<compile_context>
chip_gen: v6e
topology: v6e:2x2x1
jax: 0.10.0
libtpu: 0.0.40
codegen_flags: <defaults>
</compile_context>

<pallas_src>
import functools
import math

import jax
import jax.numpy as jnp
from jax.experimental import pallas as pl
from jax.experimental.pallas import tpu as pltpu

LATENT = 6


def _round_up(x, m):
    return ((x + m - 1) // m) * m


def _pick_tm(M):
    """Row tile: multiple of 16 (bf16 sublane packing), >=2 grid steps when M
    is big enough (v7x has 2 TensorCores sharded over the 'parallel' axis),
    capped at 1024 rows so double-buffered blocks stay far below VMEM."""
    m16 = _round_up(M, 16)
    if m16 <= 128:
        return m16
    steps = max(2, -(-m16 // 1024))
    return _round_up(-(-m16 // steps), 16)


# ----------------------- Pallas kernels -----------------------

def _mm_bias_act_kernel(x_ref, w_ref, b_ref, o_ref, *, act):
    # bf16 x bf16 -> f32 accumulate on the MXU; epilogue in f32.
    acc = jnp.dot(x_ref[...], w_ref[...], preferred_element_type=jnp.float32)
    acc = acc + b_ref[...]
    if act == "relu":
        acc = jnp.maximum(acc, 0.0)
    elif act == "sigmoid":
        acc = jax.nn.sigmoid(acc)
    o_ref[...] = acc.astype(o_ref.dtype)


def matmul_bias_act(x, w, b, act="none", out_dtype=jnp.bfloat16):
    """y = act(x @ w + b).  x:[M,K], w:[K,N], b:[N].
    K and N are NOT padded (full-array blocks); only M is padded up to the
    row tile when needed.  Operands go to bf16, accumulation is f32."""
    M, K = x.shape
    N = w.shape[1]
    x = x.astype(jnp.bfloat16)
    w = w.astype(jnp.bfloat16)
    b2 = b.astype(jnp.float32).reshape(1, N)

    TM = _pick_tm(M)
    Mp = _round_up(M, TM)
    if Mp != M:
        x = jnp.pad(x, ((0, Mp - M), (0, 0)))

    cost = pl.CostEstimate(
        flops=2 * Mp * K * N,
        transcendentals=Mp * N if act == "sigmoid" else 0,
        bytes_accessed=(Mp * K + K * N) * 2 + N * 4
        + Mp * N * jnp.dtype(out_dtype).itemsize)

    out = pl.pallas_call(
        functools.partial(_mm_bias_act_kernel, act=act),
        out_shape=jax.ShapeDtypeStruct((Mp, N), out_dtype),
        grid_spec=pltpu.PrefetchScalarGridSpec(
            num_scalar_prefetch=0,
            grid=(Mp // TM,),
            in_specs=[
                pl.BlockSpec((TM, K), lambda i: (i, 0)),
                pl.BlockSpec((K, N), lambda i: (0, 0)),
                pl.BlockSpec((1, N), lambda i: (0, 0)),
            ],
            out_specs=pl.BlockSpec((TM, N), lambda i: (i, 0)),
        ),
        compiler_params=pltpu.CompilerParams(
            dimension_semantics=("parallel",)),
        cost_estimate=cost,
    )(x, w, b2)
    return out if Mp == M else out[:M]


def _reparam_fc_kernel(mu_ref, logvar_ref, eps_ref, w_ref, b_ref, o_ref):
    # Fused reparameterization prologue + decoder fc + ReLU.
    z = mu_ref[...] + eps_ref[...] * jnp.exp(0.5 * logvar_ref[...])
    acc = jnp.dot(z.astype(w_ref.dtype), w_ref[...],
                  preferred_element_type=jnp.float32)
    acc = jnp.maximum(acc + b_ref[...], 0.0)
    o_ref[...] = acc.astype(o_ref.dtype)


def reparam_fc_relu(mu, logvar, eps, w, b, out_dtype=jnp.bfloat16):
    """relu((mu + eps*exp(0.5*logvar)) @ w + b) in a single Pallas call."""
    B, L = mu.shape
    N = w.shape[1]
    Bp = _round_up(B, 16)
    padm = lambda a: jnp.pad(a.astype(jnp.float32), ((0, Bp - B), (0, 0)))
    cost = pl.CostEstimate(
        flops=2 * Bp * L * N,
        transcendentals=Bp * L,
        bytes_accessed=3 * Bp * L * 4 + L * N * 2 + N * 4
        + Bp * N * jnp.dtype(out_dtype).itemsize)
    out = pl.pallas_call(
        _reparam_fc_kernel,
        out_shape=jax.ShapeDtypeStruct((Bp, N), out_dtype),
        cost_estimate=cost,
    )(padm(mu), padm(logvar), padm(eps),
      w.astype(jnp.bfloat16), b.astype(jnp.float32).reshape(1, N))
    return out[:B]


# ----------------------- conv glue -----------------------

def _extract_patches(x, k, stride, pad):
    # x: [B,H,W,C] -> patches [B*Ho*Wo, k*k*C], flattened in (di, dj, c) order.
    x = jnp.pad(x, ((0, 0), (pad, pad), (pad, pad), (0, 0)))
    B, Hp, Wp, C = x.shape
    Ho = (Hp - k) // stride + 1
    Wo = (Wp - k) // stride + 1
    cols = []
    for di in range(k):
        for dj in range(k):
            cols.append(
                x[:, di:di + stride * Ho:stride, dj:dj + stride * Wo:stride, :])
    p = jnp.concatenate(cols, axis=-1)
    return p.reshape(B * Ho * Wo, k * k * C), (B, Ho, Wo)


def conv2d(x, w, b, stride=2, pad=1, act="relu", out_dtype=jnp.bfloat16):
    # x: [B,H,W,Cin] NHWC ; w: PyTorch Conv2d weight [Cout,Cin,kh,kw] ; b:[Cout]
    Cout, Cin, k, _ = w.shape
    wm = jnp.transpose(w, (2, 3, 1, 0)).reshape(k * k * Cin, Cout)
    patches, (B, Ho, Wo) = _extract_patches(x.astype(jnp.bfloat16), k, stride, pad)
    y = matmul_bias_act(patches, wm, b, act=act, out_dtype=out_dtype)
    return y.reshape(B, Ho, Wo, Cout)


def conv_transpose2d(x, w, b, act="relu", out_dtype=jnp.bfloat16):
    """ConvTranspose2d(k=4, stride=2, pad=1) via polyphase decomposition.

    Output phase (pr,pc) at (m,n) = sum_{a,tb in {0,1}} of
      x_pad[m+pr+a, n+pc+tb] * W[:, :, 3-pr-2a, 3-pc-2tb]
    so one dense matmul over all (H+1)x(W+1) 2x2 windows with N = 4*Cout
    computes all four phases; phases are then interleaved into [2H, 2W].
    """
    Cin, Cout, k, _ = w.shape
    assert k == 4
    B, H, W, _ = x.shape
    x = x.astype(jnp.bfloat16)
    xp = jnp.pad(x, ((0, 0), (1, 1), (1, 1), (0, 0)))

    # 2x2 window patches at every top-left (i,j) in [0,H] x [0,W].
    cols = [xp[:, a:a + H + 1, tb:tb + W + 1, :]
            for a in range(2) for tb in range(2)]
    patches = jnp.concatenate(cols, axis=-1).reshape(
        B * (H + 1) * (W + 1), 4 * Cin)

    # Phase weights: phase (pr,pc), tap (a,tb) -> kernel (3-pr-2a, 3-pc-2tb).
    wt = jnp.transpose(w, (2, 3, 0, 1))          # [kh, kw, Cin, Cout]
    wcols = []
    for pr in range(2):
        for pc in range(2):
            taps = [wt[3 - pr - 2 * a, 3 - pc - 2 * tb]
                    for a in range(2) for tb in range(2)]
            wcols.append(jnp.stack(taps, 0).reshape(4 * Cin, Cout))
    w_all = jnp.concatenate(wcols, axis=1)        # [4*Cin, 4*Cout]
    b_all = jnp.tile(b, 4)                        # phase-major bias layout

    o = matmul_bias_act(patches, w_all, b_all, act=act, out_dtype=out_dtype)
    o = o.reshape(B, H + 1, W + 1, 2, 2, Cout)

    p00 = o[:, 0:H,     0:W,     0, 0, :]
    p01 = o[:, 0:H,     1:W + 1, 0, 1, :]
    p10 = o[:, 1:H + 1, 0:W,     1, 0, :]
    p11 = o[:, 1:H + 1, 1:W + 1, 1, 1, :]
    top = jnp.stack([p00, p01], axis=3)           # [B,H,W,2,C]
    bot = jnp.stack([p10, p11], axis=3)
    y = jnp.stack([top, bot], axis=2)             # [B,H,2,W,2,C]
    return y.reshape(B, 2 * H, 2 * W, Cout)


# ----------------------- parameters -----------------------

def init_params(key, latent=LATENT):
    keys = iter(jax.random.split(key, 32))

    def uni(shape, fan_in):
        s = 1.0 / math.sqrt(fan_in)
        return jax.random.uniform(next(keys), shape, jnp.float32, -s, s)

    def conv_p(cin, cout, k=4):
        fan = cin * k * k
        return uni((cout, cin, k, k), fan), uni((cout,), fan)

    def deconv_p(cin, cout, k=4):
        fan = cout * k * k
        return uni((cin, cout, k, k), fan), uni((cout,), fan)

    def lin_p(fin, fout):
        return uni((fout, fin), fin), uni((fout,), fin)

    return {
        "conv1": conv_p(1, 32),
        "conv2": conv_p(32, 32),
        "conv3": conv_p(32, 64),
        "conv4": conv_p(64, 64),
        "conv5": conv_p(64, 128),
        "enc_fc": lin_p(128 * 2 * 2, 2 * latent),
        "dec_fc": lin_p(latent, 128 * 2 * 2),
        "deconv1": deconv_p(128, 64),
        "deconv2": deconv_p(64, 64),
        "deconv3": deconv_p(64, 32),
        "deconv4": deconv_p(32, 32),
        "deconv5": deconv_p(32, 1),
    }


# ----------------------- forward pass -----------------------

def beta_vae_forward(params, x_nchw, eps, latent=LATENT):
    # ---- encoder ----
    x = jnp.transpose(x_nchw, (0, 2, 3, 1))            # NCHW -> NHWC
    h = conv2d(x, *params["conv1"], act="relu")
    h = conv2d(h, *params["conv2"], act="relu")
    h = conv2d(h, *params["conv3"], act="relu")
    h = conv2d(h, *params["conv4"], act="relu")
    h = conv2d(h, *params["conv5"], act="relu")
    B = h.shape[0]
    # flatten in PyTorch (C,H,W) order to match nn.Linear semantics
    hf = jnp.transpose(h, (0, 3, 1, 2)).reshape(B, 128 * 2 * 2)
    w, b = params["enc_fc"]
    latent_vec = matmul_bias_act(hf, w.T, b, act="none", out_dtype=jnp.float32)
    mu = latent_vec[:, :latent]
    logvar = latent_vec[:, latent:]

    # ---- reparameterize fused into the decoder fc (+ ReLU) ----
    wd, bd = params["dec_fc"]
    d = reparam_fc_relu(mu, logvar, eps, wd.T, bd)      # [B, 512] bf16
    d = d.reshape(B, 128, 2, 2)                         # Unflatten (C,H,W)
    d = jnp.transpose(d, (0, 2, 3, 1))                  # -> NHWC

    # ---- decoder ----
    d = conv_transpose2d(d, *params["deconv1"], act="relu")
    d = conv_transpose2d(d, *params["deconv2"], act="relu")
    d = conv_transpose2d(d, *params["deconv3"], act="relu")
    d = conv_transpose2d(d, *params["deconv4"], act="relu")
    d = conv_transpose2d(d, *params["deconv5"], act="sigmoid",
                         out_dtype=jnp.float32)
    recon = jnp.transpose(d, (0, 3, 1, 2))              # back to NCHW
    return recon, mu, logvar


if __name__ == "__main__":
    key = jax.random.PRNGKey(0)
    kp, kx, ke = jax.random.split(key, 3)
    params = init_params(kp)

    B = 2
    # 5 stride-2 convs require 64x64 input so the bottleneck is 128x2x2.
    x = jax.random.uniform(kx, (B, 1, 64, 64), dtype=jnp.float32)
    eps = jax.random.normal(ke, (B, LATENT), dtype=jnp.float32)

    fwd = jax.jit(functools.partial(beta_vae_forward, params))
    recon, mu, logvar = fwd(x, eps)
    jax.block_until_ready((recon, mu, logvar))

    assert recon.shape == (B, 1, 64, 64)
    assert mu.shape == (B, LATENT) and logvar.shape == (B, LATENT)
    assert bool(jnp.all((recon >= 0.0) & (recon <= 1.0)))
    print("KERNEL_OK")
</pallas_src>

<mosaic_0001>
module attributes {stable_mosaic.version = 11 : i64} {
  func.func @_mm_bias_act_kernel(%arg0: i32, %arg1: memref<1024x16xbf16, #tpu.memory_space<vmem>>, %arg2: memref<16x32xbf16, #tpu.memory_space<vmem>>, %arg3: memref<1x32xf32, #tpu.memory_space<vmem>>, %arg4: memref<1024x32xbf16, #tpu.memory_space<vmem>>) attributes {dimension_semantics = [#tpu.dimension_semantics<parallel>], iteration_bounds = array<i64: 2>, scalar_prefetch = 0 : i64, scratch_operands = 0 : i64, tpu.core_type = #tpu.core_type<tc>, window_params = [{transform_indices = @transform_0, window_bounds = array<i64: 1024, 16>}, {pipeline_mode = #tpu.pipeline_mode<synchronous>, transform_indices = @transform_1, window_bounds = array<i64: 16, 32>}, {pipeline_mode = #tpu.pipeline_mode<synchronous>, transform_indices = @transform_2, window_bounds = array<i64: 1, 32>}, {transform_indices = @transform_3, window_bounds = array<i64: 1024, 32>}]} {
    %c0 = arith.constant 0 : index
    %c0_0 = arith.constant 0 : index
    %0 = vector.load %arg1[%c0, %c0_0] : memref<1024x16xbf16, #tpu.memory_space<vmem>>, vector<1024x16xbf16>
    %c0_1 = arith.constant 0 : index
    %c0_2 = arith.constant 0 : index
    %1 = vector.load %arg2[%c0_1, %c0_2] : memref<16x32xbf16, #tpu.memory_space<vmem>>, vector<16x32xbf16>
    %cst = arith.constant dense<0.000000e+00> : vector<1024x32xf32>
    %2 = tpu.matmul %0, %1, %cst {dimension_numbers = #tpu.dot_dimension_numbers<[1], [0], [0], [1], [0, 0, 1, 1], [], []>} : vector<1024x16xbf16>, vector<16x32xbf16>, vector<1024x32xf32> -> vector<1024x32xf32>
    %c0_3 = arith.constant 0 : index
    %c0_4 = arith.constant 0 : index
    %3 = vector.load %arg3[%c0_3, %c0_4] : memref<1x32xf32, #tpu.memory_space<vmem>>, vector<1x32xf32>
    %4 = vector.broadcast %3 : vector<1x32xf32> to vector<1024x32xf32>
    %5 = arith.addf %2, %4 : vector<1024x32xf32>
    %cst_5 = arith.constant 0.000000e+00 : f32
    %6 = vector.broadcast %cst_5 : f32 to vector<1024x32xf32>
    %7 = arith.maximumf %5, %6 : vector<1024x32xf32>
    %8 = arith.truncf %7 : vector<1024x32xf32> to vector<1024x32xbf16>
    %c0_6 = arith.constant 0 : index
    %c0_7 = arith.constant 0 : index
    %9 = vector.load %arg4[%c0_6, %c0_7] : memref<1024x32xbf16, #tpu.memory_space<vmem>>, vector<1024x32xbf16>
    tpu.vector_store %arg4[%c0_6, %c0_7], %8 {strides = array<i32>} : memref<1024x32xbf16, #tpu.memory_space<vmem>>, vector<1024x32xbf16>,
    return
  }
  func.func @transform_0(%arg0: i32) -> (i32, i32) {
    %c0_i32 = arith.constant 0 : i32
    %c0_i32_0 = arith.constant 0 : i32
    return %arg0, %c0_i32 : i32, i32
  }
  func.func @transform_1(%arg0: i32) -> (i32, i32) {
    %c0_i32 = arith.constant 0 : i32
    %c0_i32_0 = arith.constant 0 : i32
    %c0_i32_1 = arith.constant 0 : i32
    return %c0_i32, %c0_i32_0 : i32, i32
  }
  func.func @transform_2(%arg0: i32) -> (i32, i32) {
    %c0_i32 = arith.constant 0 : i32
    %c0_i32_0 = arith.constant 0 : i32
    %c0_i32_1 = arith.constant 0 : i32
    return %c0_i32, %c0_i32_0 : i32, i32
  }
  func.func @transform_3(%arg0: i32) -> (i32, i32) {
    %c0_i32 = arith.constant 0 : i32
    %c0_i32_0 = arith.constant 0 : i32
    return %arg0, %c0_i32 : i32, i32
  }
}

module attributes {stable_mosaic.version = 11 : i64} {
  func.func @_mm_bias_act_kernel(%arg0: i32, %arg1: memref<256x512xbf16, #tpu.memory_space<vmem>>, %arg2: memref<512x32xbf16, #tpu.memory_space<vmem>>, %arg3: memref<1x32xf32, #tpu.memory_space<vmem>>, %arg4: memref<256x32xbf16, #tpu.memory_space<vmem>>) attributes {dimension_semantics = [#tpu.dimension_semantics<parallel>], iteration_bounds = array<i64: 2>, scalar_prefetch = 0 : i64, scratch_operands = 0 : i64, tpu.core_type = #tpu.core_type<tc>, window_params = [{transform_indices = @transform_0, window_bounds = array<i64: 256, 512>}, {pipeline_mode = #tpu.pipeline_mode<synchronous>, transform_indices = @transform_1, window_bounds = array<i64: 512, 32>}, {pipeline_mode = #tpu.pipeline_mode<synchronous>, transform_indices = @transform_2, window_bounds = array<i64: 1, 32>}, {transform_indices = @transform_3, window_bounds = array<i64: 256, 32>}]} {
    %c0 = arith.constant 0 : index
    %c0_0 = arith.constant 0 : index
    %0 = vector.load %arg1[%c0, %c0_0] : memref<256x512xbf16, #tpu.memory_space<vmem>>, vector<256x512xbf16>
    %c0_1 = arith.constant 0 : index
    %c0_2 = arith.constant 0 : index
    %1 = vector.load %arg2[%c0_1, %c0_2] : memref<512x32xbf16, #tpu.memory_space<vmem>>, vector<512x32xbf16>
    %cst = arith.constant dense<0.000000e+00> : vector<256x32xf32>
    %2 = tpu.matmul %0, %1, %cst {dimension_numbers = #tpu.dot_dimension_numbers<[1], [0], [0], [1], [0, 0, 1, 1], [], []>} : vector<256x512xbf16>, vector<512x32xbf16>, vector<256x32xf32> -> vector<256x32xf32>
    %c0_3 = arith.constant 0 : index
    %c0_4 = arith.constant 0 : index
    %3 = vector.load %arg3[%c0_3, %c0_4] : memref<1x32xf32, #tpu.memory_space<vmem>>, vector<1x32xf32>
    %4 = vector.broadcast %3 : vector<1x32xf32> to vector<256x32xf32>
    %5 = arith.addf %2, %4 : vector<256x32xf32>
    %cst_5 = arith.constant 0.000000e+00 : f32
    %6 = vector.broadcast %cst_5 : f32 to vector<256x32xf32>
    %7 = arith.maximumf %5, %6 : vector<256x32xf32>
    %8 = arith.truncf %7 : vector<256x32xf32> to vector<256x32xbf16>
    %c0_6 = arith.constant 0 : index
    %c0_7 = arith.constant 0 : index
    %9 = vector.load %arg4[%c0_6, %c0_7] : memref<256x32xbf16, #tpu.memory_space<vmem>>, vector<256x32xbf16>
    tpu.vector_store %arg4[%c0_6, %c0_7], %8 {strides = array<i32>} : memref<256x32xbf16, #tpu.memory_space<vmem>>, vector<256x32xbf16>,
    return
  }
  func.func @transform_0(%arg0: i32) -> (i32, i32) {
    %c0_i32 = arith.constant 0 : i32
    %c0_i32_0 = arith.constant 0 : i32
    return %arg0, %c0_i32 : i32, i32
  }
  func.func @transform_1(%arg0: i32) -> (i32, i32) {
    %c0_i32 = arith.constant 0 : i32
    %c0_i32_0 = arith.constant 0 : i32
    %c0_i32_1 = arith.constant 0 : i32
    return %c0_i32, %c0_i32_0 : i32, i32
  }
  func.func @transform_2(%arg0: i32) -> (i32, i32) {
    %c0_i32 = arith.constant 0 : i32
    %c0_i32_0 = arith.constant 0 : i32
    %c0_i32_1 = arith.constant 0 : i32
    return %c0_i32, %c0_i32_0 : i32, i32
  }
  func.func @transform_3(%arg0: i32) -> (i32, i32) {
    %c0_i32 = arith.constant 0 : i32
    %c0_i32_0 = arith.constant 0 : i32
    return %arg0, %c0_i32 : i32, i32
  }
}

module attributes {stable_mosaic.version = 11 : i64} {
  func.func @_mm_bias_act_kernel(%arg0: i32, %arg1: memref<128x512xbf16, #tpu.memory_space<vmem>>, %arg2: memref<512x64xbf16, #tpu.memory_space<vmem>>, %arg3: memref<1x64xf32, #tpu.memory_space<vmem>>, %arg4: memref<128x64xbf16, #tpu.memory_space<vmem>>) attributes {dimension_semantics = [#tpu.dimension_semantics<parallel>], iteration_bounds = array<i64: 1>, scalar_prefetch = 0 : i64, scratch_operands = 0 : i64, tpu.core_type = #tpu.core_type<tc>, window_params = [{transform_indices = @transform_0, window_bounds = array<i64: 128, 512>}, {pipeline_mode = #tpu.pipeline_mode<synchronous>, transform_indices = @transform_1, window_bounds = array<i64: 512, 64>}, {pipeline_mode = #tpu.pipeline_mode<synchronous>, transform_indices = @transform_2, window_bounds = array<i64: 1, 64>}, {transform_indices = @transform_3, window_bounds = array<i64: 128, 64>}]} {
    %c0 = arith.constant 0 : index
    %c0_0 = arith.constant 0 : index
    %0 = vector.load %arg1[%c0, %c0_0] : memref<128x512xbf16, #tpu.memory_space<vmem>>, vector<128x512xbf16>
    %c0_1 = arith.constant 0 : index
    %c0_2 = arith.constant 0 : index
    %1 = vector.load %arg2[%c0_1, %c0_2] : memref<512x64xbf16, #tpu.memory_space<vmem>>, vector<512x64xbf16>
    %cst = arith.constant dense<0.000000e+00> : vector<128x64xf32>
    %2 = tpu.matmul %0, %1, %cst {dimension_numbers = #tpu.dot_dimension_numbers<[1], [0], [0], [1], [0, 0, 1, 1], [], []>} : vector<128x512xbf16>, vector<512x64xbf16>, vector<128x64xf32> -> vector<128x64xf32>
    %c0_3 = arith.constant 0 : index
    %c0_4 = arith.constant 0 : index
    %3 = vector.load %arg3[%c0_3, %c0_4] : memref<1x64xf32, #tpu.memory_space<vmem>>, vector<1x64xf32>
    %4 = vector.broadcast %3 : vector<1x64xf32> to vector<128x64xf32>
    %5 = arith.addf %2, %4 : vector<128x64xf32>
    %cst_5 = arith.constant 0.000000e+00 : f32
    %6 = vector.broadcast %cst_5 : f32 to vector<128x64xf32>
    %7 = arith.maximumf %5, %6 : vector<128x64xf32>
    %8 = arith.truncf %7 : vector<128x64xf32> to vector<128x64xbf16>
    %c0_6 = arith.constant 0 : index
    %c0_7 = arith.constant 0 : index
    %9 = vector.load %arg4[%c0_6, %c0_7] : memref<128x64xbf16, #tpu.memory_space<vmem>>, vector<128x64xbf16>
    tpu.vector_store %arg4[%c0_6, %c0_7], %8 {strides = array<i32>} : memref<128x64xbf16, #tpu.memory_space<vmem>>, vector<128x64xbf16>,
    return
  }
  func.func @transform_0(%arg0: i32) -> (i32, i32) {
    %c0_i32 = arith.constant 0 : i32
    %c0_i32_0 = arith.constant 0 : i32
    return %arg0, %c0_i32 : i32, i32
  }
  func.func @transform_1(%arg0: i32) -> (i32, i32) {
    %c0_i32 = arith.constant 0 : i32
    %c0_i32_0 = arith.constant 0 : i32
    %c0_i32_1 = arith.constant 0 : i32
    return %c0_i32, %c0_i32_0 : i32, i32
  }
  func.func @transform_2(%arg0: i32) -> (i32, i32) {
    %c0_i32 = arith.constant 0 : i32
    %c0_i32_0 = arith.constant 0 : i32
    %c0_i32_1 = arith.constant 0 : i32
    return %c0_i32, %c0_i32_0 : i32, i32
  }
  func.func @transform_3(%arg0: i32) -> (i32, i32) {
    %c0_i32 = arith.constant 0 : i32
    %c0_i32_0 = arith.constant 0 : i32
    return %arg0, %c0_i32 : i32, i32
  }
}

module attributes {stable_mosaic.version = 11 : i64} {
  func.func @_mm_bias_act_kernel(%arg0: i32, %arg1: memref<32x1024xbf16, #tpu.memory_space<vmem>>, %arg2: memref<1024x64xbf16, #tpu.memory_space<vmem>>, %arg3: memref<1x64xf32, #tpu.memory_space<vmem>>, %arg4: memref<32x64xbf16, #tpu.memory_space<vmem>>) attributes {dimension_semantics = [#tpu.dimension_semantics<parallel>], iteration_bounds = array<i64: 1>, scalar_prefetch = 0 : i64, scratch_operands = 0 : i64, tpu.core_type = #tpu.core_type<tc>, window_params = [{transform_indices = @transform_0, window_bounds = array<i64: 32, 1024>}, {pipeline_mode = #tpu.pipeline_mode<synchronous>, transform_indices = @transform_1, window_bounds = array<i64: 1024, 64>}, {pipeline_mode = #tpu.pipeline_mode<synchronous>, transform_indices = @transform_2, window_bounds = array<i64: 1, 64>}, {transform_indices = @transform_3, window_bounds = array<i64: 32, 64>}]} {
    %c0 = arith.constant 0 : index
    %c0_0 = arith.constant 0 : index
    %0 = vector.load %arg1[%c0, %c0_0] : memref<32x1024xbf16, #tpu.memory_space<vmem>>, vector<32x1024xbf16>
    %c0_1 = arith.constant 0 : index
    %c0_2 = arith.constant 0 : index
    %1 = vector.load %arg2[%c0_1, %c0_2] : memref<1024x64xbf16, #tpu.memory_space<vmem>>, vector<1024x64xbf16>
    %cst = arith.constant dense<0.000000e+00> : vector<32x64xf32>
    %2 = tpu.matmul %0, %1, %cst {dimension_numbers = #tpu.dot_dimension_numbers<[1], [0], [0], [1], [0, 0, 1, 1], [], []>} : vector<32x1024xbf16>, vector<1024x64xbf16>, vector<32x64xf32> -> vector<32x64xf32>
    %c0_3 = arith.constant 0 : index
    %c0_4 = arith.constant 0 : index
    %3 = vector.load %arg3[%c0_3, %c0_4] : memref<1x64xf32, #tpu.memory_space<vmem>>, vector<1x64xf32>
    %4 = vector.broadcast %3 : vector<1x64xf32> to vector<32x64xf32>
    %5 = arith.addf %2, %4 : vector<32x64xf32>
    %cst_5 = arith.constant 0.000000e+00 : f32
    %6 = vector.broadcast %cst_5 : f32 to vector<32x64xf32>
    %7 = arith.maximumf %5, %6 : vector<32x64xf32>
    %8 = arith.truncf %7 : vector<32x64xf32> to vector<32x64xbf16>
    %c0_6 = arith.constant 0 : index
    %c0_7 = arith.constant 0 : index
    %9 = vector.load %arg4[%c0_6, %c0_7] : memref<32x64xbf16, #tpu.memory_space<vmem>>, vector<32x64xbf16>
    tpu.vector_store %arg4[%c0_6, %c0_7], %8 {strides = array<i32>} : memref<32x64xbf16, #tpu.memory_space<vmem>>, vector<32x64xbf16>,
    return
  }
  func.func @transform_0(%arg0: i32) -> (i32, i32) {
    %c0_i32 = arith.constant 0 : i32
    %c0_i32_0 = arith.constant 0 : i32
    return %arg0, %c0_i32 : i32, i32
  }
  func.func @transform_1(%arg0: i32) -> (i32, i32) {
    %c0_i32 = arith.constant 0 : i32
    %c0_i32_0 = arith.constant 0 : i32
    %c0_i32_1 = arith.constant 0 : i32
    return %c0_i32, %c0_i32_0 : i32, i32
  }
  func.func @transform_2(%arg0: i32) -> (i32, i32) {
    %c0_i32 = arith.constant 0 : i32
    %c0_i32_0 = arith.constant 0 : i32
    %c0_i32_1 = arith.constant 0 : i32
    return %c0_i32, %c0_i32_0 : i32, i32
  }
  func.func @transform_3(%arg0: i32) -> (i32, i32) {
    %c0_i32 = arith.constant 0 : i32
    %c0_i32_0 = arith.constant 0 : i32
    return %arg0, %c0_i32 : i32, i32
  }
}

module attributes {stable_mosaic.version = 11 : i64} {
  func.func @_mm_bias_act_kernel(%arg0: i32, %arg1: memref<16x1024xbf16, #tpu.memory_space<vmem>>, %arg2: memref<1024x128xbf16, #tpu.memory_space<vmem>>, %arg3: memref<1x128xf32, #tpu.memory_space<vmem>>, %arg4: memref<16x128xbf16, #tpu.memory_space<vmem>>) attributes {dimension_semantics = [#tpu.dimension_semantics<parallel>], iteration_bounds = array<i64: 1>, scalar_prefetch = 0 : i64, scratch_operands = 0 : i64, tpu.core_type = #tpu.core_type<tc>, window_params = [{transform_indices = @transform_0, window_bounds = array<i64: 16, 1024>}, {pipeline_mode = #tpu.pipeline_mode<synchronous>, transform_indices = @transform_1, window_bounds = array<i64: 1024, 128>}, {pipeline_mode = #tpu.pipeline_mode<synchronous>, transform_indices = @transform_2, window_bounds = array<i64: 1, 128>}, {transform_indices = @transform_3, window_bounds = array<i64: 16, 128>}]} {
    %c0 = arith.constant 0 : index
    %c0_0 = arith.constant 0 : index
    %0 = vector.load %arg1[%c0, %c0_0] : memref<16x1024xbf16, #tpu.memory_space<vmem>>, vector<16x1024xbf16>
    %c0_1 = arith.constant 0 : index
    %c0_2 = arith.constant 0 : index
    %1 = vector.load %arg2[%c0_1, %c0_2] : memref<1024x128xbf16, #tpu.memory_space<vmem>>, vector<1024x128xbf16>
    %cst = arith.constant dense<0.000000e+00> : vector<16x128xf32>
    %2 = tpu.matmul %0, %1, %cst {dimension_numbers = #tpu.dot_dimension_numbers<[1], [0], [0], [1], [0, 0, 1, 1], [], []>} : vector<16x1024xbf16>, vector<1024x128xbf16>, vector<16x128xf32> -> vector<16x128xf32>
    %c0_3 = arith.constant 0 : index
    %c0_4 = arith.constant 0 : index
    %3 = vector.load %arg3[%c0_3, %c0_4] : memref<1x128xf32, #tpu.memory_space<vmem>>, vector<1x128xf32>
    %4 = vector.broadcast %3 : vector<1x128xf32> to vector<16x128xf32>
    %5 = arith.addf %2, %4 : vector<16x128xf32>
    %cst_5 = arith.constant 0.000000e+00 : f32
    %6 = vector.broadcast %cst_5 : f32 to vector<16x128xf32>
    %7 = arith.maximumf %5, %6 : vector<16x128xf32>
    %8 = arith.truncf %7 : vector<16x128xf32> to vector<16x128xbf16>
    %c0_6 = arith.constant 0 : index
    %c0_7 = arith.constant 0 : index
    %9 = vector.load %arg4[%c0_6, %c0_7] : memref<16x128xbf16, #tpu.memory_space<vmem>>, vector<16x128xbf16>
    tpu.vector_store %arg4[%c0_6, %c0_7], %8 {strides = array<i32>} : memref<16x128xbf16, #tpu.memory_space<vmem>>, vector<16x128xbf16>,
    return
  }
  func.func @transform_0(%arg0: i32) -> (i32, i32) {
    %c0_i32 = arith.constant 0 : i32
    %c0_i32_0 = arith.constant 0 : i32
    return %arg0, %c0_i32 : i32, i32
  }
  func.func @transform_1(%arg0: i32) -> (i32, i32) {
    %c0_i32 = arith.constant 0 : i32
    %c0_i32_0 = arith.constant 0 : i32
    %c0_i32_1 = arith.constant 0 : i32
    return %c0_i32, %c0_i32_0 : i32, i32
  }
  func.func @transform_2(%arg0: i32) -> (i32, i32) {
    %c0_i32 = arith.constant 0 : i32
    %c0_i32_0 = arith.constant 0 : i32
    %c0_i32_1 = arith.constant 0 : i32
    return %c0_i32, %c0_i32_0 : i32, i32
  }
  func.func @transform_3(%arg0: i32) -> (i32, i32) {
    %c0_i32 = arith.constant 0 : i32
    %c0_i32_0 = arith.constant 0 : i32
    return %arg0, %c0_i32 : i32, i32
  }
}

module attributes {stable_mosaic.version = 11 : i64} {
  func.func @_mm_bias_act_kernel(%arg0: i32, %arg1: memref<16x512xbf16, #tpu.memory_space<vmem>>, %arg2: memref<512x12xbf16, #tpu.memory_space<vmem>>, %arg3: memref<1x12xf32, #tpu.memory_space<vmem>>, %arg4: memref<16x12xf32, #tpu.memory_space<vmem>>) attributes {dimension_semantics = [#tpu.dimension_semantics<parallel>], iteration_bounds = array<i64: 1>, scalar_prefetch = 0 : i64, scratch_operands = 0 : i64, tpu.core_type = #tpu.core_type<tc>, window_params = [{transform_indices = @transform_0, window_bounds = array<i64: 16, 512>}, {pipeline_mode = #tpu.pipeline_mode<synchronous>, transform_indices = @transform_1, window_bounds = array<i64: 512, 12>}, {pipeline_mode = #tpu.pipeline_mode<synchronous>, transform_indices = @transform_2, window_bounds = array<i64: 1, 12>}, {transform_indices = @transform_3, window_bounds = array<i64: 16, 12>}]} {
    %c0 = arith.constant 0 : index
    %c0_0 = arith.constant 0 : index
    %0 = vector.load %arg1[%c0, %c0_0] : memref<16x512xbf16, #tpu.memory_space<vmem>>, vector<16x512xbf16>
    %c0_1 = arith.constant 0 : index
    %c0_2 = arith.constant 0 : index
    %1 = vector.load %arg2[%c0_1, %c0_2] : memref<512x12xbf16, #tpu.memory_space<vmem>>, vector<512x12xbf16>
    %cst = arith.constant dense<0.000000e+00> : vector<16x12xf32>
    %2 = tpu.matmul %0, %1, %cst {dimension_numbers = #tpu.dot_dimension_numbers<[1], [0], [0], [1], [0, 0, 1, 1], [], []>} : vector<16x512xbf16>, vector<512x12xbf16>, vector<16x12xf32> -> vector<16x12xf32>
    %c0_3 = arith.constant 0 : index
    %c0_4 = arith.constant 0 : index
    %3 = vector.load %arg3[%c0_3, %c0_4] : memref<1x12xf32, #tpu.memory_space<vmem>>, vector<1x12xf32>
    %4 = vector.broadcast %3 : vector<1x12xf32> to vector<16x12xf32>
    %5 = arith.addf %2, %4 : vector<16x12xf32>
    %c0_5 = arith.constant 0 : index
    %c0_6 = arith.constant 0 : index
    %6 = vector.load %arg4[%c0_5, %c0_6] : memref<16x12xf32, #tpu.memory_space<vmem>>, vector<16x12xf32>
    tpu.vector_store %arg4[%c0_5, %c0_6], %5 {strides = array<i32>} : memref<16x12xf32, #tpu.memory_space<vmem>>, vector<16x12xf32>,
    return
  }
  func.func @transform_0(%arg0: i32) -> (i32, i32) {
    %c0_i32 = arith.constant 0 : i32
    %c0_i32_0 = arith.constant 0 : i32
    return %arg0, %c0_i32 : i32, i32
  }
  func.func @transform_1(%arg0: i32) -> (i32, i32) {
    %c0_i32 = arith.constant 0 : i32
    %c0_i32_0 = arith.constant 0 : i32
    %c0_i32_1 = arith.constant 0 : i32
    return %c0_i32, %c0_i32_0 : i32, i32
  }
  func.func @transform_2(%arg0: i32) -> (i32, i32) {
    %c0_i32 = arith.constant 0 : i32
    %c0_i32_0 = arith.constant 0 : i32
    %c0_i32_1 = arith.constant 0 : i32
    return %c0_i32, %c0_i32_0 : i32, i32
  }
  func.func @transform_3(%arg0: i32) -> (i32, i32) {
    %c0_i32 = arith.constant 0 : i32
    %c0_i32_0 = arith.constant 0 : i32
    return %arg0, %c0_i32 : i32, i32
  }
}

module attributes {stable_mosaic.version = 11 : i64} {
  func.func @_reparam_fc_kernel(%arg0: memref<16x6xf32, #tpu.memory_space<vmem>>, %arg1: memref<16x6xf32, #tpu.memory_space<vmem>>, %arg2: memref<16x6xf32, #tpu.memory_space<vmem>>, %arg3: memref<6x512xbf16, #tpu.memory_space<vmem>>, %arg4: memref<1x512xf32, #tpu.memory_space<vmem>>, %arg5: memref<16x512xbf16, #tpu.memory_space<vmem>>) attributes {dimension_semantics = [], scalar_prefetch = 0 : i64, scratch_operands = 0 : i64, tpu.core_type = #tpu.core_type<tc>} {
    %c0 = arith.constant 0 : index
    %c0_0 = arith.constant 0 : index
    %0 = vector.load %arg0[%c0, %c0_0] : memref<16x6xf32, #tpu.memory_space<vmem>>, vector<16x6xf32>
    %c0_1 = arith.constant 0 : index
    %c0_2 = arith.constant 0 : index
    %1 = vector.load %arg2[%c0_1, %c0_2] : memref<16x6xf32, #tpu.memory_space<vmem>>, vector<16x6xf32>
    %c0_3 = arith.constant 0 : index
    %c0_4 = arith.constant 0 : index
    %2 = vector.load %arg1[%c0_3, %c0_4] : memref<16x6xf32, #tpu.memory_space<vmem>>, vector<16x6xf32>
    %cst = arith.constant 5.000000e-01 : f32
    %3 = vector.broadcast %cst : f32 to vector<16x6xf32>
    %4 = arith.mulf %3, %2 : vector<16x6xf32>
    %5 = math.exp %4 : vector<16x6xf32>
    %6 = arith.mulf %1, %5 : vector<16x6xf32>
    %7 = arith.addf %0, %6 : vector<16x6xf32>
    %8 = arith.truncf %7 : vector<16x6xf32> to vector<16x6xbf16>
    %c0_5 = arith.constant 0 : index
    %c0_6 = arith.constant 0 : index
    %9 = vector.load %arg3[%c0_5, %c0_6] : memref<6x512xbf16, #tpu.memory_space<vmem>>, vector<6x512xbf16>
    %cst_7 = arith.constant dense<0.000000e+00> : vector<16x512xf32>
    %10 = tpu.matmul %8, %9, %cst_7 {dimension_numbers = #tpu.dot_dimension_numbers<[1], [0], [0], [1], [0, 0, 1, 1], [], []>} : vector<16x6xbf16>, vector<6x512xbf16>, vector<16x512xf32> -> vector<16x512xf32>
    %c0_8 = arith.constant 0 : index
    %c0_9 = arith.constant 0 : index
    %11 = vector.load %arg4[%c0_8, %c0_9] : memref<1x512xf32, #tpu.memory_space<vmem>>, vector<1x512xf32>
    %12 = vector.broadcast %11 : vector<1x512xf32> to vector<16x512xf32>
    %13 = arith.addf %10, %12 : vector<16x512xf32>
    %cst_10 = arith.constant 0.000000e+00 : f32
    %14 = vector.broadcast %cst_10 : f32 to vector<16x512xf32>
    %15 = arith.maximumf %13, %14 : vector<16x512xf32>
    %16 = arith.truncf %15 : vector<16x512xf32> to vector<16x512xbf16>
    %c0_11 = arith.constant 0 : index
    %c0_12 = arith.constant 0 : index
    %17 = vector.load %arg5[%c0_11, %c0_12] : memref<16x512xbf16, #tpu.memory_space<vmem>>, vector<16x512xbf16>
    tpu.vector_store %arg5[%c0_11, %c0_12], %16 {strides = array<i32>} : memref<16x512xbf16, #tpu.memory_space<vmem>>, vector<16x512xbf16>,
    return
  }
}

module attributes {stable_mosaic.version = 11 : i64} {
  func.func @_mm_bias_act_kernel(%arg0: i32, %arg1: memref<32x512xbf16, #tpu.memory_space<vmem>>, %arg2: memref<512x256xbf16, #tpu.memory_space<vmem>>, %arg3: memref<1x256xf32, #tpu.memory_space<vmem>>, %arg4: memref<32x256xbf16, #tpu.memory_space<vmem>>) attributes {dimension_semantics = [#tpu.dimension_semantics<parallel>], iteration_bounds = array<i64: 1>, scalar_prefetch = 0 : i64, scratch_operands = 0 : i64, tpu.core_type = #tpu.core_type<tc>, window_params = [{transform_indices = @transform_0, window_bounds = array<i64: 32, 512>}, {pipeline_mode = #tpu.pipeline_mode<synchronous>, transform_indices = @transform_1, window_bounds = array<i64: 512, 256>}, {pipeline_mode = #tpu.pipeline_mode<synchronous>, transform_indices = @transform_2, window_bounds = array<i64: 1, 256>}, {transform_indices = @transform_3, window_bounds = array<i64: 32, 256>}]} {
    %c0 = arith.constant 0 : index
    %c0_0 = arith.constant 0 : index
    %0 = vector.load %arg1[%c0, %c0_0] : memref<32x512xbf16, #tpu.memory_space<vmem>>, vector<32x512xbf16>
    %c0_1 = arith.constant 0 : index
    %c0_2 = arith.constant 0 : index
    %1 = vector.load %arg2[%c0_1, %c0_2] : memref<512x256xbf16, #tpu.memory_space<vmem>>, vector<512x256xbf16>
    %cst = arith.constant dense<0.000000e+00> : vector<32x256xf32>
    %2 = tpu.matmul %0, %1, %cst {dimension_numbers = #tpu.dot_dimension_numbers<[1], [0], [0], [1], [0, 0, 1, 1], [], []>} : vector<32x512xbf16>, vector<512x256xbf16>, vector<32x256xf32> -> vector<32x256xf32>
    %c0_3 = arith.constant 0 : index
    %c0_4 = arith.constant 0 : index
    %3 = vector.load %arg3[%c0_3, %c0_4] : memref<1x256xf32, #tpu.memory_space<vmem>>, vector<1x256xf32>
    %4 = vector.broadcast %3 : vector<1x256xf32> to vector<32x256xf32>
    %5 = arith.addf %2, %4 : vector<32x256xf32>
    %cst_5 = arith.constant 0.000000e+00 : f32
    %6 = vector.broadcast %cst_5 : f32 to vector<32x256xf32>
    %7 = arith.maximumf %5, %6 : vector<32x256xf32>
    %8 = arith.truncf %7 : vector<32x256xf32> to vector<32x256xbf16>
    %c0_6 = arith.constant 0 : index
    %c0_7 = arith.constant 0 : index
    %9 = vector.load %arg4[%c0_6, %c0_7] : memref<32x256xbf16, #tpu.memory_space<vmem>>, vector<32x256xbf16>
    tpu.vector_store %arg4[%c0_6, %c0_7], %8 {strides = array<i32>} : memref<32x256xbf16, #tpu.memory_space<vmem>>, vector<32x256xbf16>,
    return
  }
  func.func @transform_0(%arg0: i32) -> (i32, i32) {
    %c0_i32 = arith.constant 0 : i32
    %c0_i32_0 = arith.constant 0 : i32
    return %arg0, %c0_i32 : i32, i32
  }
  func.func @transform_1(%arg0: i32) -> (i32, i32) {
    %c0_i32 = arith.constant 0 : i32
    %c0_i32_0 = arith.constant 0 : i32
    %c0_i32_1 = arith.constant 0 : i32
    return %c0_i32, %c0_i32_0 : i32, i32
  }
  func.func @transform_2(%arg0: i32) -> (i32, i32) {
    %c0_i32 = arith.constant 0 : i32
    %c0_i32_0 = arith.constant 0 : i32
    %c0_i32_1 = arith.constant 0 : i32
    return %c0_i32, %c0_i32_0 : i32, i32
  }
  func.func @transform_3(%arg0: i32) -> (i32, i32) {
    %c0_i32 = arith.constant 0 : i32
    %c0_i32_0 = arith.constant 0 : i32
    return %arg0, %c0_i32 : i32, i32
  }
}

module attributes {stable_mosaic.version = 11 : i64} {
  func.func @_mm_bias_act_kernel(%arg0: i32, %arg1: memref<64x256xbf16, #tpu.memory_space<vmem>>, %arg2: memref<256x256xbf16, #tpu.memory_space<vmem>>, %arg3: memref<1x256xf32, #tpu.memory_space<vmem>>, %arg4: memref<64x256xbf16, #tpu.memory_space<vmem>>) attributes {dimension_semantics = [#tpu.dimension_semantics<parallel>], iteration_bounds = array<i64: 1>, scalar_prefetch = 0 : i64, scratch_operands = 0 : i64, tpu.core_type = #tpu.core_type<tc>, window_params = [{transform_indices = @transform_0, window_bounds = array<i64: 64, 256>}, {pipeline_mode = #tpu.pipeline_mode<synchronous>, transform_indices = @transform_1, window_bounds = array<i64: 256, 256>}, {pipeline_mode = #tpu.pipeline_mode<synchronous>, transform_indices = @transform_2, window_bounds = array<i64: 1, 256>}, {transform_indices = @transform_3, window_bounds = array<i64: 64, 256>}]} {
    %c0 = arith.constant 0 : index
    %c0_0 = arith.constant 0 : index
    %0 = vector.load %arg1[%c0, %c0_0] : memref<64x256xbf16, #tpu.memory_space<vmem>>, vector<64x256xbf16>
    %c0_1 = arith.constant 0 : index
    %c0_2 = arith.constant 0 : index
    %1 = vector.load %arg2[%c0_1, %c0_2] : memref<256x256xbf16, #tpu.memory_space<vmem>>, vector<256x256xbf16>
    %cst = arith.constant dense<0.000000e+00> : vector<64x256xf32>
    %2 = tpu.matmul %0, %1, %cst {dimension_numbers = #tpu.dot_dimension_numbers<[1], [0], [0], [1], [0, 0, 1, 1], [], []>} : vector<64x256xbf16>, vector<256x256xbf16>, vector<64x256xf32> -> vector<64x256xf32>
    %c0_3 = arith.constant 0 : index
    %c0_4 = arith.constant 0 : index
    %3 = vector.load %arg3[%c0_3, %c0_4] : memref<1x256xf32, #tpu.memory_space<vmem>>, vector<1x256xf32>
    %4 = vector.broadcast %3 : vector<1x256xf32> to vector<64x256xf32>
    %5 = arith.addf %2, %4 : vector<64x256xf32>
    %cst_5 = arith.constant 0.000000e+00 : f32
    %6 = vector.broadcast %cst_5 : f32 to vector<64x256xf32>
    %7 = arith.maximumf %5, %6 : vector<64x256xf32>
    %8 = arith.truncf %7 : vector<64x256xf32> to vector<64x256xbf16>
    %c0_6 = arith.constant 0 : index
    %c0_7 = arith.constant 0 : index
    %9 = vector.load %arg4[%c0_6, %c0_7] : memref<64x256xbf16, #tpu.memory_space<vmem>>, vector<64x256xbf16>
    tpu.vector_store %arg4[%c0_6, %c0_7], %8 {strides = array<i32>} : memref<64x256xbf16, #tpu.memory_space<vmem>>, vector<64x256xbf16>,
    return
  }
  func.func @transform_0(%arg0: i32) -> (i32, i32) {
    %c0_i32 = arith.constant 0 : i32
    %c0_i32_0 = arith.constant 0 : i32
    return %arg0, %c0_i32 : i32, i32
  }
  func.func @transform_1(%arg0: i32) -> (i32, i32) {
    %c0_i32 = arith.constant 0 : i32
    %c0_i32_0 = arith.constant 0 : i32
    %c0_i32_1 = arith.constant 0 : i32
    return %c0_i32, %c0_i32_0 : i32, i32
  }
  func.func @transform_2(%arg0: i32) -> (i32, i32) {
    %c0_i32 = arith.constant 0 : i32
    %c0_i32_0 = arith.constant 0 : i32
    %c0_i32_1 = arith.constant 0 : i32
    return %c0_i32, %c0_i32_0 : i32, i32
  }
  func.func @transform_3(%arg0: i32) -> (i32, i32) {
    %c0_i32 = arith.constant 0 : i32
    %c0_i32_0 = arith.constant 0 : i32
    return %arg0, %c0_i32 : i32, i32
  }
}

module attributes {stable_mosaic.version = 11 : i64} {
  func.func @_mm_bias_act_kernel(%arg0: i32, %arg1: memref<96x256xbf16, #tpu.memory_space<vmem>>, %arg2: memref<256x128xbf16, #tpu.memory_space<vmem>>, %arg3: memref<1x128xf32, #tpu.memory_space<vmem>>, %arg4: memref<96x128xbf16, #tpu.memory_space<vmem>>) attributes {dimension_semantics = [#tpu.dimension_semantics<parallel>], iteration_bounds = array<i64: 2>, scalar_prefetch = 0 : i64, scratch_operands = 0 : i64, tpu.core_type = #tpu.core_type<tc>, window_params = [{transform_indices = @transform_0, window_bounds = array<i64: 96, 256>}, {pipeline_mode = #tpu.pipeline_mode<synchronous>, transform_indices = @transform_1, window_bounds = array<i64: 256, 128>}, {pipeline_mode = #tpu.pipeline_mode<synchronous>, transform_indices = @transform_2, window_bounds = array<i64: 1, 128>}, {transform_indices = @transform_3, window_bounds = array<i64: 96, 128>}]} {
    %c0 = arith.constant 0 : index
    %c0_0 = arith.constant 0 : index
    %0 = vector.load %arg1[%c0, %c0_0] : memref<96x256xbf16, #tpu.memory_space<vmem>>, vector<96x256xbf16>
    %c0_1 = arith.constant 0 : index
    %c0_2 = arith.constant 0 : index
    %1 = vector.load %arg2[%c0_1, %c0_2] : memref<256x128xbf16, #tpu.memory_space<vmem>>, vector<256x128xbf16>
    %cst = arith.constant dense<0.000000e+00> : vector<96x128xf32>
    %2 = tpu.matmul %0, %1, %cst {dimension_numbers = #tpu.dot_dimension_numbers<[1], [0], [0], [1], [0, 0, 1, 1], [], []>} : vector<96x256xbf16>, vector<256x128xbf16>, vector<96x128xf32> -> vector<96x128xf32>
    %c0_3 = arith.constant 0 : index
    %c0_4 = arith.constant 0 : index
    %3 = vector.load %arg3[%c0_3, %c0_4] : memref<1x128xf32, #tpu.memory_space<vmem>>, vector<1x128xf32>
    %4 = vector.broadcast %3 : vector<1x128xf32> to vector<96x128xf32>
    %5 = arith.addf %2, %4 : vector<96x128xf32>
    %cst_5 = arith.constant 0.000000e+00 : f32
    %6 = vector.broadcast %cst_5 : f32 to vector<96x128xf32>
    %7 = arith.maximumf %5, %6 : vector<96x128xf32>
    %8 = arith.truncf %7 : vector<96x128xf32> to vector<96x128xbf16>
    %c0_6 = arith.constant 0 : index
    %c0_7 = arith.constant 0 : index
    %9 = vector.load %arg4[%c0_6, %c0_7] : memref<96x128xbf16, #tpu.memory_space<vmem>>, vector<96x128xbf16>
    tpu.vector_store %arg4[%c0_6, %c0_7], %8 {strides = array<i32>} : memref<96x128xbf16, #tpu.memory_space<vmem>>, vector<96x128xbf16>,
    return
  }
  func.func @transform_0(%arg0: i32) -> (i32, i32) {
    %c0_i32 = arith.constant 0 : i32
    %c0_i32_0 = arith.constant 0 : i32
    return %arg0, %c0_i32 : i32, i32
  }
  func.func @transform_1(%arg0: i32) -> (i32, i32) {
    %c0_i32 = arith.constant 0 : i32
    %c0_i32_0 = arith.constant 0 : i32
    %c0_i32_1 = arith.constant 0 : i32
    return %c0_i32, %c0_i32_0 : i32, i32
  }
  func.func @transform_2(%arg0: i32) -> (i32, i32) {
    %c0_i32 = arith.constant 0 : i32
    %c0_i32_0 = arith.constant 0 : i32
    %c0_i32_1 = arith.constant 0 : i32
    return %c0_i32, %c0_i32_0 : i32, i32
  }
  func.func @transform_3(%arg0: i32) -> (i32, i32) {
    %c0_i32 = arith.constant 0 : i32
    %c0_i32_0 = arith.constant 0 : i32
    return %arg0, %c0_i32 : i32, i32
  }
}

module attributes {stable_mosaic.version = 11 : i64} {
  func.func @_mm_bias_act_kernel(%arg0: i32, %arg1: memref<304x128xbf16, #tpu.memory_space<vmem>>, %arg2: memref<128x128xbf16, #tpu.memory_space<vmem>>, %arg3: memref<1x128xf32, #tpu.memory_space<vmem>>, %arg4: memref<304x128xbf16, #tpu.memory_space<vmem>>) attributes {dimension_semantics = [#tpu.dimension_semantics<parallel>], iteration_bounds = array<i64: 2>, scalar_prefetch = 0 : i64, scratch_operands = 0 : i64, tpu.core_type = #tpu.core_type<tc>, window_params = [{transform_indices = @transform_0, window_bounds = array<i64: 304, 128>}, {pipeline_mode = #tpu.pipeline_mode<synchronous>, transform_indices = @transform_1, window_bounds = array<i64: 128, 128>}, {pipeline_mode = #tpu.pipeline_mode<synchronous>, transform_indices = @transform_2, window_bounds = array<i64: 1, 128>}, {transform_indices = @transform_3, window_bounds = array<i64: 304, 128>}]} {
    %c0 = arith.constant 0 : index
    %c0_0 = arith.constant 0 : index
    %0 = vector.load %arg1[%c0, %c0_0] : memref<304x128xbf16, #tpu.memory_space<vmem>>, vector<304x128xbf16>
    %c0_1 = arith.constant 0 : index
    %c0_2 = arith.constant 0 : index
    %1 = vector.load %arg2[%c0_1, %c0_2] : memref<128x128xbf16, #tpu.memory_space<vmem>>, vector<128x128xbf16>
    %cst = arith.constant dense<0.000000e+00> : vector<304x128xf32>
    %2 = tpu.matmul %0, %1, %cst {dimension_numbers = #tpu.dot_dimension_numbers<[1], [0], [0], [1], [0, 0, 1, 1], [], []>} : vector<304x128xbf16>, vector<128x128xbf16>, vector<304x128xf32> -> vector<304x128xf32>
    %c0_3 = arith.constant 0 : index
    %c0_4 = arith.constant 0 : index
    %3 = vector.load %arg3[%c0_3, %c0_4] : memref<1x128xf32, #tpu.memory_space<vmem>>, vector<1x128xf32>
    %4 = vector.broadcast %3 : vector<1x128xf32> to vector<304x128xf32>
    %5 = arith.addf %2, %4 : vector<304x128xf32>
    %cst_5 = arith.constant 0.000000e+00 : f32
    %6 = vector.broadcast %cst_5 : f32 to vector<304x128xf32>
    %7 = arith.maximumf %5, %6 : vector<304x128xf32>
    %8 = arith.truncf %7 : vector<304x128xf32> to vector<304x128xbf16>
    %c0_6 = arith.constant 0 : index
    %c0_7 = arith.constant 0 : index
    %9 = vector.load %arg4[%c0_6, %c0_7] : memref<304x128xbf16, #tpu.memory_space<vmem>>, vector<304x128xbf16>
    tpu.vector_store %arg4[%c0_6, %c0_7], %8 {strides = array<i32>} : memref<304x128xbf16, #tpu.memory_space<vmem>>, vector<304x128xbf16>,
    return
  }
  func.func @transform_0(%arg0: i32) -> (i32, i32) {
    %c0_i32 = arith.constant 0 : i32
    %c0_i32_0 = arith.constant 0 : i32
    return %arg0, %c0_i32 : i32, i32
  }
  func.func @transform_1(%arg0: i32) -> (i32, i32) {
    %c0_i32 = arith.constant 0 : i32
    %c0_i32_0 = arith.constant 0 : i32
    %c0_i32_1 = arith.constant 0 : i32
    return %c0_i32, %c0_i32_0 : i32, i32
  }
  func.func @transform_2(%arg0: i32) -> (i32, i32) {
    %c0_i32 = arith.constant 0 : i32
    %c0_i32_0 = arith.constant 0 : i32
    %c0_i32_1 = arith.constant 0 : i32
    return %c0_i32, %c0_i32_0 : i32, i32
  }
  func.func @transform_3(%arg0: i32) -> (i32, i32) {
    %c0_i32 = arith.constant 0 : i32
    %c0_i32_0 = arith.constant 0 : i32
    return %arg0, %c0_i32 : i32, i32
  }
}

module attributes {stable_mosaic.version = 11 : i64} {
  func.func @_mm_bias_act_kernel(%arg0: i32, %arg1: memref<736x128xbf16, #tpu.memory_space<vmem>>, %arg2: memref<128x4xbf16, #tpu.memory_space<vmem>>, %arg3: memref<1x4xf32, #tpu.memory_space<vmem>>, %arg4: memref<736x4xf32, #tpu.memory_space<vmem>>) attributes {dimension_semantics = [#tpu.dimension_semantics<parallel>], iteration_bounds = array<i64: 3>, scalar_prefetch = 0 : i64, scratch_operands = 0 : i64, tpu.core_type = #tpu.core_type<tc>, window_params = [{transform_indices = @transform_0, window_bounds = array<i64: 736, 128>}, {pipeline_mode = #tpu.pipeline_mode<synchronous>, transform_indices = @transform_1, window_bounds = array<i64: 128, 4>}, {pipeline_mode = #tpu.pipeline_mode<synchronous>, transform_indices = @transform_2, window_bounds = array<i64: 1, 4>}, {transform_indices = @transform_3, window_bounds = array<i64: 736, 4>}]} {
    %c0 = arith.constant 0 : index
    %c0_0 = arith.constant 0 : index
    %0 = vector.load %arg1[%c0, %c0_0] : memref<736x128xbf16, #tpu.memory_space<vmem>>, vector<736x128xbf16>
    %c0_1 = arith.constant 0 : index
    %c0_2 = arith.constant 0 : index
    %1 = vector.load %arg2[%c0_1, %c0_2] : memref<128x4xbf16, #tpu.memory_space<vmem>>, vector<128x4xbf16>
    %cst = arith.constant dense<0.000000e+00> : vector<736x4xf32>
    %2 = tpu.matmul %0, %1, %cst {dimension_numbers = #tpu.dot_dimension_numbers<[1], [0], [0], [1], [0, 0, 1, 1], [], []>} : vector<736x128xbf16>, vector<128x4xbf16>, vector<736x4xf32> -> vector<736x4xf32>
    %c0_3 = arith.constant 0 : index
    %c0_4 = arith.constant 0 : index
    %3 = vector.load %arg3[%c0_3, %c0_4] : memref<1x4xf32, #tpu.memory_space<vmem>>, vector<1x4xf32>
    %4 = vector.broadcast %3 : vector<1x4xf32> to vector<736x4xf32>
    %5 = arith.addf %2, %4 : vector<736x4xf32>
    %6 = arith.negf %5 : vector<736x4xf32>
    %7 = math.exp %6 : vector<736x4xf32>
    %cst_5 = arith.constant 1.000000e+00 : f32
    %8 = vector.broadcast %cst_5 : f32 to vector<736x4xf32>
    %9 = arith.addf %8, %7 : vector<736x4xf32>
    %10 = arith.divf %8, %9 : vector<736x4xf32>
    %c0_6 = arith.constant 0 : index
    %c0_7 = arith.constant 0 : index
    %11 = vector.load %arg4[%c0_6, %c0_7] : memref<736x4xf32, #tpu.memory_space<vmem>>, vector<736x4xf32>
    tpu.vector_store %arg4[%c0_6, %c0_7], %10 {strides = array<i32>} : memref<736x4xf32, #tpu.memory_space<vmem>>, vector<736x4xf32>,
    return
  }
  func.func @transform_0(%arg0: i32) -> (i32, i32) {
    %c0_i32 = arith.constant 0 : i32
    %c0_i32_0 = arith.constant 0 : i32
    return %arg0, %c0_i32 : i32, i32
  }
  func.func @transform_1(%arg0: i32) -> (i32, i32) {
    %c0_i32 = arith.constant 0 : i32
    %c0_i32_0 = arith.constant 0 : i32
    %c0_i32_1 = arith.constant 0 : i32
    return %c0_i32, %c0_i32_0 : i32, i32
  }
  func.func @transform_2(%arg0: i32) -> (i32, i32) {
    %c0_i32 = arith.constant 0 : i32
    %c0_i32_0 = arith.constant 0 : i32
    %c0_i32_1 = arith.constant 0 : i32
    return %c0_i32, %c0_i32_0 : i32, i32
  }
  func.func @transform_3(%arg0: i32) -> (i32, i32) {
    %c0_i32 = arith.constant 0 : i32
    %c0_i32_0 = arith.constant 0 : i32
    return %arg0, %c0_i32 : i32, i32
  }
}

</mosaic_0001>

<llo_original>
// kernel: beta_vae_forward.12
$region0: #{beta_vae_forward.12}
  #allocation0 [shape = 'u32[]', space=smem, size = 0x4, offset = 0x4, fixed_abs, tag = 'smem constant byte address 0x4 - core index']
  #allocation1 [shape = 'u32[144,128]{1,0:T(1,128)}', space=vmem, size = 0x12000, scoped, tag = 'internal scratch']
  %s0 = inlined_call_operand.vmem [shape: bf16[2048,16], index: 0, kind: input, shape index: {}]
  %s1 = inlined_call_operand.vmem [shape: bf16[16,32], index: 1, kind: input, shape index: {}]
  %s2 = inlined_call_operand.vmem [shape: f32[1,32], index: 2, kind: input, shape index: {}]
  %s3 = inlined_call_operand.vmem [shape: bf16[2048,32], index: 3, kind: output, shape index: {}]
  %s4 = sld [smem:[#allocation0]]
  $region45: #{beta_vae_forward.12} parent=0
    _
  %s6 = ssub.s32 1, %s4
  %s7 = scalar_select 0, %s6, %s4
  loop: start=0, step=1, limit=4
  $region2: #{beta_vae_forward.12} parent=0 // loop_pre_header
    _
  $region3: #{beta_vae_forward.12} parent=0 // loop_header
    %s9 = sphi 0, %s13
    %p10 = scmp.ge.s32.totalorder %s9, 4
    %s19 = sphi 0, %s21
    %s22 = sphi 0, %s19
    %s23 = sphi 0, %s22
    %s39 = sphi 0, %s23
    %s43 = sphi 0, %s43
    %s45 = sphi 0, %s43
    %s46 = sphi 0, %s45
    %s60 = sphi 0, %s46
    %s64 = sphi 0, %s64
    %s66 = sphi 0, %s64
    %s67 = sphi 0, %s66
    %s81 = sphi 0, %s67
    %s87 = sphi 0, %s89
    %s90 = sphi 0, %s87
    %s91 = sphi 0, %s90
    %s107 = sphi 0, %s91
  $region4: #{beta_vae_forward.12} parent=0 // loop_header_branch
    %12 = sbr.rel (%p10) target = $region8
  $region5: #{beta_vae_forward.12} parent=0 // loop_body
    %s14 = ssub.s32 %s9, 1
    %s15 = ssub.s32 %s9, 2
    %s16 = sadd.s32 %s9, 1
    %s17 = ssub.s32 %s9, %s16
    %p18 = scmp.eq.s32.totalorder %s17, 0
    %s20 = sadd.s32 %s19, 1
    %s21 = scalar_select %p18, %s19, %s20
    %p24 = pneg %p18
    %p25 = scmp.eq.s32.totalorder %s9, 1
    %p26 = por %p24, %p25
    %p27 = scmp.ne.s32.totalorder %s19, %s22
    %p28 = scmp.eq.s32.totalorder %s9, 0
    %p29 = por %p27, %p28
    %p30 = scmp.ne.s32.totalorder %s19, %s22
    %p31 = scmp.eq.s32.totalorder %s14, 1
    %p32 = por %p30, %p31
    %p33 = scmp.ne.s32.totalorder %s22, %s23
    %p34 = scmp.eq.s32.totalorder %s14, 0
    %p35 = por %p33, %p34
    %p36 = scmp.ne.s32.totalorder %s22, %s23
    %p37 = scmp.eq.s32.totalorder %s15, 1
    %p38 = por %p36, %p37
    %p40 = scmp.ne.s32.totalorder %s23, %s39
    %p41 = scmp.eq.s32.totalorder %s15, 0
    %p42 = por %p40, %p41
    %s44 = sadd.s32 %s43, 1
    %p47 = scmp.eq.s32.totalorder %s9, 1
    %p48 = scmp.ne.s32.totalorder %s43, %s45
    %p49 = scmp.eq.s32.totalorder %s9, 0
    %p50 = por %p48, %p49
    %p51 = scmp.ne.s32.totalorder %s43, %s45
    %p52 = scmp.eq.s32.totalorder %s14, 1
    %p53 = por %p51, %p52
    %p54 = scmp.ne.s32.totalorder %s45, %s46
    %p55 = scmp.eq.s32.totalorder %s14, 0
    %p56 = por %p54, %p55
    %p57 = scmp.ne.s32.totalorder %s45, %s46
    %p58 = scmp.eq.s32.totalorder %s15, 1
    %p59 = por %p57, %p58
    %p61 = scmp.ne.s32.totalorder %s46, %s60
    %p62 = scmp.eq.s32.totalorder %s15, 0
    %p63 = por %p61, %p62
    %s65 = sadd.s32 %s64, 1
    %p68 = scmp.eq.s32.totalorder %s9, 1
    %p69 = scmp.ne.s32.totalorder %s64, %s66
    %p70 = scmp.eq.s32.totalorder %s9, 0
    %p71 = por %p69, %p70
    %p72 = scmp.ne.s32.totalorder %s64, %s66
    %p73 = scmp.eq.s32.totalorder %s14, 1
    %p74 = por %p72, %p73
    %p75 = scmp.ne.s32.totalorder %s66, %s67
    %p76 = scmp.eq.s32.totalorder %s14, 0
    %p77 = por %p75, %p76
    %p78 = scmp.ne.s32.totalorder %s66, %s67
    %p79 = scmp.eq.s32.totalorder %s15, 1
    %p80 = por %p78, %p79
    %p82 = scmp.ne.s32.totalorder %s67, %s81
    %p83 = scmp.eq.s32.totalorder %s15, 0
    %p84 = por %p82, %p83
    %s85 = ssub.s32 %s9, %s16
    %p86 = scmp.eq.s32.totalorder %s85, 0
    %s88 = sadd.s32 %s87, 1
    %s89 = scalar_select %p86, %s87, %s88
    %p92 = pneg %p86
    %p93 = scmp.eq.s32.totalorder %s9, 1
    %p94 = por %p92, %p93
    %p95 = scmp.ne.s32.totalorder %s87, %s90
    %p96 = scmp.eq.s32.totalorder %s9, 0
    %p97 = por %p95, %p96
    %p98 = scmp.ne.s32.totalorder %s87, %s90
    %p99 = scmp.eq.s32.totalorder %s14, 1
    %p100 = por %p98, %p99
    %p101 = scmp.ne.s32.totalorder %s90, %s91
    %p102 = scmp.eq.s32.totalorder %s14, 0
    %p103 = por %p101, %p102
    %p104 = scmp.ne.s32.totalorder %s90, %s91
    %p105 = scmp.eq.s32.totalorder %s15, 1
    %p106 = por %p104, %p105
    %p108 = scmp.ne.s32.totalorder %s91, %s107
    %p109 = scmp.eq.s32.totalorder %s15, 0
    %p110 = por %p108, %p109
    %p111 = scmp.le.s32.totalorder 1, %s9
    %p112 = scmp.lt.s32.totalorder %s9, 3
    %p113 = pnand %p111, %p112
    %p114 = pneg %p113
    // Predicated region
    $region9: #{beta_vae_forward.12} parent=5 // pred_check
      _
    $region10: #{beta_vae_forward.12} parent=5 // pred_check_branch
      %116 = sbr.rel (%p113) target = $region12
    $region11: #{beta_vae_forward.12} parent=5 // pred_region
      %s117 = ssub.s32 %s9, 1
      // Predicated region
      $region13: #{beta_vae_forward.12} parent=11 // pred_check
        %p118 = pneg %p56
      $region14: #{beta_vae_forward.12} parent=11 // pred_check_branch
        %120 = sbr.rel (%p118) target = $region16
      $region15: #{beta_vae_forward.12} parent=11 // pred_region
        _
      $region16: #{beta_vae_forward.12} parent=11 // pred_fallthru
        _
      // Predicated region
      $region17: #{beta_vae_forward.12} parent=11 // pred_check
        %p121 = pneg %p77
      $region18: #{beta_vae_forward.12} parent=11 // pred_check_branch
        %123 = sbr.rel (%p121) target = $region20
      $region19: #{beta_vae_forward.12} parent=11 // pred_region
        _
      $region20: #{beta_vae_forward.12} parent=11 // pred_fallthru
        _
    $region12: #{beta_vae_forward.12} parent=5 // pred_fallthru
      _
    %p124 = scmp.lt.s32.totalorder %s9, 2
    // Predicated region
    $region21: #{beta_vae_forward.12} parent=5 // pred_check
      %p125 = pneg %p124
    $region22: #{beta_vae_forward.12} parent=5 // pred_check_branch
      %127 = sbr.rel (%p125) target = $region24
    $region23: #{beta_vae_forward.12} parent=5 // pred_region
      // Predicated region
      $region25: #{beta_vae_forward.12} parent=23 // pred_check
        %p128 = pneg %p29
      $region26: #{beta_vae_forward.12} parent=23 // pred_check_branch
        %130 = sbr.rel (%p128) target = $region28
      $region27: #{beta_vae_forward.12} parent=23 // pred_region
        %s131 = smul.u32 128, %s9
        %p132 = scmp.lt.s32.totalorder %s131, 255
        %s133 = scalar_select %p132, %s131, 255
        %s134 = smul.addr %s133, 4
        %s135 = scalar_lea.vmem %s0, %s134
        %s136 = smul.u32 128, %s9
      $region28: #{beta_vae_forward.12} parent=23 // pred_fallthru
        _
    $region24: #{beta_vae_forward.12} parent=5 // pred_fallthru
      _
    %p137 = scmp.le.s32.totalorder 1, %s9
    %p138 = scmp.lt.s32.totalorder %s9, 3
    %p139 = pnand %p137, %p138
    %p140 = pneg %p139
    // Predicated region
    $region29: #{beta_vae_forward.12} parent=5 // pred_check
      _
    $region30: #{beta_vae_forward.12} parent=5 // pred_check_branch
      %142 = sbr.rel (%p139) target = $region32
    $region31: #{beta_vae_forward.12} parent=5 // pred_region
      %s143 = ssub.s32 %s9, 1
      %s144 = smul.u32 128, %s14
      %p145 = scmp.lt.s32.totalorder %s144, 255
      %s146 = scalar_select %p145, %s144, 255
      %s147 = smul.addr %s146, 4
      %s148 = scalar_lea.vmem %s0, %s147
      %p149 = pneg %p35
      %p150 = pneg %p32
      %p151 = pneg %p56
      %p152 = pneg %p53
      %p153 = pneg %p77
      %p154 = pneg %p74
      %p155 = pneg %p103
      %p156 = pneg %p100
      %s157 = smul.u32 128, %s14
      %p158 = scmp.lt.s32.totalorder %s157, 255
      %s159 = scalar_select %p158, %s157, 255
      %s160 = smul.addr %s159, 4
      %s161 = scalar_lea.vmem %s3, %s160
      %s162 = smul.u32 128, %s14
      %p163 = scmp.lt.s32.totalorder %s162, 255
      %s164 = scalar_select %p163, %s162, 255
      %s165 = smul.addr %s164, 4
      %s166 = scalar_lea.vmem %s0, %s165
      %s167 = smul.u32 128, %s14
      %s168 = smul.u32 128, %s14
      %p169 = scmp.lt.s32.totalorder %s168, 255
      %s170 = scalar_select %p169, %s168, 255
      %s171 = smul.addr %s170, 4
      %s172 = scalar_lea.vmem %s3, %s171
      %s173 = smul.u32 128, %s14
      %v175 = vld [vmem:[%s166] sm:$0xf]
      %v176 = vld [vmem:[%s166 + $0x4] sm:$0xf]
      %v177 = vld [vmem:[%s166 + $0x8] sm:$0xf]
      %v178 = vld [vmem:[%s166 + $0xc] sm:$0xf]
      %v179 = vld [vmem:[%s166 + $0x10] sm:$0xf]
      %v180 = vld [vmem:[%s166 + $0x14] sm:$0xf]
      %v181 = vld [vmem:[%s166 + $0x18] sm:$0xf]
      %v182 = vld [vmem:[%s166 + $0x1c] sm:$0xf]
      %v183 = vld [vmem:[%s166 + $0x20] sm:$0xf]
      %v184 = vld [vmem:[%s166 + $0x24] sm:$0xf]
      %v185 = vld [vmem:[%s166 + $0x28] sm:$0xf]
      %v186 = vld [vmem:[%s166 + $0x2c] sm:$0xf]
      %v187 = vld [vmem:[%s166 + $0x30] sm:$0xf]
      %v188 = vld [vmem:[%s166 + $0x34] sm:$0xf]
      %v189 = vld [vmem:[%s166 + $0x38] sm:$0xf]
      %v190 = vld [vmem:[%s166 + $0x3c] sm:$0xf]
      %v191 = vld [vmem:[%s166 + $0x40] sm:$0xf]
      %v192 = vld [vmem:[%s166 + $0x44] sm:$0xf]
      %v193 = vld [vmem:[%s166 + $0x48] sm:$0xf]
      %v194 = vld [vmem:[%s166 + $0x4c] sm:$0xf]
      %v195 = vld [vmem:[%s166 + $0x50] sm:$0xf]
      %v196 = vld [vmem:[%s166 + $0x54] sm:$0xf]
      %v197 = vld [vmem:[%s166 + $0x58] sm:$0xf]
      %v198 = vld [vmem:[%s166 + $0x5c] sm:$0xf]
      %v199 = vld [vmem:[%s166 + $0x60] sm:$0xf]
      %v200 = vld [vmem:[%s166 + $0x64] sm:$0xf]
      %v201 = vld [vmem:[%s166 + $0x68] sm:$0xf]
      %v202 = vld [vmem:[%s166 + $0x6c] sm:$0xf]
      %v203 = vld [vmem:[%s166 + $0x70] sm:$0xf]
      %v204 = vld [vmem:[%s166 + $0x74] sm:$0xf]
      %v205 = vld [vmem:[%s166 + $0x78] sm:$0xf]
      %v206 = vld [vmem:[%s166 + $0x7c] sm:$0xf]
      %v207 = vld [vmem:[%s166 + $0x80] sm:$0xf]
      %v208 = vld [vmem:[%s166 + $0x84] sm:$0xf]
      %v209 = vld [vmem:[%s166 + $0x88] sm:$0xf]
      %v210 = vld [vmem:[%s166 + $0x8c] sm:$0xf]
      %v211 = vld [vmem:[%s166 + $0x90] sm:$0xf]
      %v212 = vld [vmem:[%s166 + $0x94] sm:$0xf]
      %v213 = vld [vmem:[%s166 + $0x98] sm:$0xf]
      %v214 = vld [vmem:[%s166 + $0x9c] sm:$0xf]
      %v215 = vld [vmem:[%s166 + $0xa0] sm:$0xf]
      %v216 = vld [vmem:[%s166 + $0xa4] sm:$0xf]
      %v217 = vld [vmem:[%s166 + $0xa8] sm:$0xf]
      %v218 = vld [vmem:[%s166 + $0xac] sm:$0xf]
      %v219 = vld [vmem:[%s166 + $0xb0] sm:$0xf]
      %v220 = vld [vmem:[%s166 + $0xb4] sm:$0xf]
      %v221 = vld [vmem:[%s166 + $0xb8] sm:$0xf]
      %v222 = vld [vmem:[%s166 + $0xbc] sm:$0xf]
      %v223 = vld [vmem:[%s166 + $0xc0] sm:$0xf]
      %v224 = vld [vmem:[%s166 + $0xc4] sm:$0xf]
      %v225 = vld [vmem:[%s166 + $0xc8] sm:$0xf]
      %v226 = vld [vmem:[%s166 + $0xcc] sm:$0xf]
      %v227 = vld [vmem:[%s166 + $0xd0] sm:$0xf]
      %v228 = vld [vmem:[%s166 + $0xd4] sm:$0xf]
      %v229 = vld [vmem:[%s166 + $0xd8] sm:$0xf]
      %v230 = vld [vmem:[%s166 + $0xdc] sm:$0xf]
      %v231 = vld [vmem:[%s166 + $0xe0] sm:$0xf]
      %v232 = vld [vmem:[%s166 + $0xe4] sm:$0xf]
      %v233 = vld [vmem:[%s166 + $0xe8] sm:$0xf]
      %v234 = vld [vmem:[%s166 + $0xec] sm:$0xf]
      %v235 = vld [vmem:[%s166 + $0xf0] sm:$0xf]
      %v236 = vld [vmem:[%s166 + $0xf4] sm:$0xf]
      %v237 = vld [vmem:[%s166 + $0xf8] sm:$0xf]
      %v238 = vld [vmem:[%s166 + $0xfc] sm:$0xf]
      %v239 = vld [vmem:[%s166 + $0x100] sm:$0xf]
      %v240 = vld [vmem:[%s166 + $0x104] sm:$0xf]
      %v241 = vld [vmem:[%s166 + $0x108] sm:$0xf]
      %v242 = vld [vmem:[%s166 + $0x10c] sm:$0xf]
      %v243 = vld [vmem:[%s166 + $0x110] sm:$0xf]
      %v244 = vld [vmem:[%s166 + $0x114] sm:$0xf]
      %v245 = vld [vmem:[%s166 + $0x118] sm:$0xf]
      %v246 = vld [vmem:[%s166 + $0x11c] sm:$0xf]
      %v247 = vld [vmem:[%s166 + $0x120] sm:$0xf]
      %v248 = vld [vmem:[%s166 + $0x124] sm:$0xf]
      %v249 = vld [vmem:[%s166 + $0x128] sm:$0xf]
      %v250 = vld [vmem:[%s166 + $0x12c] sm:$0xf]
      %v251 = vld [vmem:[%s166 + $0x130] sm:$0xf]
      %v252 = vld [vmem:[%s166 + $0x134] sm:$0xf]
      %v253 = vld [vmem:[%s166 + $0x138] sm:$0xf]
      %v254 = vld [vmem:[%s166 + $0x13c] sm:$0xf]
      %v255 = vld [vmem:[%s166 + $0x140] sm:$0xf]
      %v256 = vld [vmem:[%s166 + $0x144] sm:$0xf]
      %v257 = vld [vmem:[%s166 + $0x148] sm:$0xf]
      %v258 = vld [vmem:[%s166 + $0x14c] sm:$0xf]
      %v259 = vld [vmem:[%s166 + $0x150] sm:$0xf]
      %v260 = vld [vmem:[%s166 + $0x154] sm:$0xf]
      %v261 = vld [vmem:[%s166 + $0x158] sm:$0xf]
      %v262 = vld [vmem:[%s166 + $0x15c] sm:$0xf]
      %v263 = vld [vmem:[%s166 + $0x160] sm:$0xf]
      %v264 = vld [vmem:[%s166 + $0x164] sm:$0xf]
      %v265 = vld [vmem:[%s166 + $0x168] sm:$0xf]
      %v266 = vld [vmem:[%s166 + $0x16c] sm:$0xf]
      %v267 = vld [vmem:[%s166 + $0x170] sm:$0xf]
      %v268 = vld [vmem:[%s166 + $0x174] sm:$0xf]
      %v269 = vld [vmem:[%s166 + $0x178] sm:$0xf]
      %v270 = vld [vmem:[%s166 + $0x17c] sm:$0xf]
      %v271 = vld [vmem:[%s166 + $0x180] sm:$0xf]
      %v272 = vld [vmem:[%s166 + $0x184] sm:$0xf]
      %v273 = vld [vmem:[%s166 + $0x188] sm:$0xf]
      %v274 = vld [vmem:[%s166 + $0x18c] sm:$0xf]
      %v275 = vld [vmem:[%s166 + $0x190] sm:$0xf]
      %v276 = vld [vmem:[%s166 + $0x194] sm:$0xf]
      %v277 = vld [vmem:[%s166 + $0x198] sm:$0xf]
      %v278 = vld [vmem:[%s166 + $0x19c] sm:$0xf]
      %v279 = vld [vmem:[%s166 + $0x1a0] sm:$0xf]
      %v280 = vld [vmem:[%s166 + $0x1a4] sm:$0xf]
      %v281 = vld [vmem:[%s166 + $0x1a8] sm:$0xf]
      %v282 = vld [vmem:[%s166 + $0x1ac] sm:$0xf]
      %v283 = vld [vmem:[%s166 + $0x1b0] sm:$0xf]
      %v284 = vld [vmem:[%s166 + $0x1b4] sm:$0xf]
      %v285 = vld [vmem:[%s166 + $0x1b8] sm:$0xf]
      %v286 = vld [vmem:[%s166 + $0x1bc] sm:$0xf]
      %v287 = vld [vmem:[%s166 + $0x1c0] sm:$0xf]
      %v288 = vld [vmem:[%s166 + $0x1c4] sm:$0xf]
      %v289 = vld [vmem:[%s166 + $0x1c8] sm:$0xf]
      %v290 = vld [vmem:[%s166 + $0x1cc] sm:$0xf]
      %v291 = vld [vmem:[%s166 + $0x1d0] sm:$0xf]
      %v292 = vld [vmem:[%s166 + $0x1d4] sm:$0xf]
      %v293 = vld [vmem:[%s166 + $0x1d8] sm:$0xf]
      %v294 = vld [vmem:[%s166 + $0x1dc] sm:$0xf]
      %v295 = vld [vmem:[%s166 + $0x1e0] sm:$0xf]
      %v296 = vld [vmem:[%s166 + $0x1e4] sm:$0xf]
      %v297 = vld [vmem:[%s166 + $0x1e8] sm:$0xf]
      %v298 = vld [vmem:[%s166 + $0x1ec] sm:$0xf]
      %v299 = vld [vmem:[%s166 + $0x1f0] sm:$0xf]
      %v300 = vld [vmem:[%s166 + $0x1f4] sm:$0xf]
      %v301 = vld [vmem:[%s166 + $0x1f8] sm:$0xf]
      %v302 = vld [vmem:[%s166 + $0x1fc] sm:$0xf]
      %v303 = vld [vmem:[%s1] sm:$0xf]
      %v304 = vld [vmem:[%s1 + $0x4] sm:$0xf]
      %v305 = vld [vmem:[%s2] sm:$0x1]
      %v307 = vlaneseq
      %v308 = vshrl.u32 %v307, 7
      %v309 = vsub.s32 0, %v308
      %v310 = vrot.slane %v305, %v309
      %v440 = vunpack.c.l.b16 %v175
      %v441 = vunpack.c.l.b16 %v176
      %v442 = vunpack.c.l.b16 %v177
      %v443 = vunpack.c.l.b16 %v178
      %v444 = vunpack.c.l.b16 %v179
      %v445 = vunpack.c.l.b16 %v180
      %v446 = vunpack.c.l.b16 %v181
      %v447 = vunpack.c.l.b16 %v182
      %v448 = vunpack.c.l.b16 %v183
      %v449 = vunpack.c.l.b16 %v184
      %v450 = vunpack.c.l.b16 %v185
      %v451 = vunpack.c.l.b16 %v186
      %v452 = vunpack.c.l.b16 %v187
      %v453 = vunpack.c.l.b16 %v188
      %v454 = vunpack.c.l.b16 %v189
      %v455 = vunpack.c.l.b16 %v190
      %v456 = vunpack.c.l.b16 %v191
      %v457 = vunpack.c.l.b16 %v192
      %v458 = vunpack.c.l.b16 %v193
      %v459 = vunpack.c.l.b16 %v194
      %v460 = vunpack.c.l.b16 %v195
      %v461 = vunpack.c.l.b16 %v196
      %v462 = vunpack.c.l.b16 %v197
      %v463 = vunpack.c.l.b16 %v198
      %v464 = vunpack.c.l.b16 %v199
      %v465 = vunpack.c.l.b16 %v200
      %v466 = vunpack.c.l.b16 %v201
      %v467 = vunpack.c.l.b16 %v202
      %v468 = vunpack.c.l.b16 %v203
      %v469 = vunpack.c.l.b16 %v204
      %v470 = vunpack.c.l.b16 %v205
      %v471 = vunpack.c.l.b16 %v206
      %v472 = vunpack.c.l.b16 %v207
      %v473 = vunpack.c.l.b16 %v208
      %v474 = vunpack.c.l.b16 %v209
      %v475 = vunpack.c.l.b16 %v210
      %v476 = vunpack.c.l.b16 %v211
      %v477 = vunpack.c.l.b16 %v212
      %v478 = vunpack.c.l.b16 %v213
      %v479 = vunpack.c.l.b16 %v214
      %v480 = vunpack.c.l.b16 %v215
      %v481 = vunpack.c.l.b16 %v216
      %v482 = vunpack.c.l.b16 %v217
      %v483 = vunpack.c.l.b16 %v218
      %v484 = vunpack.c.l.b16 %v219
      %v485 = vunpack.c.l.b16 %v220
      %v486 = vunpack.c.l.b16 %v221
      %v487 = vunpack.c.l.b16 %v222
      %v488 = vunpack.c.l.b16 %v223
      %v489 = vunpack.c.l.b16 %v224
      %v490 = vunpack.c.l.b16 %v225
      %v491 = vunpack.c.l.b16 %v226
      %v492 = vunpack.c.l.b16 %v227
      %v493 = vunpack.c.l.b16 %v228
      %v494 = vunpack.c.l.b16 %v229
      %v495 = vunpack.c.l.b16 %v230
      %v496 = vunpack.c.l.b16 %v231
      %v497 = vunpack.c.l.b16 %v232
      %v498 = vunpack.c.l.b16 %v233
      %v499 = vunpack.c.l.b16 %v234
      %v500 = vunpack.c.l.b16 %v235
      %v501 = vunpack.c.l.b16 %v236
      %v502 = vunpack.c.l.b16 %v237
      %v503 = vunpack.c.l.b16 %v238
      %v504 = vunpack.c.l.b16 %v239
      %v505 = vunpack.c.l.b16 %v240
      %v506 = vunpack.c.l.b16 %v241
      %v507 = vunpack.c.l.b16 %v242
      %v508 = vunpack.c.l.b16 %v243
      %v509 = vunpack.c.l.b16 %v244
      %v510 = vunpack.c.l.b16 %v245
      %v511 = vunpack.c.l.b16 %v246
      %v512 = vunpack.c.l.b16 %v247
      %v513 = vunpack.c.l.b16 %v248
      %v514 = vunpack.c.l.b16 %v249
      %v515 = vunpack.c.l.b16 %v250
      %v516 = vunpack.c.l.b16 %v251
      %v517 = vunpack.c.l.b16 %v252
      %v518 = vunpack.c.l.b16 %v253
      %v519 = vunpack.c.l.b16 %v254
      %v520 = vunpack.c.l.b16 %v255
      %v521 = vunpack.c.l.b16 %v256
      %v522 = vunpack.c.l.b16 %v257
      %v523 = vunpack.c.l.b16 %v258
      %v524 = vunpack.c.l.b16 %v259
      %v525 = vunpack.c.l.b16 %v260
      %v526 = vunpack.c.l.b16 %v261
      %v527 = vunpack.c.l.b16 %v262
      %v528 = vunpack.c.l.b16 %v263
      %v529 = vunpack.c.l.b16 %v264
      %v530 = vunpack.c.l.b16 %v265
      %v531 = vunpack.c.l.b16 %v266
      %v532 = vunpack.c.l.b16 %v267
      %v533 = vunpack.c.l.b16 %v268
      %v534 = vunpack.c.l.b16 %v269
      %v535 = vunpack.c.l.b16 %v270
      %v536 = vunpack.c.l.b16 %v271
      %v537 = vunpack.c.l.b16 %v272
      %v538 = vunpack.c.l.b16 %v273
      %v539 = vunpack.c.l.b16 %v274
      %v540 = vunpack.c.l.b16 %v275
      %v541 = vunpack.c.l.b16 %v276
      %v542 = vunpack.c.l.b16 %v277
      %v543 = vunpack.c.l.b16 %v278
      %v544 = vunpack.c.l.b16 %v279
      %v545 = vunpack.c.l.b16 %v280
      %v546 = vunpack.c.l.b16 %v281
      %v547 = vunpack.c.l.b16 %v282
      %v548 = vunpack.c.l.b16 %v283
      %v549 = vunpack.c.l.b16 %v284
      %v550 = vunpack.c.l.b16 %v285
      %v551 = vunpack.c.l.b16 %v286
      %v552 = vunpack.c.l.b16 %v287
      %v553 = vunpack.c.l.b16 %v288
      %v554 = vunpack.c.l.b16 %v289
      %v555 = vunpack.c.l.b16 %v290
      %v556 = vunpack.c.l.b16 %v291
      %v557 = vunpack.c.l.b16 %v292
      %v558 = vunpack.c.l.b16 %v293
      %v559 = vunpack.c.l.b16 %v294
      %v560 = vunpack.c.l.b16 %v295
      %v561 = vunpack.c.l.b16 %v296
      %v562 = vunpack.c.l.b16 %v297
      %v563 = vunpack.c.l.b16 %v298
      %v564 = vunpack.c.l.b16 %v299
      %v565 = vunpack.c.l.b16 %v300
      %v566 = vunpack.c.l.b16 %v301
      %v567 = vunpack.c.l.b16 %v302
      %v568 = vpack.c.b16 %v441, %v440
      %v569 = vpack.c.b16 %v443, %v442
      %v570 = vpack.c.b16 %v445, %v444
      %v571 = vpack.c.b16 %v447, %v446
      %v572 = vpack.c.b16 %v449, %v448
      %v573 = vpack.c.b16 %v451, %v450
      %v574 = vpack.c.b16 %v453, %v452
      %v575 = vpack.c.b16 %v455, %v454
      %v576 = vpack.c.b16 %v457, %v456
      %v577 = vpack.c.b16 %v459, %v458
      %v578 = vpack.c.b16 %v461, %v460
      %v579 = vpack.c.b16 %v463, %v462
      %v580 = vpack.c.b16 %v465, %v464
      %v581 = vpack.c.b16 %v467, %v466
      %v582 = vpack.c.b16 %v469, %v468
      %v583 = vpack.c.b16 %v471, %v470
      %v584 = vpack.c.b16 %v473, %v472
      %v585 = vpack.c.b16 %v475, %v474
      %v586 = vpack.c.b16 %v477, %v476
      %v587 = vpack.c.b16 %v479, %v478
      %v588 = vpack.c.b16 %v481, %v480
      %v589 = vpack.c.b16 %v483, %v482
      %v590 = vpack.c.b16 %v485, %v484
      %v591 = vpack.c.b16 %v487, %v486
      %v592 = vpack.c.b16 %v489, %v488
      %v593 = vpack.c.b16 %v491, %v490
      %v594 = vpack.c.b16 %v493, %v492
      %v595 = vpack.c.b16 %v495, %v494
      %v596 = vpack.c.b16 %v497, %v496
      %v597 = vpack.c.b16 %v499, %v498
      %v598 = vpack.c.b16 %v501, %v500
      %v599 = vpack.c.b16 %v503, %v502
      %v600 = vpack.c.b16 %v505, %v504
      %v601 = vpack.c.b16 %v507, %v506
      %v602 = vpack.c.b16 %v509, %v508
      %v603 = vpack.c.b16 %v511, %v510
      %v604 = vpack.c.b16 %v513, %v512
      %v605 = vpack.c.b16 %v515, %v514
      %v606 = vpack.c.b16 %v517, %v516
      %v607 = vpack.c.b16 %v519, %v518
      %v608 = vpack.c.b16 %v521, %v520
      %v609 = vpack.c.b16 %v523, %v522
      %v610 = vpack.c.b16 %v525, %v524
      %v611 = vpack.c.b16 %v527, %v526
      %v612 = vpack.c.b16 %v529, %v528
      %v613 = vpack.c.b16 %v531, %v530
      %v614 = vpack.c.b16 %v533, %v532
      %v615 = vpack.c.b16 %v535, %v534
      %v616 = vpack.c.b16 %v537, %v536
      %v617 = vpack.c.b16 %v539, %v538
      %v618 = vpack.c.b16 %v541, %v540
      %v619 = vpack.c.b16 %v543, %v542
      %v620 = vpack.c.b16 %v545, %v544
      %v621 = vpack.c.b16 %v547, %v546
      %v622 = vpack.c.b16 %v549, %v548
      %v623 = vpack.c.b16 %v551, %v550
      %v624 = vpack.c.b16 %v553, %v552
      %v625 = vpack.c.b16 %v555, %v554
      %v626 = vpack.c.b16 %v557, %v556
      %v627 = vpack.c.b16 %v559, %v558
      %v628 = vpack.c.b16 %v561, %v560
      %v629 = vpack.c.b16 %v563, %v562
      %v630 = vpack.c.b16 %v565, %v564
      %v631 = vpack.c.b16 %v567, %v566
      %v634 = vunpack.c.l.b16 %v303
      %v635 = vunpack.c.l.b16 %v304
      %v636 = vpack.c.b16 %v635, %v634
      %vm638 = vcmask 130048
      %v640 = vsel %vm638, %v568, 0
      %v643 = vsel %vm638, %v569, 0
      %v646 = vsel %vm638, %v570, 0
      %v649 = vsel %vm638, %v571, 0
      %v652 = vsel %vm638, %v572, 0
      %v655 = vsel %vm638, %v573, 0
      %v658 = vsel %vm638, %v574, 0
      %v661 = vsel %vm638, %v575, 0
      %v664 = vsel %vm638, %v576, 0
      %v667 = vsel %vm638, %v577, 0
      %v670 = vsel %vm638, %v578, 0
      %v673 = vsel %vm638, %v579, 0
      %v676 = vsel %vm638, %v580, 0
      %v679 = vsel %vm638, %v581, 0
      %v682 = vsel %vm638, %v582, 0
      %v685 = vsel %vm638, %v583, 0
      %v688 = vsel %vm638, %v584, 0
      %v691 = vsel %vm638, %v585, 0
      %v694 = vsel %vm638, %v586, 0
      %v697 = vsel %vm638, %v587, 0
      %v700 = vsel %vm638, %v588, 0
      %v703 = vsel %vm638, %v589, 0
      %v706 = vsel %vm638, %v590, 0
      %v709 = vsel %vm638, %v591, 0
      %v712 = vsel %vm638, %v592, 0
      %v715 = vsel %vm638, %v593, 0
      %v718 = vsel %vm638, %v594, 0
      %v721 = vsel %vm638, %v595, 0
      %v724 = vsel %vm638, %v596, 0
      %v727 = vsel %vm638, %v597, 0
      %v730 = vsel %vm638, %v598, 0
      %v733 = vsel %vm638, %v599, 0
      %v736 = vsel %vm638, %v600, 0
      %v739 = vsel %vm638, %v601, 0
      %v742 = vsel %vm638, %v602, 0
      %v745 = vsel %vm638, %v603, 0
      %v748 = vsel %vm638, %v604, 0
      %v751 = vsel %vm638, %v605, 0
      %v754 = vsel %vm638, %v606, 0
      %v757 = vsel %vm638, %v607, 0
      %v760 = vsel %vm638, %v608, 0
      %v763 = vsel %vm638, %v609, 0
      %v766 = vsel %vm638, %v610, 0
      %v769 = vsel %vm638, %v611, 0
      %v772 = vsel %vm638, %v612, 0
      %v775 = vsel %vm638, %v613, 0
      %v778 = vsel %vm638, %v614, 0
      %v781 = vsel %vm638, %v615, 0
      %v784 = vsel %vm638, %v616, 0
      %v787 = vsel %vm638, %v617, 0
      %v790 = vsel %vm638, %v618, 0
      %v793 = vsel %vm638, %v619, 0
      %v796 = vsel %vm638, %v620, 0
      %v799 = vsel %vm638, %v621, 0
      %v802 = vsel %vm638, %v622, 0
      %v805 = vsel %vm638, %v623, 0
      %v808 = vsel %vm638, %v624, 0
      %v811 = vsel %vm638, %v625, 0
      %v814 = vsel %vm638, %v626, 0
      %v817 = vsel %vm638, %v627, 0
      %v820 = vsel %vm638, %v628, 0
      %v823 = vsel %vm638, %v629, 0
      %v826 = vsel %vm638, %v630, 0
      %v829 = vsel %vm638, %v631, 0
      %831 = vmatprep.subr.bf16.mxu0 0
      %832 = vmatpush1.bf16.msra.mxu0 0
      %833 = vmatprep.subr.bf16.mxu0 0
      %834 = vmatpush1.bf16.msra.mxu0 0
      %835 = vmatprep.subr.bf16.mxu0 0
      %836 = vmatpush1.bf16.msra.mxu0 0
      %837 = vmatprep.subr.bf16.mxu0 0
      %838 = vmatpush1.bf16.msra.mxu0 0
      %839 = vmatprep.subr.bf16.mxu0 0
      %840 = vmatpush1.bf16.msra.mxu0 0
      %841 = vmatprep.subr.bf16.mxu0 0
      %842 = vmatpush1.bf16.msra.mxu0 0
      %843 = vmatprep.subr.bf16.mxu0 0
      %844 = vmatpush1.bf16.msra.mxu0 0
      %845 = vmatprep.subr.bf16.mxu0 0
      %846 = vmatpush1.bf16.msra.mxu0 %v636
      %847 = vmatprep.subr.bf16.mxu0 0
      %848 = vmatpush2.bf16.msra.mxu0 0
      %849 = vmatprep.subr.bf16.mxu0 0
      %850 = vmatpush2.bf16.msra.mxu0 0
      %851 = vmatprep.subr.bf16.mxu0 0
      %852 = vmatpush2.bf16.msra.mxu0 0
      %853 = vmatprep.subr.bf16.mxu0 0
      %854 = vmatpush2.bf16.msra.mxu0 0
      %855 = vmatprep.subr.bf16.mxu0 0
      %856 = vmatpush2.bf16.msra.mxu0 0
      %857 = vmatprep.subr.bf16.mxu0 0
      %858 = vmatpush2.bf16.msra.mxu0 0
      %859 = vmatprep.subr.bf16.mxu0 0
      %860 = vmatpush2.bf16.msra.mxu0 0
      %861 = vmatprep.subr.bf16.mxu0 0
      %862 = vmatpush2.bf16.msra.mxu0 0
      %863 = vmatprep.mubr.bf16.mxu0 0
      %864 = vmatmul.mubr.bf16.gmra.mxu0 %v640
      %v865 = vpop.f32.mrf.mxu0
      %v866 = vadd.f32 %v310, %v865
      %v867 = vpop.f32.mrf.mxu0
      %v868 = vpop.f32.mrf.mxu0
      %v869 = vadd.f32 %v310, %v868
      %v870 = vpop.f32.mrf.mxu0
      %871 = vmatprep.mubr.bf16.mxu0 0
      %872 = vmatmul.mubr.bf16.gmra.mxu0 %v643
      %v873 = vpop.f32.mrf.mxu0
      %v874 = vadd.f32 %v310, %v873
      %v875 = vpop.f32.mrf.mxu0
      %v876 = vpop.f32.mrf.mxu0
      %v877 = vadd.f32 %v310, %v876
      %v878 = vpop.f32.mrf.mxu0
      %879 = vmatprep.mubr.bf16.mxu0 0
      %880 = vmatmul.mubr.bf16.gmra.mxu0 %v646
      %v881 = vpop.f32.mrf.mxu0
      %v882 = vadd.f32 %v310, %v881
      %v883 = vpop.f32.mrf.mxu0
      %v884 = vpop.f32.mrf.mxu0
      %v885 = vadd.f32 %v310, %v884
      %v886 = vpop.f32.mrf.mxu0
      %887 = vmatprep.mubr.bf16.mxu0 0
      %888 = vmatmul.mubr.bf16.gmra.mxu0 %v649
      %v889 = vpop.f32.mrf.mxu0
      %v890 = vadd.f32 %v310, %v889
      %v891 = vpop.f32.mrf.mxu0
      %v892 = vpop.f32.mrf.mxu0
      %v893 = vadd.f32 %v310, %v892
      %v894 = vpop.f32.mrf.mxu0
      %895 = vmatprep.mubr.bf16.mxu0 0
      %896 = vmatmul.mubr.bf16.gmra.mxu0 %v652
      %v897 = vpop.f32.mrf.mxu0
      %v898 = vadd.f32 %v310, %v897
      %v899 = vpop.f32.mrf.mxu0
      %v900 = vpop.f32.mrf.mxu0
      %v901 = vadd.f32 %v310, %v900
      %v902 = vpop.f32.mrf.mxu0
      %903 = vmatprep.mubr.bf16.mxu0 0
      %904 = vmatmul.mubr.bf16.gmra.mxu0 %v655
      %v905 = vpop.f32.mrf.mxu0
      %v906 = vadd.f32 %v310, %v905
      %v907 = vpop.f32.mrf.mxu0
      %v908 = vpop.f32.mrf.mxu0
      %v909 = vadd.f32 %v310, %v908
      %v910 = vpop.f32.mrf.mxu0
      %911 = vmatprep.mubr.bf16.mxu0 0
      %912 = vmatmul.mubr.bf16.gmra.mxu0 %v658
      %v913 = vpop.f32.mrf.mxu0
      %v914 = vadd.f32 %v310, %v913
      %v915 = vpop.f32.mrf.mxu0
      %v916 = vpop.f32.mrf.mxu0
      %v917 = vadd.f32 %v310, %v916
      %v918 = vpop.f32.mrf.mxu0
      %919 = vmatprep.mubr.bf16.mxu0 0
      %920 = vmatmul.mubr.bf16.gmra.mxu0 %v661
      %v921 = vpop.f32.mrf.mxu0
      %v922 = vadd.f32 %v310, %v921
      %v923 = vpop.f32.mrf.mxu0
      %v924 = vpop.f32.mrf.mxu0
      %v925 = vadd.f32 %v310, %v924
      %v926 = vpop.f32.mrf.mxu0
      %927 = vmatprep.mubr.bf16.mxu0 0
      %928 = vmatmul.mubr.bf16.gmra.mxu0 %v664
      %v929 = vpop.f32.mrf.mxu0
      %v930 = vadd.f32 %v310, %v929
      %v931 = vpop.f32.mrf.mxu0
      %v932 = vpop.f32.mrf.mxu0
      %v933 = vadd.f32 %v310, %v932
      %v934 = vpop.f32.mrf.mxu0
      %935 = vmatprep.mubr.bf16.mxu0 0
      %936 = vmatmul.mubr.bf16.gmra.mxu0 %v667
      %v937 = vpop.f32.mrf.mxu0
      %v938 = vadd.f32 %v310, %v937
      %v939 = vpop.f32.mrf.mxu0
      %v940 = vpop.f32.mrf.mxu0
      %v941 = vadd.f32 %v310, %v940
      %v942 = vpop.f32.mrf.mxu0
      %943 = vmatprep.mubr.bf16.mxu0 0
      %944 = vmatmul.mubr.bf16.gmra.mxu0 %v670
      %v945 = vpop.f32.mrf.mxu0
      %v946 = vadd.f32 %v310, %v945
      %v947 = vpop.f32.mrf.mxu0
      %v948 = vpop.f32.mrf.mxu0
      %v949 = vadd.f32 %v310, %v948
      %v950 = vpop.f32.mrf.mxu0
      %951 = vmatprep.mubr.bf16.mxu0 0
      %952 = vmatmul.mubr.bf16.gmra.mxu0 %v673
      %v953 = vpop.f32.mrf.mxu0
      %v954 = vadd.f32 %v310, %v953
      %v955 = vpop.f32.mrf.mxu0
      %v956 = vpop.f32.mrf.mxu0
      %v957 = vadd.f32 %v310, %v956
      %v958 = vpop.f32.mrf.mxu0
      %959 = vmatprep.mubr.bf16.mxu0 0
      %960 = vmatmul.mubr.bf16.gmra.mxu0 %v676
      %v961 = vpop.f32.mrf.mxu0
      %v962 = vadd.f32 %v310, %v961
      %v963 = vpop.f32.mrf.mxu0
      %v964 = vpop.f32.mrf.mxu0
      %v965 = vadd.f32 %v310, %v964
      %v966 = vpop.f32.mrf.mxu0
      %967 = vmatprep.mubr.bf16.mxu0 0
      %968 = vmatmul.mubr.bf16.gmra.mxu0 %v679
      %v969 = vpop.f32.mrf.mxu0
      %v970 = vadd.f32 %v310, %v969
      %v971 = vpop.f32.mrf.mxu0
      %v972 = vpop.f32.mrf.mxu0
      %v973 = vadd.f32 %v310, %v972
      %v974 = vpop.f32.mrf.mxu0
      %975 = vmatprep.mubr.bf16.mxu0 0
      %976 = vmatmul.mubr.bf16.gmra.mxu0 %v682
      %v977 = vpop.f32.mrf.mxu0
      %v978 = vadd.f32 %v310, %v977
      %v979 = vpop.f32.mrf.mxu0
      %v980 = vpop.f32.mrf.mxu0
      %v981 = vadd.f32 %v310, %v980
      %v982 = vpop.f32.mrf.mxu0
      %983 = vmatprep.mubr.bf16.mxu0 0
      %984 = vmatmul.mubr.bf16.gmra.mxu0 %v685
      %v985 = vpop.f32.mrf.mxu0
      %v986 = vadd.f32 %v310, %v985
      %v987 = vpop.f32.mrf.mxu0
      %v988 = vpop.f32.mrf.mxu0
      %v989 = vadd.f32 %v310, %v988
      %v990 = vpop.f32.mrf.mxu0
      %991 = vmatprep.mubr.bf16.mxu0 0
      %992 = vmatmul.mubr.bf16.gmra.mxu0 %v688
      %v993 = vpop.f32.mrf.mxu0
      %v994 = vadd.f32 %v310, %v993
      %v995 = vpop.f32.mrf.mxu0
      %v996 = vpop.f32.mrf.mxu0
      %v997 = vadd.f32 %v310, %v996
      %v998 = vpop.f32.mrf.mxu0
      %999 = vmatprep.mubr.bf16.mxu0 0
      %1000 = vmatmul.mubr.bf16.gmra.mxu0 %v691
      %v1001 = vpop.f32.mrf.mxu0
      %v1002 = vadd.f32 %v310, %v1001
      %v1003 = vpop.f32.mrf.mxu0
      %v1004 = vpop.f32.mrf.mxu0
      %v1005 = vadd.f32 %v310, %v1004
      %v1006 = vpop.f32.mrf.mxu0
      %1007 = vmatprep.mubr.bf16.mxu0 0
      %1008 = vmatmul.mubr.bf16.gmra.mxu0 %v694
      %v1009 = vpop.f32.mrf.mxu0
      %v1010 = vadd.f32 %v310, %v1009
      %v1011 = vpop.f32.mrf.mxu0
      %v1012 = vpop.f32.mrf.mxu0
      %v1013 = vadd.f32 %v310, %v1012
      %v1014 = vpop.f32.mrf.mxu0
      %1015 = vmatprep.mubr.bf16.mxu0 0
      %1016 = vmatmul.mubr.bf16.gmra.mxu0 %v697
      %v1017 = vpop.f32.mrf.mxu0
      %v1018 = vadd.f32 %v310, %v1017
      %v1019 = vpop.f32.mrf.mxu0
      %v1020 = vpop.f32.mrf.mxu0
      %v1021 = vadd.f32 %v310, %v1020
      %v1022 = vpop.f32.mrf.mxu0
      %1023 = vmatprep.mubr.bf16.mxu0 0
      %1024 = vmatmul.mubr.bf16.gmra.mxu0 %v700
      %v1025 = vpop.f32.mrf.mxu0
      %v1026 = vadd.f32 %v310, %v1025
      %v1027 = vpop.f32.mrf.mxu0
      %v1028 = vpop.f32.mrf.mxu0
      %v1029 = vadd.f32 %v310, %v1028
      %v1030 = vpop.f32.mrf.mxu0
      %1031 = vmatprep.mubr.bf16.mxu0 0
      %1032 = vmatmul.mubr.bf16.gmra.mxu0 %v703
      %v1033 = vpop.f32.mrf.mxu0
      %v1034 = vadd.f32 %v310, %v1033
      %v1035 = vpop.f32.mrf.mxu0
      %v1036 = vpop.f32.mrf.mxu0
      %v1037 = vadd.f32 %v310, %v1036
      %v1038 = vpop.f32.mrf.mxu0
      %1039 = vmatprep.mubr.bf16.mxu0 0
      %1040 = vmatmul.mubr.bf16.gmra.mxu0 %v706
      %v1041 = vpop.f32.mrf.mxu0
      %v1042 = vadd.f32 %v310, %v1041
      %v1043 = vpop.f32.mrf.mxu0
      %v1044 = vpop.f32.mrf.mxu0
      %v1045 = vadd.f32 %v310, %v1044
      %v1046 = vpop.f32.mrf.mxu0
      %1047 = vmatprep.mubr.bf16.mxu0 0
      %1048 = vmatmul.mubr.bf16.gmra.mxu0 %v709
      %v1049 = vpop.f32.mrf.mxu0
      %v1050 = vadd.f32 %v310, %v1049
      %v1051 = vpop.f32.mrf.mxu0
      %v1052 = vpop.f32.mrf.mxu0
      %v1053 = vadd.f32 %v310, %v1052
      %v1054 = vpop.f32.mrf.mxu0
      %1055 = vmatprep.mubr.bf16.mxu0 0
      %1056 = vmatmul.mubr.bf16.gmra.mxu0 %v712
      %v1057 = vpop.f32.mrf.mxu0
      %v1058 = vadd.f32 %v310, %v1057
      %v1059 = vpop.f32.mrf.mxu0
      %v1060 = vpop.f32.mrf.mxu0
      %v1061 = vadd.f32 %v310, %v1060
      %v1062 = vpop.f32.mrf.mxu0
      %1063 = vmatprep.mubr.bf16.mxu0 0
      %1064 = vmatmul.mubr.bf16.gmra.mxu0 %v715
      %v1065 = vpop.f32.mrf.mxu0
      %v1066 = vadd.f32 %v310, %v1065
      %v1067 = vpop.f32.mrf.mxu0
      %v1068 = vpop.f32.mrf.mxu0
      %v1069 = vadd.f32 %v310, %v1068
      %v1070 = vpop.f32.mrf.mxu0
      %1071 = vmatprep.mubr.bf16.mxu0 0
      %1072 = vmatmul.mubr.bf16.gmra.mxu0 %v718
      %v1073 = vpop.f32.mrf.mxu0
      %v1074 = vadd.f32 %v310, %v1073
      %v1075 = vpop.f32.mrf.mxu0
      %v1076 = vpop.f32.mrf.mxu0
      %v1077 = vadd.f32 %v310, %v1076
      %v1078 = vpop.f32.mrf.mxu0
      %1079 = vmatprep.mubr.bf16.mxu0 0
      %1080 = vmatmul.mubr.bf16.gmra.mxu0 %v721
      %v1081 = vpop.f32.mrf.mxu0
      %v1082 = vadd.f32 %v310, %v1081
      %v1083 = vpop.f32.mrf.mxu0
      %v1084 = vpop.f32.mrf.mxu0
      %v1085 = vadd.f32 %v310, %v1084
      %v1086 = vpop.f32.mrf.mxu0
      %1087 = vmatprep.mubr.bf16.mxu0 0
      %1088 = vmatmul.mubr.bf16.gmra.mxu0 %v724
      %v1089 = vpop.f32.mrf.mxu0
      %v1090 = vadd.f32 %v310, %v1089
      %v1091 = vpop.f32.mrf.mxu0
      %v1092 = vpop.f32.mrf.mxu0
      %v1093 = vadd.f32 %v310, %v1092
      %v1094 = vpop.f32.mrf.mxu0
      %1095 = vmatprep.mubr.bf16.mxu0 0
      %1096 = vmatmul.mubr.bf16.gmra.mxu0 %v727
      %v1097 = vpop.f32.mrf.mxu0
      %v1098 = vadd.f32 %v310, %v1097
      %v1099 = vpop.f32.mrf.mxu0
      %v1100 = vpop.f32.mrf.mxu0
      %v1101 = vadd.f32 %v310, %v1100
      %v1102 = vpop.f32.mrf.mxu0
      %1103 = vmatprep.mubr.bf16.mxu0 0
      %1104 = vmatmul.mubr.bf16.gmra.mxu0 %v730
      %v1105 = vpop.f32.mrf.mxu0
      %v1106 = vadd.f32 %v310, %v1105
      %v1107 = vpop.f32.mrf.mxu0
      %v1108 = vpop.f32.mrf.mxu0
      %v1109 = vadd.f32 %v310, %v1108
      %v1110 = vpop.f32.mrf.mxu0
      %1111 = vmatprep.mubr.bf16.mxu0 0
      %1112 = vmatmul.mubr.bf16.gmra.mxu0 %v733
      %v1113 = vpop.f32.mrf.mxu0
      %v1114 = vadd.f32 %v310, %v1113
      %v1115 = vpop.f32.mrf.mxu0
      %v1116 = vpop.f32.mrf.mxu0
      %v1117 = vadd.f32 %v310, %v1116
      %v1118 = vpop.f32.mrf.mxu0
      %1119 = vmatprep.mubr.bf16.mxu0 0
      %1120 = vmatmul.mubr.bf16.gmra.mxu0 %v736
      %v1121 = vpop.f32.mrf.mxu0
      %v1122 = vadd.f32 %v310, %v1121
      %v1123 = vpop.f32.mrf.mxu0
      %v1124 = vpop.f32.mrf.mxu0
      %v1125 = vadd.f32 %v310, %v1124
      %v1126 = vpop.f32.mrf.mxu0
      %1127 = vmatprep.mubr.bf16.mxu0 0
      %1128 = vmatmul.mubr.bf16.gmra.mxu0 %v739
      %v1129 = vpop.f32.mrf.mxu0
      %v1130 = vadd.f32 %v310, %v1129
      %v1131 = vpop.f32.mrf.mxu0
      %v1132 = vpop.f32.mrf.mxu0
      %v1133 = vadd.f32 %v310, %v1132
      %v1134 = vpop.f32.mrf.mxu0
      %1135 = vmatprep.mubr.bf16.mxu0 0
      %1136 = vmatmul.mubr.bf16.gmra.mxu0 %v742
      %v1137 = vpop.f32.mrf.mxu0
      %v1138 = vadd.f32 %v310, %v1137
      %v1139 = vpop.f32.mrf.mxu0
      %v1140 = vpop.f32.mrf.mxu0
      %v1141 = vadd.f32 %v310, %v1140
      %v1142 = vpop.f32.mrf.mxu0
      %1143 = vmatprep.mubr.bf16.mxu0 0
      %1144 = vmatmul.mubr.bf16.gmra.mxu0 %v745
      %v1145 = vpop.f32.mrf.mxu0
      %v1146 = vadd.f32 %v310, %v1145
      %v1147 = vpop.f32.mrf.mxu0
      %v1148 = vpop.f32.mrf.mxu0
      %v1149 = vadd.f32 %v310, %v1148
      %v1150 = vpop.f32.mrf.mxu0
      %1151 = vmatprep.mubr.bf16.mxu0 0
      %1152 = vmatmul.mubr.bf16.gmra.mxu0 %v748
      %v1153 = vpop.f32.mrf.mxu0
      %v1154 = vadd.f32 %v310, %v1153
      %v1155 = vpop.f32.mrf.mxu0
      %v1156 = vpop.f32.mrf.mxu0
      %v1157 = vadd.f32 %v310, %v1156
      %v1158 = vpop.f32.mrf.mxu0
      %1159 = vmatprep.mubr.bf16.mxu0 0
      %1160 = vmatmul.mubr.bf16.gmra.mxu0 %v751
      %v1161 = vpop.f32.mrf.mxu0
      %v1162 = vadd.f32 %v310, %v1161
      %v1163 = vpop.f32.mrf.mxu0
      %v1164 = vpop.f32.mrf.mxu0
      %v1165 = vadd.f32 %v310, %v1164
      %v1166 = vpop.f32.mrf.mxu0
      %1167 = vmatprep.mubr.bf16.mxu0 0
      %1168 = vmatmul.mubr.bf16.gmra.mxu0 %v754
      %v1169 = vpop.f32.mrf.mxu0
      %v1170 = vadd.f32 %v310, %v1169
      %v1171 = vpop.f32.mrf.mxu0
      %v1172 = vpop.f32.mrf.mxu0
      %v1173 = vadd.f32 %v310, %v1172
      %v1174 = vpop.f32.mrf.mxu0
      %1175 = vmatprep.mubr.bf16.mxu0 0
      %1176 = vmatmul.mubr.bf16.gmra.mxu0 %v757
      %v1177 = vpop.f32.mrf.mxu0
      %v1178 = vadd.f32 %v310, %v1177
      %v1179 = vpop.f32.mrf.mxu0
      %v1180 = vpop.f32.mrf.mxu0
      %v1181 = vadd.f32 %v310, %v1180
      %v1182 = vpop.f32.mrf.mxu0
      %1183 = vmatprep.mubr.bf16.mxu0 0
      %1184 = vmatmul.mubr.bf16.gmra.mxu0 %v760
      %v1185 = vpop.f32.mrf.mxu0
      %v1186 = vadd.f32 %v310, %v1185
      %v1187 = vpop.f32.mrf.mxu0
      %v1188 = vpop.f32.mrf.mxu0
      %v1189 = vadd.f32 %v310, %v1188
      %v1190 = vpop.f32.mrf.mxu0
      %1191 = vmatprep.mubr.bf16.mxu0 0
      %1192 = vmatmul.mubr.bf16.gmra.mxu0 %v763
      %v1193 = vpop.f32.mrf.mxu0
      %v1194 = vadd.f32 %v310, %v1193
      %v1195 = vpop.f32.mrf.mxu0
      %v1196 = vpop.f32.mrf.mxu0
      %v1197 = vadd.f32 %v310, %v1196
      %v1198 = vpop.f32.mrf.mxu0
      %1199 = vmatprep.mubr.bf16.mxu0 0
      %1200 = vmatmul.mubr.bf16.gmra.mxu0 %v766
      %v1201 = vpop.f32.mrf.mxu0
      %v1202 = vadd.f32 %v310, %v1201
      %v1203 = vpop.f32.mrf.mxu0
      %v1204 = vpop.f32.mrf.mxu0
      %v1205 = vadd.f32 %v310, %v1204
      %v1206 = vpop.f32.mrf.mxu0
      %1207 = vmatprep.mubr.bf16.mxu0 0
      %1208 = vmatmul.mubr.bf16.gmra.mxu0 %v769
      %v1209 = vpop.f32.mrf.mxu0
      %v1210 = vadd.f32 %v310, %v1209
      %v1211 = vpop.f32.mrf.mxu0
      %v1212 = vpop.f32.mrf.mxu0
      %v1213 = vadd.f32 %v310, %v1212
      %v1214 = vpop.f32.mrf.mxu0
      %1215 = vmatprep.mubr.bf16.mxu0 0
      %1216 = vmatmul.mubr.bf16.gmra.mxu0 %v772
      %v1217 = vpop.f32.mrf.mxu0
      %v1218 = vadd.f32 %v310, %v1217
      %v1219 = vpop.f32.mrf.mxu0
      %v1220 = vpop.f32.mrf.mxu0
      %v1221 = vadd.f32 %v310, %v1220
      %v1222 = vpop.f32.mrf.mxu0
      %1223 = vmatprep.mubr.bf16.mxu0 0
      %1224 = vmatmul.mubr.bf16.gmra.mxu0 %v775
      %v1225 = vpop.f32.mrf.mxu0
      %v1226 = vadd.f32 %v310, %v1225
      %v1227 = vpop.f32.mrf.mxu0
      %v1228 = vpop.f32.mrf.mxu0
      %v1229 = vadd.f32 %v310, %v1228
      %v1230 = vpop.f32.mrf.mxu0
      %1231 = vmatprep.mubr.bf16.mxu0 0
      %1232 = vmatmul.mubr.bf16.gmra.mxu0 %v778
      %v1233 = vpop.f32.mrf.mxu0
      %v1234 = vadd.f32 %v310, %v1233
      %v1235 = vpop.f32.mrf.mxu0
      %v1236 = vpop.f32.mrf.mxu0
      %v1237 = vadd.f32 %v310, %v1236
      %v1238 = vpop.f32.mrf.mxu0
      %1239 = vmatprep.mubr.bf16.mxu0 0
      %1240 = vmatmul.mubr.bf16.gmra.mxu0 %v781
      %v1241 = vpop.f32.mrf.mxu0
      %v1242 = vadd.f32 %v310, %v1241
      %v1243 = vpop.f32.mrf.mxu0
      %v1244 = vpop.f32.mrf.mxu0
      %v1245 = vadd.f32 %v310, %v1244
      %v1246 = vpop.f32.mrf.mxu0
      %1247 = vmatprep.mubr.bf16.mxu0 0
      %1248 = vmatmul.mubr.bf16.gmra.mxu0 %v784
      %v1249 = vpop.f32.mrf.mxu0
      %v1250 = vadd.f32 %v310, %v1249
      %v1251 = vpop.f32.mrf.mxu0
      %v1252 = vpop.f32.mrf.mxu0
      %v1253 = vadd.f32 %v310, %v1252
      %v1254 = vpop.f32.mrf.mxu0
      %1255 = vmatprep.mubr.bf16.mxu0 0
      %1256 = vmatmul.mubr.bf16.gmra.mxu0 %v787
      %v1257 = vpop.f32.mrf.mxu0
      %v1258 = vadd.f32 %v310, %v1257
      %v1259 = vpop.f32.mrf.mxu0
      %v1260 = vpop.f32.mrf.mxu0
      %v1261 = vadd.f32 %v310, %v1260
      %v1262 = vpop.f32.mrf.mxu0
      %1263 = vmatprep.mubr.bf16.mxu0 0
      %1264 = vmatmul.mubr.bf16.gmra.mxu0 %v790
      %v1265 = vpop.f32.mrf.mxu0
      %v1266 = vadd.f32 %v310, %v1265
      %v1267 = vpop.f32.mrf.mxu0
      %v1268 = vpop.f32.mrf.mxu0
      %v1269 = vadd.f32 %v310, %v1268
      %v1270 = vpop.f32.mrf.mxu0
      %1271 = vmatprep.mubr.bf16.mxu0 0
      %1272 = vmatmul.mubr.bf16.gmra.mxu0 %v793
      %v1273 = vpop.f32.mrf.mxu0
      %v1274 = vadd.f32 %v310, %v1273
      %v1275 = vpop.f32.mrf.mxu0
      %v1276 = vpop.f32.mrf.mxu0
      %v1277 = vadd.f32 %v310, %v1276
      %v1278 = vpop.f32.mrf.mxu0
      %1279 = vmatprep.mubr.bf16.mxu0 0
      %1280 = vmatmul.mubr.bf16.gmra.mxu0 %v796
      %v1281 = vpop.f32.mrf.mxu0
      %v1282 = vadd.f32 %v310, %v1281
      %v1283 = vpop.f32.mrf.mxu0
      %v1284 = vpop.f32.mrf.mxu0
      %v1285 = vadd.f32 %v310, %v1284
      %v1286 = vpop.f32.mrf.mxu0
      %1287 = vmatprep.mubr.bf16.mxu0 0
      %1288 = vmatmul.mubr.bf16.gmra.mxu0 %v799
      %v1289 = vpop.f32.mrf.mxu0
      %v1290 = vadd.f32 %v310, %v1289
      %v1291 = vpop.f32.mrf.mxu0
      %v1292 = vpop.f32.mrf.mxu0
      %v1293 = vadd.f32 %v310, %v1292
      %v1294 = vpop.f32.mrf.mxu0
      %1295 = vmatprep.mubr.bf16.mxu0 0
      %1296 = vmatmul.mubr.bf16.gmra.mxu0 %v802
      %v1297 = vpop.f32.mrf.mxu0
      %v1298 = vadd.f32 %v310, %v1297
      %v1299 = vpop.f32.mrf.mxu0
      %v1300 = vpop.f32.mrf.mxu0
      %v1301 = vadd.f32 %v310, %v1300
      %v1302 = vpop.f32.mrf.mxu0
      %1303 = vmatprep.mubr.bf16.mxu0 0
      %1304 = vmatmul.mubr.bf16.gmra.mxu0 %v805
      %v1305 = vpop.f32.mrf.mxu0
      %v1306 = vadd.f32 %v310, %v1305
      %v1307 = vpop.f32.mrf.mxu0
      %v1308 = vpop.f32.mrf.mxu0
      %v1309 = vadd.f32 %v310, %v1308
      %v1310 = vpop.f32.mrf.mxu0
      %1311 = vmatprep.mubr.bf16.mxu0 0
      %1312 = vmatmul.mubr.bf16.gmra.mxu0 %v808
      %v1313 = vpop.f32.mrf.mxu0
      %v1314 = vadd.f32 %v310, %v1313
      %v1315 = vpop.f32.mrf.mxu0
      %v1316 = vpop.f32.mrf.mxu0
      %v1317 = vadd.f32 %v310, %v1316
      %v1318 = vpop.f32.mrf.mxu0
      %1319 = vmatprep.mubr.bf16.mxu0 0
      %1320 = vmatmul.mubr.bf16.gmra.mxu0 %v811
      %v1321 = vpop.f32.mrf.mxu0
      %v1322 = vadd.f32 %v310, %v1321
      %v1323 = vpop.f32.mrf.mxu0
      %v1324 = vpop.f32.mrf.mxu0
      %v1325 = vadd.f32 %v310, %v1324
      %v1326 = vpop.f32.mrf.mxu0
      %1327 = vmatprep.mubr.bf16.mxu0 0
      %1328 = vmatmul.mubr.bf16.gmra.mxu0 %v814
      %v1329 = vpop.f32.mrf.mxu0
      %v1330 = vadd.f32 %v310, %v1329
      %v1331 = vpop.f32.mrf.mxu0
      %v1332 = vpop.f32.mrf.mxu0
      %v1333 = vadd.f32 %v310, %v1332
      %v1334 = vpop.f32.mrf.mxu0
      %1335 = vmatprep.mubr.bf16.mxu0 0
      %1336 = vmatmul.mubr.bf16.gmra.mxu0 %v817
      %v1337 = vpop.f32.mrf.mxu0
      %v1338 = vadd.f32 %v310, %v1337
      %v1339 = vpop.f32.mrf.mxu0
      %v1340 = vpop.f32.mrf.mxu0
      %v1341 = vadd.f32 %v310, %v1340
      %v1342 = vpop.f32.mrf.mxu0
      %1343 = vmatprep.mubr.bf16.mxu0 0
      %1344 = vmatmul.mubr.bf16.gmra.mxu0 %v820
      %v1345 = vpop.f32.mrf.mxu0
      %v1346 = vadd.f32 %v310, %v1345
      %v1347 = vpop.f32.mrf.mxu0
      %v1348 = vpop.f32.mrf.mxu0
      %v1349 = vadd.f32 %v310, %v1348
      %v1350 = vpop.f32.mrf.mxu0
      %1351 = vmatprep.mubr.bf16.mxu0 0
      %1352 = vmatmul.mubr.bf16.gmra.mxu0 %v823
      %v1353 = vpop.f32.mrf.mxu0
      %v1354 = vadd.f32 %v310, %v1353
      %v1355 = vpop.f32.mrf.mxu0
      %v1356 = vpop.f32.mrf.mxu0
      %v1357 = vadd.f32 %v310, %v1356
      %v1358 = vpop.f32.mrf.mxu0
      %1359 = vmatprep.mubr.bf16.mxu0 0
      %1360 = vmatmul.mubr.bf16.gmra.mxu0 %v826
      %v1361 = vpop.f32.mrf.mxu0
      %v1362 = vadd.f32 %v310, %v1361
      %v1363 = vpop.f32.mrf.mxu0
      %v1364 = vpop.f32.mrf.mxu0
      %v1365 = vadd.f32 %v310, %v1364
      %v1366 = vpop.f32.mrf.mxu0
      %1367 = vmatprep.mubr.bf16.mxu0 0
      %1368 = vmatmul.mubr.bf16.gmra.mxu0 %v829
      %v1369 = vpop.f32.mrf.mxu0
      %v1370 = vadd.f32 %v310, %v1369
      %v1371 = vpop.f32.mrf.mxu0
      %v1372 = vpop.f32.mrf.mxu0
      %v1373 = vadd.f32 %v310, %v1372
      %v1374 = vpop.f32.mrf.mxu0
      %1375 = vdwg.mxu0
      %v1376 = vmax.f32 %v866, 0.0
      %v1377 = vmax.f32 %v869, 0.0
      %v1378 = vmax.f32 %v874, 0.0
      %v1379 = vmax.f32 %v877, 0.0
      %v1380 = vmax.f32 %v882, 0.0
      %v1381 = vmax.f32 %v885, 0.0
      %v1382 = vmax.f32 %v890, 0.0
      %v1383 = vmax.f32 %v893, 0.0
      %v1384 = vmax.f32 %v898, 0.0
      %v1385 = vmax.f32 %v901, 0.0
      %v1386 = vmax.f32 %v906, 0.0
      %v1387 = vmax.f32 %v909, 0.0
      %v1388 = vmax.f32 %v914, 0.0
      %v1389 = vmax.f32 %v917, 0.0
      %v1390 = vmax.f32 %v922, 0.0
      %v1391 = vmax.f32 %v925, 0.0
      %v1392 = vmax.f32 %v930, 0.0
      %v1393 = vmax.f32 %v933, 0.0
      %v1394 = vmax.f32 %v938, 0.0
      %v1395 = vmax.f32 %v941, 0.0
      %v1396 = vmax.f32 %v946, 0.0
      %v1397 = vmax.f32 %v949, 0.0
      %v1398 = vmax.f32 %v954, 0.0
      %v1399 = vmax.f32 %v957, 0.0
      %v1400 = vmax.f32 %v962, 0.0
      %v1401 = vmax.f32 %v965, 0.0
      %v1402 = vmax.f32 %v970, 0.0
      %v1403 = vmax.f32 %v973, 0.0
      %v1404 = vmax.f32 %v978, 0.0
      %v1405 = vmax.f32 %v981, 0.0
      %v1406 = vmax.f32 %v986, 0.0
      %v1407 = vmax.f32 %v989, 0.0
      %v1408 = vmax.f32 %v994, 0.0
      %v1409 = vmax.f32 %v997, 0.0
      %v1410 = vmax.f32 %v1002, 0.0
      %v1411 = vmax.f32 %v1005, 0.0
      %v1412 = vmax.f32 %v1010, 0.0
      %v1413 = vmax.f32 %v1013, 0.0
      %v1414 = vmax.f32 %v1018, 0.0
      %v1415 = vmax.f32 %v1021, 0.0
      %v1416 = vmax.f32 %v1026, 0.0
      %v1417 = vmax.f32 %v1029, 0.0
      %v1418 = vmax.f32 %v1034, 0.0
      %v1419 = vmax.f32 %v1037, 0.0
      %v1420 = vmax.f32 %v1042, 0.0
      %v1421 = vmax.f32 %v1045, 0.0
      %v1422 = vmax.f32 %v1050, 0.0
      %v1423 = vmax.f32 %v1053, 0.0
      %v1424 = vmax.f32 %v1058, 0.0
      %v1425 = vmax.f32 %v1061, 0.0
      %v1426 = vmax.f32 %v1066, 0.0
      %v1427 = vmax.f32 %v1069, 0.0
      %v1428 = vmax.f32 %v1074, 0.0
      %v1429 = vmax.f32 %v1077, 0.0
      %v1430 = vmax.f32 %v1082, 0.0
      %v1431 = vmax.f32 %v1085, 0.0
      %v1432 = vmax.f32 %v1090, 0.0
      %v1433 = vmax.f32 %v1093, 0.0
      %v1434 = vmax.f32 %v1098, 0.0
      %v1435 = vmax.f32 %v1101, 0.0
      %v1436 = vmax.f32 %v1106, 0.0
      %v1437 = vmax.f32 %v1109, 0.0
      %v1438 = vmax.f32 %v1114, 0.0
      %v1439 = vmax.f32 %v1117, 0.0
      %v1440 = vmax.f32 %v1122, 0.0
      %v1441 = vmax.f32 %v1125, 0.0
      %v1442 = vmax.f32 %v1130, 0.0
      %v1443 = vmax.f32 %v1133, 0.0
      %v1444 = vmax.f32 %v1138, 0.0
      %v1445 = vmax.f32 %v1141, 0.0
      %v1446 = vmax.f32 %v1146, 0.0
      %v1447 = vmax.f32 %v1149, 0.0
      %v1448 = vmax.f32 %v1154, 0.0
      %v1449 = vmax.f32 %v1157, 0.0
      %v1450 = vmax.f32 %v1162, 0.0
      %v1451 = vmax.f32 %v1165, 0.0
      %v1452 = vmax.f32 %v1170, 0.0
      %v1453 = vmax.f32 %v1173, 0.0
      %v1454 = vmax.f32 %v1178, 0.0
      %v1455 = vmax.f32 %v1181, 0.0
      %v1456 = vmax.f32 %v1186, 0.0
      %v1457 = vmax.f32 %v1189, 0.0
      %v1458 = vmax.f32 %v1194, 0.0
      %v1459 = vmax.f32 %v1197, 0.0
      %v1460 = vmax.f32 %v1202, 0.0
      %v1461 = vmax.f32 %v1205, 0.0
      %v1462 = vmax.f32 %v1210, 0.0
      %v1463 = vmax.f32 %v1213, 0.0
      %v1464 = vmax.f32 %v1218, 0.0
      %v1465 = vmax.f32 %v1221, 0.0
      %v1466 = vmax.f32 %v1226, 0.0
      %v1467 = vmax.f32 %v1229, 0.0
      %v1468 = vmax.f32 %v1234, 0.0
      %v1469 = vmax.f32 %v1237, 0.0
      %v1470 = vmax.f32 %v1242, 0.0
      %v1471 = vmax.f32 %v1245, 0.0
      %v1472 = vmax.f32 %v1250, 0.0
      %v1473 = vmax.f32 %v1253, 0.0
      %v1474 = vmax.f32 %v1258, 0.0
      %v1475 = vmax.f32 %v1261, 0.0
      %v1476 = vmax.f32 %v1266, 0.0
      %v1477 = vmax.f32 %v1269, 0.0
      %v1478 = vmax.f32 %v1274, 0.0
      %v1479 = vmax.f32 %v1277, 0.0
      %v1480 = vmax.f32 %v1282, 0.0
      %v1481 = vmax.f32 %v1285, 0.0
      %v1482 = vmax.f32 %v1290, 0.0
      %v1483 = vmax.f32 %v1293, 0.0
      %v1484 = vmax.f32 %v1298, 0.0
      %v1485 = vmax.f32 %v1301, 0.0
      %v1486 = vmax.f32 %v1306, 0.0
      %v1487 = vmax.f32 %v1309, 0.0
      %v1488 = vmax.f32 %v1314, 0.0
      %v1489 = vmax.f32 %v1317, 0.0
      %v1490 = vmax.f32 %v1322, 0.0
      %v1491 = vmax.f32 %v1325, 0.0
      %v1492 = vmax.f32 %v1330, 0.0
      %v1493 = vmax.f32 %v1333, 0.0
      %v1494 = vmax.f32 %v1338, 0.0
      %v1495 = vmax.f32 %v1341, 0.0
      %v1496 = vmax.f32 %v1346, 0.0
      %v1497 = vmax.f32 %v1349, 0.0
      %v1498 = vmax.f32 %v1354, 0.0
      %v1499 = vmax.f32 %v1357, 0.0
      %v1500 = vmax.f32 %v1362, 0.0
      %v1501 = vmax.f32 %v1365, 0.0
      %v1502 = vmax.f32 %v1370, 0.0
      %v1503 = vmax.f32 %v1373, 0.0
      %v1504 = vpack.c.bf16 %v1377, %v1376
      %v1505 = vpack.c.bf16 %v1379, %v1378
      %v1506 = vpack.c.bf16 %v1381, %v1380
      %v1507 = vpack.c.bf16 %v1383, %v1382
      %v1508 = vpack.c.bf16 %v1385, %v1384
      %v1509 = vpack.c.bf16 %v1387, %v1386
      %v1510 = vpack.c.bf16 %v1389, %v1388
      %v1511 = vpack.c.bf16 %v1391, %v1390
      %v1512 = vpack.c.bf16 %v1393, %v1392
      %v1513 = vpack.c.bf16 %v1395, %v1394
      %v1514 = vpack.c.bf16 %v1397, %v1396
      %v1515 = vpack.c.bf16 %v1399, %v1398
      %v1516 = vpack.c.bf16 %v1401, %v1400
      %v1517 = vpack.c.bf16 %v1403, %v1402
      %v1518 = vpack.c.bf16 %v1405, %v1404
      %v1519 = vpack.c.bf16 %v1407, %v1406
      %v1520 = vpack.c.bf16 %v1409, %v1408
      %v1521 = vpack.c.bf16 %v1411, %v1410
      %v1522 = vpack.c.bf16 %v1413, %v1412
      %v1523 = vpack.c.bf16 %v1415, %v1414
      %v1524 = vpack.c.bf16 %v1417, %v1416
      %v1525 = vpack.c.bf16 %v1419, %v1418
      %v1526 = vpack.c.bf16 %v1421, %v1420
      %v1527 = vpack.c.bf16 %v1423, %v1422
      %v1528 = vpack.c.bf16 %v1425, %v1424
      %v1529 = vpack.c.bf16 %v1427, %v1426
      %v1530 = vpack.c.bf16 %v1429, %v1428
      %v1531 = vpack.c.bf16 %v1431, %v1430
      %v1532 = vpack.c.bf16 %v1433, %v1432
      %v1533 = vpack.c.bf16 %v1435, %v1434
      %v1534 = vpack.c.bf16 %v1437, %v1436
      %v1535 = vpack.c.bf16 %v1439, %v1438
      %v1536 = vpack.c.bf16 %v1441, %v1440
      %v1537 = vpack.c.bf16 %v1443, %v1442
      %v1538 = vpack.c.bf16 %v1445, %v1444
      %v1539 = vpack.c.bf16 %v1447, %v1446
      %v1540 = vpack.c.bf16 %v1449, %v1448
      %v1541 = vpack.c.bf16 %v1451, %v1450
      %v1542 = vpack.c.bf16 %v1453, %v1452
      %v1543 = vpack.c.bf16 %v1455, %v1454
      %v1544 = vpack.c.bf16 %v1457, %v1456
      %v1545 = vpack.c.bf16 %v1459, %v1458
      %v1546 = vpack.c.bf16 %v1461, %v1460
      %v1547 = vpack.c.bf16 %v1463, %v1462
      %v1548 = vpack.c.bf16 %v1465, %v1464
      %v1549 = vpack.c.bf16 %v1467, %v1466
      %v1550 = vpack.c.bf16 %v1469, %v1468
      %v1551 = vpack.c.bf16 %v1471, %v1470
      %v1552 = vpack.c.bf16 %v1473, %v1472
      %v1553 = vpack.c.bf16 %v1475, %v1474
      %v1554 = vpack.c.bf16 %v1477, %v1476
      %v1555 = vpack.c.bf16 %v1479, %v1478
      %v1556 = vpack.c.bf16 %v1481, %v1480
      %v1557 = vpack.c.bf16 %v1483, %v1482
      %v1558 = vpack.c.bf16 %v1485, %v1484
      %v1559 = vpack.c.bf16 %v1487, %v1486
      %v1560 = vpack.c.bf16 %v1489, %v1488
      %v1561 = vpack.c.bf16 %v1491, %v1490
      %v1562 = vpack.c.bf16 %v1493, %v1492
      %v1563 = vpack.c.bf16 %v1495, %v1494
      %v1564 = vpack.c.bf16 %v1497, %v1496
      %v1565 = vpack.c.bf16 %v1499, %v1498
      %v1566 = vpack.c.bf16 %v1501, %v1500
      %v1567 = vpack.c.bf16 %v1503, %v1502
      %v1632 = vunpack.c.l.b16 %v1504
      %v1633 = vunpack.c.h.b16 %v1504
      %v1634 = vunpack.c.l.b16 %v1505
      %v1635 = vunpack.c.h.b16 %v1505
      %v1636 = vunpack.c.l.b16 %v1506
      %v1637 = vunpack.c.h.b16 %v1506
      %v1638 = vunpack.c.l.b16 %v1507
      %v1639 = vunpack.c.h.b16 %v1507
      %v1640 = vunpack.c.l.b16 %v1508
      %v1641 = vunpack.c.h.b16 %v1508
      %v1642 = vunpack.c.l.b16 %v1509
      %v1643 = vunpack.c.h.b16 %v1509
      %v1644 = vunpack.c.l.b16 %v1510
      %v1645 = vunpack.c.h.b16 %v1510
      %v1646 = vunpack.c.l.b16 %v1511
      %v1647 = vunpack.c.h.b16 %v1511
      %v1648 = vunpack.c.l.b16 %v1512
      %v1649 = vunpack.c.h.b16 %v1512
      %v1650 = vunpack.c.l.b16 %v1513
      %v1651 = vunpack.c.h.b16 %v1513
      %v1652 = vunpack.c.l.b16 %v1514
      %v1653 = vunpack.c.h.b16 %v1514
      %v1654 = vunpack.c.l.b16 %v1515
      %v1655 = vunpack.c.h.b16 %v1515
      %v1656 = vunpack.c.l.b16 %v1516
      %v1657 = vunpack.c.h.b16 %v1516
      %v1658 = vunpack.c.l.b16 %v1517
      %v1659 = vunpack.c.h.b16 %v1517
      %v1660 = vunpack.c.l.b16 %v1518
      %v1661 = vunpack.c.h.b16 %v1518
      %v1662 = vunpack.c.l.b16 %v1519
      %v1663 = vunpack.c.h.b16 %v1519
      %v1664 = vunpack.c.l.b16 %v1520
      %v1665 = vunpack.c.h.b16 %v1520
      %v1666 = vunpack.c.l.b16 %v1521
      %v1667 = vunpack.c.h.b16 %v1521
      %v1668 = vunpack.c.l.b16 %v1522
      %v1669 = vunpack.c.h.b16 %v1522
      %v1670 = vunpack.c.l.b16 %v1523
      %v1671 = vunpack.c.h.b16 %v1523
      %v1672 = vunpack.c.l.b16 %v1524
      %v1673 = vunpack.c.h.b16 %v1524
      %v1674 = vunpack.c.l.b16 %v1525
      %v1675 = vunpack.c.h.b16 %v1525
      %v1676 = vunpack.c.l.b16 %v1526
      %v1677 = vunpack.c.h.b16 %v1526
      %v1678 = vunpack.c.l.b16 %v1527
      %v1679 = vunpack.c.h.b16 %v1527
      %v1680 = vunpack.c.l.b16 %v1528
      %v1681 = vunpack.c.h.b16 %v1528
      %v1682 = vunpack.c.l.b16 %v1529
      %v1683 = vunpack.c.h.b16 %v1529
      %v1684 = vunpack.c.l.b16 %v1530
      %v1685 = vunpack.c.h.b16 %v1530
      %v1686 = vunpack.c.l.b16 %v1531
      %v1687 = vunpack.c.h.b16 %v1531
      %v1688 = vunpack.c.l.b16 %v1532
      %v1689 = vunpack.c.h.b16 %v1532
      %v1690 = vunpack.c.l.b16 %v1533
      %v1691 = vunpack.c.h.b16 %v1533
      %v1692 = vunpack.c.l.b16 %v1534
      %v1693 = vunpack.c.h.b16 %v1534
      %v1694 = vunpack.c.l.b16 %v1535
      %v1695 = vunpack.c.h.b16 %v1535
      %v1696 = vunpack.c.l.b16 %v1536
      %v1697 = vunpack.c.h.b16 %v1536
      %v1698 = vunpack.c.l.b16 %v1537
      %v1699 = vunpack.c.h.b16 %v1537
      %v1700 = vunpack.c.l.b16 %v1538
      %v1701 = vunpack.c.h.b16 %v1538
      %v1702 = vunpack.c.l.b16 %v1539
      %v1703 = vunpack.c.h.b16 %v1539
      %v1704 = vunpack.c.l.b16 %v1540
      %v1705 = vunpack.c.h.b16 %v1540
      %v1706 = vunpack.c.l.b16 %v1541
      %v1707 = vunpack.c.h.b16 %v1541
      %v1708 = vunpack.c.l.b16 %v1542
      %v1709 = vunpack.c.h.b16 %v1542
      %v1710 = vunpack.c.l.b16 %v1543
      %v1711 = vunpack.c.h.b16 %v1543
      %v1712 = vunpack.c.l.b16 %v1544
      %v1713 = vunpack.c.h.b16 %v1544
      %v1714 = vunpack.c.l.b16 %v1545
      %v1715 = vunpack.c.h.b16 %v1545
      %v1716 = vunpack.c.l.b16 %v1546
      %v1717 = vunpack.c.h.b16 %v1546
      %v1718 = vunpack.c.l.b16 %v1547
      %v1719 = vunpack.c.h.b16 %v1547
      %v1720 = vunpack.c.l.b16 %v1548
      %v1721 = vunpack.c.h.b16 %v1548
      %v1722 = vunpack.c.l.b16 %v1549
      %v1723 = vunpack.c.h.b16 %v1549
      %v1724 = vunpack.c.l.b16 %v1550
      %v1725 = vunpack.c.h.b16 %v1550
      %v1726 = vunpack.c.l.b16 %v1551
      %v1727 = vunpack.c.h.b16 %v1551
      %v1728 = vunpack.c.l.b16 %v1552
      %v1729 = vunpack.c.h.b16 %v1552
      %v1730 = vunpack.c.l.b16 %v1553
      %v1731 = vunpack.c.h.b16 %v1553
      %v1732 = vunpack.c.l.b16 %v1554
      %v1733 = vunpack.c.h.b16 %v1554
      %v1734 = vunpack.c.l.b16 %v1555
      %v1735 = vunpack.c.h.b16 %v1555
      %v1736 = vunpack.c.l.b16 %v1556
      %v1737 = vunpack.c.h.b16 %v1556
      %v1738 = vunpack.c.l.b16 %v1557
      %v1739 = vunpack.c.h.b16 %v1557
      %v1740 = vunpack.c.l.b16 %v1558
      %v1741 = vunpack.c.h.b16 %v1558
      %v1742 = vunpack.c.l.b16 %v1559
      %v1743 = vunpack.c.h.b16 %v1559
      %v1744 = vunpack.c.l.b16 %v1560
      %v1745 = vunpack.c.h.b16 %v1560
      %v1746 = vunpack.c.l.b16 %v1561
      %v1747 = vunpack.c.h.b16 %v1561
      %v1748 = vunpack.c.l.b16 %v1562
      %v1749 = vunpack.c.h.b16 %v1562
      %v1750 = vunpack.c.l.b16 %v1563
      %v1751 = vunpack.c.h.b16 %v1563
      %v1752 = vunpack.c.l.b16 %v1564
      %v1753 = vunpack.c.h.b16 %v1564
      %v1754 = vunpack.c.l.b16 %v1565
      %v1755 = vunpack.c.h.b16 %v1565
      %v1756 = vunpack.c.l.b16 %v1566
      %v1757 = vunpack.c.h.b16 %v1566
      %v1758 = vunpack.c.l.b16 %v1567
      %v1759 = vunpack.c.h.b16 %v1567
      %v1760 = vpack.c.b16 %v1632, %v1632
      %v1761 = vpack.c.b16 %v1633, %v1633
      %v1762 = vpack.c.b16 %v1634, %v1634
      %v1763 = vpack.c.b16 %v1635, %v1635
      %v1764 = vpack.c.b16 %v1636, %v1636
      %v1765 = vpack.c.b16 %v1637, %v1637
      %v1766 = vpack.c.b16 %v1638, %v1638
      %v1767 = vpack.c.b16 %v1639, %v1639
      %v1768 = vpack.c.b16 %v1640, %v1640
      %v1769 = vpack.c.b16 %v1641, %v1641
      %v1770 = vpack.c.b16 %v1642, %v1642
      %v1771 = vpack.c.b16 %v1643, %v1643
      %v1772 = vpack.c.b16 %v1644, %v1644
      %v1773 = vpack.c.b16 %v1645, %v1645
      %v1774 = vpack.c.b16 %v1646, %v1646
      %v1775 = vpack.c.b16 %v1647, %v1647
      %v1776 = vpack.c.b16 %v1648, %v1648
      %v1777 = vpack.c.b16 %v1649, %v1649
      %v1778 = vpack.c.b16 %v1650, %v1650
      %v1779 = vpack.c.b16 %v1651, %v1651
      %v1780 = vpack.c.b16 %v1652, %v1652
      %v1781 = vpack.c.b16 %v1653, %v1653
      %v1782 = vpack.c.b16 %v1654, %v1654
      %v1783 = vpack.c.b16 %v1655, %v1655
      %v1784 = vpack.c.b16 %v1656, %v1656
      %v1785 = vpack.c.b16 %v1657, %v1657
      %v1786 = vpack.c.b16 %v1658, %v1658
      %v1787 = vpack.c.b16 %v1659, %v1659
      %v1788 = vpack.c.b16 %v1660, %v1660
      %v1789 = vpack.c.b16 %v1661, %v1661
      %v1790 = vpack.c.b16 %v1662, %v1662
      %v1791 = vpack.c.b16 %v1663, %v1663
      %v1792 = vpack.c.b16 %v1664, %v1664
      %v1793 = vpack.c.b16 %v1665, %v1665
      %v1794 = vpack.c.b16 %v1666, %v1666
      %v1795 = vpack.c.b16 %v1667, %v1667
      %v1796 = vpack.c.b16 %v1668, %v1668
      %v1797 = vpack.c.b16 %v1669, %v1669
      %v1798 = vpack.c.b16 %v1670, %v1670
      %v1799 = vpack.c.b16 %v1671, %v1671
      %v1800 = vpack.c.b16 %v1672, %v1672
      %v1801 = vpack.c.b16 %v1673, %v1673
      %v1802 = vpack.c.b16 %v1674, %v1674
      %v1803 = vpack.c.b16 %v1675, %v1675
      %v1804 = vpack.c.b16 %v1676, %v1676
      %v1805 = vpack.c.b16 %v1677, %v1677
      %v1806 = vpack.c.b16 %v1678, %v1678
      %v1807 = vpack.c.b16 %v1679, %v1679
      %v1808 = vpack.c.b16 %v1680, %v1680
      %v1809 = vpack.c.b16 %v1681, %v1681
      %v1810 = vpack.c.b16 %v1682, %v1682
      %v1811 = vpack.c.b16 %v1683, %v1683
      %v1812 = vpack.c.b16 %v1684, %v1684
      %v1813 = vpack.c.b16 %v1685, %v1685
      %v1814 = vpack.c.b16 %v1686, %v1686
      %v1815 = vpack.c.b16 %v1687, %v1687
      %v1816 = vpack.c.b16 %v1688, %v1688
      %v1817 = vpack.c.b16 %v1689, %v1689
      %v1818 = vpack.c.b16 %v1690, %v1690
      %v1819 = vpack.c.b16 %v1691, %v1691
      %v1820 = vpack.c.b16 %v1692, %v1692
      %v1821 = vpack.c.b16 %v1693, %v1693
      %v1822 = vpack.c.b16 %v1694, %v1694
      %v1823 = vpack.c.b16 %v1695, %v1695
      %v1824 = vpack.c.b16 %v1696, %v1696
      %v1825 = vpack.c.b16 %v1697, %v1697
      %v1826 = vpack.c.b16 %v1698, %v1698
      %v1827 = vpack.c.b16 %v1699, %v1699
      %v1828 = vpack.c.b16 %v1700, %v1700
      %v1829 = vpack.c.b16 %v1701, %v1701
      %v1830 = vpack.c.b16 %v1702, %v1702
      %v1831 = vpack.c.b16 %v1703, %v1703
      %v1832 = vpack.c.b16 %v1704, %v1704
      %v1833 = vpack.c.b16 %v1705, %v1705
      %v1834 = vpack.c.b16 %v1706, %v1706
      %v1835 = vpack.c.b16 %v1707, %v1707
      %v1836 = vpack.c.b16 %v1708, %v1708
      %v1837 = vpack.c.b16 %v1709, %v1709
      %v1838 = vpack.c.b16 %v1710, %v1710
      %v1839 = vpack.c.b16 %v1711, %v1711
      %v1840 = vpack.c.b16 %v1712, %v1712
      %v1841 = vpack.c.b16 %v1713, %v1713
      %v1842 = vpack.c.b16 %v1714, %v1714
      %v1843 = vpack.c.b16 %v1715, %v1715
      %v1844 = vpack.c.b16 %v1716, %v1716
      %v1845 = vpack.c.b16 %v1717, %v1717
      %v1846 = vpack.c.b16 %v1718, %v1718
      %v1847 = vpack.c.b16 %v1719, %v1719
      %v1848 = vpack.c.b16 %v1720, %v1720
      %v1849 = vpack.c.b16 %v1721, %v1721
      %v1850 = vpack.c.b16 %v1722, %v1722
      %v1851 = vpack.c.b16 %v1723, %v1723
      %v1852 = vpack.c.b16 %v1724, %v1724
      %v1853 = vpack.c.b16 %v1725, %v1725
      %v1854 = vpack.c.b16 %v1726, %v1726
      %v1855 = vpack.c.b16 %v1727, %v1727
      %v1856 = vpack.c.b16 %v1728, %v1728
      %v1857 = vpack.c.b16 %v1729, %v1729
      %v1858 = vpack.c.b16 %v1730, %v1730
      %v1859 = vpack.c.b16 %v1731, %v1731
      %v1860 = vpack.c.b16 %v1732, %v1732
      %v1861 = vpack.c.b16 %v1733, %v1733
      %v1862 = vpack.c.b16 %v1734, %v1734
      %v1863 = vpack.c.b16 %v1735, %v1735
      %v1864 = vpack.c.b16 %v1736, %v1736
      %v1865 = vpack.c.b16 %v1737, %v1737
      %v1866 = vpack.c.b16 %v1738, %v1738
      %v1867 = vpack.c.b16 %v1739, %v1739
      %v1868 = vpack.c.b16 %v1740, %v1740
      %v1869 = vpack.c.b16 %v1741, %v1741
      %v1870 = vpack.c.b16 %v1742, %v1742
      %v1871 = vpack.c.b16 %v1743, %v1743
      %v1872 = vpack.c.b16 %v1744, %v1744
      %v1873 = vpack.c.b16 %v1745, %v1745
      %v1874 = vpack.c.b16 %v1746, %v1746
      %v1875 = vpack.c.b16 %v1747, %v1747
      %v1876 = vpack.c.b16 %v1748, %v1748
      %v1877 = vpack.c.b16 %v1749, %v1749
      %v1878 = vpack.c.b16 %v1750, %v1750
      %v1879 = vpack.c.b16 %v1751, %v1751
      %v1880 = vpack.c.b16 %v1752, %v1752
      %v1881 = vpack.c.b16 %v1753, %v1753
      %v1882 = vpack.c.b16 %v1754, %v1754
      %v1883 = vpack.c.b16 %v1755, %v1755
      %v1884 = vpack.c.b16 %v1756, %v1756
      %v1885 = vpack.c.b16 %v1757, %v1757
      %v1886 = vpack.c.b16 %v1758, %v1758
      %v1887 = vpack.c.b16 %v1759, %v1759
      %vm2016 = vcmask 257024
      %2017 = vst.msk [vmem:[%s172] sm:$0xf] %vm2016, %v1760
      %2018 = vst.msk [vmem:[%s172 + $0x4] sm:$0xf] %vm2016, %v1761
      %2019 = vst.msk [vmem:[%s172 + $0x8] sm:$0xf] %vm2016, %v1762
      %2020 = vst.msk [vmem:[%s172 + $0xc] sm:$0xf] %vm2016, %v1763
      %2021 = vst.msk [vmem:[%s172 + $0x10] sm:$0xf] %vm2016, %v1764
      %2022 = vst.msk [vmem:[%s172 + $0x14] sm:$0xf] %vm2016, %v1765
      %2023 = vst.msk [vmem:[%s172 + $0x18] sm:$0xf] %vm2016, %v1766
      %2024 = vst.msk [vmem:[%s172 + $0x1c] sm:$0xf] %vm2016, %v1767
      %2025 = vst.msk [vmem:[%s172 + $0x20] sm:$0xf] %vm2016, %v1768
      %2026 = vst.msk [vmem:[%s172 + $0x24] sm:$0xf] %vm2016, %v1769
      %2027 = vst.msk [vmem:[%s172 + $0x28] sm:$0xf] %vm2016, %v1770
      %2028 = vst.msk [vmem:[%s172 + $0x2c] sm:$0xf] %vm2016, %v1771
      %2029 = vst.msk [vmem:[%s172 + $0x30] sm:$0xf] %vm2016, %v1772
      %2030 = vst.msk [vmem:[%s172 + $0x34] sm:$0xf] %vm2016, %v1773
      %2031 = vst.msk [vmem:[%s172 + $0x38] sm:$0xf] %vm2016, %v1774
      %2032 = vst.msk [vmem:[%s172 + $0x3c] sm:$0xf] %vm2016, %v1775
      %2033 = vst.msk [vmem:[%s172 + $0x40] sm:$0xf] %vm2016, %v1776
      %2034 = vst.msk [vmem:[%s172 + $0x44] sm:$0xf] %vm2016, %v1777
      %2035 = vst.msk [vmem:[%s172 + $0x48] sm:$0xf] %vm2016, %v1778
      %2036 = vst.msk [vmem:[%s172 + $0x4c] sm:$0xf] %vm2016, %v1779
      %2037 = vst.msk [vmem:[%s172 + $0x50] sm:$0xf] %vm2016, %v1780
      %2038 = vst.msk [vmem:[%s172 + $0x54] sm:$0xf] %vm2016, %v1781
      %2039 = vst.msk [vmem:[%s172 + $0x58] sm:$0xf] %vm2016, %v1782
      %2040 = vst.msk [vmem:[%s172 + $0x5c] sm:$0xf] %vm2016, %v1783
      %2041 = vst.msk [vmem:[%s172 + $0x60] sm:$0xf] %vm2016, %v1784
      %2042 = vst.msk [vmem:[%s172 + $0x64] sm:$0xf] %vm2016, %v1785
      %2043 = vst.msk [vmem:[%s172 + $0x68] sm:$0xf] %vm2016, %v1786
      %2044 = vst.msk [vmem:[%s172 + $0x6c] sm:$0xf] %vm2016, %v1787
      %2045 = vst.msk [vmem:[%s172 + $0x70] sm:$0xf] %vm2016, %v1788
      %2046 = vst.msk [vmem:[%s172 + $0x74] sm:$0xf] %vm2016, %v1789
      %2047 = vst.msk [vmem:[%s172 + $0x78] sm:$0xf] %vm2016, %v1790
      %2048 = vst.msk [vmem:[%s172 + $0x7c] sm:$0xf] %vm2016, %v1791
      %2049 = vst.msk [vmem:[%s172 + $0x80] sm:$0xf] %vm2016, %v1792
      %2050 = vst.msk [vmem:[%s172 + $0x84] sm:$0xf] %vm2016, %v1793
      %2051 = vst.msk [vmem:[%s172 + $0x88] sm:$0xf] %vm2016, %v1794
      %2052 = vst.msk [vmem:[%s172 + $0x8c] sm:$0xf] %vm2016, %v1795
      %2053 = vst.msk [vmem:[%s172 + $0x90] sm:$0xf] %vm2016, %v1796
      %2054 = vst.msk [vmem:[%s172 + $0x94] sm:$0xf] %vm2016, %v1797
      %2055 = vst.msk [vmem:[%s172 + $0x98] sm:$0xf] %vm2016, %v1798
      %2056 = vst.msk [vmem:[%s172 + $0x9c] sm:$0xf] %vm2016, %v1799
      %2057 = vst.msk [vmem:[%s172 + $0xa0] sm:$0xf] %vm2016, %v1800
      %2058 = vst.msk [vmem:[%s172 + $0xa4] sm:$0xf] %vm2016, %v1801
      %2059 = vst.msk [vmem:[%s172 + $0xa8] sm:$0xf] %vm2016, %v1802
      %2060 = vst.msk [vmem:[%s172 + $0xac] sm:$0xf] %vm2016, %v1803
      %2061 = vst.msk [vmem:[%s172 + $0xb0] sm:$0xf] %vm2016, %v1804
      %2062 = vst.msk [vmem:[%s172 + $0xb4] sm:$0xf] %vm2016, %v1805
      %2063 = vst.msk [vmem:[%s172 + $0xb8] sm:$0xf] %vm2016, %v1806
      %2064 = vst.msk [vmem:[%s172 + $0xbc] sm:$0xf] %vm2016, %v1807
      %2065 = vst.msk [vmem:[%s172 + $0xc0] sm:$0xf] %vm2016, %v1808
      %2066 = vst.msk [vmem:[%s172 + $0xc4] sm:$0xf] %vm2016, %v1809
      %2067 = vst.msk [vmem:[%s172 + $0xc8] sm:$0xf] %vm2016, %v1810
      %2068 = vst.msk [vmem:[%s172 + $0xcc] sm:$0xf] %vm2016, %v1811
      %2069 = vst.msk [vmem:[%s172 + $0xd0] sm:$0xf] %vm2016, %v1812
      %2070 = vst.msk [vmem:[%s172 + $0xd4] sm:$0xf] %vm2016, %v1813
      %2071 = vst.msk [vmem:[%s172 + $0xd8] sm:$0xf] %vm2016, %v1814
      %2072 = vst.msk [vmem:[%s172 + $0xdc] sm:$0xf] %vm2016, %v1815
      %2073 = vst.msk [vmem:[%s172 + $0xe0] sm:$0xf] %vm2016, %v1816
      %2074 = vst.msk [vmem:[%s172 + $0xe4] sm:$0xf] %vm2016, %v1817
      %2075 = vst.msk [vmem:[%s172 + $0xe8] sm:$0xf] %vm2016, %v1818
      %2076 = vst.msk [vmem:[%s172 + $0xec] sm:$0xf] %vm2016, %v1819
      %2077 = vst.msk [vmem:[%s172 + $0xf0] sm:$0xf] %vm2016, %v1820
      %2078 = vst.msk [vmem:[%s172 + $0xf4] sm:$0xf] %vm2016, %v1821
      %2079 = vst.msk [vmem:[%s172 + $0xf8] sm:$0xf] %vm2016, %v1822
      %2080 = vst.msk [vmem:[%s172 + $0xfc] sm:$0xf] %vm2016, %v1823
      %2081 = vst.msk [vmem:[%s172 + $0x100] sm:$0xf] %vm2016, %v1824
      %2082 = vst.msk [vmem:[%s172 + $0x104] sm:$0xf] %vm2016, %v1825
      %2083 = vst.msk [vmem:[%s172 + $0x108] sm:$0xf] %vm2016, %v1826
      %2084 = vst.msk [vmem:[%s172 + $0x10c] sm:$0xf] %vm2016, %v1827
      %2085 = vst.msk [vmem:[%s172 + $0x110] sm:$0xf] %vm2016, %v1828
      %2086 = vst.msk [vmem:[%s172 + $0x114] sm:$0xf] %vm2016, %v1829
      %2087 = vst.msk [vmem:[%s172 + $0x118] sm:$0xf] %vm2016, %v1830
      %2088 = vst.msk [vmem:[%s172 + $0x11c] sm:$0xf] %vm2016, %v1831
      %2089 = vst.msk [vmem:[%s172 + $0x120] sm:$0xf] %vm2016, %v1832
      %2090 = vst.msk [vmem:[%s172 + $0x124] sm:$0xf] %vm2016, %v1833
      %2091 = vst.msk [vmem:[%s172 + $0x128] sm:$0xf] %vm2016, %v1834
      %2092 = vst.msk [vmem:[%s172 + $0x12c] sm:$0xf] %vm2016, %v1835
      %2093 = vst.msk [vmem:[%s172 + $0x130] sm:$0xf] %vm2016, %v1836
      %2094 = vst.msk [vmem:[%s172 + $0x134] sm:$0xf] %vm2016, %v1837
      %2095 = vst.msk [vmem:[%s172 + $0x138] sm:$0xf] %vm2016, %v1838
      %2096 = vst.msk [vmem:[%s172 + $0x13c] sm:$0xf] %vm2016, %v1839
      %2097 = vst.msk [vmem:[%s172 + $0x140] sm:$0xf] %vm2016, %v1840
      %2098 = vst.msk [vmem:[%s172 + $0x144] sm:$0xf] %vm2016, %v1841
      %2099 = vst.msk [vmem:[%s172 + $0x148] sm:$0xf] %vm2016, %v1842
      %2100 = vst.msk [vmem:[%s172 + $0x14c] sm:$0xf] %vm2016, %v1843
      %2101 = vst.msk [vmem:[%s172 + $0x150] sm:$0xf] %vm2016, %v1844
      %2102 = vst.msk [vmem:[%s172 + $0x154] sm:$0xf] %vm2016, %v1845
      %2103 = vst.msk [vmem:[%s172 + $0x158] sm:$0xf] %vm2016, %v1846
      %2104 = vst.msk [vmem:[%s172 + $0x15c] sm:$0xf] %vm2016, %v1847
      %2105 = vst.msk [vmem:[%s172 + $0x160] sm:$0xf] %vm2016, %v1848
      %2106 = vst.msk [vmem:[%s172 + $0x164] sm:$0xf] %vm2016, %v1849
      %2107 = vst.msk [vmem:[%s172 + $0x168] sm:$0xf] %vm2016, %v1850
      %2108 = vst.msk [vmem:[%s172 + $0x16c] sm:$0xf] %vm2016, %v1851
      %2109 = vst.msk [vmem:[%s172 + $0x170] sm:$0xf] %vm2016, %v1852
      %2110 = vst.msk [vmem:[%s172 + $0x174] sm:$0xf] %vm2016, %v1853
      %2111 = vst.msk [vmem:[%s172 + $0x178] sm:$0xf] %vm2016, %v1854
      %2112 = vst.msk [vmem:[%s172 + $0x17c] sm:$0xf] %vm2016, %v1855
      %2113 = vst.msk [vmem:[%s172 + $0x180] sm:$0xf] %vm2016, %v1856
      %2114 = vst.msk [vmem:[%s172 + $0x184] sm:$0xf] %vm2016, %v1857
      %2115 = vst.msk [vmem:[%s172 + $0x188] sm:$0xf] %vm2016, %v1858
      %2116 = vst.msk [vmem:[%s172 + $0x18c] sm:$0xf] %vm2016, %v1859
      %2117 = vst.msk [vmem:[%s172 + $0x190] sm:$0xf] %vm2016, %v1860
      %2118 = vst.msk [vmem:[%s172 + $0x194] sm:$0xf] %vm2016, %v1861
      %2119 = vst.msk [vmem:[%s172 + $0x198] sm:$0xf] %vm2016, %v1862
      %2120 = vst.msk [vmem:[%s172 + $0x19c] sm:$0xf] %vm2016, %v1863
      %2121 = vst.msk [vmem:[%s172 + $0x1a0] sm:$0xf] %vm2016, %v1864
      %2122 = vst.msk [vmem:[%s172 + $0x1a4] sm:$0xf] %vm2016, %v1865
      %2123 = vst.msk [vmem:[%s172 + $0x1a8] sm:$0xf] %vm2016, %v1866
      %2124 = vst.msk [vmem:[%s172 + $0x1ac] sm:$0xf] %vm2016, %v1867
      %2125 = vst.msk [vmem:[%s172 + $0x1b0] sm:$0xf] %vm2016, %v1868
      %2126 = vst.msk [vmem:[%s172 + $0x1b4] sm:$0xf] %vm2016, %v1869
      %2127 = vst.msk [vmem:[%s172 + $0x1b8] sm:$0xf] %vm2016, %v1870
      %2128 = vst.msk [vmem:[%s172 + $0x1bc] sm:$0xf] %vm2016, %v1871
      %2129 = vst.msk [vmem:[%s172 + $0x1c0] sm:$0xf] %vm2016, %v1872
      %2130 = vst.msk [vmem:[%s172 + $0x1c4] sm:$0xf] %vm2016, %v1873
      %2131 = vst.msk [vmem:[%s172 + $0x1c8] sm:$0xf] %vm2016, %v1874
      %2132 = vst.msk [vmem:[%s172 + $0x1cc] sm:$0xf] %vm2016, %v1875
      %2133 = vst.msk [vmem:[%s172 + $0x1d0] sm:$0xf] %vm2016, %v1876
      %2134 = vst.msk [vmem:[%s172 + $0x1d4] sm:$0xf] %vm2016, %v1877
      %2135 = vst.msk [vmem:[%s172 + $0x1d8] sm:$0xf] %vm2016, %v1878
      %2136 = vst.msk [vmem:[%s172 + $0x1dc] sm:$0xf] %vm2016, %v1879
      %2137 = vst.msk [vmem:[%s172 + $0x1e0] sm:$0xf] %vm2016, %v1880
      %2138 = vst.msk [vmem:[%s172 + $0x1e4] sm:$0xf] %vm2016, %v1881
      %2139 = vst.msk [vmem:[%s172 + $0x1e8] sm:$0xf] %vm2016, %v1882
      %2140 = vst.msk [vmem:[%s172 + $0x1ec] sm:$0xf] %vm2016, %v1883
      %2141 = vst.msk [vmem:[%s172 + $0x1f0] sm:$0xf] %vm2016, %v1884
      %2142 = vst.msk [vmem:[%s172 + $0x1f4] sm:$0xf] %vm2016, %v1885
      %2143 = vst.msk [vmem:[%s172 + $0x1f8] sm:$0xf] %vm2016, %v1886
      %2144 = vst.msk [vmem:[%s172 + $0x1fc] sm:$0xf] %vm2016, %v1887
      %s2145 = smul.u32 128, %s14
      %p2146 = scmp.lt.s32.totalorder %s2145, 255
      %s2147 = scalar_select %p2146, %s2145, 255
      %s2148 = smul.addr %s2147, 4
      %s2149 = scalar_lea.vmem %s3, %s2148
      // Predicated region
      $region33: #{beta_vae_forward.12} parent=31 // pred_check
        %p2150 = pneg %p100
      $region34: #{beta_vae_forward.12} parent=31 // pred_check_branch
        %2152 = sbr.rel (%p2150) target = $region36
      $region35: #{beta_vae_forward.12} parent=31 // pred_region
        %s2153 = smul.u32 128, %s14
      $region36: #{beta_vae_forward.12} parent=31 // pred_fallthru
        _
    $region32: #{beta_vae_forward.12} parent=5 // pred_fallthru
      _
    %p2154 = scmp.le.s32.totalorder 2, %s9
    // Predicated region
    $region37: #{beta_vae_forward.12} parent=5 // pred_check
      %p2155 = pneg %p2154
    $region38: #{beta_vae_forward.12} parent=5 // pred_check_branch
      %2157 = sbr.rel (%p2155) target = $region40
    $region39: #{beta_vae_forward.12} parent=5 // pred_region
      %s2158 = ssub.s32 %s9, 2
      // Predicated region
      $region41: #{beta_vae_forward.12} parent=39 // pred_check
        %p2159 = pneg %p106
      $region42: #{beta_vae_forward.12} parent=39 // pred_check_branch
        %2161 = sbr.rel (%p2159) target = $region44
      $region43: #{beta_vae_forward.12} parent=39 // pred_region
        %s2162 = smul.u32 128, %s15
        %p2163 = scmp.lt.s32.totalorder %s2162, 255
        %s2164 = scalar_select %p2163, %s2162, 255
        %s2165 = smul.addr %s2164, 4
        %s2166 = scalar_lea.vmem %s3, %s2165
      $region44: #{beta_vae_forward.12} parent=39 // pred_fallthru
        _
    $region40: #{beta_vae_forward.12} parent=5 // pred_fallthru
      _
  $region6: #{beta_vae_forward.12} parent=0 // loop_footer
    %s13 = sadd.s32 1, %s9
  $region7: #{beta_vae_forward.12} parent=0 // loop_footer_branch
    %8 = sbr.rel target = $region3
  $region8: #{beta_vae_forward.12} parent=0 // loop_exit
    _

// kernel: beta_vae_forward.13
$region0: #{beta_vae_forward.13}
  #allocation0 [shape = 'u32[]', space=smem, size = 0x4, offset = 0x4, fixed_abs, tag = 'smem constant byte address 0x4 - core index']
  #allocation1 [shape = 'u32[144,128]{1,0:T(1,128)}', space=vmem, size = 0x12000, scoped, tag = 'internal scratch']
  %s0 = inlined_call_operand.vmem [shape: bf16[512,512], index: 0, kind: input, shape index: {}]
  %s1 = inlined_call_operand.vmem [shape: bf16[512,32], index: 1, kind: input, shape index: {}]
  %s2 = inlined_call_operand.vmem [shape: f32[1,32], index: 2, kind: input, shape index: {}]
  %s3 = inlined_call_operand.vmem [shape: bf16[512,32], index: 3, kind: output, shape index: {}]
  %s4 = sld [smem:[#allocation0]]
  $region45: #{beta_vae_forward.13} parent=0
    _
  %s6 = ssub.s32 1, %s4
  %s7 = scalar_select 0, %s6, %s4
  loop: start=0, step=1, limit=4
  $region2: #{beta_vae_forward.13} parent=0 // loop_pre_header
    _
  $region3: #{beta_vae_forward.13} parent=0 // loop_header
    %s9 = sphi 0, %s13
    %p10 = scmp.ge.s32.totalorder %s9, 4
    %s19 = sphi 0, %s21
    %s22 = sphi 0, %s19
    %s23 = sphi 0, %s22
    %s39 = sphi 0, %s23
    %s43 = sphi 0, %s43
    %s45 = sphi 0, %s43
    %s46 = sphi 0, %s45
    %s60 = sphi 0, %s46
    %s64 = sphi 0, %s64
    %s66 = sphi 0, %s64
    %s67 = sphi 0, %s66
    %s81 = sphi 0, %s67
    %s87 = sphi 0, %s89
    %s90 = sphi 0, %s87
    %s91 = sphi 0, %s90
    %s107 = sphi 0, %s91
  $region4: #{beta_vae_forward.13} parent=0 // loop_header_branch
    %12 = sbr.rel (%p10) target = $region8
  $region5: #{beta_vae_forward.13} parent=0 // loop_body
    %s14 = ssub.s32 %s9, 1
    %s15 = ssub.s32 %s9, 2
    %s16 = sadd.s32 %s9, 1
    %s17 = ssub.s32 %s9, %s16
    %p18 = scmp.eq.s32.totalorder %s17, 0
    %s20 = sadd.s32 %s19, 1
    %s21 = scalar_select %p18, %s19, %s20
    %p24 = pneg %p18
    %p25 = scmp.eq.s32.totalorder %s9, 1
    %p26 = por %p24, %p25
    %p27 = scmp.ne.s32.totalorder %s19, %s22
    %p28 = scmp.eq.s32.totalorder %s9, 0
    %p29 = por %p27, %p28
    %p30 = scmp.ne.s32.totalorder %s19, %s22
    %p31 = scmp.eq.s32.totalorder %s14, 1
    %p32 = por %p30, %p31
    %p33 = scmp.ne.s32.totalorder %s22, %s23
    %p34 = scmp.eq.s32.totalorder %s14, 0
    %p35 = por %p33, %p34
    %p36 = scmp.ne.s32.totalorder %s22, %s23
    %p37 = scmp.eq.s32.totalorder %s15, 1
    %p38 = por %p36, %p37
    %p40 = scmp.ne.s32.totalorder %s23, %s39
    %p41 = scmp.eq.s32.totalorder %s15, 0
    %p42 = por %p40, %p41
    %s44 = sadd.s32 %s43, 1
    %p47 = scmp.eq.s32.totalorder %s9, 1
    %p48 = scmp.ne.s32.totalorder %s43, %s45
    %p49 = scmp.eq.s32.totalorder %s9, 0
    %p50 = por %p48, %p49
    %p51 = scmp.ne.s32.totalorder %s43, %s45
    %p52 = scmp.eq.s32.totalorder %s14, 1
    %p53 = por %p51, %p52
    %p54 = scmp.ne.s32.totalorder %s45, %s46
    %p55 = scmp.eq.s32.totalorder %s14, 0
    %p56 = por %p54, %p55
    %p57 = scmp.ne.s32.totalorder %s45, %s46
    %p58 = scmp.eq.s32.totalorder %s15, 1
    %p59 = por %p57, %p58
    %p61 = scmp.ne.s32.totalorder %s46, %s60
    %p62 = scmp.eq.s32.totalorder %s15, 0
    %p63 = por %p61, %p62
    %s65 = sadd.s32 %s64, 1
    %p68 = scmp.eq.s32.totalorder %s9, 1
    %p69 = scmp.ne.s32.totalorder %s64, %s66
    %p70 = scmp.eq.s32.totalorder %s9, 0
    %p71 = por %p69, %p70
    %p72 = scmp.ne.s32.totalorder %s64, %s66
    %p73 = scmp.eq.s32.totalorder %s14, 1
    %p74 = por %p72, %p73
    %p75 = scmp.ne.s32.totalorder %s66, %s67
    %p76 = scmp.eq.s32.totalorder %s14, 0
    %p77 = por %p75, %p76
    %p78 = scmp.ne.s32.totalorder %s66, %s67
    %p79 = scmp.eq.s32.totalorder %s15, 1
    %p80 = por %p78, %p79
    %p82 = scmp.ne.s32.totalorder %s67, %s81
    %p83 = scmp.eq.s32.totalorder %s15, 0
    %p84 = por %p82, %p83
    %s85 = ssub.s32 %s9, %s16
    %p86 = scmp.eq.s32.totalorder %s85, 0
    %s88 = sadd.s32 %s87, 1
    %s89 = scalar_select %p86, %s87, %s88
    %p92 = pneg %p86
    %p93 = scmp.eq.s32.totalorder %s9, 1
    %p94 = por %p92, %p93
    %p95 = scmp.ne.s32.totalorder %s87, %s90
    %p96 = scmp.eq.s32.totalorder %s9, 0
    %p97 = por %p95, %p96
    %p98 = scmp.ne.s32.totalorder %s87, %s90
    %p99 = scmp.eq.s32.totalorder %s14, 1
    %p100 = por %p98, %p99
    %p101 = scmp.ne.s32.totalorder %s90, %s91
    %p102 = scmp.eq.s32.totalorder %s14, 0
    %p103 = por %p101, %p102
    %p104 = scmp.ne.s32.totalorder %s90, %s91
    %p105 = scmp.eq.s32.totalorder %s15, 1
    %p106 = por %p104, %p105
    %p108 = scmp.ne.s32.totalorder %s91, %s107
    %p109 = scmp.eq.s32.totalorder %s15, 0
    %p110 = por %p108, %p109
    %p111 = scmp.le.s32.totalorder 1, %s9
    %p112 = scmp.lt.s32.totalorder %s9, 3
    %p113 = pnand %p111, %p112
    %p114 = pneg %p113
    // Predicated region
    $region9: #{beta_vae_forward.13} parent=5 // pred_check
      _
    $region10: #{beta_vae_forward.13} parent=5 // pred_check_branch
      %116 = sbr.rel (%p113) target = $region12
    $region11: #{beta_vae_forward.13} parent=5 // pred_region
      %s117 = ssub.s32 %s9, 1
      // Predicated region
      $region13: #{beta_vae_forward.13} parent=11 // pred_check
        %p118 = pneg %p56
      $region14: #{beta_vae_forward.13} parent=11 // pred_check_branch
        %120 = sbr.rel (%p118) target = $region16
      $region15: #{beta_vae_forward.13} parent=11 // pred_region
        _
      $region16: #{beta_vae_forward.13} parent=11 // pred_fallthru
        _
      // Predicated region
      $region17: #{beta_vae_forward.13} parent=11 // pred_check
        %p121 = pneg %p77
      $region18: #{beta_vae_forward.13} parent=11 // pred_check_branch
        %123 = sbr.rel (%p121) target = $region20
      $region19: #{beta_vae_forward.13} parent=11 // pred_region
        _
      $region20: #{beta_vae_forward.13} parent=11 // pred_fallthru
        _
    $region12: #{beta_vae_forward.13} parent=5 // pred_fallthru
      _
    %p124 = scmp.lt.s32.totalorder %s9, 2
    // Predicated region
    $region21: #{beta_vae_forward.13} parent=5 // pred_check
      %p125 = pneg %p124
    $region22: #{beta_vae_forward.13} parent=5 // pred_check_branch
      %127 = sbr.rel (%p125) target = $region24
    $region23: #{beta_vae_forward.13} parent=5 // pred_region
      // Predicated region
      $region25: #{beta_vae_forward.13} parent=23 // pred_check
        %p128 = pneg %p29
      $region26: #{beta_vae_forward.13} parent=23 // pred_check_branch
        %130 = sbr.rel (%p128) target = $region28
      $region27: #{beta_vae_forward.13} parent=23 // pred_region
        %s131 = smul.u32 32, %s9
        %p132 = scmp.lt.s32.totalorder %s131, 63
        %s133 = scalar_select %p132, %s131, 63
        %s134 = smul.addr %s133, 4
        %s135 = smul.addr %s134, 4
        %s136 = scalar_lea.vmem %s0, %s135
        %s137 = smul.u32 32, %s9
      $region28: #{beta_vae_forward.13} parent=23 // pred_fallthru
        _
    $region24: #{beta_vae_forward.13} parent=5 // pred_fallthru
      _
    %p138 = scmp.le.s32.totalorder 1, %s9
    %p139 = scmp.lt.s32.totalorder %s9, 3
    %p140 = pnand %p138, %p139
    %p141 = pneg %p140
    // Predicated region
    $region29: #{beta_vae_forward.13} parent=5 // pred_check
      _
    $region30: #{beta_vae_forward.13} parent=5 // pred_check_branch
      %143 = sbr.rel (%p140) target = $region32
    $region31: #{beta_vae_forward.13} parent=5 // pred_region
      %s144 = ssub.s32 %s9, 1
      %s145 = smul.u32 32, %s14
      %p146 = scmp.lt.s32.totalorder %s145, 63
      %s147 = scalar_select %p146, %s145, 63
      %s148 = smul.addr %s147, 4
      %s149 = smul.addr %s148, 4
      %s150 = scalar_lea.vmem %s0, %s149
      %p151 = pneg %p35
      %p152 = pneg %p32
      %p153 = pneg %p56
      %p154 = pneg %p53
      %p155 = pneg %p77
      %p156 = pneg %p74
      %p157 = pneg %p103
      %p158 = pneg %p100
      %s159 = smul.u32 32, %s14
      %p160 = scmp.lt.s32.totalorder %s159, 63
      %s161 = scalar_select %p160, %s159, 63
      %s162 = smul.addr %s161, 4
      %s163 = scalar_lea.vmem %s3, %s162
      %s164 = smul.u32 32, %s14
      %p165 = scmp.lt.s32.totalorder %s164, 63
      %s166 = scalar_select %p165, %s164, 63
      %s167 = smul.addr %s166, 4
      %s168 = smul.addr %s167, 4
      %s169 = scalar_lea.vmem %s0, %s168
      %s170 = smul.u32 32, %s14
      %s171 = smul.u32 32, %s14
      %p172 = scmp.lt.s32.totalorder %s171, 63
      %s173 = scalar_select %p172, %s171, 63
      %s174 = smul.addr %s173, 4
      %s175 = scalar_lea.vmem %s3, %s174
      %s176 = smul.u32 32, %s14
      %v178 = vld [vmem:[%s169] sm:$0xff]
      %v179 = vld [vmem:[%s169 + $0x8] sm:$0xff]
      %v180 = vld [vmem:[%s169 + $0x10] sm:$0xff]
      %v181 = vld [vmem:[%s169 + $0x18] sm:$0xff]
      %v182 = vld [vmem:[%s169 + $0x20] sm:$0xff]
      %v183 = vld [vmem:[%s169 + $0x28] sm:$0xff]
      %v184 = vld [vmem:[%s169 + $0x30] sm:$0xff]
      %v185 = vld [vmem:[%s169 + $0x38] sm:$0xff]
      %v186 = vld [vmem:[%s169 + $0x40] sm:$0xff]
      %v187 = vld [vmem:[%s169 + $0x48] sm:$0xff]
      %v188 = vld [vmem:[%s169 + $0x50] sm:$0xff]
      %v189 = vld [vmem:[%s169 + $0x58] sm:$0xff]
      %v190 = vld [vmem:[%s169 + $0x60] sm:$0xff]
      %v191 = vld [vmem:[%s169 + $0x68] sm:$0xff]
      %v192 = vld [vmem:[%s169 + $0x70] sm:$0xff]
      %v193 = vld [vmem:[%s169 + $0x78] sm:$0xff]
      %v194 = vld [vmem:[%s169 + $0x80] sm:$0xff]
      %v195 = vld [vmem:[%s169 + $0x88] sm:$0xff]
      %v196 = vld [vmem:[%s169 + $0x90] sm:$0xff]
      %v197 = vld [vmem:[%s169 + $0x98] sm:$0xff]
      %v198 = vld [vmem:[%s169 + $0xa0] sm:$0xff]
      %v199 = vld [vmem:[%s169 + $0xa8] sm:$0xff]
      %v200 = vld [vmem:[%s169 + $0xb0] sm:$0xff]
      %v201 = vld [vmem:[%s169 + $0xb8] sm:$0xff]
      %v202 = vld [vmem:[%s169 + $0xc0] sm:$0xff]
      %v203 = vld [vmem:[%s169 + $0xc8] sm:$0xff]
      %v204 = vld [vmem:[%s169 + $0xd0] sm:$0xff]
      %v205 = vld [vmem:[%s169 + $0xd8] sm:$0xff]
      %v206 = vld [vmem:[%s169 + $0xe0] sm:$0xff]
      %v207 = vld [vmem:[%s169 + $0xe8] sm:$0xff]
      %v208 = vld [vmem:[%s169 + $0xf0] sm:$0xff]
      %v209 = vld [vmem:[%s169 + $0xf8] sm:$0xff]
      %v210 = vld [vmem:[%s169 + $0x100] sm:$0xff]
      %v211 = vld [vmem:[%s169 + $0x108] sm:$0xff]
      %v212 = vld [vmem:[%s169 + $0x110] sm:$0xff]
      %v213 = vld [vmem:[%s169 + $0x118] sm:$0xff]
      %v214 = vld [vmem:[%s169 + $0x120] sm:$0xff]
      %v215 = vld [vmem:[%s169 + $0x128] sm:$0xff]
      %v216 = vld [vmem:[%s169 + $0x130] sm:$0xff]
      %v217 = vld [vmem:[%s169 + $0x138] sm:$0xff]
      %v218 = vld [vmem:[%s169 + $0x140] sm:$0xff]
      %v219 = vld [vmem:[%s169 + $0x148] sm:$0xff]
      %v220 = vld [vmem:[%s169 + $0x150] sm:$0xff]
      %v221 = vld [vmem:[%s169 + $0x158] sm:$0xff]
      %v222 = vld [vmem:[%s169 + $0x160] sm:$0xff]
      %v223 = vld [vmem:[%s169 + $0x168] sm:$0xff]
      %v224 = vld [vmem:[%s169 + $0x170] sm:$0xff]
      %v225 = vld [vmem:[%s169 + $0x178] sm:$0xff]
      %v226 = vld [vmem:[%s169 + $0x180] sm:$0xff]
      %v227 = vld [vmem:[%s169 + $0x188] sm:$0xff]
      %v228 = vld [vmem:[%s169 + $0x190] sm:$0xff]
      %v229 = vld [vmem:[%s169 + $0x198] sm:$0xff]
      %v230 = vld [vmem:[%s169 + $0x1a0] sm:$0xff]
      %v231 = vld [vmem:[%s169 + $0x1a8] sm:$0xff]
      %v232 = vld [vmem:[%s169 + $0x1b0] sm:$0xff]
      %v233 = vld [vmem:[%s169 + $0x1b8] sm:$0xff]
      %v234 = vld [vmem:[%s169 + $0x1c0] sm:$0xff]
      %v235 = vld [vmem:[%s169 + $0x1c8] sm:$0xff]
      %v236 = vld [vmem:[%s169 + $0x1d0] sm:$0xff]
      %v237 = vld [vmem:[%s169 + $0x1d8] sm:$0xff]
      %v238 = vld [vmem:[%s169 + $0x1e0] sm:$0xff]
      %v239 = vld [vmem:[%s169 + $0x1e8] sm:$0xff]
      %v240 = vld [vmem:[%s169 + $0x1f0] sm:$0xff]
      %v241 = vld [vmem:[%s169 + $0x1f8] sm:$0xff]
      %v242 = vld [vmem:[%s1] sm:$0xf]
      %v243 = vld [vmem:[%s1 + $0x4] sm:$0xf]
      %v244 = vld [vmem:[%s1 + $0x8] sm:$0xf]
      %v245 = vld [vmem:[%s1 + $0xc] sm:$0xf]
      %v246 = vld [vmem:[%s1 + $0x10] sm:$0xf]
      %v247 = vld [vmem:[%s1 + $0x14] sm:$0xf]
      %v248 = vld [vmem:[%s1 + $0x18] sm:$0xf]
      %v249 = vld [vmem:[%s1 + $0x1c] sm:$0xf]
      %v250 = vld [vmem:[%s1 + $0x20] sm:$0xf]
      %v251 = vld [vmem:[%s1 + $0x24] sm:$0xf]
      %v252 = vld [vmem:[%s1 + $0x28] sm:$0xf]
      %v253 = vld [vmem:[%s1 + $0x2c] sm:$0xf]
      %v254 = vld [vmem:[%s1 + $0x30] sm:$0xf]
      %v255 = vld [vmem:[%s1 + $0x34] sm:$0xf]
      %v256 = vld [vmem:[%s1 + $0x38] sm:$0xf]
      %v257 = vld [vmem:[%s1 + $0x3c] sm:$0xf]
      %v258 = vld [vmem:[%s1 + $0x40] sm:$0xf]
      %v259 = vld [vmem:[%s1 + $0x44] sm:$0xf]
      %v260 = vld [vmem:[%s1 + $0x48] sm:$0xf]
      %v261 = vld [vmem:[%s1 + $0x4c] sm:$0xf]
      %v262 = vld [vmem:[%s1 + $0x50] sm:$0xf]
      %v263 = vld [vmem:[%s1 + $0x54] sm:$0xf]
      %v264 = vld [vmem:[%s1 + $0x58] sm:$0xf]
      %v265 = vld [vmem:[%s1 + $0x5c] sm:$0xf]
      %v266 = vld [vmem:[%s1 + $0x60] sm:$0xf]
      %v267 = vld [vmem:[%s1 + $0x64] sm:$0xf]
      %v268 = vld [vmem:[%s1 + $0x68] sm:$0xf]
      %v269 = vld [vmem:[%s1 + $0x6c] sm:$0xf]
      %v270 = vld [vmem:[%s1 + $0x70] sm:$0xf]
      %v271 = vld [vmem:[%s1 + $0x74] sm:$0xf]
      %v272 = vld [vmem:[%s1 + $0x78] sm:$0xf]
      %v273 = vld [vmem:[%s1 + $0x7c] sm:$0xf]
      %v274 = vld [vmem:[%s1 + $0x80] sm:$0xf]
      %v275 = vld [vmem:[%s1 + $0x84] sm:$0xf]
      %v276 = vld [vmem:[%s1 + $0x88] sm:$0xf]
      %v277 = vld [vmem:[%s1 + $0x8c] sm:$0xf]
      %v278 = vld [vmem:[%s1 + $0x90] sm:$0xf]
      %v279 = vld [vmem:[%s1 + $0x94] sm:$0xf]
      %v280 = vld [vmem:[%s1 + $0x98] sm:$0xf]
      %v281 = vld [vmem:[%s1 + $0x9c] sm:$0xf]
      %v282 = vld [vmem:[%s1 + $0xa0] sm:$0xf]
      %v283 = vld [vmem:[%s1 + $0xa4] sm:$0xf]
      %v284 = vld [vmem:[%s1 + $0xa8] sm:$0xf]
      %v285 = vld [vmem:[%s1 + $0xac] sm:$0xf]
      %v286 = vld [vmem:[%s1 + $0xb0] sm:$0xf]
      %v287 = vld [vmem:[%s1 + $0xb4] sm:$0xf]
      %v288 = vld [vmem:[%s1 + $0xb8] sm:$0xf]
      %v289 = vld [vmem:[%s1 + $0xbc] sm:$0xf]
      %v290 = vld [vmem:[%s1 + $0xc0] sm:$0xf]
      %v291 = vld [vmem:[%s1 + $0xc4] sm:$0xf]
      %v292 = vld [vmem:[%s1 + $0xc8] sm:$0xf]
      %v293 = vld [vmem:[%s1 + $0xcc] sm:$0xf]
      %v294 = vld [vmem:[%s1 + $0xd0] sm:$0xf]
      %v295 = vld [vmem:[%s1 + $0xd4] sm:$0xf]
      %v296 = vld [vmem:[%s1 + $0xd8] sm:$0xf]
      %v297 = vld [vmem:[%s1 + $0xdc] sm:$0xf]
      %v298 = vld [vmem:[%s1 + $0xe0] sm:$0xf]
      %v299 = vld [vmem:[%s1 + $0xe4] sm:$0xf]
      %v300 = vld [vmem:[%s1 + $0xe8] sm:$0xf]
      %v301 = vld [vmem:[%s1 + $0xec] sm:$0xf]
      %v302 = vld [vmem:[%s1 + $0xf0] sm:$0xf]
      %v303 = vld [vmem:[%s1 + $0xf4] sm:$0xf]
      %v304 = vld [vmem:[%s1 + $0xf8] sm:$0xf]
      %v305 = vld [vmem:[%s1 + $0xfc] sm:$0xf]
      %v306 = vld [vmem:[%s2] sm:$0x1]
      %v308 = vlaneseq
      %v309 = vshrl.u32 %v308, 7
      %v310 = vsub.s32 0, %v309
      %v311 = vrot.slane %v306, %v310
      %v377 = vunpack.c.l.b16 %v178
      %v378 = vunpack.c.h.b16 %v178
      %v379 = vunpack.c.l.b16 %v179
      %v380 = vunpack.c.h.b16 %v179
      %v381 = vunpack.c.l.b16 %v180
      %v382 = vunpack.c.h.b16 %v180
      %v383 = vunpack.c.l.b16 %v181
      %v384 = vunpack.c.h.b16 %v181
      %v385 = vunpack.c.l.b16 %v182
      %v386 = vunpack.c.h.b16 %v182
      %v387 = vunpack.c.l.b16 %v183
      %v388 = vunpack.c.h.b16 %v183
      %v389 = vunpack.c.l.b16 %v184
      %v390 = vunpack.c.h.b16 %v184
      %v391 = vunpack.c.l.b16 %v185
      %v392 = vunpack.c.h.b16 %v185
      %v393 = vunpack.c.l.b16 %v186
      %v394 = vunpack.c.h.b16 %v186
      %v395 = vunpack.c.l.b16 %v187
      %v396 = vunpack.c.h.b16 %v187
      %v397 = vunpack.c.l.b16 %v188
      %v398 = vunpack.c.h.b16 %v188
      %v399 = vunpack.c.l.b16 %v189
      %v400 = vunpack.c.h.b16 %v189
      %v401 = vunpack.c.l.b16 %v190
      %v402 = vunpack.c.h.b16 %v190
      %v403 = vunpack.c.l.b16 %v191
      %v404 = vunpack.c.h.b16 %v191
      %v405 = vunpack.c.l.b16 %v192
      %v406 = vunpack.c.h.b16 %v192
      %v407 = vunpack.c.l.b16 %v193
      %v408 = vunpack.c.h.b16 %v193
      %v409 = vunpack.c.l.b16 %v194
      %v410 = vunpack.c.h.b16 %v194
      %v411 = vunpack.c.l.b16 %v195
      %v412 = vunpack.c.h.b16 %v195
      %v413 = vunpack.c.l.b16 %v196
      %v414 = vunpack.c.h.b16 %v196
      %v415 = vunpack.c.l.b16 %v197
      %v416 = vunpack.c.h.b16 %v197
      %v417 = vunpack.c.l.b16 %v198
      %v418 = vunpack.c.h.b16 %v198
      %v419 = vunpack.c.l.b16 %v199
      %v420 = vunpack.c.h.b16 %v199
      %v421 = vunpack.c.l.b16 %v200
      %v422 = vunpack.c.h.b16 %v200
      %v423 = vunpack.c.l.b16 %v201
      %v424 = vunpack.c.h.b16 %v201
      %v425 = vunpack.c.l.b16 %v202
      %v426 = vunpack.c.h.b16 %v202
      %v427 = vunpack.c.l.b16 %v203
      %v428 = vunpack.c.h.b16 %v203
      %v429 = vunpack.c.l.b16 %v204
      %v430 = vunpack.c.h.b16 %v204
      %v431 = vunpack.c.l.b16 %v205
      %v432 = vunpack.c.h.b16 %v205
      %v433 = vunpack.c.l.b16 %v206
      %v434 = vunpack.c.h.b16 %v206
      %v435 = vunpack.c.l.b16 %v207
      %v436 = vunpack.c.h.b16 %v207
      %v437 = vunpack.c.l.b16 %v208
      %v438 = vunpack.c.h.b16 %v208
      %v439 = vunpack.c.l.b16 %v209
      %v440 = vunpack.c.h.b16 %v209
      %v441 = vunpack.c.l.b16 %v210
      %v442 = vunpack.c.h.b16 %v210
      %v443 = vunpack.c.l.b16 %v211
      %v444 = vunpack.c.h.b16 %v211
      %v445 = vunpack.c.l.b16 %v212
      %v446 = vunpack.c.h.b16 %v212
      %v447 = vunpack.c.l.b16 %v213
      %v448 = vunpack.c.h.b16 %v213
      %v449 = vunpack.c.l.b16 %v214
      %v450 = vunpack.c.h.b16 %v214
      %v451 = vunpack.c.l.b16 %v215
      %v452 = vunpack.c.h.b16 %v215
      %v453 = vunpack.c.l.b16 %v216
      %v454 = vunpack.c.h.b16 %v216
      %v455 = vunpack.c.l.b16 %v217
      %v456 = vunpack.c.h.b16 %v217
      %v457 = vunpack.c.l.b16 %v218
      %v458 = vunpack.c.h.b16 %v218
      %v459 = vunpack.c.l.b16 %v219
      %v460 = vunpack.c.h.b16 %v219
      %v461 = vunpack.c.l.b16 %v220
      %v462 = vunpack.c.h.b16 %v220
      %v463 = vunpack.c.l.b16 %v221
      %v464 = vunpack.c.h.b16 %v221
      %v465 = vunpack.c.l.b16 %v222
      %v466 = vunpack.c.h.b16 %v222
      %v467 = vunpack.c.l.b16 %v223
      %v468 = vunpack.c.h.b16 %v223
      %v469 = vunpack.c.l.b16 %v224
      %v470 = vunpack.c.h.b16 %v224
      %v471 = vunpack.c.l.b16 %v225
      %v472 = vunpack.c.h.b16 %v225
      %v473 = vunpack.c.l.b16 %v226
      %v474 = vunpack.c.h.b16 %v226
      %v475 = vunpack.c.l.b16 %v227
      %v476 = vunpack.c.h.b16 %v227
      %v477 = vunpack.c.l.b16 %v228
      %v478 = vunpack.c.h.b16 %v228
      %v479 = vunpack.c.l.b16 %v229
      %v480 = vunpack.c.h.b16 %v229
      %v481 = vunpack.c.l.b16 %v230
      %v482 = vunpack.c.h.b16 %v230
      %v483 = vunpack.c.l.b16 %v231
      %v484 = vunpack.c.h.b16 %v231
      %v485 = vunpack.c.l.b16 %v232
      %v486 = vunpack.c.h.b16 %v232
      %v487 = vunpack.c.l.b16 %v233
      %v488 = vunpack.c.h.b16 %v233
      %v489 = vunpack.c.l.b16 %v234
      %v490 = vunpack.c.h.b16 %v234
      %v491 = vunpack.c.l.b16 %v235
      %v492 = vunpack.c.h.b16 %v235
      %v493 = vunpack.c.l.b16 %v236
      %v494 = vunpack.c.h.b16 %v236
      %v495 = vunpack.c.l.b16 %v237
      %v496 = vunpack.c.h.b16 %v237
      %v497 = vunpack.c.l.b16 %v238
      %v498 = vunpack.c.h.b16 %v238
      %v499 = vunpack.c.l.b16 %v239
      %v500 = vunpack.c.h.b16 %v239
      %v501 = vunpack.c.l.b16 %v240
      %v502 = vunpack.c.h.b16 %v240
      %v503 = vunpack.c.l.b16 %v241
      %v504 = vunpack.c.h.b16 %v241
      %v505 = vpack.c.b16 %v381, %v377
      %v506 = vpack.c.b16 %v382, %v378
      %v507 = vpack.c.b16 %v383, %v379
      %v508 = vpack.c.b16 %v384, %v380
      %v509 = vpack.c.b16 %v389, %v385
      %v510 = vpack.c.b16 %v390, %v386
      %v511 = vpack.c.b16 %v391, %v387
      %v512 = vpack.c.b16 %v392, %v388
      %v513 = vpack.c.b16 %v397, %v393
      %v514 = vpack.c.b16 %v398, %v394
      %v515 = vpack.c.b16 %v399, %v395
      %v516 = vpack.c.b16 %v400, %v396
      %v517 = vpack.c.b16 %v405, %v401
      %v518 = vpack.c.b16 %v406, %v402
      %v519 = vpack.c.b16 %v407, %v403
      %v520 = vpack.c.b16 %v408, %v404
      %v521 = vpack.c.b16 %v413, %v409
      %v522 = vpack.c.b16 %v414, %v410
      %v523 = vpack.c.b16 %v415, %v411
      %v524 = vpack.c.b16 %v416, %v412
      %v525 = vpack.c.b16 %v421, %v417
      %v526 = vpack.c.b16 %v422, %v418
      %v527 = vpack.c.b16 %v423, %v419
      %v528 = vpack.c.b16 %v424, %v420
      %v529 = vpack.c.b16 %v429, %v425
      %v530 = vpack.c.b16 %v430, %v426
      %v531 = vpack.c.b16 %v431, %v427
      %v532 = vpack.c.b16 %v432, %v428
      %v533 = vpack.c.b16 %v437, %v433
      %v534 = vpack.c.b16 %v438, %v434
      %v535 = vpack.c.b16 %v439, %v435
      %v536 = vpack.c.b16 %v440, %v436
      %v537 = vpack.c.b16 %v445, %v441
      %v538 = vpack.c.b16 %v446, %v442
      %v539 = vpack.c.b16 %v447, %v443
      %v540 = vpack.c.b16 %v448, %v444
      %v541 = vpack.c.b16 %v453, %v449
      %v542 = vpack.c.b16 %v454, %v450
      %v543 = vpack.c.b16 %v455, %v451
      %v544 = vpack.c.b16 %v456, %v452
      %v545 = vpack.c.b16 %v461, %v457
      %v546 = vpack.c.b16 %v462, %v458
      %v547 = vpack.c.b16 %v463, %v459
      %v548 = vpack.c.b16 %v464, %v460
      %v549 = vpack.c.b16 %v469, %v465
      %v550 = vpack.c.b16 %v470, %v466
      %v551 = vpack.c.b16 %v471, %v467
      %v552 = vpack.c.b16 %v472, %v468
      %v553 = vpack.c.b16 %v477, %v473
      %v554 = vpack.c.b16 %v478, %v474
      %v555 = vpack.c.b16 %v479, %v475
      %v556 = vpack.c.b16 %v480, %v476
      %v557 = vpack.c.b16 %v485, %v481
      %v558 = vpack.c.b16 %v486, %v482
      %v559 = vpack.c.b16 %v487, %v483
      %v560 = vpack.c.b16 %v488, %v484
      %v561 = vpack.c.b16 %v493, %v489
      %v562 = vpack.c.b16 %v494, %v490
      %v563 = vpack.c.b16 %v495, %v491
      %v564 = vpack.c.b16 %v496, %v492
      %v565 = vpack.c.b16 %v501, %v497
      %v566 = vpack.c.b16 %v502, %v498
      %v567 = vpack.c.b16 %v503, %v499
      %v568 = vpack.c.b16 %v504, %v500
      %v697 = vunpack.c.l.b16 %v242
      %v698 = vunpack.c.l.b16 %v243
      %v699 = vunpack.c.l.b16 %v244
      %v700 = vunpack.c.l.b16 %v245
      %v701 = vunpack.c.l.b16 %v246
      %v702 = vunpack.c.l.b16 %v247
      %v703 = vunpack.c.l.b16 %v248
      %v704 = vunpack.c.l.b16 %v249
      %v705 = vunpack.c.l.b16 %v250
      %v706 = vunpack.c.l.b16 %v251
      %v707 = vunpack.c.l.b16 %v252
      %v708 = vunpack.c.l.b16 %v253
      %v709 = vunpack.c.l.b16 %v254
      %v710 = vunpack.c.l.b16 %v255
      %v711 = vunpack.c.l.b16 %v256
      %v712 = vunpack.c.l.b16 %v257
      %v713 = vunpack.c.l.b16 %v258
      %v714 = vunpack.c.l.b16 %v259
      %v715 = vunpack.c.l.b16 %v260
      %v716 = vunpack.c.l.b16 %v261
      %v717 = vunpack.c.l.b16 %v262
      %v718 = vunpack.c.l.b16 %v263
      %v719 = vunpack.c.l.b16 %v264
      %v720 = vunpack.c.l.b16 %v265
      %v721 = vunpack.c.l.b16 %v266
      %v722 = vunpack.c.l.b16 %v267
      %v723 = vunpack.c.l.b16 %v268
      %v724 = vunpack.c.l.b16 %v269
      %v725 = vunpack.c.l.b16 %v270
      %v726 = vunpack.c.l.b16 %v271
      %v727 = vunpack.c.l.b16 %v272
      %v728 = vunpack.c.l.b16 %v273
      %v729 = vunpack.c.l.b16 %v274
      %v730 = vunpack.c.l.b16 %v275
      %v731 = vunpack.c.l.b16 %v276
      %v732 = vunpack.c.l.b16 %v277
      %v733 = vunpack.c.l.b16 %v278
      %v734 = vunpack.c.l.b16 %v279
      %v735 = vunpack.c.l.b16 %v280
      %v736 = vunpack.c.l.b16 %v281
      %v737 = vunpack.c.l.b16 %v282
      %v738 = vunpack.c.l.b16 %v283
      %v739 = vunpack.c.l.b16 %v284
      %v740 = vunpack.c.l.b16 %v285
      %v741 = vunpack.c.l.b16 %v286
      %v742 = vunpack.c.l.b16 %v287
      %v743 = vunpack.c.l.b16 %v288
      %v744 = vunpack.c.l.b16 %v289
      %v745 = vunpack.c.l.b16 %v290
      %v746 = vunpack.c.l.b16 %v291
      %v747 = vunpack.c.l.b16 %v292
      %v748 = vunpack.c.l.b16 %v293
      %v749 = vunpack.c.l.b16 %v294
      %v750 = vunpack.c.l.b16 %v295
      %v751 = vunpack.c.l.b16 %v296
      %v752 = vunpack.c.l.b16 %v297
      %v753 = vunpack.c.l.b16 %v298
      %v754 = vunpack.c.l.b16 %v299
      %v755 = vunpack.c.l.b16 %v300
      %v756 = vunpack.c.l.b16 %v301
      %v757 = vunpack.c.l.b16 %v302
      %v758 = vunpack.c.l.b16 %v303
      %v759 = vunpack.c.l.b16 %v304
      %v760 = vunpack.c.l.b16 %v305
      %v761 = vpack.c.b16 %v698, %v697
      %v762 = vpack.c.b16 %v700, %v699
      %v763 = vpack.c.b16 %v702, %v701
      %v764 = vpack.c.b16 %v704, %v703
      %v765 = vpack.c.b16 %v706, %v705
      %v766 = vpack.c.b16 %v708, %v707
      %v767 = vpack.c.b16 %v710, %v709
      %v768 = vpack.c.b16 %v712, %v711
      %v769 = vpack.c.b16 %v714, %v713
      %v770 = vpack.c.b16 %v716, %v715
      %v771 = vpack.c.b16 %v718, %v717
      %v772 = vpack.c.b16 %v720, %v719
      %v773 = vpack.c.b16 %v722, %v721
      %v774 = vpack.c.b16 %v724, %v723
      %v775 = vpack.c.b16 %v726, %v725
      %v776 = vpack.c.b16 %v728, %v727
      %v777 = vpack.c.b16 %v730, %v729
      %v778 = vpack.c.b16 %v732, %v731
      %v779 = vpack.c.b16 %v734, %v733
      %v780 = vpack.c.b16 %v736, %v735
      %v781 = vpack.c.b16 %v738, %v737
      %v782 = vpack.c.b16 %v740, %v739
      %v783 = vpack.c.b16 %v742, %v741
      %v784 = vpack.c.b16 %v744, %v743
      %v785 = vpack.c.b16 %v746, %v745
      %v786 = vpack.c.b16 %v748, %v747
      %v787 = vpack.c.b16 %v750, %v749
      %v788 = vpack.c.b16 %v752, %v751
      %v789 = vpack.c.b16 %v754, %v753
      %v790 = vpack.c.b16 %v756, %v755
      %v791 = vpack.c.b16 %v758, %v757
      %v792 = vpack.c.b16 %v760, %v759
      %825 = vmatprep.subr.bf16.mxu0 0
      %826 = vmatpush1.bf16.msra.mxu0 %v768
      %827 = vmatprep.subr.bf16.mxu0 0
      %828 = vmatpush1.bf16.msra.mxu0 %v767
      %829 = vmatprep.subr.bf16.mxu0 0
      %830 = vmatpush1.bf16.msra.mxu0 %v766
      %831 = vmatprep.subr.bf16.mxu0 0
      %832 = vmatpush1.bf16.msra.mxu0 %v765
      %833 = vmatprep.subr.bf16.mxu0 0
      %834 = vmatpush1.bf16.msra.mxu0 %v764
      %835 = vmatprep.subr.bf16.mxu0 0
      %836 = vmatpush1.bf16.msra.mxu0 %v763
      %837 = vmatprep.subr.bf16.mxu0 0
      %838 = vmatpush1.bf16.msra.mxu0 %v762
      %839 = vmatprep.subr.bf16.mxu0 0
      %840 = vmatpush1.bf16.msra.mxu0 %v761
      %841 = vmatprep.subr.bf16.mxu0 0
      %842 = vmatpush2.bf16.msra.mxu0 %v776
      %843 = vmatprep.subr.bf16.mxu0 0
      %844 = vmatpush2.bf16.msra.mxu0 %v775
      %845 = vmatprep.subr.bf16.mxu0 0
      %846 = vmatpush2.bf16.msra.mxu0 %v774
      %847 = vmatprep.subr.bf16.mxu0 0
      %848 = vmatpush2.bf16.msra.mxu0 %v773
      %849 = vmatprep.subr.bf16.mxu0 0
      %850 = vmatpush2.bf16.msra.mxu0 %v772
      %851 = vmatprep.subr.bf16.mxu0 0
      %852 = vmatpush2.bf16.msra.mxu0 %v771
      %853 = vmatprep.subr.bf16.mxu0 0
      %854 = vmatpush2.bf16.msra.mxu0 %v770
      %855 = vmatprep.subr.bf16.mxu0 0
      %856 = vmatpush2.bf16.msra.mxu0 %v769
      %857 = vmatprep.mubr.bf16.mxu0 %v506
      %858 = vmatmul.mubr.bf16.gmra.mxu0 %v505
      %v859 = vpop.f32.mrf.mxu0
      %v860 = vadd.f32 %v311, %v859
      %v861 = vpop.f32.mrf.mxu0
      %v862 = vpop.f32.mrf.mxu0
      %v863 = vadd.f32 %v311, %v862
      %v864 = vpop.f32.mrf.mxu0
      %865 = vmatprep.mubr.bf16.mxu0 %v510
      %866 = vmatmul.mubr.bf16.gmra.mxu0 %v509
      %v867 = vpop.f32.mrf.mxu0
      %v868 = vadd.f32 %v311, %v867
      %v869 = vpop.f32.mrf.mxu0
      %v870 = vpop.f32.mrf.mxu0
      %v871 = vadd.f32 %v311, %v870
      %v872 = vpop.f32.mrf.mxu0
      %873 = vmatprep.mubr.bf16.mxu0 %v514
      %874 = vmatmul.mubr.bf16.gmra.mxu0 %v513
      %v875 = vpop.f32.mrf.mxu0
      %v876 = vadd.f32 %v311, %v875
      %v877 = vpop.f32.mrf.mxu0
      %v878 = vpop.f32.mrf.mxu0
      %v879 = vadd.f32 %v311, %v878
      %v880 = vpop.f32.mrf.mxu0
      %881 = vmatprep.mubr.bf16.mxu0 %v518
      %882 = vmatmul.mubr.bf16.gmra.mxu0 %v517
      %v883 = vpop.f32.mrf.mxu0
      %v884 = vadd.f32 %v311, %v883
      %v885 = vpop.f32.mrf.mxu0
      %v886 = vpop.f32.mrf.mxu0
      %v887 = vadd.f32 %v311, %v886
      %v888 = vpop.f32.mrf.mxu0
      %889 = vmatprep.mubr.bf16.mxu0 %v522
      %890 = vmatmul.mubr.bf16.gmra.mxu0 %v521
      %v891 = vpop.f32.mrf.mxu0
      %v892 = vadd.f32 %v311, %v891
      %v893 = vpop.f32.mrf.mxu0
      %v894 = vpop.f32.mrf.mxu0
      %v895 = vadd.f32 %v311, %v894
      %v896 = vpop.f32.mrf.mxu0
      %897 = vmatprep.mubr.bf16.mxu0 %v526
      %898 = vmatmul.mubr.bf16.gmra.mxu0 %v525
      %v899 = vpop.f32.mrf.mxu0
      %v900 = vadd.f32 %v311, %v899
      %v901 = vpop.f32.mrf.mxu0
      %v902 = vpop.f32.mrf.mxu0
      %v903 = vadd.f32 %v311, %v902
      %v904 = vpop.f32.mrf.mxu0
      %905 = vmatprep.mubr.bf16.mxu0 %v530
      %906 = vmatmul.mubr.bf16.gmra.mxu0 %v529
      %v907 = vpop.f32.mrf.mxu0
      %v908 = vadd.f32 %v311, %v907
      %v909 = vpop.f32.mrf.mxu0
      %v910 = vpop.f32.mrf.mxu0
      %v911 = vadd.f32 %v311, %v910
      %v912 = vpop.f32.mrf.mxu0
      %913 = vmatprep.mubr.bf16.mxu0 %v534
      %914 = vmatmul.mubr.bf16.gmra.mxu0 %v533
      %v915 = vpop.f32.mrf.mxu0
      %v916 = vadd.f32 %v311, %v915
      %v917 = vpop.f32.mrf.mxu0
      %v918 = vpop.f32.mrf.mxu0
      %v919 = vadd.f32 %v311, %v918
      %v920 = vpop.f32.mrf.mxu0
      %921 = vmatprep.mubr.bf16.mxu0 %v538
      %922 = vmatmul.mubr.bf16.gmra.mxu0 %v537
      %v923 = vpop.f32.mrf.mxu0
      %v924 = vadd.f32 %v311, %v923
      %v925 = vpop.f32.mrf.mxu0
      %v926 = vpop.f32.mrf.mxu0
      %v927 = vadd.f32 %v311, %v926
      %v928 = vpop.f32.mrf.mxu0
      %929 = vmatprep.mubr.bf16.mxu0 %v542
      %930 = vmatmul.mubr.bf16.gmra.mxu0 %v541
      %v931 = vpop.f32.mrf.mxu0
      %v932 = vadd.f32 %v311, %v931
      %v933 = vpop.f32.mrf.mxu0
      %v934 = vpop.f32.mrf.mxu0
      %v935 = vadd.f32 %v311, %v934
      %v936 = vpop.f32.mrf.mxu0
      %937 = vmatprep.mubr.bf16.mxu0 %v546
      %938 = vmatmul.mubr.bf16.gmra.mxu0 %v545
      %v939 = vpop.f32.mrf.mxu0
      %v940 = vadd.f32 %v311, %v939
      %v941 = vpop.f32.mrf.mxu0
      %v942 = vpop.f32.mrf.mxu0
      %v943 = vadd.f32 %v311, %v942
      %v944 = vpop.f32.mrf.mxu0
      %945 = vmatprep.mubr.bf16.mxu0 %v550
      %946 = vmatmul.mubr.bf16.gmra.mxu0 %v549
      %v947 = vpop.f32.mrf.mxu0
      %v948 = vadd.f32 %v311, %v947
      %v949 = vpop.f32.mrf.mxu0
      %v950 = vpop.f32.mrf.mxu0
      %v951 = vadd.f32 %v311, %v950
      %v952 = vpop.f32.mrf.mxu0
      %953 = vmatprep.mubr.bf16.mxu0 %v554
      %954 = vmatmul.mubr.bf16.gmra.mxu0 %v553
      %v955 = vpop.f32.mrf.mxu0
      %v956 = vadd.f32 %v311, %v955
      %v957 = vpop.f32.mrf.mxu0
      %v958 = vpop.f32.mrf.mxu0
      %v959 = vadd.f32 %v311, %v958
      %v960 = vpop.f32.mrf.mxu0
      %961 = vmatprep.mubr.bf16.mxu0 %v558
      %962 = vmatmul.mubr.bf16.gmra.mxu0 %v557
      %v963 = vpop.f32.mrf.mxu0
      %v964 = vadd.f32 %v311, %v963
      %v965 = vpop.f32.mrf.mxu0
      %v966 = vpop.f32.mrf.mxu0
      %v967 = vadd.f32 %v311, %v966
      %v968 = vpop.f32.mrf.mxu0
      %969 = vmatprep.mubr.bf16.mxu0 %v562
      %970 = vmatmul.mubr.bf16.gmra.mxu0 %v561
      %v971 = vpop.f32.mrf.mxu0
      %v972 = vadd.f32 %v311, %v971
      %v973 = vpop.f32.mrf.mxu0
      %v974 = vpop.f32.mrf.mxu0
      %v975 = vadd.f32 %v311, %v974
      %v976 = vpop.f32.mrf.mxu0
      %977 = vmatprep.mubr.bf16.mxu0 %v566
      %978 = vmatmul.mubr.bf16.gmra.mxu0 %v565
      %v979 = vpop.f32.mrf.mxu0
      %v980 = vadd.f32 %v311, %v979
      %v981 = vpop.f32.mrf.mxu0
      %v982 = vpop.f32.mrf.mxu0
      %v983 = vadd.f32 %v311, %v982
      %v984 = vpop.f32.mrf.mxu0
      %985 = vdwg.mxu0
      %986 = vmatprep.subr.bf16.mxu0 0
      %987 = vmatpush1.bf16.msra.mxu0 %v784
      %988 = vmatprep.subr.bf16.mxu0 0
      %989 = vmatpush1.bf16.msra.mxu0 %v783
      %990 = vmatprep.subr.bf16.mxu0 0
      %991 = vmatpush1.bf16.msra.mxu0 %v782
      %992 = vmatprep.subr.bf16.mxu0 0
      %993 = vmatpush1.bf16.msra.mxu0 %v781
      %994 = vmatprep.subr.bf16.mxu0 0
      %995 = vmatpush1.bf16.msra.mxu0 %v780
      %996 = vmatprep.subr.bf16.mxu0 0
      %997 = vmatpush1.bf16.msra.mxu0 %v779
      %998 = vmatprep.subr.bf16.mxu0 0
      %999 = vmatpush1.bf16.msra.mxu0 %v778
      %1000 = vmatprep.subr.bf16.mxu0 0
      %1001 = vmatpush1.bf16.msra.mxu0 %v777
      %1002 = vmatprep.subr.bf16.mxu0 0
      %1003 = vmatpush2.bf16.msra.mxu0 %v792
      %1004 = vmatprep.subr.bf16.mxu0 0
      %1005 = vmatpush2.bf16.msra.mxu0 %v791
      %1006 = vmatprep.subr.bf16.mxu0 0
      %1007 = vmatpush2.bf16.msra.mxu0 %v790
      %1008 = vmatprep.subr.bf16.mxu0 0
      %1009 = vmatpush2.bf16.msra.mxu0 %v789
      %1010 = vmatprep.subr.bf16.mxu0 0
      %1011 = vmatpush2.bf16.msra.mxu0 %v788
      %1012 = vmatprep.subr.bf16.mxu0 0
      %1013 = vmatpush2.bf16.msra.mxu0 %v787
      %1014 = vmatprep.subr.bf16.mxu0 0
      %1015 = vmatpush2.bf16.msra.mxu0 %v786
      %1016 = vmatprep.subr.bf16.mxu0 0
      %1017 = vmatpush2.bf16.msra.mxu0 %v785
      %1018 = vmatprep.mubr.bf16.mxu0 %v508
      %1019 = vmatmul.mubr.bf16.gmra.mxu0 %v507
      %v1020 = vpop.f32.mrf.mxu0
      %v1021 = vadd.f32 %v860, %v1020
      %v1022 = vpop.f32.mrf.mxu0
      %v1023 = vpop.f32.mrf.mxu0
      %v1024 = vadd.f32 %v863, %v1023
      %v1025 = vpop.f32.mrf.mxu0
      %1026 = vmatprep.mubr.bf16.mxu0 %v512
      %1027 = vmatmul.mubr.bf16.gmra.mxu0 %v511
      %v1028 = vpop.f32.mrf.mxu0
      %v1029 = vadd.f32 %v868, %v1028
      %v1030 = vpop.f32.mrf.mxu0
      %v1031 = vpop.f32.mrf.mxu0
      %v1032 = vadd.f32 %v871, %v1031
      %v1033 = vpop.f32.mrf.mxu0
      %1034 = vmatprep.mubr.bf16.mxu0 %v516
      %1035 = vmatmul.mubr.bf16.gmra.mxu0 %v515
      %v1036 = vpop.f32.mrf.mxu0
      %v1037 = vadd.f32 %v876, %v1036
      %v1038 = vpop.f32.mrf.mxu0
      %v1039 = vpop.f32.mrf.mxu0
      %v1040 = vadd.f32 %v879, %v1039
      %v1041 = vpop.f32.mrf.mxu0
      %1042 = vmatprep.mubr.bf16.mxu0 %v520
      %1043 = vmatmul.mubr.bf16.gmra.mxu0 %v519
      %v1044 = vpop.f32.mrf.mxu0
      %v1045 = vadd.f32 %v884, %v1044
      %v1046 = vpop.f32.mrf.mxu0
      %v1047 = vpop.f32.mrf.mxu0
      %v1048 = vadd.f32 %v887, %v1047
      %v1049 = vpop.f32.mrf.mxu0
      %1050 = vmatprep.mubr.bf16.mxu0 %v524
      %1051 = vmatmul.mubr.bf16.gmra.mxu0 %v523
      %v1052 = vpop.f32.mrf.mxu0
      %v1053 = vadd.f32 %v892, %v1052
      %v1054 = vpop.f32.mrf.mxu0
      %v1055 = vpop.f32.mrf.mxu0
      %v1056 = vadd.f32 %v895, %v1055
      %v1057 = vpop.f32.mrf.mxu0
      %1058 = vmatprep.mubr.bf16.mxu0 %v528
      %1059 = vmatmul.mubr.bf16.gmra.mxu0 %v527
      %v1060 = vpop.f32.mrf.mxu0
      %v1061 = vadd.f32 %v900, %v1060
      %v1062 = vpop.f32.mrf.mxu0
      %v1063 = vpop.f32.mrf.mxu0
      %v1064 = vadd.f32 %v903, %v1063
      %v1065 = vpop.f32.mrf.mxu0
      %1066 = vmatprep.mubr.bf16.mxu0 %v532
      %1067 = vmatmul.mubr.bf16.gmra.mxu0 %v531
      %v1068 = vpop.f32.mrf.mxu0
      %v1069 = vadd.f32 %v908, %v1068
      %v1070 = vpop.f32.mrf.mxu0
      %v1071 = vpop.f32.mrf.mxu0
      %v1072 = vadd.f32 %v911, %v1071
      %v1073 = vpop.f32.mrf.mxu0
      %1074 = vmatprep.mubr.bf16.mxu0 %v536
      %1075 = vmatmul.mubr.bf16.gmra.mxu0 %v535
      %v1076 = vpop.f32.mrf.mxu0
      %v1077 = vadd.f32 %v916, %v1076
      %v1078 = vpop.f32.mrf.mxu0
      %v1079 = vpop.f32.mrf.mxu0
      %v1080 = vadd.f32 %v919, %v1079
      %v1081 = vpop.f32.mrf.mxu0
      %1082 = vmatprep.mubr.bf16.mxu0 %v540
      %1083 = vmatmul.mubr.bf16.gmra.mxu0 %v539
      %v1084 = vpop.f32.mrf.mxu0
      %v1085 = vadd.f32 %v924, %v1084
      %v1086 = vpop.f32.mrf.mxu0
      %v1087 = vpop.f32.mrf.mxu0
      %v1088 = vadd.f32 %v927, %v1087
      %v1089 = vpop.f32.mrf.mxu0
      %1090 = vmatprep.mubr.bf16.mxu0 %v544
      %1091 = vmatmul.mubr.bf16.gmra.mxu0 %v543
      %v1092 = vpop.f32.mrf.mxu0
      %v1093 = vadd.f32 %v932, %v1092
      %v1094 = vpop.f32.mrf.mxu0
      %v1095 = vpop.f32.mrf.mxu0
      %v1096 = vadd.f32 %v935, %v1095
      %v1097 = vpop.f32.mrf.mxu0
      %1098 = vmatprep.mubr.bf16.mxu0 %v548
      %1099 = vmatmul.mubr.bf16.gmra.mxu0 %v547
      %v1100 = vpop.f32.mrf.mxu0
      %v1101 = vadd.f32 %v940, %v1100
      %v1102 = vpop.f32.mrf.mxu0
      %v1103 = vpop.f32.mrf.mxu0
      %v1104 = vadd.f32 %v943, %v1103
      %v1105 = vpop.f32.mrf.mxu0
      %1106 = vmatprep.mubr.bf16.mxu0 %v552
      %1107 = vmatmul.mubr.bf16.gmra.mxu0 %v551
      %v1108 = vpop.f32.mrf.mxu0
      %v1109 = vadd.f32 %v948, %v1108
      %v1110 = vpop.f32.mrf.mxu0
      %v1111 = vpop.f32.mrf.mxu0
      %v1112 = vadd.f32 %v951, %v1111
      %v1113 = vpop.f32.mrf.mxu0
      %1114 = vmatprep.mubr.bf16.mxu0 %v556
      %1115 = vmatmul.mubr.bf16.gmra.mxu0 %v555
      %v1116 = vpop.f32.mrf.mxu0
      %v1117 = vadd.f32 %v956, %v1116
      %v1118 = vpop.f32.mrf.mxu0
      %v1119 = vpop.f32.mrf.mxu0
      %v1120 = vadd.f32 %v959, %v1119
      %v1121 = vpop.f32.mrf.mxu0
      %1122 = vmatprep.mubr.bf16.mxu0 %v560
      %1123 = vmatmul.mubr.bf16.gmra.mxu0 %v559
      %v1124 = vpop.f32.mrf.mxu0
      %v1125 = vadd.f32 %v964, %v1124
      %v1126 = vpop.f32.mrf.mxu0
      %v1127 = vpop.f32.mrf.mxu0
      %v1128 = vadd.f32 %v967, %v1127
      %v1129 = vpop.f32.mrf.mxu0
      %1130 = vmatprep.mubr.bf16.mxu0 %v564
      %1131 = vmatmul.mubr.bf16.gmra.mxu0 %v563
      %v1132 = vpop.f32.mrf.mxu0
      %v1133 = vadd.f32 %v972, %v1132
      %v1134 = vpop.f32.mrf.mxu0
      %v1135 = vpop.f32.mrf.mxu0
      %v1136 = vadd.f32 %v975, %v1135
      %v1137 = vpop.f32.mrf.mxu0
      %1138 = vmatprep.mubr.bf16.mxu0 %v568
      %1139 = vmatmul.mubr.bf16.gmra.mxu0 %v567
      %v1140 = vpop.f32.mrf.mxu0
      %v1141 = vadd.f32 %v980, %v1140
      %v1142 = vpop.f32.mrf.mxu0
      %v1143 = vpop.f32.mrf.mxu0
      %v1144 = vadd.f32 %v983, %v1143
      %v1145 = vpop.f32.mrf.mxu0
      %1146 = vdwg.mxu0
      %v1147 = vmax.f32 %v1021, 0.0
      %v1148 = vmax.f32 %v1024, 0.0
      %v1149 = vmax.f32 %v1029, 0.0
      %v1150 = vmax.f32 %v1032, 0.0
      %v1151 = vmax.f32 %v1037, 0.0
      %v1152 = vmax.f32 %v1040, 0.0
      %v1153 = vmax.f32 %v1045, 0.0
      %v1154 = vmax.f32 %v1048, 0.0
      %v1155 = vmax.f32 %v1053, 0.0
      %v1156 = vmax.f32 %v1056, 0.0
      %v1157 = vmax.f32 %v1061, 0.0
      %v1158 = vmax.f32 %v1064, 0.0
      %v1159 = vmax.f32 %v1069, 0.0
      %v1160 = vmax.f32 %v1072, 0.0
      %v1161 = vmax.f32 %v1077, 0.0
      %v1162 = vmax.f32 %v1080, 0.0
      %v1163 = vmax.f32 %v1085, 0.0
      %v1164 = vmax.f32 %v1088, 0.0
      %v1165 = vmax.f32 %v1093, 0.0
      %v1166 = vmax.f32 %v1096, 0.0
      %v1167 = vmax.f32 %v1101, 0.0
      %v1168 = vmax.f32 %v1104, 0.0
      %v1169 = vmax.f32 %v1109, 0.0
      %v1170 = vmax.f32 %v1112, 0.0
      %v1171 = vmax.f32 %v1117, 0.0
      %v1172 = vmax.f32 %v1120, 0.0
      %v1173 = vmax.f32 %v1125, 0.0
      %v1174 = vmax.f32 %v1128, 0.0
      %v1175 = vmax.f32 %v1133, 0.0
      %v1176 = vmax.f32 %v1136, 0.0
      %v1177 = vmax.f32 %v1141, 0.0
      %v1178 = vmax.f32 %v1144, 0.0
      %v1179 = vpack.c.bf16 %v1148, %v1147
      %v1180 = vpack.c.bf16 %v1150, %v1149
      %v1181 = vpack.c.bf16 %v1152, %v1151
      %v1182 = vpack.c.bf16 %v1154, %v1153
      %v1183 = vpack.c.bf16 %v1156, %v1155
      %v1184 = vpack.c.bf16 %v1158, %v1157
      %v1185 = vpack.c.bf16 %v1160, %v1159
      %v1186 = vpack.c.bf16 %v1162, %v1161
      %v1187 = vpack.c.bf16 %v1164, %v1163
      %v1188 = vpack.c.bf16 %v1166, %v1165
      %v1189 = vpack.c.bf16 %v1168, %v1167
      %v1190 = vpack.c.bf16 %v1170, %v1169
      %v1191 = vpack.c.bf16 %v1172, %v1171
      %v1192 = vpack.c.bf16 %v1174, %v1173
      %v1193 = vpack.c.bf16 %v1176, %v1175
      %v1194 = vpack.c.bf16 %v1178, %v1177
      %v1211 = vunpack.c.l.b16 %v1179
      %v1212 = vunpack.c.h.b16 %v1179
      %v1213 = vunpack.c.l.b16 %v1180
      %v1214 = vunpack.c.h.b16 %v1180
      %v1215 = vunpack.c.l.b16 %v1181
      %v1216 = vunpack.c.h.b16 %v1181
      %v1217 = vunpack.c.l.b16 %v1182
      %v1218 = vunpack.c.h.b16 %v1182
      %v1219 = vunpack.c.l.b16 %v1183
      %v1220 = vunpack.c.h.b16 %v1183
      %v1221 = vunpack.c.l.b16 %v1184
      %v1222 = vunpack.c.h.b16 %v1184
      %v1223 = vunpack.c.l.b16 %v1185
      %v1224 = vunpack.c.h.b16 %v1185
      %v1225 = vunpack.c.l.b16 %v1186
      %v1226 = vunpack.c.h.b16 %v1186
      %v1227 = vunpack.c.l.b16 %v1187
      %v1228 = vunpack.c.h.b16 %v1187
      %v1229 = vunpack.c.l.b16 %v1188
      %v1230 = vunpack.c.h.b16 %v1188
      %v1231 = vunpack.c.l.b16 %v1189
      %v1232 = vunpack.c.h.b16 %v1189
      %v1233 = vunpack.c.l.b16 %v1190
      %v1234 = vunpack.c.h.b16 %v1190
      %v1235 = vunpack.c.l.b16 %v1191
      %v1236 = vunpack.c.h.b16 %v1191
      %v1237 = vunpack.c.l.b16 %v1192
      %v1238 = vunpack.c.h.b16 %v1192
      %v1239 = vunpack.c.l.b16 %v1193
      %v1240 = vunpack.c.h.b16 %v1193
      %v1241 = vunpack.c.l.b16 %v1194
      %v1242 = vunpack.c.h.b16 %v1194
      %v1243 = vpack.c.b16 %v1211, %v1211
      %v1244 = vpack.c.b16 %v1212, %v1212
      %v1245 = vpack.c.b16 %v1213, %v1213
      %v1246 = vpack.c.b16 %v1214, %v1214
      %v1247 = vpack.c.b16 %v1215, %v1215
      %v1248 = vpack.c.b16 %v1216, %v1216
      %v1249 = vpack.c.b16 %v1217, %v1217
      %v1250 = vpack.c.b16 %v1218, %v1218
      %v1251 = vpack.c.b16 %v1219, %v1219
      %v1252 = vpack.c.b16 %v1220, %v1220
      %v1253 = vpack.c.b16 %v1221, %v1221
      %v1254 = vpack.c.b16 %v1222, %v1222
      %v1255 = vpack.c.b16 %v1223, %v1223
      %v1256 = vpack.c.b16 %v1224, %v1224
      %v1257 = vpack.c.b16 %v1225, %v1225
      %v1258 = vpack.c.b16 %v1226, %v1226
      %v1259 = vpack.c.b16 %v1227, %v1227
      %v1260 = vpack.c.b16 %v1228, %v1228
      %v1261 = vpack.c.b16 %v1229, %v1229
      %v1262 = vpack.c.b16 %v1230, %v1230
      %v1263 = vpack.c.b16 %v1231, %v1231
      %v1264 = vpack.c.b16 %v1232, %v1232
      %v1265 = vpack.c.b16 %v1233, %v1233
      %v1266 = vpack.c.b16 %v1234, %v1234
      %v1267 = vpack.c.b16 %v1235, %v1235
      %v1268 = vpack.c.b16 %v1236, %v1236
      %v1269 = vpack.c.b16 %v1237, %v1237
      %v1270 = vpack.c.b16 %v1238, %v1238
      %v1271 = vpack.c.b16 %v1239, %v1239
      %v1272 = vpack.c.b16 %v1240, %v1240
      %v1273 = vpack.c.b16 %v1241, %v1241
      %v1274 = vpack.c.b16 %v1242, %v1242
      %vm1307 = vcmask 257024
      %1308 = vst.msk [vmem:[%s175] sm:$0xf] %vm1307, %v1243
      %1309 = vst.msk [vmem:[%s175 + $0x4] sm:$0xf] %vm1307, %v1244
      %1310 = vst.msk [vmem:[%s175 + $0x8] sm:$0xf] %vm1307, %v1245
      %1311 = vst.msk [vmem:[%s175 + $0xc] sm:$0xf] %vm1307, %v1246
      %1312 = vst.msk [vmem:[%s175 + $0x10] sm:$0xf] %vm1307, %v1247
      %1313 = vst.msk [vmem:[%s175 + $0x14] sm:$0xf] %vm1307, %v1248
      %1314 = vst.msk [vmem:[%s175 + $0x18] sm:$0xf] %vm1307, %v1249
      %1315 = vst.msk [vmem:[%s175 + $0x1c] sm:$0xf] %vm1307, %v1250
      %1316 = vst.msk [vmem:[%s175 + $0x20] sm:$0xf] %vm1307, %v1251
      %1317 = vst.msk [vmem:[%s175 + $0x24] sm:$0xf] %vm1307, %v1252
      %1318 = vst.msk [vmem:[%s175 + $0x28] sm:$0xf] %vm1307, %v1253
      %1319 = vst.msk [vmem:[%s175 + $0x2c] sm:$0xf] %vm1307, %v1254
      %1320 = vst.msk [vmem:[%s175 + $0x30] sm:$0xf] %vm1307, %v1255
      %1321 = vst.msk [vmem:[%s175 + $0x34] sm:$0xf] %vm1307, %v1256
      %1322 = vst.msk [vmem:[%s175 + $0x38] sm:$0xf] %vm1307, %v1257
      %1323 = vst.msk [vmem:[%s175 + $0x3c] sm:$0xf] %vm1307, %v1258
      %1324 = vst.msk [vmem:[%s175 + $0x40] sm:$0xf] %vm1307, %v1259
      %1325 = vst.msk [vmem:[%s175 + $0x44] sm:$0xf] %vm1307, %v1260
      %1326 = vst.msk [vmem:[%s175 + $0x48] sm:$0xf] %vm1307, %v1261
      %1327 = vst.msk [vmem:[%s175 + $0x4c] sm:$0xf] %vm1307, %v1262
      %1328 = vst.msk [vmem:[%s175 + $0x50] sm:$0xf] %vm1307, %v1263
      %1329 = vst.msk [vmem:[%s175 + $0x54] sm:$0xf] %vm1307, %v1264
      %1330 = vst.msk [vmem:[%s175 + $0x58] sm:$0xf] %vm1307, %v1265
      %1331 = vst.msk [vmem:[%s175 + $0x5c] sm:$0xf] %vm1307, %v1266
      %1332 = vst.msk [vmem:[%s175 + $0x60] sm:$0xf] %vm1307, %v1267
      %1333 = vst.msk [vmem:[%s175 + $0x64] sm:$0xf] %vm1307, %v1268
      %1334 = vst.msk [vmem:[%s175 + $0x68] sm:$0xf] %vm1307, %v1269
      %1335 = vst.msk [vmem:[%s175 + $0x6c] sm:$0xf] %vm1307, %v1270
      %1336 = vst.msk [vmem:[%s175 + $0x70] sm:$0xf] %vm1307, %v1271
      %1337 = vst.msk [vmem:[%s175 + $0x74] sm:$0xf] %vm1307, %v1272
      %1338 = vst.msk [vmem:[%s175 + $0x78] sm:$0xf] %vm1307, %v1273
      %1339 = vst.msk [vmem:[%s175 + $0x7c] sm:$0xf] %vm1307, %v1274
      %s1340 = smul.u32 32, %s14
      %p1341 = scmp.lt.s32.totalorder %s1340, 63
      %s1342 = scalar_select %p1341, %s1340, 63
      %s1343 = smul.addr %s1342, 4
      %s1344 = scalar_lea.vmem %s3, %s1343
      // Predicated region
      $region33: #{beta_vae_forward.13} parent=31 // pred_check
        %p1345 = pneg %p100
      $region34: #{beta_vae_forward.13} parent=31 // pred_check_branch
        %1347 = sbr.rel (%p1345) target = $region36
      $region35: #{beta_vae_forward.13} parent=31 // pred_region
        %s1348 = smul.u32 32, %s14
      $region36: #{beta_vae_forward.13} parent=31 // pred_fallthru
        _
    $region32: #{beta_vae_forward.13} parent=5 // pred_fallthru
      _
    %p1349 = scmp.le.s32.totalorder 2, %s9
    // Predicated region
    $region37: #{beta_vae_forward.13} parent=5 // pred_check
      %p1350 = pneg %p1349
    $region38: #{beta_vae_forward.13} parent=5 // pred_check_branch
      %1352 = sbr.rel (%p1350) target = $region40
    $region39: #{beta_vae_forward.13} parent=5 // pred_region
      %s1353 = ssub.s32 %s9, 2
      // Predicated region
      $region41: #{beta_vae_forward.13} parent=39 // pred_check
        %p1354 = pneg %p106
      $region42: #{beta_vae_forward.13} parent=39 // pred_check_branch
        %1356 = sbr.rel (%p1354) target = $region44
      $region43: #{beta_vae_forward.13} parent=39 // pred_region
        %s1357 = smul.u32 32, %s15
        %p1358 = scmp.lt.s32.totalorder %s1357, 63
        %s1359 = scalar_select %p1358, %s1357, 63
        %s1360 = smul.addr %s1359, 4
        %s1361 = scalar_lea.vmem %s3, %s1360
      $region44: #{beta_vae_forward.13} parent=39 // pred_fallthru
        _
    $region40: #{beta_vae_forward.13} parent=5 // pred_fallthru
      _
  $region6: #{beta_vae_forward.13} parent=0 // loop_footer
    %s13 = sadd.s32 1, %s9
  $region7: #{beta_vae_forward.13} parent=0 // loop_footer_branch
    %8 = sbr.rel target = $region3
  $region8: #{beta_vae_forward.13} parent=0 // loop_exit
    _

// kernel: beta_vae_forward.14
$region0: #{beta_vae_forward.14}
  #allocation0 [shape = 'u32[]', space=smem, size = 0x4, offset = 0x4, fixed_abs, tag = 'smem constant byte address 0x4 - core index']
  #allocation1 [shape = 'u32[144,128]{1,0:T(1,128)}', space=vmem, size = 0x12000, scoped, tag = 'internal scratch']
  %s0 = inlined_call_operand.vmem [shape: bf16[128,512], index: 0, kind: input, shape index: {}]
  %s1 = inlined_call_operand.vmem [shape: bf16[512,64], index: 1, kind: input, shape index: {}]
  %s2 = inlined_call_operand.vmem [shape: f32[1,64], index: 2, kind: input, shape index: {}]
  %s3 = inlined_call_operand.vmem [shape: bf16[128,64], index: 3, kind: output, shape index: {}]
  %s4 = sld [smem:[#allocation0]]
  $region22: #{beta_vae_forward.14} parent=0
    _
  %s6 = ssub.s32 1, %s4
  %s7 = scalar_select 0, %s6, %s4
  // Predicated region
  $region2: #{beta_vae_forward.14} parent=0 // pred_check
    _
  $region3: #{beta_vae_forward.14} parent=0 // pred_check_branch
    %9 = sbr.rel (0) target = $region5
  $region4: #{beta_vae_forward.14} parent=0 // pred_region
    _
  $region5: #{beta_vae_forward.14} parent=0 // pred_fallthru
    _
  // Predicated region
  $region6: #{beta_vae_forward.14} parent=0 // pred_check
    _
  $region7: #{beta_vae_forward.14} parent=0 // pred_check_branch
    %11 = sbr.rel (0) target = $region9
  $region8: #{beta_vae_forward.14} parent=0 // pred_region
    _
  $region9: #{beta_vae_forward.14} parent=0 // pred_fallthru
    _
  // Predicated region
  $region10: #{beta_vae_forward.14} parent=0 // pred_check
    _
  $region11: #{beta_vae_forward.14} parent=0 // pred_check_branch
    %13 = sbr.rel (0) target = $region13
  $region12: #{beta_vae_forward.14} parent=0 // pred_region
    _
  $region13: #{beta_vae_forward.14} parent=0 // pred_fallthru
    _
  %v15 = vld [vmem:[%s0] sm:$0xff]
  %v16 = vld [vmem:[%s0 + $0x8] sm:$0xff]
  %v17 = vld [vmem:[%s0 + $0x10] sm:$0xff]
  %v18 = vld [vmem:[%s0 + $0x18] sm:$0xff]
  %v19 = vld [vmem:[%s0 + $0x20] sm:$0xff]
  %v20 = vld [vmem:[%s0 + $0x28] sm:$0xff]
  %v21 = vld [vmem:[%s0 + $0x30] sm:$0xff]
  %v22 = vld [vmem:[%s0 + $0x38] sm:$0xff]
  %v23 = vld [vmem:[%s0 + $0x40] sm:$0xff]
  %v24 = vld [vmem:[%s0 + $0x48] sm:$0xff]
  %v25 = vld [vmem:[%s0 + $0x50] sm:$0xff]
  %v26 = vld [vmem:[%s0 + $0x58] sm:$0xff]
  %v27 = vld [vmem:[%s0 + $0x60] sm:$0xff]
  %v28 = vld [vmem:[%s0 + $0x68] sm:$0xff]
  %v29 = vld [vmem:[%s0 + $0x70] sm:$0xff]
  %v30 = vld [vmem:[%s0 + $0x78] sm:$0xff]
  %v31 = vld [vmem:[%s0 + $0x80] sm:$0xff]
  %v32 = vld [vmem:[%s0 + $0x88] sm:$0xff]
  %v33 = vld [vmem:[%s0 + $0x90] sm:$0xff]
  %v34 = vld [vmem:[%s0 + $0x98] sm:$0xff]
  %v35 = vld [vmem:[%s0 + $0xa0] sm:$0xff]
  %v36 = vld [vmem:[%s0 + $0xa8] sm:$0xff]
  %v37 = vld [vmem:[%s0 + $0xb0] sm:$0xff]
  %v38 = vld [vmem:[%s0 + $0xb8] sm:$0xff]
  %v39 = vld [vmem:[%s0 + $0xc0] sm:$0xff]
  %v40 = vld [vmem:[%s0 + $0xc8] sm:$0xff]
  %v41 = vld [vmem:[%s0 + $0xd0] sm:$0xff]
  %v42 = vld [vmem:[%s0 + $0xd8] sm:$0xff]
  %v43 = vld [vmem:[%s0 + $0xe0] sm:$0xff]
  %v44 = vld [vmem:[%s0 + $0xe8] sm:$0xff]
  %v45 = vld [vmem:[%s0 + $0xf0] sm:$0xff]
  %v46 = vld [vmem:[%s0 + $0xf8] sm:$0xff]
  %v47 = vld [vmem:[%s1] sm:$0xf]
  %v48 = vld [vmem:[%s1 + $0x4] sm:$0xf]
  %v49 = vld [vmem:[%s1 + $0x8] sm:$0xf]
  %v50 = vld [vmem:[%s1 + $0xc] sm:$0xf]
  %v51 = vld [vmem:[%s1 + $0x10] sm:$0xf]
  %v52 = vld [vmem:[%s1 + $0x14] sm:$0xf]
  %v53 = vld [vmem:[%s1 + $0x18] sm:$0xf]
  %v54 = vld [vmem:[%s1 + $0x1c] sm:$0xf]
  %v55 = vld [vmem:[%s1 + $0x20] sm:$0xf]
  %v56 = vld [vmem:[%s1 + $0x24] sm:$0xf]
  %v57 = vld [vmem:[%s1 + $0x28] sm:$0xf]
  %v58 = vld [vmem:[%s1 + $0x2c] sm:$0xf]
  %v59 = vld [vmem:[%s1 + $0x30] sm:$0xf]
  %v60 = vld [vmem:[%s1 + $0x34] sm:$0xf]
  %v61 = vld [vmem:[%s1 + $0x38] sm:$0xf]
  %v62 = vld [vmem:[%s1 + $0x3c] sm:$0xf]
  %v63 = vld [vmem:[%s1 + $0x40] sm:$0xf]
  %v64 = vld [vmem:[%s1 + $0x44] sm:$0xf]
  %v65 = vld [vmem:[%s1 + $0x48] sm:$0xf]
  %v66 = vld [vmem:[%s1 + $0x4c] sm:$0xf]
  %v67 = vld [vmem:[%s1 + $0x50] sm:$0xf]
  %v68 = vld [vmem:[%s1 + $0x54] sm:$0xf]
  %v69 = vld [vmem:[%s1 + $0x58] sm:$0xf]
  %v70 = vld [vmem:[%s1 + $0x5c] sm:$0xf]
  %v71 = vld [vmem:[%s1 + $0x60] sm:$0xf]
  %v72 = vld [vmem:[%s1 + $0x64] sm:$0xf]
  %v73 = vld [vmem:[%s1 + $0x68] sm:$0xf]
  %v74 = vld [vmem:[%s1 + $0x6c] sm:$0xf]
  %v75 = vld [vmem:[%s1 + $0x70] sm:$0xf]
  %v76 = vld [vmem:[%s1 + $0x74] sm:$0xf]
  %v77 = vld [vmem:[%s1 + $0x78] sm:$0xf]
  %v78 = vld [vmem:[%s1 + $0x7c] sm:$0xf]
  %v79 = vld [vmem:[%s1 + $0x80] sm:$0xf]
  %v80 = vld [vmem:[%s1 + $0x84] sm:$0xf]
  %v81 = vld [vmem:[%s1 + $0x88] sm:$0xf]
  %v82 = vld [vmem:[%s1 + $0x8c] sm:$0xf]
  %v83 = vld [vmem:[%s1 + $0x90] sm:$0xf]
  %v84 = vld [vmem:[%s1 + $0x94] sm:$0xf]
  %v85 = vld [vmem:[%s1 + $0x98] sm:$0xf]
  %v86 = vld [vmem:[%s1 + $0x9c] sm:$0xf]
  %v87 = vld [vmem:[%s1 + $0xa0] sm:$0xf]
  %v88 = vld [vmem:[%s1 + $0xa4] sm:$0xf]
  %v89 = vld [vmem:[%s1 + $0xa8] sm:$0xf]
  %v90 = vld [vmem:[%s1 + $0xac] sm:$0xf]
  %v91 = vld [vmem:[%s1 + $0xb0] sm:$0xf]
  %v92 = vld [vmem:[%s1 + $0xb4] sm:$0xf]
  %v93 = vld [vmem:[%s1 + $0xb8] sm:$0xf]
  %v94 = vld [vmem:[%s1 + $0xbc] sm:$0xf]
  %v95 = vld [vmem:[%s1 + $0xc0] sm:$0xf]
  %v96 = vld [vmem:[%s1 + $0xc4] sm:$0xf]
  %v97 = vld [vmem:[%s1 + $0xc8] sm:$0xf]
  %v98 = vld [vmem:[%s1 + $0xcc] sm:$0xf]
  %v99 = vld [vmem:[%s1 + $0xd0] sm:$0xf]
  %v100 = vld [vmem:[%s1 + $0xd4] sm:$0xf]
  %v101 = vld [vmem:[%s1 + $0xd8] sm:$0xf]
  %v102 = vld [vmem:[%s1 + $0xdc] sm:$0xf]
  %v103 = vld [vmem:[%s1 + $0xe0] sm:$0xf]
  %v104 = vld [vmem:[%s1 + $0xe4] sm:$0xf]
  %v105 = vld [vmem:[%s1 + $0xe8] sm:$0xf]
  %v106 = vld [vmem:[%s1 + $0xec] sm:$0xf]
  %v107 = vld [vmem:[%s1 + $0xf0] sm:$0xf]
  %v108 = vld [vmem:[%s1 + $0xf4] sm:$0xf]
  %v109 = vld [vmem:[%s1 + $0xf8] sm:$0xf]
  %v110 = vld [vmem:[%s1 + $0xfc] sm:$0xf]
  %v111 = vld [vmem:[%s2] sm:$0x1]
  %v113 = vlaneseq
  %v114 = vshrl.u32 %v113, 7
  %v115 = vsub.s32 0, %v114
  %v116 = vrot.slane %v111, %v115
  %v150 = vunpack.c.l.b16 %v15
  %v151 = vunpack.c.h.b16 %v15
  %v152 = vunpack.c.l.b16 %v16
  %v153 = vunpack.c.h.b16 %v16
  %v154 = vunpack.c.l.b16 %v17
  %v155 = vunpack.c.h.b16 %v17
  %v156 = vunpack.c.l.b16 %v18
  %v157 = vunpack.c.h.b16 %v18
  %v158 = vunpack.c.l.b16 %v19
  %v159 = vunpack.c.h.b16 %v19
  %v160 = vunpack.c.l.b16 %v20
  %v161 = vunpack.c.h.b16 %v20
  %v162 = vunpack.c.l.b16 %v21
  %v163 = vunpack.c.h.b16 %v21
  %v164 = vunpack.c.l.b16 %v22
  %v165 = vunpack.c.h.b16 %v22
  %v166 = vunpack.c.l.b16 %v23
  %v167 = vunpack.c.h.b16 %v23
  %v168 = vunpack.c.l.b16 %v24
  %v169 = vunpack.c.h.b16 %v24
  %v170 = vunpack.c.l.b16 %v25
  %v171 = vunpack.c.h.b16 %v25
  %v172 = vunpack.c.l.b16 %v26
  %v173 = vunpack.c.h.b16 %v26
  %v174 = vunpack.c.l.b16 %v27
  %v175 = vunpack.c.h.b16 %v27
  %v176 = vunpack.c.l.b16 %v28
  %v177 = vunpack.c.h.b16 %v28
  %v178 = vunpack.c.l.b16 %v29
  %v179 = vunpack.c.h.b16 %v29
  %v180 = vunpack.c.l.b16 %v30
  %v181 = vunpack.c.h.b16 %v30
  %v182 = vunpack.c.l.b16 %v31
  %v183 = vunpack.c.h.b16 %v31
  %v184 = vunpack.c.l.b16 %v32
  %v185 = vunpack.c.h.b16 %v32
  %v186 = vunpack.c.l.b16 %v33
  %v187 = vunpack.c.h.b16 %v33
  %v188 = vunpack.c.l.b16 %v34
  %v189 = vunpack.c.h.b16 %v34
  %v190 = vunpack.c.l.b16 %v35
  %v191 = vunpack.c.h.b16 %v35
  %v192 = vunpack.c.l.b16 %v36
  %v193 = vunpack.c.h.b16 %v36
  %v194 = vunpack.c.l.b16 %v37
  %v195 = vunpack.c.h.b16 %v37
  %v196 = vunpack.c.l.b16 %v38
  %v197 = vunpack.c.h.b16 %v38
  %v198 = vunpack.c.l.b16 %v39
  %v199 = vunpack.c.h.b16 %v39
  %v200 = vunpack.c.l.b16 %v40
  %v201 = vunpack.c.h.b16 %v40
  %v202 = vunpack.c.l.b16 %v41
  %v203 = vunpack.c.h.b16 %v41
  %v204 = vunpack.c.l.b16 %v42
  %v205 = vunpack.c.h.b16 %v42
  %v206 = vunpack.c.l.b16 %v43
  %v207 = vunpack.c.h.b16 %v43
  %v208 = vunpack.c.l.b16 %v44
  %v209 = vunpack.c.h.b16 %v44
  %v210 = vunpack.c.l.b16 %v45
  %v211 = vunpack.c.h.b16 %v45
  %v212 = vunpack.c.l.b16 %v46
  %v213 = vunpack.c.h.b16 %v46
  %v214 = vpack.c.b16 %v154, %v150
  %v215 = vpack.c.b16 %v155, %v151
  %v216 = vpack.c.b16 %v156, %v152
  %v217 = vpack.c.b16 %v157, %v153
  %v218 = vpack.c.b16 %v162, %v158
  %v219 = vpack.c.b16 %v163, %v159
  %v220 = vpack.c.b16 %v164, %v160
  %v221 = vpack.c.b16 %v165, %v161
  %v222 = vpack.c.b16 %v170, %v166
  %v223 = vpack.c.b16 %v171, %v167
  %v224 = vpack.c.b16 %v172, %v168
  %v225 = vpack.c.b16 %v173, %v169
  %v226 = vpack.c.b16 %v178, %v174
  %v227 = vpack.c.b16 %v179, %v175
  %v228 = vpack.c.b16 %v180, %v176
  %v229 = vpack.c.b16 %v181, %v177
  %v230 = vpack.c.b16 %v186, %v182
  %v231 = vpack.c.b16 %v187, %v183
  %v232 = vpack.c.b16 %v188, %v184
  %v233 = vpack.c.b16 %v189, %v185
  %v234 = vpack.c.b16 %v194, %v190
  %v235 = vpack.c.b16 %v195, %v191
  %v236 = vpack.c.b16 %v196, %v192
  %v237 = vpack.c.b16 %v197, %v193
  %v238 = vpack.c.b16 %v202, %v198
  %v239 = vpack.c.b16 %v203, %v199
  %v240 = vpack.c.b16 %v204, %v200
  %v241 = vpack.c.b16 %v205, %v201
  %v242 = vpack.c.b16 %v210, %v206
  %v243 = vpack.c.b16 %v211, %v207
  %v244 = vpack.c.b16 %v212, %v208
  %v245 = vpack.c.b16 %v213, %v209
  %v342 = vunpack.c.l.b16 %v47
  %v343 = vunpack.c.l.b16 %v48
  %v344 = vunpack.c.l.b16 %v49
  %v345 = vunpack.c.l.b16 %v50
  %v346 = vunpack.c.l.b16 %v51
  %v347 = vunpack.c.l.b16 %v52
  %v348 = vunpack.c.l.b16 %v53
  %v349 = vunpack.c.l.b16 %v54
  %v350 = vunpack.c.l.b16 %v55
  %v351 = vunpack.c.l.b16 %v56
  %v352 = vunpack.c.l.b16 %v57
  %v353 = vunpack.c.l.b16 %v58
  %v354 = vunpack.c.l.b16 %v59
  %v355 = vunpack.c.l.b16 %v60
  %v356 = vunpack.c.l.b16 %v61
  %v357 = vunpack.c.l.b16 %v62
  %v358 = vunpack.c.l.b16 %v63
  %v359 = vunpack.c.l.b16 %v64
  %v360 = vunpack.c.l.b16 %v65
  %v361 = vunpack.c.l.b16 %v66
  %v362 = vunpack.c.l.b16 %v67
  %v363 = vunpack.c.l.b16 %v68
  %v364 = vunpack.c.l.b16 %v69
  %v365 = vunpack.c.l.b16 %v70
  %v366 = vunpack.c.l.b16 %v71
  %v367 = vunpack.c.l.b16 %v72
  %v368 = vunpack.c.l.b16 %v73
  %v369 = vunpack.c.l.b16 %v74
  %v370 = vunpack.c.l.b16 %v75
  %v371 = vunpack.c.l.b16 %v76
  %v372 = vunpack.c.l.b16 %v77
  %v373 = vunpack.c.l.b16 %v78
  %v374 = vunpack.c.l.b16 %v79
  %v375 = vunpack.c.l.b16 %v80
  %v376 = vunpack.c.l.b16 %v81
  %v377 = vunpack.c.l.b16 %v82
  %v378 = vunpack.c.l.b16 %v83
  %v379 = vunpack.c.l.b16 %v84
  %v380 = vunpack.c.l.b16 %v85
  %v381 = vunpack.c.l.b16 %v86
  %v382 = vunpack.c.l.b16 %v87
  %v383 = vunpack.c.l.b16 %v88
  %v384 = vunpack.c.l.b16 %v89
  %v385 = vunpack.c.l.b16 %v90
  %v386 = vunpack.c.l.b16 %v91
  %v387 = vunpack.c.l.b16 %v92
  %v388 = vunpack.c.l.b16 %v93
  %v389 = vunpack.c.l.b16 %v94
  %v390 = vunpack.c.l.b16 %v95
  %v391 = vunpack.c.l.b16 %v96
  %v392 = vunpack.c.l.b16 %v97
  %v393 = vunpack.c.l.b16 %v98
  %v394 = vunpack.c.l.b16 %v99
  %v395 = vunpack.c.l.b16 %v100
  %v396 = vunpack.c.l.b16 %v101
  %v397 = vunpack.c.l.b16 %v102
  %v398 = vunpack.c.l.b16 %v103
  %v399 = vunpack.c.l.b16 %v104
  %v400 = vunpack.c.l.b16 %v105
  %v401 = vunpack.c.l.b16 %v106
  %v402 = vunpack.c.l.b16 %v107
  %v403 = vunpack.c.l.b16 %v108
  %v404 = vunpack.c.l.b16 %v109
  %v405 = vunpack.c.l.b16 %v110
  %v406 = vpack.c.b16 %v343, %v342
  %v407 = vpack.c.b16 %v345, %v344
  %v408 = vpack.c.b16 %v347, %v346
  %v409 = vpack.c.b16 %v349, %v348
  %v410 = vpack.c.b16 %v351, %v350
  %v411 = vpack.c.b16 %v353, %v352
  %v412 = vpack.c.b16 %v355, %v354
  %v413 = vpack.c.b16 %v357, %v356
  %v414 = vpack.c.b16 %v359, %v358
  %v415 = vpack.c.b16 %v361, %v360
  %v416 = vpack.c.b16 %v363, %v362
  %v417 = vpack.c.b16 %v365, %v364
  %v418 = vpack.c.b16 %v367, %v366
  %v419 = vpack.c.b16 %v369, %v368
  %v420 = vpack.c.b16 %v371, %v370
  %v421 = vpack.c.b16 %v373, %v372
  %v422 = vpack.c.b16 %v375, %v374
  %v423 = vpack.c.b16 %v377, %v376
  %v424 = vpack.c.b16 %v379, %v378
  %v425 = vpack.c.b16 %v381, %v380
  %v426 = vpack.c.b16 %v383, %v382
  %v427 = vpack.c.b16 %v385, %v384
  %v428 = vpack.c.b16 %v387, %v386
  %v429 = vpack.c.b16 %v389, %v388
  %v430 = vpack.c.b16 %v391, %v390
  %v431 = vpack.c.b16 %v393, %v392
  %v432 = vpack.c.b16 %v395, %v394
  %v433 = vpack.c.b16 %v397, %v396
  %v434 = vpack.c.b16 %v399, %v398
  %v435 = vpack.c.b16 %v401, %v400
  %v436 = vpack.c.b16 %v403, %v402
  %v437 = vpack.c.b16 %v405, %v404
  %470 = vmatprep.subr.bf16.mxu0 0
  %471 = vmatpush1.bf16.msra.mxu0 %v413
  %472 = vmatprep.subr.bf16.mxu0 0
  %473 = vmatpush1.bf16.msra.mxu0 %v412
  %474 = vmatprep.subr.bf16.mxu0 0
  %475 = vmatpush1.bf16.msra.mxu0 %v411
  %476 = vmatprep.subr.bf16.mxu0 0
  %477 = vmatpush1.bf16.msra.mxu0 %v410
  %478 = vmatprep.subr.bf16.mxu0 0
  %479 = vmatpush1.bf16.msra.mxu0 %v409
  %480 = vmatprep.subr.bf16.mxu0 0
  %481 = vmatpush1.bf16.msra.mxu0 %v408
  %482 = vmatprep.subr.bf16.mxu0 0
  %483 = vmatpush1.bf16.msra.mxu0 %v407
  %484 = vmatprep.subr.bf16.mxu0 0
  %485 = vmatpush1.bf16.msra.mxu0 %v406
  %486 = vmatprep.subr.bf16.mxu0 0
  %487 = vmatpush2.bf16.msra.mxu0 %v421
  %488 = vmatprep.subr.bf16.mxu0 0
  %489 = vmatpush2.bf16.msra.mxu0 %v420
  %490 = vmatprep.subr.bf16.mxu0 0
  %491 = vmatpush2.bf16.msra.mxu0 %v419
  %492 = vmatprep.subr.bf16.mxu0 0
  %493 = vmatpush2.bf16.msra.mxu0 %v418
  %494 = vmatprep.subr.bf16.mxu0 0
  %495 = vmatpush2.bf16.msra.mxu0 %v417
  %496 = vmatprep.subr.bf16.mxu0 0
  %497 = vmatpush2.bf16.msra.mxu0 %v416
  %498 = vmatprep.subr.bf16.mxu0 0
  %499 = vmatpush2.bf16.msra.mxu0 %v415
  %500 = vmatprep.subr.bf16.mxu0 0
  %501 = vmatpush2.bf16.msra.mxu0 %v414
  %502 = vmatprep.mubr.bf16.mxu0 %v215
  %503 = vmatmul.mubr.bf16.gmra.mxu0 %v214
  %v504 = vpop.f32.mrf.mxu0
  %v505 = vadd.f32 %v116, %v504
  %v506 = vpop.f32.mrf.mxu0
  %v507 = vpop.f32.mrf.mxu0
  %v508 = vadd.f32 %v116, %v507
  %v509 = vpop.f32.mrf.mxu0
  %510 = vmatprep.mubr.bf16.mxu0 %v219
  %511 = vmatmul.mubr.bf16.gmra.mxu0 %v218
  %v512 = vpop.f32.mrf.mxu0
  %v513 = vadd.f32 %v116, %v512
  %v514 = vpop.f32.mrf.mxu0
  %v515 = vpop.f32.mrf.mxu0
  %v516 = vadd.f32 %v116, %v515
  %v517 = vpop.f32.mrf.mxu0
  %518 = vmatprep.mubr.bf16.mxu0 %v223
  %519 = vmatmul.mubr.bf16.gmra.mxu0 %v222
  %v520 = vpop.f32.mrf.mxu0
  %v521 = vadd.f32 %v116, %v520
  %v522 = vpop.f32.mrf.mxu0
  %v523 = vpop.f32.mrf.mxu0
  %v524 = vadd.f32 %v116, %v523
  %v525 = vpop.f32.mrf.mxu0
  %526 = vmatprep.mubr.bf16.mxu0 %v227
  %527 = vmatmul.mubr.bf16.gmra.mxu0 %v226
  %v528 = vpop.f32.mrf.mxu0
  %v529 = vadd.f32 %v116, %v528
  %v530 = vpop.f32.mrf.mxu0
  %v531 = vpop.f32.mrf.mxu0
  %v532 = vadd.f32 %v116, %v531
  %v533 = vpop.f32.mrf.mxu0
  %534 = vmatprep.mubr.bf16.mxu0 %v231
  %535 = vmatmul.mubr.bf16.gmra.mxu0 %v230
  %v536 = vpop.f32.mrf.mxu0
  %v537 = vadd.f32 %v116, %v536
  %v538 = vpop.f32.mrf.mxu0
  %v539 = vpop.f32.mrf.mxu0
  %v540 = vadd.f32 %v116, %v539
  %v541 = vpop.f32.mrf.mxu0
  %542 = vmatprep.mubr.bf16.mxu0 %v235
  %543 = vmatmul.mubr.bf16.gmra.mxu0 %v234
  %v544 = vpop.f32.mrf.mxu0
  %v545 = vadd.f32 %v116, %v544
  %v546 = vpop.f32.mrf.mxu0
  %v547 = vpop.f32.mrf.mxu0
  %v548 = vadd.f32 %v116, %v547
  %v549 = vpop.f32.mrf.mxu0
  %550 = vmatprep.mubr.bf16.mxu0 %v239
  %551 = vmatmul.mubr.bf16.gmra.mxu0 %v238
  %v552 = vpop.f32.mrf.mxu0
  %v553 = vadd.f32 %v116, %v552
  %v554 = vpop.f32.mrf.mxu0
  %v555 = vpop.f32.mrf.mxu0
  %v556 = vadd.f32 %v116, %v555
  %v557 = vpop.f32.mrf.mxu0
  %558 = vmatprep.mubr.bf16.mxu0 %v243
  %559 = vmatmul.mubr.bf16.gmra.mxu0 %v242
  %v560 = vpop.f32.mrf.mxu0
  %v561 = vadd.f32 %v116, %v560
  %v562 = vpop.f32.mrf.mxu0
  %v563 = vpop.f32.mrf.mxu0
  %v564 = vadd.f32 %v116, %v563
  %v565 = vpop.f32.mrf.mxu0
  %566 = vdwg.mxu0
  %567 = vmatprep.subr.bf16.mxu0 0
  %568 = vmatpush1.bf16.msra.mxu0 %v429
  %569 = vmatprep.subr.bf16.mxu0 0
  %570 = vmatpush1.bf16.msra.mxu0 %v428
  %571 = vmatprep.subr.bf16.mxu0 0
  %572 = vmatpush1.bf16.msra.mxu0 %v427
  %573 = vmatprep.subr.bf16.mxu0 0
  %574 = vmatpush1.bf16.msra.mxu0 %v426
  %575 = vmatprep.subr.bf16.mxu0 0
  %576 = vmatpush1.bf16.msra.mxu0 %v425
  %577 = vmatprep.subr.bf16.mxu0 0
  %578 = vmatpush1.bf16.msra.mxu0 %v424
  %579 = vmatprep.subr.bf16.mxu0 0
  %580 = vmatpush1.bf16.msra.mxu0 %v423
  %581 = vmatprep.subr.bf16.mxu0 0
  %582 = vmatpush1.bf16.msra.mxu0 %v422
  %583 = vmatprep.subr.bf16.mxu0 0
  %584 = vmatpush2.bf16.msra.mxu0 %v437
  %585 = vmatprep.subr.bf16.mxu0 0
  %586 = vmatpush2.bf16.msra.mxu0 %v436
  %587 = vmatprep.subr.bf16.mxu0 0
  %588 = vmatpush2.bf16.msra.mxu0 %v435
  %589 = vmatprep.subr.bf16.mxu0 0
  %590 = vmatpush2.bf16.msra.mxu0 %v434
  %591 = vmatprep.subr.bf16.mxu0 0
  %592 = vmatpush2.bf16.msra.mxu0 %v433
  %593 = vmatprep.subr.bf16.mxu0 0
  %594 = vmatpush2.bf16.msra.mxu0 %v432
  %595 = vmatprep.subr.bf16.mxu0 0
  %596 = vmatpush2.bf16.msra.mxu0 %v431
  %597 = vmatprep.subr.bf16.mxu0 0
  %598 = vmatpush2.bf16.msra.mxu0 %v430
  %599 = vmatprep.mubr.bf16.mxu0 %v217
  %600 = vmatmul.mubr.bf16.gmra.mxu0 %v216
  %v601 = vpop.f32.mrf.mxu0
  %v602 = vadd.f32 %v505, %v601
  %v603 = vpop.f32.mrf.mxu0
  %v604 = vpop.f32.mrf.mxu0
  %v605 = vadd.f32 %v508, %v604
  %v606 = vpop.f32.mrf.mxu0
  %607 = vmatprep.mubr.bf16.mxu0 %v221
  %608 = vmatmul.mubr.bf16.gmra.mxu0 %v220
  %v609 = vpop.f32.mrf.mxu0
  %v610 = vadd.f32 %v513, %v609
  %v611 = vpop.f32.mrf.mxu0
  %v612 = vpop.f32.mrf.mxu0
  %v613 = vadd.f32 %v516, %v612
  %v614 = vpop.f32.mrf.mxu0
  %615 = vmatprep.mubr.bf16.mxu0 %v225
  %616 = vmatmul.mubr.bf16.gmra.mxu0 %v224
  %v617 = vpop.f32.mrf.mxu0
  %v618 = vadd.f32 %v521, %v617
  %v619 = vpop.f32.mrf.mxu0
  %v620 = vpop.f32.mrf.mxu0
  %v621 = vadd.f32 %v524, %v620
  %v622 = vpop.f32.mrf.mxu0
  %623 = vmatprep.mubr.bf16.mxu0 %v229
  %624 = vmatmul.mubr.bf16.gmra.mxu0 %v228
  %v625 = vpop.f32.mrf.mxu0
  %v626 = vadd.f32 %v529, %v625
  %v627 = vpop.f32.mrf.mxu0
  %v628 = vpop.f32.mrf.mxu0
  %v629 = vadd.f32 %v532, %v628
  %v630 = vpop.f32.mrf.mxu0
  %631 = vmatprep.mubr.bf16.mxu0 %v233
  %632 = vmatmul.mubr.bf16.gmra.mxu0 %v232
  %v633 = vpop.f32.mrf.mxu0
  %v634 = vadd.f32 %v537, %v633
  %v635 = vpop.f32.mrf.mxu0
  %v636 = vpop.f32.mrf.mxu0
  %v637 = vadd.f32 %v540, %v636
  %v638 = vpop.f32.mrf.mxu0
  %639 = vmatprep.mubr.bf16.mxu0 %v237
  %640 = vmatmul.mubr.bf16.gmra.mxu0 %v236
  %v641 = vpop.f32.mrf.mxu0
  %v642 = vadd.f32 %v545, %v641
  %v643 = vpop.f32.mrf.mxu0
  %v644 = vpop.f32.mrf.mxu0
  %v645 = vadd.f32 %v548, %v644
  %v646 = vpop.f32.mrf.mxu0
  %647 = vmatprep.mubr.bf16.mxu0 %v241
  %648 = vmatmul.mubr.bf16.gmra.mxu0 %v240
  %v649 = vpop.f32.mrf.mxu0
  %v650 = vadd.f32 %v553, %v649
  %v651 = vpop.f32.mrf.mxu0
  %v652 = vpop.f32.mrf.mxu0
  %v653 = vadd.f32 %v556, %v652
  %v654 = vpop.f32.mrf.mxu0
  %655 = vmatprep.mubr.bf16.mxu0 %v245
  %656 = vmatmul.mubr.bf16.gmra.mxu0 %v244
  %v657 = vpop.f32.mrf.mxu0
  %v658 = vadd.f32 %v561, %v657
  %v659 = vpop.f32.mrf.mxu0
  %v660 = vpop.f32.mrf.mxu0
  %v661 = vadd.f32 %v564, %v660
  %v662 = vpop.f32.mrf.mxu0
  %663 = vdwg.mxu0
  %v664 = vmax.f32 %v602, 0.0
  %v665 = vmax.f32 %v605, 0.0
  %v666 = vmax.f32 %v610, 0.0
  %v667 = vmax.f32 %v613, 0.0
  %v668 = vmax.f32 %v618, 0.0
  %v669 = vmax.f32 %v621, 0.0
  %v670 = vmax.f32 %v626, 0.0
  %v671 = vmax.f32 %v629, 0.0
  %v672 = vmax.f32 %v634, 0.0
  %v673 = vmax.f32 %v637, 0.0
  %v674 = vmax.f32 %v642, 0.0
  %v675 = vmax.f32 %v645, 0.0
  %v676 = vmax.f32 %v650, 0.0
  %v677 = vmax.f32 %v653, 0.0
  %v678 = vmax.f32 %v658, 0.0
  %v679 = vmax.f32 %v661, 0.0
  %v680 = vpack.c.bf16 %v665, %v664
  %v681 = vpack.c.bf16 %v667, %v666
  %v682 = vpack.c.bf16 %v669, %v668
  %v683 = vpack.c.bf16 %v671, %v670
  %v684 = vpack.c.bf16 %v673, %v672
  %v685 = vpack.c.bf16 %v675, %v674
  %v686 = vpack.c.bf16 %v677, %v676
  %v687 = vpack.c.bf16 %v679, %v678
  %v696 = vunpack.c.l.b16 %v680
  %v697 = vunpack.c.h.b16 %v680
  %v698 = vunpack.c.l.b16 %v681
  %v699 = vunpack.c.h.b16 %v681
  %v700 = vunpack.c.l.b16 %v682
  %v701 = vunpack.c.h.b16 %v682
  %v702 = vunpack.c.l.b16 %v683
  %v703 = vunpack.c.h.b16 %v683
  %v704 = vunpack.c.l.b16 %v684
  %v705 = vunpack.c.h.b16 %v684
  %v706 = vunpack.c.l.b16 %v685
  %v707 = vunpack.c.h.b16 %v685
  %v708 = vunpack.c.l.b16 %v686
  %v709 = vunpack.c.h.b16 %v686
  %v710 = vunpack.c.l.b16 %v687
  %v711 = vunpack.c.h.b16 %v687
  %v712 = vpack.c.b16 %v696, %v696
  %v713 = vpack.c.b16 %v697, %v697
  %v714 = vpack.c.b16 %v698, %v698
  %v715 = vpack.c.b16 %v699, %v699
  %v716 = vpack.c.b16 %v700, %v700
  %v717 = vpack.c.b16 %v701, %v701
  %v718 = vpack.c.b16 %v702, %v702
  %v719 = vpack.c.b16 %v703, %v703
  %v720 = vpack.c.b16 %v704, %v704
  %v721 = vpack.c.b16 %v705, %v705
  %v722 = vpack.c.b16 %v706, %v706
  %v723 = vpack.c.b16 %v707, %v707
  %v724 = vpack.c.b16 %v708, %v708
  %v725 = vpack.c.b16 %v709, %v709
  %v726 = vpack.c.b16 %v710, %v710
  %v727 = vpack.c.b16 %v711, %v711
  %vm744 = vcmask 519168
  %745 = vst.msk [vmem:[%s3] sm:$0xf] %vm744, %v712
  %746 = vst.msk [vmem:[%s3 + $0x4] sm:$0xf] %vm744, %v713
  %747 = vst.msk [vmem:[%s3 + $0x8] sm:$0xf] %vm744, %v714
  %748 = vst.msk [vmem:[%s3 + $0xc] sm:$0xf] %vm744, %v715
  %749 = vst.msk [vmem:[%s3 + $0x10] sm:$0xf] %vm744, %v716
  %750 = vst.msk [vmem:[%s3 + $0x14] sm:$0xf] %vm744, %v717
  %751 = vst.msk [vmem:[%s3 + $0x18] sm:$0xf] %vm744, %v718
  %752 = vst.msk [vmem:[%s3 + $0x1c] sm:$0xf] %vm744, %v719
  %753 = vst.msk [vmem:[%s3 + $0x20] sm:$0xf] %vm744, %v720
  %754 = vst.msk [vmem:[%s3 + $0x24] sm:$0xf] %vm744, %v721
  %755 = vst.msk [vmem:[%s3 + $0x28] sm:$0xf] %vm744, %v722
  %756 = vst.msk [vmem:[%s3 + $0x2c] sm:$0xf] %vm744, %v723
  %757 = vst.msk [vmem:[%s3 + $0x30] sm:$0xf] %vm744, %v724
  %758 = vst.msk [vmem:[%s3 + $0x34] sm:$0xf] %vm744, %v725
  %759 = vst.msk [vmem:[%s3 + $0x38] sm:$0xf] %vm744, %v726
  %760 = vst.msk [vmem:[%s3 + $0x3c] sm:$0xf] %vm744, %v727
  // Predicated region
  $region14: #{beta_vae_forward.14} parent=0 // pred_check
    _
  $region15: #{beta_vae_forward.14} parent=0 // pred_check_branch
    %762 = sbr.rel (0) target = $region17
  $region16: #{beta_vae_forward.14} parent=0 // pred_region
    _
  $region17: #{beta_vae_forward.14} parent=0 // pred_fallthru
    _
  // Predicated region
  $region18: #{beta_vae_forward.14} parent=0 // pred_check
    _
  $region19: #{beta_vae_forward.14} parent=0 // pred_check_branch
    %764 = sbr.rel (0) target = $region21
  $region20: #{beta_vae_forward.14} parent=0 // pred_region
    _
  $region21: #{beta_vae_forward.14} parent=0 // pred_fallthru
    _

// kernel: beta_vae_forward.15
$region0: #{beta_vae_forward.15}
  #allocation0 [shape = 'u32[]', space=smem, size = 0x4, offset = 0x4, fixed_abs, tag = 'smem constant byte address 0x4 - core index']
  #allocation1 [shape = 'u32[144,128]{1,0:T(1,128)}', space=vmem, size = 0x12000, scoped, tag = 'internal scratch']
  %s0 = inlined_call_operand.vmem [shape: bf16[32,1024], index: 0, kind: input, shape index: {}]
  %s1 = inlined_call_operand.vmem [shape: bf16[1024,64], index: 1, kind: input, shape index: {}]
  %s2 = inlined_call_operand.vmem [shape: f32[1,64], index: 2, kind: input, shape index: {}]
  %s3 = inlined_call_operand.vmem [shape: bf16[32,64], index: 3, kind: output, shape index: {}]
  %s4 = sld [smem:[#allocation0]]
  $region22: #{beta_vae_forward.15} parent=0
    _
  %s6 = ssub.s32 1, %s4
  %s7 = scalar_select 0, %s6, %s4
  // Predicated region
  $region2: #{beta_vae_forward.15} parent=0 // pred_check
    _
  $region3: #{beta_vae_forward.15} parent=0 // pred_check_branch
    %9 = sbr.rel (0) target = $region5
  $region4: #{beta_vae_forward.15} parent=0 // pred_region
    _
  $region5: #{beta_vae_forward.15} parent=0 // pred_fallthru
    _
  // Predicated region
  $region6: #{beta_vae_forward.15} parent=0 // pred_check
    _
  $region7: #{beta_vae_forward.15} parent=0 // pred_check_branch
    %11 = sbr.rel (0) target = $region9
  $region8: #{beta_vae_forward.15} parent=0 // pred_region
    _
  $region9: #{beta_vae_forward.15} parent=0 // pred_fallthru
    _
  // Predicated region
  $region10: #{beta_vae_forward.15} parent=0 // pred_check
    _
  $region11: #{beta_vae_forward.15} parent=0 // pred_check_branch
    %13 = sbr.rel (0) target = $region13
  $region12: #{beta_vae_forward.15} parent=0 // pred_region
    _
  $region13: #{beta_vae_forward.15} parent=0 // pred_fallthru
    _
  %v15 = vld [vmem:[%s0] sm:$0xff]
  %v16 = vld [vmem:[%s0 + $0x8] sm:$0xff]
  %v17 = vld [vmem:[%s0 + $0x10] sm:$0xff]
  %v18 = vld [vmem:[%s0 + $0x18] sm:$0xff]
  %v19 = vld [vmem:[%s0 + $0x20] sm:$0xff]
  %v20 = vld [vmem:[%s0 + $0x28] sm:$0xff]
  %v21 = vld [vmem:[%s0 + $0x30] sm:$0xff]
  %v22 = vld [vmem:[%s0 + $0x38] sm:$0xff]
  %v23 = vld [vmem:[%s0 + $0x40] sm:$0xff]
  %v24 = vld [vmem:[%s0 + $0x48] sm:$0xff]
  %v25 = vld [vmem:[%s0 + $0x50] sm:$0xff]
  %v26 = vld [vmem:[%s0 + $0x58] sm:$0xff]
  %v27 = vld [vmem:[%s0 + $0x60] sm:$0xff]
  %v28 = vld [vmem:[%s0 + $0x68] sm:$0xff]
  %v29 = vld [vmem:[%s0 + $0x70] sm:$0xff]
  %v30 = vld [vmem:[%s0 + $0x78] sm:$0xff]
  %v31 = vld [vmem:[%s1] sm:$0xf]
  %v32 = vld [vmem:[%s1 + $0x4] sm:$0xf]
  %v33 = vld [vmem:[%s1 + $0x8] sm:$0xf]
  %v34 = vld [vmem:[%s1 + $0xc] sm:$0xf]
  %v35 = vld [vmem:[%s1 + $0x10] sm:$0xf]
  %v36 = vld [vmem:[%s1 + $0x14] sm:$0xf]
  %v37 = vld [vmem:[%s1 + $0x18] sm:$0xf]
  %v38 = vld [vmem:[%s1 + $0x1c] sm:$0xf]
  %v39 = vld [vmem:[%s1 + $0x20] sm:$0xf]
  %v40 = vld [vmem:[%s1 + $0x24] sm:$0xf]
  %v41 = vld [vmem:[%s1 + $0x28] sm:$0xf]
  %v42 = vld [vmem:[%s1 + $0x2c] sm:$0xf]
  %v43 = vld [vmem:[%s1 + $0x30] sm:$0xf]
  %v44 = vld [vmem:[%s1 + $0x34] sm:$0xf]
  %v45 = vld [vmem:[%s1 + $0x38] sm:$0xf]
  %v46 = vld [vmem:[%s1 + $0x3c] sm:$0xf]
  %v47 = vld [vmem:[%s1 + $0x40] sm:$0xf]
  %v48 = vld [vmem:[%s1 + $0x44] sm:$0xf]
  %v49 = vld [vmem:[%s1 + $0x48] sm:$0xf]
  %v50 = vld [vmem:[%s1 + $0x4c] sm:$0xf]
  %v51 = vld [vmem:[%s1 + $0x50] sm:$0xf]
  %v52 = vld [vmem:[%s1 + $0x54] sm:$0xf]
  %v53 = vld [vmem:[%s1 + $0x58] sm:$0xf]
  %v54 = vld [vmem:[%s1 + $0x5c] sm:$0xf]
  %v55 = vld [vmem:[%s1 + $0x60] sm:$0xf]
  %v56 = vld [vmem:[%s1 + $0x64] sm:$0xf]
  %v57 = vld [vmem:[%s1 + $0x68] sm:$0xf]
  %v58 = vld [vmem:[%s1 + $0x6c] sm:$0xf]
  %v59 = vld [vmem:[%s1 + $0x70] sm:$0xf]
  %v60 = vld [vmem:[%s1 + $0x74] sm:$0xf]
  %v61 = vld [vmem:[%s1 + $0x78] sm:$0xf]
  %v62 = vld [vmem:[%s1 + $0x7c] sm:$0xf]
  %v63 = vld [vmem:[%s1 + $0x80] sm:$0xf]
  %v64 = vld [vmem:[%s1 + $0x84] sm:$0xf]
  %v65 = vld [vmem:[%s1 + $0x88] sm:$0xf]
  %v66 = vld [vmem:[%s1 + $0x8c] sm:$0xf]
  %v67 = vld [vmem:[%s1 + $0x90] sm:$0xf]
  %v68 = vld [vmem:[%s1 + $0x94] sm:$0xf]
  %v69 = vld [vmem:[%s1 + $0x98] sm:$0xf]
  %v70 = vld [vmem:[%s1 + $0x9c] sm:$0xf]
  %v71 = vld [vmem:[%s1 + $0xa0] sm:$0xf]
  %v72 = vld [vmem:[%s1 + $0xa4] sm:$0xf]
  %v73 = vld [vmem:[%s1 + $0xa8] sm:$0xf]
  %v74 = vld [vmem:[%s1 + $0xac] sm:$0xf]
  %v75 = vld [vmem:[%s1 + $0xb0] sm:$0xf]
  %v76 = vld [vmem:[%s1 + $0xb4] sm:$0xf]
  %v77 = vld [vmem:[%s1 + $0xb8] sm:$0xf]
  %v78 = vld [vmem:[%s1 + $0xbc] sm:$0xf]
  %v79 = vld [vmem:[%s1 + $0xc0] sm:$0xf]
  %v80 = vld [vmem:[%s1 + $0xc4] sm:$0xf]
  %v81 = vld [vmem:[%s1 + $0xc8] sm:$0xf]
  %v82 = vld [vmem:[%s1 + $0xcc] sm:$0xf]
  %v83 = vld [vmem:[%s1 + $0xd0] sm:$0xf]
  %v84 = vld [vmem:[%s1 + $0xd4] sm:$0xf]
  %v85 = vld [vmem:[%s1 + $0xd8] sm:$0xf]
  %v86 = vld [vmem:[%s1 + $0xdc] sm:$0xf]
  %v87 = vld [vmem:[%s1 + $0xe0] sm:$0xf]
  %v88 = vld [vmem:[%s1 + $0xe4] sm:$0xf]
  %v89 = vld [vmem:[%s1 + $0xe8] sm:$0xf]
  %v90 = vld [vmem:[%s1 + $0xec] sm:$0xf]
  %v91 = vld [vmem:[%s1 + $0xf0] sm:$0xf]
  %v92 = vld [vmem:[%s1 + $0xf4] sm:$0xf]
  %v93 = vld [vmem:[%s1 + $0xf8] sm:$0xf]
  %v94 = vld [vmem:[%s1 + $0xfc] sm:$0xf]
  %v95 = vld [vmem:[%s1 + $0x100] sm:$0xf]
  %v96 = vld [vmem:[%s1 + $0x104] sm:$0xf]
  %v97 = vld [vmem:[%s1 + $0x108] sm:$0xf]
  %v98 = vld [vmem:[%s1 + $0x10c] sm:$0xf]
  %v99 = vld [vmem:[%s1 + $0x110] sm:$0xf]
  %v100 = vld [vmem:[%s1 + $0x114] sm:$0xf]
  %v101 = vld [vmem:[%s1 + $0x118] sm:$0xf]
  %v102 = vld [vmem:[%s1 + $0x11c] sm:$0xf]
  %v103 = vld [vmem:[%s1 + $0x120] sm:$0xf]
  %v104 = vld [vmem:[%s1 + $0x124] sm:$0xf]
  %v105 = vld [vmem:[%s1 + $0x128] sm:$0xf]
  %v106 = vld [vmem:[%s1 + $0x12c] sm:$0xf]
  %v107 = vld [vmem:[%s1 + $0x130] sm:$0xf]
  %v108 = vld [vmem:[%s1 + $0x134] sm:$0xf]
  %v109 = vld [vmem:[%s1 + $0x138] sm:$0xf]
  %v110 = vld [vmem:[%s1 + $0x13c] sm:$0xf]
  %v111 = vld [vmem:[%s1 + $0x140] sm:$0xf]
  %v112 = vld [vmem:[%s1 + $0x144] sm:$0xf]
  %v113 = vld [vmem:[%s1 + $0x148] sm:$0xf]
  %v114 = vld [vmem:[%s1 + $0x14c] sm:$0xf]
  %v115 = vld [vmem:[%s1 + $0x150] sm:$0xf]
  %v116 = vld [vmem:[%s1 + $0x154] sm:$0xf]
  %v117 = vld [vmem:[%s1 + $0x158] sm:$0xf]
  %v118 = vld [vmem:[%s1 + $0x15c] sm:$0xf]
  %v119 = vld [vmem:[%s1 + $0x160] sm:$0xf]
  %v120 = vld [vmem:[%s1 + $0x164] sm:$0xf]
  %v121 = vld [vmem:[%s1 + $0x168] sm:$0xf]
  %v122 = vld [vmem:[%s1 + $0x16c] sm:$0xf]
  %v123 = vld [vmem:[%s1 + $0x170] sm:$0xf]
  %v124 = vld [vmem:[%s1 + $0x174] sm:$0xf]
  %v125 = vld [vmem:[%s1 + $0x178] sm:$0xf]
  %v126 = vld [vmem:[%s1 + $0x17c] sm:$0xf]
  %v127 = vld [vmem:[%s1 + $0x180] sm:$0xf]
  %v128 = vld [vmem:[%s1 + $0x184] sm:$0xf]
  %v129 = vld [vmem:[%s1 + $0x188] sm:$0xf]
  %v130 = vld [vmem:[%s1 + $0x18c] sm:$0xf]
  %v131 = vld [vmem:[%s1 + $0x190] sm:$0xf]
  %v132 = vld [vmem:[%s1 + $0x194] sm:$0xf]
  %v133 = vld [vmem:[%s1 + $0x198] sm:$0xf]
  %v134 = vld [vmem:[%s1 + $0x19c] sm:$0xf]
  %v135 = vld [vmem:[%s1 + $0x1a0] sm:$0xf]
  %v136 = vld [vmem:[%s1 + $0x1a4] sm:$0xf]
  %v137 = vld [vmem:[%s1 + $0x1a8] sm:$0xf]
  %v138 = vld [vmem:[%s1 + $0x1ac] sm:$0xf]
  %v139 = vld [vmem:[%s1 + $0x1b0] sm:$0xf]
  %v140 = vld [vmem:[%s1 + $0x1b4] sm:$0xf]
  %v141 = vld [vmem:[%s1 + $0x1b8] sm:$0xf]
  %v142 = vld [vmem:[%s1 + $0x1bc] sm:$0xf]
  %v143 = vld [vmem:[%s1 + $0x1c0] sm:$0xf]
  %v144 = vld [vmem:[%s1 + $0x1c4] sm:$0xf]
  %v145 = vld [vmem:[%s1 + $0x1c8] sm:$0xf]
  %v146 = vld [vmem:[%s1 + $0x1cc] sm:$0xf]
  %v147 = vld [vmem:[%s1 + $0x1d0] sm:$0xf]
  %v148 = vld [vmem:[%s1 + $0x1d4] sm:$0xf]
  %v149 = vld [vmem:[%s1 + $0x1d8] sm:$0xf]
  %v150 = vld [vmem:[%s1 + $0x1dc] sm:$0xf]
  %v151 = vld [vmem:[%s1 + $0x1e0] sm:$0xf]
  %v152 = vld [vmem:[%s1 + $0x1e4] sm:$0xf]
  %v153 = vld [vmem:[%s1 + $0x1e8] sm:$0xf]
  %v154 = vld [vmem:[%s1 + $0x1ec] sm:$0xf]
  %v155 = vld [vmem:[%s1 + $0x1f0] sm:$0xf]
  %v156 = vld [vmem:[%s1 + $0x1f4] sm:$0xf]
  %v157 = vld [vmem:[%s1 + $0x1f8] sm:$0xf]
  %v158 = vld [vmem:[%s1 + $0x1fc] sm:$0xf]
  %v159 = vld [vmem:[%s2] sm:$0x1]
  %v161 = vlaneseq
  %v162 = vshrl.u32 %v161, 7
  %v163 = vsub.s32 0, %v162
  %v164 = vrot.slane %v159, %v163
  %v182 = vunpack.c.l.b16 %v15
  %v183 = vunpack.c.h.b16 %v15
  %v184 = vunpack.c.l.b16 %v16
  %v185 = vunpack.c.h.b16 %v16
  %v186 = vunpack.c.l.b16 %v17
  %v187 = vunpack.c.h.b16 %v17
  %v188 = vunpack.c.l.b16 %v18
  %v189 = vunpack.c.h.b16 %v18
  %v190 = vunpack.c.l.b16 %v19
  %v191 = vunpack.c.h.b16 %v19
  %v192 = vunpack.c.l.b16 %v20
  %v193 = vunpack.c.h.b16 %v20
  %v194 = vunpack.c.l.b16 %v21
  %v195 = vunpack.c.h.b16 %v21
  %v196 = vunpack.c.l.b16 %v22
  %v197 = vunpack.c.h.b16 %v22
  %v198 = vunpack.c.l.b16 %v23
  %v199 = vunpack.c.h.b16 %v23
  %v200 = vunpack.c.l.b16 %v24
  %v201 = vunpack.c.h.b16 %v24
  %v202 = vunpack.c.l.b16 %v25
  %v203 = vunpack.c.h.b16 %v25
  %v204 = vunpack.c.l.b16 %v26
  %v205 = vunpack.c.h.b16 %v26
  %v206 = vunpack.c.l.b16 %v27
  %v207 = vunpack.c.h.b16 %v27
  %v208 = vunpack.c.l.b16 %v28
  %v209 = vunpack.c.h.b16 %v28
  %v210 = vunpack.c.l.b16 %v29
  %v211 = vunpack.c.h.b16 %v29
  %v212 = vunpack.c.l.b16 %v30
  %v213 = vunpack.c.h.b16 %v30
  %v214 = vpack.c.b16 %v190, %v182
  %v215 = vpack.c.b16 %v191, %v183
  %v216 = vpack.c.b16 %v192, %v184
  %v217 = vpack.c.b16 %v193, %v185
  %v218 = vpack.c.b16 %v194, %v186
  %v219 = vpack.c.b16 %v195, %v187
  %v220 = vpack.c.b16 %v196, %v188
  %v221 = vpack.c.b16 %v197, %v189
  %v222 = vpack.c.b16 %v206, %v198
  %v223 = vpack.c.b16 %v207, %v199
  %v224 = vpack.c.b16 %v208, %v200
  %v225 = vpack.c.b16 %v209, %v201
  %v226 = vpack.c.b16 %v210, %v202
  %v227 = vpack.c.b16 %v211, %v203
  %v228 = vpack.c.b16 %v212, %v204
  %v229 = vpack.c.b16 %v213, %v205
  %v374 = vunpack.c.l.b16 %v31
  %v375 = vunpack.c.l.b16 %v32
  %v376 = vunpack.c.l.b16 %v33
  %v377 = vunpack.c.l.b16 %v34
  %v378 = vunpack.c.l.b16 %v35
  %v379 = vunpack.c.l.b16 %v36
  %v380 = vunpack.c.l.b16 %v37
  %v381 = vunpack.c.l.b16 %v38
  %v382 = vunpack.c.l.b16 %v39
  %v383 = vunpack.c.l.b16 %v40
  %v384 = vunpack.c.l.b16 %v41
  %v385 = vunpack.c.l.b16 %v42
  %v386 = vunpack.c.l.b16 %v43
  %v387 = vunpack.c.l.b16 %v44
  %v388 = vunpack.c.l.b16 %v45
  %v389 = vunpack.c.l.b16 %v46
  %v390 = vunpack.c.l.b16 %v47
  %v391 = vunpack.c.l.b16 %v48
  %v392 = vunpack.c.l.b16 %v49
  %v393 = vunpack.c.l.b16 %v50
  %v394 = vunpack.c.l.b16 %v51
  %v395 = vunpack.c.l.b16 %v52
  %v396 = vunpack.c.l.b16 %v53
  %v397 = vunpack.c.l.b16 %v54
  %v398 = vunpack.c.l.b16 %v55
  %v399 = vunpack.c.l.b16 %v56
  %v400 = vunpack.c.l.b16 %v57
  %v401 = vunpack.c.l.b16 %v58
  %v402 = vunpack.c.l.b16 %v59
  %v403 = vunpack.c.l.b16 %v60
  %v404 = vunpack.c.l.b16 %v61
  %v405 = vunpack.c.l.b16 %v62
  %v406 = vunpack.c.l.b16 %v63
  %v407 = vunpack.c.l.b16 %v64
  %v408 = vunpack.c.l.b16 %v65
  %v409 = vunpack.c.l.b16 %v66
  %v410 = vunpack.c.l.b16 %v67
  %v411 = vunpack.c.l.b16 %v68
  %v412 = vunpack.c.l.b16 %v69
  %v413 = vunpack.c.l.b16 %v70
  %v414 = vunpack.c.l.b16 %v71
  %v415 = vunpack.c.l.b16 %v72
  %v416 = vunpack.c.l.b16 %v73
  %v417 = vunpack.c.l.b16 %v74
  %v418 = vunpack.c.l.b16 %v75
  %v419 = vunpack.c.l.b16 %v76
  %v420 = vunpack.c.l.b16 %v77
  %v421 = vunpack.c.l.b16 %v78
  %v422 = vunpack.c.l.b16 %v79
  %v423 = vunpack.c.l.b16 %v80
  %v424 = vunpack.c.l.b16 %v81
  %v425 = vunpack.c.l.b16 %v82
  %v426 = vunpack.c.l.b16 %v83
  %v427 = vunpack.c.l.b16 %v84
  %v428 = vunpack.c.l.b16 %v85
  %v429 = vunpack.c.l.b16 %v86
  %v430 = vunpack.c.l.b16 %v87
  %v431 = vunpack.c.l.b16 %v88
  %v432 = vunpack.c.l.b16 %v89
  %v433 = vunpack.c.l.b16 %v90
  %v434 = vunpack.c.l.b16 %v91
  %v435 = vunpack.c.l.b16 %v92
  %v436 = vunpack.c.l.b16 %v93
  %v437 = vunpack.c.l.b16 %v94
  %v438 = vunpack.c.l.b16 %v95
  %v439 = vunpack.c.l.b16 %v96
  %v440 = vunpack.c.l.b16 %v97
  %v441 = vunpack.c.l.b16 %v98
  %v442 = vunpack.c.l.b16 %v99
  %v443 = vunpack.c.l.b16 %v100
  %v444 = vunpack.c.l.b16 %v101
  %v445 = vunpack.c.l.b16 %v102
  %v446 = vunpack.c.l.b16 %v103
  %v447 = vunpack.c.l.b16 %v104
  %v448 = vunpack.c.l.b16 %v105
  %v449 = vunpack.c.l.b16 %v106
  %v450 = vunpack.c.l.b16 %v107
  %v451 = vunpack.c.l.b16 %v108
  %v452 = vunpack.c.l.b16 %v109
  %v453 = vunpack.c.l.b16 %v110
  %v454 = vunpack.c.l.b16 %v111
  %v455 = vunpack.c.l.b16 %v112
  %v456 = vunpack.c.l.b16 %v113
  %v457 = vunpack.c.l.b16 %v114
  %v458 = vunpack.c.l.b16 %v115
  %v459 = vunpack.c.l.b16 %v116
  %v460 = vunpack.c.l.b16 %v117
  %v461 = vunpack.c.l.b16 %v118
  %v462 = vunpack.c.l.b16 %v119
  %v463 = vunpack.c.l.b16 %v120
  %v464 = vunpack.c.l.b16 %v121
  %v465 = vunpack.c.l.b16 %v122
  %v466 = vunpack.c.l.b16 %v123
  %v467 = vunpack.c.l.b16 %v124
  %v468 = vunpack.c.l.b16 %v125
  %v469 = vunpack.c.l.b16 %v126
  %v470 = vunpack.c.l.b16 %v127
  %v471 = vunpack.c.l.b16 %v128
  %v472 = vunpack.c.l.b16 %v129
  %v473 = vunpack.c.l.b16 %v130
  %v474 = vunpack.c.l.b16 %v131
  %v475 = vunpack.c.l.b16 %v132
  %v476 = vunpack.c.l.b16 %v133
  %v477 = vunpack.c.l.b16 %v134
  %v478 = vunpack.c.l.b16 %v135
  %v479 = vunpack.c.l.b16 %v136
  %v480 = vunpack.c.l.b16 %v137
  %v481 = vunpack.c.l.b16 %v138
  %v482 = vunpack.c.l.b16 %v139
  %v483 = vunpack.c.l.b16 %v140
  %v484 = vunpack.c.l.b16 %v141
  %v485 = vunpack.c.l.b16 %v142
  %v486 = vunpack.c.l.b16 %v143
  %v487 = vunpack.c.l.b16 %v144
  %v488 = vunpack.c.l.b16 %v145
  %v489 = vunpack.c.l.b16 %v146
  %v490 = vunpack.c.l.b16 %v147
  %v491 = vunpack.c.l.b16 %v148
  %v492 = vunpack.c.l.b16 %v149
  %v493 = vunpack.c.l.b16 %v150
  %v494 = vunpack.c.l.b16 %v151
  %v495 = vunpack.c.l.b16 %v152
  %v496 = vunpack.c.l.b16 %v153
  %v497 = vunpack.c.l.b16 %v154
  %v498 = vunpack.c.l.b16 %v155
  %v499 = vunpack.c.l.b16 %v156
  %v500 = vunpack.c.l.b16 %v157
  %v501 = vunpack.c.l.b16 %v158
  %v502 = vpack.c.b16 %v375, %v374
  %v503 = vpack.c.b16 %v377, %v376
  %v504 = vpack.c.b16 %v379, %v378
  %v505 = vpack.c.b16 %v381, %v380
  %v506 = vpack.c.b16 %v383, %v382
  %v507 = vpack.c.b16 %v385, %v384
  %v508 = vpack.c.b16 %v387, %v386
  %v509 = vpack.c.b16 %v389, %v388
  %v510 = vpack.c.b16 %v391, %v390
  %v511 = vpack.c.b16 %v393, %v392
  %v512 = vpack.c.b16 %v395, %v394
  %v513 = vpack.c.b16 %v397, %v396
  %v514 = vpack.c.b16 %v399, %v398
  %v515 = vpack.c.b16 %v401, %v400
  %v516 = vpack.c.b16 %v403, %v402
  %v517 = vpack.c.b16 %v405, %v404
  %v518 = vpack.c.b16 %v407, %v406
  %v519 = vpack.c.b16 %v409, %v408
  %v520 = vpack.c.b16 %v411, %v410
  %v521 = vpack.c.b16 %v413, %v412
  %v522 = vpack.c.b16 %v415, %v414
  %v523 = vpack.c.b16 %v417, %v416
  %v524 = vpack.c.b16 %v419, %v418
  %v525 = vpack.c.b16 %v421, %v420
  %v526 = vpack.c.b16 %v423, %v422
  %v527 = vpack.c.b16 %v425, %v424
  %v528 = vpack.c.b16 %v427, %v426
  %v529 = vpack.c.b16 %v429, %v428
  %v530 = vpack.c.b16 %v431, %v430
  %v531 = vpack.c.b16 %v433, %v432
  %v532 = vpack.c.b16 %v435, %v434
  %v533 = vpack.c.b16 %v437, %v436
  %v534 = vpack.c.b16 %v439, %v438
  %v535 = vpack.c.b16 %v441, %v440
  %v536 = vpack.c.b16 %v443, %v442
  %v537 = vpack.c.b16 %v445, %v444
  %v538 = vpack.c.b16 %v447, %v446
  %v539 = vpack.c.b16 %v449, %v448
  %v540 = vpack.c.b16 %v451, %v450
  %v541 = vpack.c.b16 %v453, %v452
  %v542 = vpack.c.b16 %v455, %v454
  %v543 = vpack.c.b16 %v457, %v456
  %v544 = vpack.c.b16 %v459, %v458
  %v545 = vpack.c.b16 %v461, %v460
  %v546 = vpack.c.b16 %v463, %v462
  %v547 = vpack.c.b16 %v465, %v464
  %v548 = vpack.c.b16 %v467, %v466
  %v549 = vpack.c.b16 %v469, %v468
  %v550 = vpack.c.b16 %v471, %v470
  %v551 = vpack.c.b16 %v473, %v472
  %v552 = vpack.c.b16 %v475, %v474
  %v553 = vpack.c.b16 %v477, %v476
  %v554 = vpack.c.b16 %v479, %v478
  %v555 = vpack.c.b16 %v481, %v480
  %v556 = vpack.c.b16 %v483, %v482
  %v557 = vpack.c.b16 %v485, %v484
  %v558 = vpack.c.b16 %v487, %v486
  %v559 = vpack.c.b16 %v489, %v488
  %v560 = vpack.c.b16 %v491, %v490
  %v561 = vpack.c.b16 %v493, %v492
  %v562 = vpack.c.b16 %v495, %v494
  %v563 = vpack.c.b16 %v497, %v496
  %v564 = vpack.c.b16 %v499, %v498
  %v565 = vpack.c.b16 %v501, %v500
  %630 = vmatprep.subr.bf16.mxu0 0
  %631 = vmatpush1.bf16.msra.mxu0 %v509
  %632 = vmatprep.subr.bf16.mxu0 0
  %633 = vmatpush1.bf16.msra.mxu0 %v508
  %634 = vmatprep.subr.bf16.mxu0 0
  %635 = vmatpush1.bf16.msra.mxu0 %v507
  %636 = vmatprep.subr.bf16.mxu0 0
  %637 = vmatpush1.bf16.msra.mxu0 %v506
  %638 = vmatprep.subr.bf16.mxu0 0
  %639 = vmatpush1.bf16.msra.mxu0 %v505
  %640 = vmatprep.subr.bf16.mxu0 0
  %641 = vmatpush1.bf16.msra.mxu0 %v504
  %642 = vmatprep.subr.bf16.mxu0 0
  %643 = vmatpush1.bf16.msra.mxu0 %v503
  %644 = vmatprep.subr.bf16.mxu0 0
  %645 = vmatpush1.bf16.msra.mxu0 %v502
  %646 = vmatprep.subr.bf16.mxu0 0
  %647 = vmatpush2.bf16.msra.mxu0 %v517
  %648 = vmatprep.subr.bf16.mxu0 0
  %649 = vmatpush2.bf16.msra.mxu0 %v516
  %650 = vmatprep.subr.bf16.mxu0 0
  %651 = vmatpush2.bf16.msra.mxu0 %v515
  %652 = vmatprep.subr.bf16.mxu0 0
  %653 = vmatpush2.bf16.msra.mxu0 %v514
  %654 = vmatprep.subr.bf16.mxu0 0
  %655 = vmatpush2.bf16.msra.mxu0 %v513
  %656 = vmatprep.subr.bf16.mxu0 0
  %657 = vmatpush2.bf16.msra.mxu0 %v512
  %658 = vmatprep.subr.bf16.mxu0 0
  %659 = vmatpush2.bf16.msra.mxu0 %v511
  %660 = vmatprep.subr.bf16.mxu0 0
  %661 = vmatpush2.bf16.msra.mxu0 %v510
  %662 = vmatprep.mubr.bf16.mxu0 %v215
  %663 = vmatmul.mubr.bf16.gmra.mxu0 %v214
  %v664 = vpop.f32.mrf.mxu0
  %v665 = vadd.f32 %v164, %v664
  %v666 = vpop.f32.mrf.mxu0
  %v667 = vpop.f32.mrf.mxu0
  %v668 = vadd.f32 %v164, %v667
  %v669 = vpop.f32.mrf.mxu0
  %670 = vmatprep.mubr.bf16.mxu0 %v223
  %671 = vmatmul.mubr.bf16.gmra.mxu0 %v222
  %v672 = vpop.f32.mrf.mxu0
  %v673 = vadd.f32 %v164, %v672
  %v674 = vpop.f32.mrf.mxu0
  %v675 = vpop.f32.mrf.mxu0
  %v676 = vadd.f32 %v164, %v675
  %v677 = vpop.f32.mrf.mxu0
  %678 = vdwg.mxu0
  %679 = vmatprep.subr.bf16.mxu0 0
  %680 = vmatpush1.bf16.msra.mxu0 %v525
  %681 = vmatprep.subr.bf16.mxu0 0
  %682 = vmatpush1.bf16.msra.mxu0 %v524
  %683 = vmatprep.subr.bf16.mxu0 0
  %684 = vmatpush1.bf16.msra.mxu0 %v523
  %685 = vmatprep.subr.bf16.mxu0 0
  %686 = vmatpush1.bf16.msra.mxu0 %v522
  %687 = vmatprep.subr.bf16.mxu0 0
  %688 = vmatpush1.bf16.msra.mxu0 %v521
  %689 = vmatprep.subr.bf16.mxu0 0
  %690 = vmatpush1.bf16.msra.mxu0 %v520
  %691 = vmatprep.subr.bf16.mxu0 0
  %692 = vmatpush1.bf16.msra.mxu0 %v519
  %693 = vmatprep.subr.bf16.mxu0 0
  %694 = vmatpush1.bf16.msra.mxu0 %v518
  %695 = vmatprep.subr.bf16.mxu0 0
  %696 = vmatpush2.bf16.msra.mxu0 %v533
  %697 = vmatprep.subr.bf16.mxu0 0
  %698 = vmatpush2.bf16.msra.mxu0 %v532
  %699 = vmatprep.subr.bf16.mxu0 0
  %700 = vmatpush2.bf16.msra.mxu0 %v531
  %701 = vmatprep.subr.bf16.mxu0 0
  %702 = vmatpush2.bf16.msra.mxu0 %v530
  %703 = vmatprep.subr.bf16.mxu0 0
  %704 = vmatpush2.bf16.msra.mxu0 %v529
  %705 = vmatprep.subr.bf16.mxu0 0
  %706 = vmatpush2.bf16.msra.mxu0 %v528
  %707 = vmatprep.subr.bf16.mxu0 0
  %708 = vmatpush2.bf16.msra.mxu0 %v527
  %709 = vmatprep.subr.bf16.mxu0 0
  %710 = vmatpush2.bf16.msra.mxu0 %v526
  %711 = vmatprep.mubr.bf16.mxu0 %v217
  %712 = vmatmul.mubr.bf16.gmra.mxu0 %v216
  %v713 = vpop.f32.mrf.mxu0
  %v714 = vadd.f32 %v665, %v713
  %v715 = vpop.f32.mrf.mxu0
  %v716 = vpop.f32.mrf.mxu0
  %v717 = vadd.f32 %v668, %v716
  %v718 = vpop.f32.mrf.mxu0
  %719 = vmatprep.mubr.bf16.mxu0 %v225
  %720 = vmatmul.mubr.bf16.gmra.mxu0 %v224
  %v721 = vpop.f32.mrf.mxu0
  %v722 = vadd.f32 %v673, %v721
  %v723 = vpop.f32.mrf.mxu0
  %v724 = vpop.f32.mrf.mxu0
  %v725 = vadd.f32 %v676, %v724
  %v726 = vpop.f32.mrf.mxu0
  %727 = vdwg.mxu0
  %728 = vmatprep.subr.bf16.mxu0 0
  %729 = vmatpush1.bf16.msra.mxu0 %v541
  %730 = vmatprep.subr.bf16.mxu0 0
  %731 = vmatpush1.bf16.msra.mxu0 %v540
  %732 = vmatprep.subr.bf16.mxu0 0
  %733 = vmatpush1.bf16.msra.mxu0 %v539
  %734 = vmatprep.subr.bf16.mxu0 0
  %735 = vmatpush1.bf16.msra.mxu0 %v538
  %736 = vmatprep.subr.bf16.mxu0 0
  %737 = vmatpush1.bf16.msra.mxu0 %v537
  %738 = vmatprep.subr.bf16.mxu0 0
  %739 = vmatpush1.bf16.msra.mxu0 %v536
  %740 = vmatprep.subr.bf16.mxu0 0
  %741 = vmatpush1.bf16.msra.mxu0 %v535
  %742 = vmatprep.subr.bf16.mxu0 0
  %743 = vmatpush1.bf16.msra.mxu0 %v534
  %744 = vmatprep.subr.bf16.mxu0 0
  %745 = vmatpush2.bf16.msra.mxu0 %v549
  %746 = vmatprep.subr.bf16.mxu0 0
  %747 = vmatpush2.bf16.msra.mxu0 %v548
  %748 = vmatprep.subr.bf16.mxu0 0
  %749 = vmatpush2.bf16.msra.mxu0 %v547
  %750 = vmatprep.subr.bf16.mxu0 0
  %751 = vmatpush2.bf16.msra.mxu0 %v546
  %752 = vmatprep.subr.bf16.mxu0 0
  %753 = vmatpush2.bf16.msra.mxu0 %v545
  %754 = vmatprep.subr.bf16.mxu0 0
  %755 = vmatpush2.bf16.msra.mxu0 %v544
  %756 = vmatprep.subr.bf16.mxu0 0
  %757 = vmatpush2.bf16.msra.mxu0 %v543
  %758 = vmatprep.subr.bf16.mxu0 0
  %759 = vmatpush2.bf16.msra.mxu0 %v542
  %760 = vmatprep.mubr.bf16.mxu0 %v219
  %761 = vmatmul.mubr.bf16.gmra.mxu0 %v218
  %v762 = vpop.f32.mrf.mxu0
  %v763 = vadd.f32 %v714, %v762
  %v764 = vpop.f32.mrf.mxu0
  %v765 = vpop.f32.mrf.mxu0
  %v766 = vadd.f32 %v717, %v765
  %v767 = vpop.f32.mrf.mxu0
  %768 = vmatprep.mubr.bf16.mxu0 %v227
  %769 = vmatmul.mubr.bf16.gmra.mxu0 %v226
  %v770 = vpop.f32.mrf.mxu0
  %v771 = vadd.f32 %v722, %v770
  %v772 = vpop.f32.mrf.mxu0
  %v773 = vpop.f32.mrf.mxu0
  %v774 = vadd.f32 %v725, %v773
  %v775 = vpop.f32.mrf.mxu0
  %776 = vdwg.mxu0
  %777 = vmatprep.subr.bf16.mxu0 0
  %778 = vmatpush1.bf16.msra.mxu0 %v557
  %779 = vmatprep.subr.bf16.mxu0 0
  %780 = vmatpush1.bf16.msra.mxu0 %v556
  %781 = vmatprep.subr.bf16.mxu0 0
  %782 = vmatpush1.bf16.msra.mxu0 %v555
  %783 = vmatprep.subr.bf16.mxu0 0
  %784 = vmatpush1.bf16.msra.mxu0 %v554
  %785 = vmatprep.subr.bf16.mxu0 0
  %786 = vmatpush1.bf16.msra.mxu0 %v553
  %787 = vmatprep.subr.bf16.mxu0 0
  %788 = vmatpush1.bf16.msra.mxu0 %v552
  %789 = vmatprep.subr.bf16.mxu0 0
  %790 = vmatpush1.bf16.msra.mxu0 %v551
  %791 = vmatprep.subr.bf16.mxu0 0
  %792 = vmatpush1.bf16.msra.mxu0 %v550
  %793 = vmatprep.subr.bf16.mxu0 0
  %794 = vmatpush2.bf16.msra.mxu0 %v565
  %795 = vmatprep.subr.bf16.mxu0 0
  %796 = vmatpush2.bf16.msra.mxu0 %v564
  %797 = vmatprep.subr.bf16.mxu0 0
  %798 = vmatpush2.bf16.msra.mxu0 %v563
  %799 = vmatprep.subr.bf16.mxu0 0
  %800 = vmatpush2.bf16.msra.mxu0 %v562
  %801 = vmatprep.subr.bf16.mxu0 0
  %802 = vmatpush2.bf16.msra.mxu0 %v561
  %803 = vmatprep.subr.bf16.mxu0 0
  %804 = vmatpush2.bf16.msra.mxu0 %v560
  %805 = vmatprep.subr.bf16.mxu0 0
  %806 = vmatpush2.bf16.msra.mxu0 %v559
  %807 = vmatprep.subr.bf16.mxu0 0
  %808 = vmatpush2.bf16.msra.mxu0 %v558
  %809 = vmatprep.mubr.bf16.mxu0 %v221
  %810 = vmatmul.mubr.bf16.gmra.mxu0 %v220
  %v811 = vpop.f32.mrf.mxu0
  %v812 = vadd.f32 %v763, %v811
  %v813 = vpop.f32.mrf.mxu0
  %v814 = vpop.f32.mrf.mxu0
  %v815 = vadd.f32 %v766, %v814
  %v816 = vpop.f32.mrf.mxu0
  %817 = vmatprep.mubr.bf16.mxu0 %v229
  %818 = vmatmul.mubr.bf16.gmra.mxu0 %v228
  %v819 = vpop.f32.mrf.mxu0
  %v820 = vadd.f32 %v771, %v819
  %v821 = vpop.f32.mrf.mxu0
  %v822 = vpop.f32.mrf.mxu0
  %v823 = vadd.f32 %v774, %v822
  %v824 = vpop.f32.mrf.mxu0
  %825 = vdwg.mxu0
  %v826 = vmax.f32 %v812, 0.0
  %v827 = vmax.f32 %v815, 0.0
  %v828 = vmax.f32 %v820, 0.0
  %v829 = vmax.f32 %v823, 0.0
  %v830 = vpack.c.bf16 %v827, %v826
  %v831 = vpack.c.bf16 %v829, %v828
  %v834 = vunpack.c.l.b16 %v830
  %v835 = vunpack.c.h.b16 %v830
  %v836 = vunpack.c.l.b16 %v831
  %v837 = vunpack.c.h.b16 %v831
  %v838 = vpack.c.b16 %v834, %v834
  %v839 = vpack.c.b16 %v835, %v835
  %v840 = vpack.c.b16 %v836, %v836
  %v841 = vpack.c.b16 %v837, %v837
  %vm846 = vcmask 519168
  %847 = vst.msk [vmem:[%s3] sm:$0xf] %vm846, %v838
  %848 = vst.msk [vmem:[%s3 + $0x4] sm:$0xf] %vm846, %v839
  %849 = vst.msk [vmem:[%s3 + $0x8] sm:$0xf] %vm846, %v840
  %850 = vst.msk [vmem:[%s3 + $0xc] sm:$0xf] %vm846, %v841
  // Predicated region
  $region14: #{beta_vae_forward.15} parent=0 // pred_check
    _
  $region15: #{beta_vae_forward.15} parent=0 // pred_check_branch
    %852 = sbr.rel (0) target = $region17
  $region16: #{beta_vae_forward.15} parent=0 // pred_region
    _
  $region17: #{beta_vae_forward.15} parent=0 // pred_fallthru
    _
  // Predicated region
  $region18: #{beta_vae_forward.15} parent=0 // pred_check
    _
  $region19: #{beta_vae_forward.15} parent=0 // pred_check_branch
    %854 = sbr.rel (0) target = $region21
  $region20: #{beta_vae_forward.15} parent=0 // pred_region
    _
  $region21: #{beta_vae_forward.15} parent=0 // pred_fallthru
    _

// kernel: beta_vae_forward.17
$region0: #{beta_vae_forward.17}
  #allocation0 [shape = 'u32[]', space=smem, size = 0x4, offset = 0x4, fixed_abs, tag = 'smem constant byte address 0x4 - core index']
  #allocation1 [shape = 'u32[144,128]{1,0:T(1,128)}', space=vmem, size = 0x12000, scoped, tag = 'internal scratch']
  %s0 = inlined_call_operand.vmem [shape: bf16[16,512], index: 0, kind: input, shape index: {}]
  %s1 = inlined_call_operand.vmem [shape: bf16[512,12], index: 1, kind: input, shape index: {}]
  %s2 = inlined_call_operand.vmem [shape: f32[1,12], index: 2, kind: input, shape index: {}]
  %s3 = inlined_call_operand.vmem [shape: f32[16,12], index: 3, kind: output, shape index: {}]
  %s4 = sld [smem:[#allocation0]]
  $region22: #{beta_vae_forward.17} parent=0
    _
  %s6 = ssub.s32 1, %s4
  %s7 = scalar_select 0, %s6, %s4
  // Predicated region
  $region2: #{beta_vae_forward.17} parent=0 // pred_check
    _
  $region3: #{beta_vae_forward.17} parent=0 // pred_check_branch
    %9 = sbr.rel (0) target = $region5
  $region4: #{beta_vae_forward.17} parent=0 // pred_region
    _
  $region5: #{beta_vae_forward.17} parent=0 // pred_fallthru
    _
  // Predicated region
  $region6: #{beta_vae_forward.17} parent=0 // pred_check
    _
  $region7: #{beta_vae_forward.17} parent=0 // pred_check_branch
    %11 = sbr.rel (0) target = $region9
  $region8: #{beta_vae_forward.17} parent=0 // pred_region
    _
  $region9: #{beta_vae_forward.17} parent=0 // pred_fallthru
    _
  // Predicated region
  $region10: #{beta_vae_forward.17} parent=0 // pred_check
    _
  $region11: #{beta_vae_forward.17} parent=0 // pred_check_branch
    %13 = sbr.rel (0) target = $region13
  $region12: #{beta_vae_forward.17} parent=0 // pred_region
    _
  $region13: #{beta_vae_forward.17} parent=0 // pred_fallthru
    _
  %v15 = vld [vmem:[%s0] sm:$0xff]
  %v16 = vld [vmem:[%s0 + $0x8] sm:$0xff]
  %v17 = vld [vmem:[%s0 + $0x10] sm:$0xff]
  %v18 = vld [vmem:[%s0 + $0x18] sm:$0xff]
  %v19 = vld [vmem:[%s1] sm:$0xf]
  %v20 = vld [vmem:[%s1 + $0x4] sm:$0xf]
  %v21 = vld [vmem:[%s1 + $0x8] sm:$0xf]
  %v22 = vld [vmem:[%s1 + $0xc] sm:$0xf]
  %v23 = vld [vmem:[%s1 + $0x10] sm:$0xf]
  %v24 = vld [vmem:[%s1 + $0x14] sm:$0xf]
  %v25 = vld [vmem:[%s1 + $0x18] sm:$0xf]
  %v26 = vld [vmem:[%s1 + $0x1c] sm:$0xf]
  %v27 = vld [vmem:[%s1 + $0x20] sm:$0xf]
  %v28 = vld [vmem:[%s1 + $0x24] sm:$0xf]
  %v29 = vld [vmem:[%s1 + $0x28] sm:$0xf]
  %v30 = vld [vmem:[%s1 + $0x2c] sm:$0xf]
  %v31 = vld [vmem:[%s1 + $0x30] sm:$0xf]
  %v32 = vld [vmem:[%s1 + $0x34] sm:$0xf]
  %v33 = vld [vmem:[%s1 + $0x38] sm:$0xf]
  %v34 = vld [vmem:[%s1 + $0x3c] sm:$0xf]
  %v35 = vld [vmem:[%s1 + $0x40] sm:$0xf]
  %v36 = vld [vmem:[%s1 + $0x44] sm:$0xf]
  %v37 = vld [vmem:[%s1 + $0x48] sm:$0xf]
  %v38 = vld [vmem:[%s1 + $0x4c] sm:$0xf]
  %v39 = vld [vmem:[%s1 + $0x50] sm:$0xf]
  %v40 = vld [vmem:[%s1 + $0x54] sm:$0xf]
  %v41 = vld [vmem:[%s1 + $0x58] sm:$0xf]
  %v42 = vld [vmem:[%s1 + $0x5c] sm:$0xf]
  %v43 = vld [vmem:[%s1 + $0x60] sm:$0xf]
  %v44 = vld [vmem:[%s1 + $0x64] sm:$0xf]
  %v45 = vld [vmem:[%s1 + $0x68] sm:$0xf]
  %v46 = vld [vmem:[%s1 + $0x6c] sm:$0xf]
  %v47 = vld [vmem:[%s1 + $0x70] sm:$0xf]
  %v48 = vld [vmem:[%s1 + $0x74] sm:$0xf]
  %v49 = vld [vmem:[%s1 + $0x78] sm:$0xf]
  %v50 = vld [vmem:[%s1 + $0x7c] sm:$0xf]
  %v51 = vld [vmem:[%s1 + $0x80] sm:$0xf]
  %v52 = vld [vmem:[%s1 + $0x84] sm:$0xf]
  %v53 = vld [vmem:[%s1 + $0x88] sm:$0xf]
  %v54 = vld [vmem:[%s1 + $0x8c] sm:$0xf]
  %v55 = vld [vmem:[%s1 + $0x90] sm:$0xf]
  %v56 = vld [vmem:[%s1 + $0x94] sm:$0xf]
  %v57 = vld [vmem:[%s1 + $0x98] sm:$0xf]
  %v58 = vld [vmem:[%s1 + $0x9c] sm:$0xf]
  %v59 = vld [vmem:[%s1 + $0xa0] sm:$0xf]
  %v60 = vld [vmem:[%s1 + $0xa4] sm:$0xf]
  %v61 = vld [vmem:[%s1 + $0xa8] sm:$0xf]
  %v62 = vld [vmem:[%s1 + $0xac] sm:$0xf]
  %v63 = vld [vmem:[%s1 + $0xb0] sm:$0xf]
  %v64 = vld [vmem:[%s1 + $0xb4] sm:$0xf]
  %v65 = vld [vmem:[%s1 + $0xb8] sm:$0xf]
  %v66 = vld [vmem:[%s1 + $0xbc] sm:$0xf]
  %v67 = vld [vmem:[%s1 + $0xc0] sm:$0xf]
  %v68 = vld [vmem:[%s1 + $0xc4] sm:$0xf]
  %v69 = vld [vmem:[%s1 + $0xc8] sm:$0xf]
  %v70 = vld [vmem:[%s1 + $0xcc] sm:$0xf]
  %v71 = vld [vmem:[%s1 + $0xd0] sm:$0xf]
  %v72 = vld [vmem:[%s1 + $0xd4] sm:$0xf]
  %v73 = vld [vmem:[%s1 + $0xd8] sm:$0xf]
  %v74 = vld [vmem:[%s1 + $0xdc] sm:$0xf]
  %v75 = vld [vmem:[%s1 + $0xe0] sm:$0xf]
  %v76 = vld [vmem:[%s1 + $0xe4] sm:$0xf]
  %v77 = vld [vmem:[%s1 + $0xe8] sm:$0xf]
  %v78 = vld [vmem:[%s1 + $0xec] sm:$0xf]
  %v79 = vld [vmem:[%s1 + $0xf0] sm:$0xf]
  %v80 = vld [vmem:[%s1 + $0xf4] sm:$0xf]
  %v81 = vld [vmem:[%s1 + $0xf8] sm:$0xf]
  %v82 = vld [vmem:[%s1 + $0xfc] sm:$0xf]
  %v83 = vld [vmem:[%s2] sm:$0x1]
  %v85 = vlaneseq
  %v86 = vshrl.u32 %v85, 7
  %v87 = vsub.s32 0, %v86
  %v88 = vrot.slane %v83, %v87
  %v94 = vunpack.c.l.b16 %v15
  %v95 = vunpack.c.h.b16 %v15
  %v96 = vunpack.c.l.b16 %v16
  %v97 = vunpack.c.h.b16 %v16
  %v98 = vunpack.c.l.b16 %v17
  %v99 = vunpack.c.h.b16 %v17
  %v100 = vunpack.c.l.b16 %v18
  %v101 = vunpack.c.h.b16 %v18
  %v102 = vpack.c.b16 %v98, %v94
  %v103 = vpack.c.b16 %v99, %v95
  %v104 = vpack.c.b16 %v100, %v96
  %v105 = vpack.c.b16 %v101, %v97
  %v174 = vunpack.c.l.b16 %v19
  %v175 = vunpack.c.l.b16 %v20
  %v176 = vunpack.c.l.b16 %v21
  %v177 = vunpack.c.l.b16 %v22
  %v178 = vunpack.c.l.b16 %v23
  %v179 = vunpack.c.l.b16 %v24
  %v180 = vunpack.c.l.b16 %v25
  %v181 = vunpack.c.l.b16 %v26
  %v182 = vunpack.c.l.b16 %v27
  %v183 = vunpack.c.l.b16 %v28
  %v184 = vunpack.c.l.b16 %v29
  %v185 = vunpack.c.l.b16 %v30
  %v186 = vunpack.c.l.b16 %v31
  %v187 = vunpack.c.l.b16 %v32
  %v188 = vunpack.c.l.b16 %v33
  %v189 = vunpack.c.l.b16 %v34
  %v190 = vunpack.c.l.b16 %v35
  %v191 = vunpack.c.l.b16 %v36
  %v192 = vunpack.c.l.b16 %v37
  %v193 = vunpack.c.l.b16 %v38
  %v194 = vunpack.c.l.b16 %v39
  %v195 = vunpack.c.l.b16 %v40
  %v196 = vunpack.c.l.b16 %v41
  %v197 = vunpack.c.l.b16 %v42
  %v198 = vunpack.c.l.b16 %v43
  %v199 = vunpack.c.l.b16 %v44
  %v200 = vunpack.c.l.b16 %v45
  %v201 = vunpack.c.l.b16 %v46
  %v202 = vunpack.c.l.b16 %v47
  %v203 = vunpack.c.l.b16 %v48
  %v204 = vunpack.c.l.b16 %v49
  %v205 = vunpack.c.l.b16 %v50
  %v206 = vunpack.c.l.b16 %v51
  %v207 = vunpack.c.l.b16 %v52
  %v208 = vunpack.c.l.b16 %v53
  %v209 = vunpack.c.l.b16 %v54
  %v210 = vunpack.c.l.b16 %v55
  %v211 = vunpack.c.l.b16 %v56
  %v212 = vunpack.c.l.b16 %v57
  %v213 = vunpack.c.l.b16 %v58
  %v214 = vunpack.c.l.b16 %v59
  %v215 = vunpack.c.l.b16 %v60
  %v216 = vunpack.c.l.b16 %v61
  %v217 = vunpack.c.l.b16 %v62
  %v218 = vunpack.c.l.b16 %v63
  %v219 = vunpack.c.l.b16 %v64
  %v220 = vunpack.c.l.b16 %v65
  %v221 = vunpack.c.l.b16 %v66
  %v222 = vunpack.c.l.b16 %v67
  %v223 = vunpack.c.l.b16 %v68
  %v224 = vunpack.c.l.b16 %v69
  %v225 = vunpack.c.l.b16 %v70
  %v226 = vunpack.c.l.b16 %v71
  %v227 = vunpack.c.l.b16 %v72
  %v228 = vunpack.c.l.b16 %v73
  %v229 = vunpack.c.l.b16 %v74
  %v230 = vunpack.c.l.b16 %v75
  %v231 = vunpack.c.l.b16 %v76
  %v232 = vunpack.c.l.b16 %v77
  %v233 = vunpack.c.l.b16 %v78
  %v234 = vunpack.c.l.b16 %v79
  %v235 = vunpack.c.l.b16 %v80
  %v236 = vunpack.c.l.b16 %v81
  %v237 = vunpack.c.l.b16 %v82
  %v238 = vpack.c.b16 %v175, %v174
  %v239 = vpack.c.b16 %v177, %v176
  %v240 = vpack.c.b16 %v179, %v178
  %v241 = vpack.c.b16 %v181, %v180
  %v242 = vpack.c.b16 %v183, %v182
  %v243 = vpack.c.b16 %v185, %v184
  %v244 = vpack.c.b16 %v187, %v186
  %v245 = vpack.c.b16 %v189, %v188
  %v246 = vpack.c.b16 %v191, %v190
  %v247 = vpack.c.b16 %v193, %v192
  %v248 = vpack.c.b16 %v195, %v194
  %v249 = vpack.c.b16 %v197, %v196
  %v250 = vpack.c.b16 %v199, %v198
  %v251 = vpack.c.b16 %v201, %v200
  %v252 = vpack.c.b16 %v203, %v202
  %v253 = vpack.c.b16 %v205, %v204
  %v254 = vpack.c.b16 %v207, %v206
  %v255 = vpack.c.b16 %v209, %v208
  %v256 = vpack.c.b16 %v211, %v210
  %v257 = vpack.c.b16 %v213, %v212
  %v258 = vpack.c.b16 %v215, %v214
  %v259 = vpack.c.b16 %v217, %v216
  %v260 = vpack.c.b16 %v219, %v218
  %v261 = vpack.c.b16 %v221, %v220
  %v262 = vpack.c.b16 %v223, %v222
  %v263 = vpack.c.b16 %v225, %v224
  %v264 = vpack.c.b16 %v227, %v226
  %v265 = vpack.c.b16 %v229, %v228
  %v266 = vpack.c.b16 %v231, %v230
  %v267 = vpack.c.b16 %v233, %v232
  %v268 = vpack.c.b16 %v235, %v234
  %v269 = vpack.c.b16 %v237, %v236
  %302 = vmatprep.subr.bf16.mxu0 0
  %303 = vmatpush1.bf16.msra.mxu0 %v245
  %304 = vmatprep.subr.bf16.mxu0 0
  %305 = vmatpush1.bf16.msra.mxu0 %v244
  %306 = vmatprep.subr.bf16.mxu0 0
  %307 = vmatpush1.bf16.msra.mxu0 %v243
  %308 = vmatprep.subr.bf16.mxu0 0
  %309 = vmatpush1.bf16.msra.mxu0 %v242
  %310 = vmatprep.subr.bf16.mxu0 0
  %311 = vmatpush1.bf16.msra.mxu0 %v241
  %312 = vmatprep.subr.bf16.mxu0 0
  %313 = vmatpush1.bf16.msra.mxu0 %v240
  %314 = vmatprep.subr.bf16.mxu0 0
  %315 = vmatpush1.bf16.msra.mxu0 %v239
  %316 = vmatprep.subr.bf16.mxu0 0
  %317 = vmatpush1.bf16.msra.mxu0 %v238
  %318 = vmatprep.subr.bf16.mxu0 0
  %319 = vmatpush2.bf16.msra.mxu0 %v253
  %320 = vmatprep.subr.bf16.mxu0 0
  %321 = vmatpush2.bf16.msra.mxu0 %v252
  %322 = vmatprep.subr.bf16.mxu0 0
  %323 = vmatpush2.bf16.msra.mxu0 %v251
  %324 = vmatprep.subr.bf16.mxu0 0
  %325 = vmatpush2.bf16.msra.mxu0 %v250
  %326 = vmatprep.subr.bf16.mxu0 0
  %327 = vmatpush2.bf16.msra.mxu0 %v249
  %328 = vmatprep.subr.bf16.mxu0 0
  %329 = vmatpush2.bf16.msra.mxu0 %v248
  %330 = vmatprep.subr.bf16.mxu0 0
  %331 = vmatpush2.bf16.msra.mxu0 %v247
  %332 = vmatprep.subr.bf16.mxu0 0
  %333 = vmatpush2.bf16.msra.mxu0 %v246
  %334 = vmatprep.mubr.bf16.mxu0 %v103
  %335 = vmatmul.mubr.bf16.gmra.mxu0 %v102
  %v336 = vpop.f32.mrf.mxu0
  %v337 = vadd.f32 %v88, %v336
  %v338 = vpop.f32.mrf.mxu0
  %v339 = vpop.f32.mrf.mxu0
  %v340 = vadd.f32 %v88, %v339
  %v341 = vpop.f32.mrf.mxu0
  %342 = vdwg.mxu0
  %343 = vmatprep.subr.bf16.mxu0 0
  %344 = vmatpush1.bf16.msra.mxu0 %v261
  %345 = vmatprep.subr.bf16.mxu0 0
  %346 = vmatpush1.bf16.msra.mxu0 %v260
  %347 = vmatprep.subr.bf16.mxu0 0
  %348 = vmatpush1.bf16.msra.mxu0 %v259
  %349 = vmatprep.subr.bf16.mxu0 0
  %350 = vmatpush1.bf16.msra.mxu0 %v258
  %351 = vmatprep.subr.bf16.mxu0 0
  %352 = vmatpush1.bf16.msra.mxu0 %v257
  %353 = vmatprep.subr.bf16.mxu0 0
  %354 = vmatpush1.bf16.msra.mxu0 %v256
  %355 = vmatprep.subr.bf16.mxu0 0
  %356 = vmatpush1.bf16.msra.mxu0 %v255
  %357 = vmatprep.subr.bf16.mxu0 0
  %358 = vmatpush1.bf16.msra.mxu0 %v254
  %359 = vmatprep.subr.bf16.mxu0 0
  %360 = vmatpush2.bf16.msra.mxu0 %v269
  %361 = vmatprep.subr.bf16.mxu0 0
  %362 = vmatpush2.bf16.msra.mxu0 %v268
  %363 = vmatprep.subr.bf16.mxu0 0
  %364 = vmatpush2.bf16.msra.mxu0 %v267
  %365 = vmatprep.subr.bf16.mxu0 0
  %366 = vmatpush2.bf16.msra.mxu0 %v266
  %367 = vmatprep.subr.bf16.mxu0 0
  %368 = vmatpush2.bf16.msra.mxu0 %v265
  %369 = vmatprep.subr.bf16.mxu0 0
  %370 = vmatpush2.bf16.msra.mxu0 %v264
  %371 = vmatprep.subr.bf16.mxu0 0
  %372 = vmatpush2.bf16.msra.mxu0 %v263
  %373 = vmatprep.subr.bf16.mxu0 0
  %374 = vmatpush2.bf16.msra.mxu0 %v262
  %375 = vmatprep.mubr.bf16.mxu0 %v105
  %376 = vmatmul.mubr.bf16.gmra.mxu0 %v104
  %v377 = vpop.f32.mrf.mxu0
  %v378 = vadd.f32 %v337, %v377
  %v379 = vpop.f32.mrf.mxu0
  %v380 = vpop.f32.mrf.mxu0
  %v381 = vadd.f32 %v340, %v380
  %v382 = vpop.f32.mrf.mxu0
  %383 = vdwg.mxu0
  %vm384 = vcmask 97280
  %385 = vst.msk [vmem:[%s3] sm:$0xff] %vm384, %v378
  %386 = vst.msk [vmem:[%s3 + $0x8] sm:$0xff] %vm384, %v381
  // Predicated region
  $region14: #{beta_vae_forward.17} parent=0 // pred_check
    _
  $region15: #{beta_vae_forward.17} parent=0 // pred_check_branch
    %388 = sbr.rel (0) target = $region17
  $region16: #{beta_vae_forward.17} parent=0 // pred_region
    _
  $region17: #{beta_vae_forward.17} parent=0 // pred_fallthru
    _
  // Predicated region
  $region18: #{beta_vae_forward.17} parent=0 // pred_check
    _
  $region19: #{beta_vae_forward.17} parent=0 // pred_check_branch
    %390 = sbr.rel (0) target = $region21
  $region20: #{beta_vae_forward.17} parent=0 // pred_region
    _
  $region21: #{beta_vae_forward.17} parent=0 // pred_fallthru
    _

// kernel: beta_vae_forward.18
$region0: #{beta_vae_forward.18}
  #allocation0 [shape = 'u32[]', space=smem, size = 0x4, offset = 0x4, fixed_abs, tag = 'smem constant byte address 0x4 - core index']
  #allocation1 [shape = 'u32[144,128]{1,0:T(1,128)}', space=vmem, size = 0x12000, scoped, tag = 'internal scratch']
  %s0 = inlined_call_operand.vmem [shape: f32[16,6], index: 0, kind: input, shape index: {}]
  %s1 = inlined_call_operand.vmem [shape: f32[16,6], index: 1, kind: input, shape index: {}]
  %s2 = inlined_call_operand.vmem [shape: f32[16,6], index: 2, kind: input, shape index: {}]
  %s3 = inlined_call_operand.vmem [shape: bf16[6,512], index: 3, kind: input, shape index: {}]
  %s4 = inlined_call_operand.vmem [shape: f32[1,512], index: 4, kind: input, shape index: {}]
  %s5 = inlined_call_operand.vmem [shape: bf16[16,512], index: 5, kind: output, shape index: {}]
  %s6 = sld [smem:[#allocation0]]
  $region30: #{beta_vae_forward.18} parent=0
    _
  %s8 = ssub.s32 1, %s6
  %s9 = scalar_select 0, %s8, %s6
  // Predicated region
  $region2: #{beta_vae_forward.18} parent=0 // pred_check
    _
  $region3: #{beta_vae_forward.18} parent=0 // pred_check_branch
    %11 = sbr.rel (0) target = $region5
  $region4: #{beta_vae_forward.18} parent=0 // pred_region
    _
  $region5: #{beta_vae_forward.18} parent=0 // pred_fallthru
    _
  // Predicated region
  $region6: #{beta_vae_forward.18} parent=0 // pred_check
    _
  $region7: #{beta_vae_forward.18} parent=0 // pred_check_branch
    %13 = sbr.rel (0) target = $region9
  $region8: #{beta_vae_forward.18} parent=0 // pred_region
    _
  $region9: #{beta_vae_forward.18} parent=0 // pred_fallthru
    _
  // Predicated region
  $region10: #{beta_vae_forward.18} parent=0 // pred_check
    _
  $region11: #{beta_vae_forward.18} parent=0 // pred_check_branch
    %15 = sbr.rel (0) target = $region13
  $region12: #{beta_vae_forward.18} parent=0 // pred_region
    _
  $region13: #{beta_vae_forward.18} parent=0 // pred_fallthru
    _
  // Predicated region
  $region14: #{beta_vae_forward.18} parent=0 // pred_check
    _
  $region15: #{beta_vae_forward.18} parent=0 // pred_check_branch
    %17 = sbr.rel (0) target = $region17
  $region16: #{beta_vae_forward.18} parent=0 // pred_region
    _
  $region17: #{beta_vae_forward.18} parent=0 // pred_fallthru
    _
  // Predicated region
  $region18: #{beta_vae_forward.18} parent=0 // pred_check
    _
  $region19: #{beta_vae_forward.18} parent=0 // pred_check_branch
    %19 = sbr.rel (0) target = $region21
  $region20: #{beta_vae_forward.18} parent=0 // pred_region
    _
  $region21: #{beta_vae_forward.18} parent=0 // pred_fallthru
    _
  %v21 = vld [vmem:[%s0] sm:$0xff]
  %v22 = vld [vmem:[%s0 + $0x8] sm:$0xff]
  %v23 = vld [vmem:[%s2] sm:$0xff]
  %v24 = vld [vmem:[%s2 + $0x8] sm:$0xff]
  %v25 = vld [vmem:[%s1] sm:$0xff]
  %v26 = vld [vmem:[%s1 + $0x8] sm:$0xff]
  %v27 = vmul.f32 %v25, 0.5
  %v28 = vmul.f32 %v26, 0.5
  %v29 = vmul.f32 %v27, 1.442695
  %v30 = vpow.pop %v29
  %v31 = vmul.f32 %v28, 1.442695
  %v32 = vpow.pop %v31
  %v33 = vmul.f32 %v23, %v30
  %v34 = vmul.f32 %v24, %v32
  %v35 = vadd.f32 %v21, %v33
  %v36 = vadd.f32 %v22, %v34
  %v37 = vpack.c.bf16 %v36, %v35
  %v38 = vld [vmem:[%s3] sm:$0x77]
  %v39 = vld [vmem:[%s3 + $0x8] sm:$0x77]
  %v40 = vld [vmem:[%s4] sm:$0xf]
  %v42 = vlaneseq
  %v43 = vshrl.u32 %v42, 7
  %v44 = vsub.s32 0, %v43
  %v45 = vrot.slane %v40, %v44
  %v46 = vlaneseq
  %v47 = vshrl.u32 %v46, 7
  %v48 = vsub.s32 1, %v47
  %v49 = vrot.slane %v40, %v48
  %v50 = vlaneseq
  %v51 = vshrl.u32 %v50, 7
  %v52 = vsub.s32 2, %v51
  %v53 = vrot.slane %v40, %v52
  %v54 = vlaneseq
  %v55 = vshrl.u32 %v54, 7
  %v56 = vsub.s32 3, %v55
  %v57 = vrot.slane %v40, %v56
  %v64 = vunpack.c.l.b16 %v38
  %v65 = vunpack.c.h.b16 %v38
  %v66 = vunpack.c.l.b16 %v39
  %v67 = vunpack.c.h.b16 %v39
  %v68 = vpack.c.b16 %v64, %v64
  %v69 = vpack.c.b16 %v65, %v65
  %v70 = vpack.c.b16 %v66, %v66
  %v71 = vpack.c.b16 %v67, %v67
  %vm72 = vcmask 48128
  %v74 = vsel %vm72, %v37, 0
  %vm76 = vcmask 1042432
  %v78 = vsel %vm76, %v68, 0
  %v81 = vsel %vm76, %v69, 0
  %v84 = vsel %vm76, %v70, 0
  %v87 = vsel %vm76, %v71, 0
  %89 = vmatprep.subr.bf16.mxu0 0
  %90 = vmatpush1.bf16.msra.mxu0 0
  %91 = vmatprep.subr.bf16.mxu0 0
  %92 = vmatpush1.bf16.msra.mxu0 0
  %93 = vmatprep.subr.bf16.mxu0 0
  %94 = vmatpush1.bf16.msra.mxu0 0
  %95 = vmatprep.subr.bf16.mxu0 0
  %96 = vmatpush1.bf16.msra.mxu0 0
  %97 = vmatprep.subr.bf16.mxu0 0
  %98 = vmatpush1.bf16.msra.mxu0 0
  %99 = vmatprep.subr.bf16.mxu0 0
  %100 = vmatpush1.bf16.msra.mxu0 0
  %101 = vmatprep.subr.bf16.mxu0 0
  %102 = vmatpush1.bf16.msra.mxu0 0
  %103 = vmatprep.subr.bf16.mxu0 %v81
  %104 = vmatpush1.bf16.msra.mxu0 %v78
  %105 = vmatprep.subr.bf16.mxu0 0
  %106 = vmatpush2.bf16.msra.mxu0 0
  %107 = vmatprep.subr.bf16.mxu0 0
  %108 = vmatpush2.bf16.msra.mxu0 0
  %109 = vmatprep.subr.bf16.mxu0 0
  %110 = vmatpush2.bf16.msra.mxu0 0
  %111 = vmatprep.subr.bf16.mxu0 0
  %112 = vmatpush2.bf16.msra.mxu0 0
  %113 = vmatprep.subr.bf16.mxu0 0
  %114 = vmatpush2.bf16.msra.mxu0 0
  %115 = vmatprep.subr.bf16.mxu0 0
  %116 = vmatpush2.bf16.msra.mxu0 0
  %117 = vmatprep.subr.bf16.mxu0 0
  %118 = vmatpush2.bf16.msra.mxu0 0
  %119 = vmatprep.subr.bf16.mxu0 0
  %120 = vmatpush2.bf16.msra.mxu0 0
  %121 = vmatprep.mubr.bf16.mxu0 0
  %122 = vmatmul.mubr.bf16.gmra.mxu0 %v74
  %v123 = vpop.f32.mrf.mxu0
  %v124 = vadd.f32 %v45, %v123
  %v125 = vpop.f32.mrf.mxu0
  %v126 = vadd.f32 %v49, %v125
  %v127 = vpop.f32.mrf.mxu0
  %v128 = vadd.f32 %v45, %v127
  %v129 = vpop.f32.mrf.mxu0
  %v130 = vadd.f32 %v49, %v129
  %131 = vdwg.mxu0
  %132 = vmatprep.subr.bf16.mxu0 0
  %133 = vmatpush1.bf16.msra.mxu0 0
  %134 = vmatprep.subr.bf16.mxu0 0
  %135 = vmatpush1.bf16.msra.mxu0 0
  %136 = vmatprep.subr.bf16.mxu0 0
  %137 = vmatpush1.bf16.msra.mxu0 0
  %138 = vmatprep.subr.bf16.mxu0 0
  %139 = vmatpush1.bf16.msra.mxu0 0
  %140 = vmatprep.subr.bf16.mxu0 0
  %141 = vmatpush1.bf16.msra.mxu0 0
  %142 = vmatprep.subr.bf16.mxu0 0
  %143 = vmatpush1.bf16.msra.mxu0 0
  %144 = vmatprep.subr.bf16.mxu0 0
  %145 = vmatpush1.bf16.msra.mxu0 0
  %146 = vmatprep.subr.bf16.mxu0 %v87
  %147 = vmatpush1.bf16.msra.mxu0 %v84
  %148 = vmatprep.subr.bf16.mxu0 0
  %149 = vmatpush2.bf16.msra.mxu0 0
  %150 = vmatprep.subr.bf16.mxu0 0
  %151 = vmatpush2.bf16.msra.mxu0 0
  %152 = vmatprep.subr.bf16.mxu0 0
  %153 = vmatpush2.bf16.msra.mxu0 0
  %154 = vmatprep.subr.bf16.mxu0 0
  %155 = vmatpush2.bf16.msra.mxu0 0
  %156 = vmatprep.subr.bf16.mxu0 0
  %157 = vmatpush2.bf16.msra.mxu0 0
  %158 = vmatprep.subr.bf16.mxu0 0
  %159 = vmatpush2.bf16.msra.mxu0 0
  %160 = vmatprep.subr.bf16.mxu0 0
  %161 = vmatpush2.bf16.msra.mxu0 0
  %162 = vmatprep.subr.bf16.mxu0 0
  %163 = vmatpush2.bf16.msra.mxu0 0
  %164 = vmatprep.mubr.bf16.mxu0 0
  %165 = vmatmul.mubr.bf16.gmra.mxu0 %v74
  %v166 = vpop.f32.mrf.mxu0
  %v167 = vadd.f32 %v53, %v166
  %v168 = vpop.f32.mrf.mxu0
  %v169 = vadd.f32 %v57, %v168
  %v170 = vpop.f32.mrf.mxu0
  %v171 = vadd.f32 %v53, %v170
  %v172 = vpop.f32.mrf.mxu0
  %v173 = vadd.f32 %v57, %v172
  %174 = vdwg.mxu0
  %v175 = vmax.f32 %v124, 0.0
  %v176 = vmax.f32 %v126, 0.0
  %v177 = vmax.f32 %v167, 0.0
  %v178 = vmax.f32 %v169, 0.0
  %v179 = vmax.f32 %v128, 0.0
  %v180 = vmax.f32 %v130, 0.0
  %v181 = vmax.f32 %v171, 0.0
  %v182 = vmax.f32 %v173, 0.0
  %v183 = vpack.c.bf16 %v179, %v175
  %v184 = vpack.c.bf16 %v180, %v176
  %v185 = vpack.c.bf16 %v181, %v177
  %v186 = vpack.c.bf16 %v182, %v178
  %v191 = vunpack.c.l.b16 %v183
  %v192 = vunpack.c.l.b16 %v184
  %v193 = vunpack.c.l.b16 %v185
  %v194 = vunpack.c.l.b16 %v186
  %v195 = vunpack.c.h.b16 %v183
  %v196 = vunpack.c.h.b16 %v184
  %v197 = vunpack.c.h.b16 %v185
  %v198 = vunpack.c.h.b16 %v186
  %v199 = vpack.c.b16 %v192, %v191
  %v200 = vpack.c.b16 %v194, %v193
  %v201 = vpack.c.b16 %v196, %v195
  %v202 = vpack.c.b16 %v198, %v197
  %207 = vst [vmem:[%s5] sm:$0xff] %v199
  %208 = vst [vmem:[%s5 + $0x8] sm:$0xff] %v200
  %209 = vst [vmem:[%s5 + $0x10] sm:$0xff] %v201
  %210 = vst [vmem:[%s5 + $0x18] sm:$0xff] %v202
  // Predicated region
  $region22: #{beta_vae_forward.18} parent=0 // pred_check
    _
  $region23: #{beta_vae_forward.18} parent=0 // pred_check_branch
    %212 = sbr.rel (0) target = $region25
  $region24: #{beta_vae_forward.18} parent=0 // pred_region
    _
  $region25: #{beta_vae_forward.18} parent=0 // pred_fallthru
    _
  // Predicated region
  $region26: #{beta_vae_forward.18} parent=0 // pred_check
    _
  $region27: #{beta_vae_forward.18} parent=0 // pred_check_branch
    %214 = sbr.rel (0) target = $region29
  $region28: #{beta_vae_forward.18} parent=0 // pred_region
    _
  $region29: #{beta_vae_forward.18} parent=0 // pred_fallthru
    _

// kernel: beta_vae_forward.16
$region0: #{beta_vae_forward.16}
  #allocation0 [shape = 'u32[]', space=smem, size = 0x4, offset = 0x4, fixed_abs, tag = 'smem constant byte address 0x4 - core index']
  #allocation1 [shape = 'u32[144,128]{1,0:T(1,128)}', space=vmem, size = 0x12000, scoped, tag = 'internal scratch']
  %s0 = inlined_call_operand.vmem [shape: bf16[16,1024], index: 0, kind: input, shape index: {}]
  %s1 = inlined_call_operand.vmem [shape: bf16[1024,128], index: 1, kind: input, shape index: {}]
  %s2 = inlined_call_operand.vmem [shape: f32[1,128], index: 2, kind: input, shape index: {}]
  %s3 = inlined_call_operand.vmem [shape: bf16[16,128], index: 3, kind: output, shape index: {}]
  %s4 = sld [smem:[#allocation0]]
  $region22: #{beta_vae_forward.16} parent=0
    _
  %s6 = ssub.s32 1, %s4
  %s7 = scalar_select 0, %s6, %s4
  // Predicated region
  $region2: #{beta_vae_forward.16} parent=0 // pred_check
    _
  $region3: #{beta_vae_forward.16} parent=0 // pred_check_branch
    %9 = sbr.rel (0) target = $region5
  $region4: #{beta_vae_forward.16} parent=0 // pred_region
    _
  $region5: #{beta_vae_forward.16} parent=0 // pred_fallthru
    _
  // Predicated region
  $region6: #{beta_vae_forward.16} parent=0 // pred_check
    _
  $region7: #{beta_vae_forward.16} parent=0 // pred_check_branch
    %11 = sbr.rel (0) target = $region9
  $region8: #{beta_vae_forward.16} parent=0 // pred_region
    _
  $region9: #{beta_vae_forward.16} parent=0 // pred_fallthru
    _
  // Predicated region
  $region10: #{beta_vae_forward.16} parent=0 // pred_check
    _
  $region11: #{beta_vae_forward.16} parent=0 // pred_check_branch
    %13 = sbr.rel (0) target = $region13
  $region12: #{beta_vae_forward.16} parent=0 // pred_region
    _
  $region13: #{beta_vae_forward.16} parent=0 // pred_fallthru
    _
  %v15 = vld [vmem:[%s0] sm:$0xff]
  %v16 = vld [vmem:[%s0 + $0x8] sm:$0xff]
  %v17 = vld [vmem:[%s0 + $0x10] sm:$0xff]
  %v18 = vld [vmem:[%s0 + $0x18] sm:$0xff]
  %v19 = vld [vmem:[%s0 + $0x20] sm:$0xff]
  %v20 = vld [vmem:[%s0 + $0x28] sm:$0xff]
  %v21 = vld [vmem:[%s0 + $0x30] sm:$0xff]
  %v22 = vld [vmem:[%s0 + $0x38] sm:$0xff]
  %v23 = vld [vmem:[%s1] sm:$0xf]
  %v24 = vld [vmem:[%s1 + $0x4] sm:$0xf]
  %v25 = vld [vmem:[%s1 + $0x8] sm:$0xf]
  %v26 = vld [vmem:[%s1 + $0xc] sm:$0xf]
  %v27 = vld [vmem:[%s1 + $0x10] sm:$0xf]
  %v28 = vld [vmem:[%s1 + $0x14] sm:$0xf]
  %v29 = vld [vmem:[%s1 + $0x18] sm:$0xf]
  %v30 = vld [vmem:[%s1 + $0x1c] sm:$0xf]
  %v31 = vld [vmem:[%s1 + $0x20] sm:$0xf]
  %v32 = vld [vmem:[%s1 + $0x24] sm:$0xf]
  %v33 = vld [vmem:[%s1 + $0x28] sm:$0xf]
  %v34 = vld [vmem:[%s1 + $0x2c] sm:$0xf]
  %v35 = vld [vmem:[%s1 + $0x30] sm:$0xf]
  %v36 = vld [vmem:[%s1 + $0x34] sm:$0xf]
  %v37 = vld [vmem:[%s1 + $0x38] sm:$0xf]
  %v38 = vld [vmem:[%s1 + $0x3c] sm:$0xf]
  %v39 = vld [vmem:[%s1 + $0x40] sm:$0xf]
  %v40 = vld [vmem:[%s1 + $0x44] sm:$0xf]
  %v41 = vld [vmem:[%s1 + $0x48] sm:$0xf]
  %v42 = vld [vmem:[%s1 + $0x4c] sm:$0xf]
  %v43 = vld [vmem:[%s1 + $0x50] sm:$0xf]
  %v44 = vld [vmem:[%s1 + $0x54] sm:$0xf]
  %v45 = vld [vmem:[%s1 + $0x58] sm:$0xf]
  %v46 = vld [vmem:[%s1 + $0x5c] sm:$0xf]
  %v47 = vld [vmem:[%s1 + $0x60] sm:$0xf]
  %v48 = vld [vmem:[%s1 + $0x64] sm:$0xf]
  %v49 = vld [vmem:[%s1 + $0x68] sm:$0xf]
  %v50 = vld [vmem:[%s1 + $0x6c] sm:$0xf]
  %v51 = vld [vmem:[%s1 + $0x70] sm:$0xf]
  %v52 = vld [vmem:[%s1 + $0x74] sm:$0xf]
  %v53 = vld [vmem:[%s1 + $0x78] sm:$0xf]
  %v54 = vld [vmem:[%s1 + $0x7c] sm:$0xf]
  %v55 = vld [vmem:[%s1 + $0x80] sm:$0xf]
  %v56 = vld [vmem:[%s1 + $0x84] sm:$0xf]
  %v57 = vld [vmem:[%s1 + $0x88] sm:$0xf]
  %v58 = vld [vmem:[%s1 + $0x8c] sm:$0xf]
  %v59 = vld [vmem:[%s1 + $0x90] sm:$0xf]
  %v60 = vld [vmem:[%s1 + $0x94] sm:$0xf]
  %v61 = vld [vmem:[%s1 + $0x98] sm:$0xf]
  %v62 = vld [vmem:[%s1 + $0x9c] sm:$0xf]
  %v63 = vld [vmem:[%s1 + $0xa0] sm:$0xf]
  %v64 = vld [vmem:[%s1 + $0xa4] sm:$0xf]
  %v65 = vld [vmem:[%s1 + $0xa8] sm:$0xf]
  %v66 = vld [vmem:[%s1 + $0xac] sm:$0xf]
  %v67 = vld [vmem:[%s1 + $0xb0] sm:$0xf]
  %v68 = vld [vmem:[%s1 + $0xb4] sm:$0xf]
  %v69 = vld [vmem:[%s1 + $0xb8] sm:$0xf]
  %v70 = vld [vmem:[%s1 + $0xbc] sm:$0xf]
  %v71 = vld [vmem:[%s1 + $0xc0] sm:$0xf]
  %v72 = vld [vmem:[%s1 + $0xc4] sm:$0xf]
  %v73 = vld [vmem:[%s1 + $0xc8] sm:$0xf]
  %v74 = vld [vmem:[%s1 + $0xcc] sm:$0xf]
  %v75 = vld [vmem:[%s1 + $0xd0] sm:$0xf]
  %v76 = vld [vmem:[%s1 + $0xd4] sm:$0xf]
  %v77 = vld [vmem:[%s1 + $0xd8] sm:$0xf]
  %v78 = vld [vmem:[%s1 + $0xdc] sm:$0xf]
  %v79 = vld [vmem:[%s1 + $0xe0] sm:$0xf]
  %v80 = vld [vmem:[%s1 + $0xe4] sm:$0xf]
  %v81 = vld [vmem:[%s1 + $0xe8] sm:$0xf]
  %v82 = vld [vmem:[%s1 + $0xec] sm:$0xf]
  %v83 = vld [vmem:[%s1 + $0xf0] sm:$0xf]
  %v84 = vld [vmem:[%s1 + $0xf4] sm:$0xf]
  %v85 = vld [vmem:[%s1 + $0xf8] sm:$0xf]
  %v86 = vld [vmem:[%s1 + $0xfc] sm:$0xf]
  %v87 = vld [vmem:[%s1 + $0x100] sm:$0xf]
  %v88 = vld [vmem:[%s1 + $0x104] sm:$0xf]
  %v89 = vld [vmem:[%s1 + $0x108] sm:$0xf]
  %v90 = vld [vmem:[%s1 + $0x10c] sm:$0xf]
  %v91 = vld [vmem:[%s1 + $0x110] sm:$0xf]
  %v92 = vld [vmem:[%s1 + $0x114] sm:$0xf]
  %v93 = vld [vmem:[%s1 + $0x118] sm:$0xf]
  %v94 = vld [vmem:[%s1 + $0x11c] sm:$0xf]
  %v95 = vld [vmem:[%s1 + $0x120] sm:$0xf]
  %v96 = vld [vmem:[%s1 + $0x124] sm:$0xf]
  %v97 = vld [vmem:[%s1 + $0x128] sm:$0xf]
  %v98 = vld [vmem:[%s1 + $0x12c] sm:$0xf]
  %v99 = vld [vmem:[%s1 + $0x130] sm:$0xf]
  %v100 = vld [vmem:[%s1 + $0x134] sm:$0xf]
  %v101 = vld [vmem:[%s1 + $0x138] sm:$0xf]
  %v102 = vld [vmem:[%s1 + $0x13c] sm:$0xf]
  %v103 = vld [vmem:[%s1 + $0x140] sm:$0xf]
  %v104 = vld [vmem:[%s1 + $0x144] sm:$0xf]
  %v105 = vld [vmem:[%s1 + $0x148] sm:$0xf]
  %v106 = vld [vmem:[%s1 + $0x14c] sm:$0xf]
  %v107 = vld [vmem:[%s1 + $0x150] sm:$0xf]
  %v108 = vld [vmem:[%s1 + $0x154] sm:$0xf]
  %v109 = vld [vmem:[%s1 + $0x158] sm:$0xf]
  %v110 = vld [vmem:[%s1 + $0x15c] sm:$0xf]
  %v111 = vld [vmem:[%s1 + $0x160] sm:$0xf]
  %v112 = vld [vmem:[%s1 + $0x164] sm:$0xf]
  %v113 = vld [vmem:[%s1 + $0x168] sm:$0xf]
  %v114 = vld [vmem:[%s1 + $0x16c] sm:$0xf]
  %v115 = vld [vmem:[%s1 + $0x170] sm:$0xf]
  %v116 = vld [vmem:[%s1 + $0x174] sm:$0xf]
  %v117 = vld [vmem:[%s1 + $0x178] sm:$0xf]
  %v118 = vld [vmem:[%s1 + $0x17c] sm:$0xf]
  %v119 = vld [vmem:[%s1 + $0x180] sm:$0xf]
  %v120 = vld [vmem:[%s1 + $0x184] sm:$0xf]
  %v121 = vld [vmem:[%s1 + $0x188] sm:$0xf]
  %v122 = vld [vmem:[%s1 + $0x18c] sm:$0xf]
  %v123 = vld [vmem:[%s1 + $0x190] sm:$0xf]
  %v124 = vld [vmem:[%s1 + $0x194] sm:$0xf]
  %v125 = vld [vmem:[%s1 + $0x198] sm:$0xf]
  %v126 = vld [vmem:[%s1 + $0x19c] sm:$0xf]
  %v127 = vld [vmem:[%s1 + $0x1a0] sm:$0xf]
  %v128 = vld [vmem:[%s1 + $0x1a4] sm:$0xf]
  %v129 = vld [vmem:[%s1 + $0x1a8] sm:$0xf]
  %v130 = vld [vmem:[%s1 + $0x1ac] sm:$0xf]
  %v131 = vld [vmem:[%s1 + $0x1b0] sm:$0xf]
  %v132 = vld [vmem:[%s1 + $0x1b4] sm:$0xf]
  %v133 = vld [vmem:[%s1 + $0x1b8] sm:$0xf]
  %v134 = vld [vmem:[%s1 + $0x1bc] sm:$0xf]
  %v135 = vld [vmem:[%s1 + $0x1c0] sm:$0xf]
  %v136 = vld [vmem:[%s1 + $0x1c4] sm:$0xf]
  %v137 = vld [vmem:[%s1 + $0x1c8] sm:$0xf]
  %v138 = vld [vmem:[%s1 + $0x1cc] sm:$0xf]
  %v139 = vld [vmem:[%s1 + $0x1d0] sm:$0xf]
  %v140 = vld [vmem:[%s1 + $0x1d4] sm:$0xf]
  %v141 = vld [vmem:[%s1 + $0x1d8] sm:$0xf]
  %v142 = vld [vmem:[%s1 + $0x1dc] sm:$0xf]
  %v143 = vld [vmem:[%s1 + $0x1e0] sm:$0xf]
  %v144 = vld [vmem:[%s1 + $0x1e4] sm:$0xf]
  %v145 = vld [vmem:[%s1 + $0x1e8] sm:$0xf]
  %v146 = vld [vmem:[%s1 + $0x1ec] sm:$0xf]
  %v147 = vld [vmem:[%s1 + $0x1f0] sm:$0xf]
  %v148 = vld [vmem:[%s1 + $0x1f4] sm:$0xf]
  %v149 = vld [vmem:[%s1 + $0x1f8] sm:$0xf]
  %v150 = vld [vmem:[%s1 + $0x1fc] sm:$0xf]
  %v151 = vld [vmem:[%s2] sm:$0x1]
  %v153 = vlaneseq
  %v154 = vshrl.u32 %v153, 7
  %v155 = vsub.s32 0, %v154
  %v156 = vrot.slane %v151, %v155
  %v166 = vunpack.c.l.b16 %v15
  %v167 = vunpack.c.h.b16 %v15
  %v168 = vunpack.c.l.b16 %v16
  %v169 = vunpack.c.h.b16 %v16
  %v170 = vunpack.c.l.b16 %v17
  %v171 = vunpack.c.h.b16 %v17
  %v172 = vunpack.c.l.b16 %v18
  %v173 = vunpack.c.h.b16 %v18
  %v174 = vunpack.c.l.b16 %v19
  %v175 = vunpack.c.h.b16 %v19
  %v176 = vunpack.c.l.b16 %v20
  %v177 = vunpack.c.h.b16 %v20
  %v178 = vunpack.c.l.b16 %v21
  %v179 = vunpack.c.h.b16 %v21
  %v180 = vunpack.c.l.b16 %v22
  %v181 = vunpack.c.h.b16 %v22
  %v182 = vpack.c.b16 %v174, %v166
  %v183 = vpack.c.b16 %v175, %v167
  %v184 = vpack.c.b16 %v176, %v168
  %v185 = vpack.c.b16 %v177, %v169
  %v186 = vpack.c.b16 %v178, %v170
  %v187 = vpack.c.b16 %v179, %v171
  %v188 = vpack.c.b16 %v180, %v172
  %v189 = vpack.c.b16 %v181, %v173
  %v326 = vunpack.c.l.b16 %v23
  %v327 = vunpack.c.l.b16 %v24
  %v328 = vunpack.c.l.b16 %v25
  %v329 = vunpack.c.l.b16 %v26
  %v330 = vunpack.c.l.b16 %v27
  %v331 = vunpack.c.l.b16 %v28
  %v332 = vunpack.c.l.b16 %v29
  %v333 = vunpack.c.l.b16 %v30
  %v334 = vunpack.c.l.b16 %v31
  %v335 = vunpack.c.l.b16 %v32
  %v336 = vunpack.c.l.b16 %v33
  %v337 = vunpack.c.l.b16 %v34
  %v338 = vunpack.c.l.b16 %v35
  %v339 = vunpack.c.l.b16 %v36
  %v340 = vunpack.c.l.b16 %v37
  %v341 = vunpack.c.l.b16 %v38
  %v342 = vunpack.c.l.b16 %v39
  %v343 = vunpack.c.l.b16 %v40
  %v344 = vunpack.c.l.b16 %v41
  %v345 = vunpack.c.l.b16 %v42
  %v346 = vunpack.c.l.b16 %v43
  %v347 = vunpack.c.l.b16 %v44
  %v348 = vunpack.c.l.b16 %v45
  %v349 = vunpack.c.l.b16 %v46
  %v350 = vunpack.c.l.b16 %v47
  %v351 = vunpack.c.l.b16 %v48
  %v352 = vunpack.c.l.b16 %v49
  %v353 = vunpack.c.l.b16 %v50
  %v354 = vunpack.c.l.b16 %v51
  %v355 = vunpack.c.l.b16 %v52
  %v356 = vunpack.c.l.b16 %v53
  %v357 = vunpack.c.l.b16 %v54
  %v358 = vunpack.c.l.b16 %v55
  %v359 = vunpack.c.l.b16 %v56
  %v360 = vunpack.c.l.b16 %v57
  %v361 = vunpack.c.l.b16 %v58
  %v362 = vunpack.c.l.b16 %v59
  %v363 = vunpack.c.l.b16 %v60
  %v364 = vunpack.c.l.b16 %v61
  %v365 = vunpack.c.l.b16 %v62
  %v366 = vunpack.c.l.b16 %v63
  %v367 = vunpack.c.l.b16 %v64
  %v368 = vunpack.c.l.b16 %v65
  %v369 = vunpack.c.l.b16 %v66
  %v370 = vunpack.c.l.b16 %v67
  %v371 = vunpack.c.l.b16 %v68
  %v372 = vunpack.c.l.b16 %v69
  %v373 = vunpack.c.l.b16 %v70
  %v374 = vunpack.c.l.b16 %v71
  %v375 = vunpack.c.l.b16 %v72
  %v376 = vunpack.c.l.b16 %v73
  %v377 = vunpack.c.l.b16 %v74
  %v378 = vunpack.c.l.b16 %v75
  %v379 = vunpack.c.l.b16 %v76
  %v380 = vunpack.c.l.b16 %v77
  %v381 = vunpack.c.l.b16 %v78
  %v382 = vunpack.c.l.b16 %v79
  %v383 = vunpack.c.l.b16 %v80
  %v384 = vunpack.c.l.b16 %v81
  %v385 = vunpack.c.l.b16 %v82
  %v386 = vunpack.c.l.b16 %v83
  %v387 = vunpack.c.l.b16 %v84
  %v388 = vunpack.c.l.b16 %v85
  %v389 = vunpack.c.l.b16 %v86
  %v390 = vunpack.c.l.b16 %v87
  %v391 = vunpack.c.l.b16 %v88
  %v392 = vunpack.c.l.b16 %v89
  %v393 = vunpack.c.l.b16 %v90
  %v394 = vunpack.c.l.b16 %v91
  %v395 = vunpack.c.l.b16 %v92
  %v396 = vunpack.c.l.b16 %v93
  %v397 = vunpack.c.l.b16 %v94
  %v398 = vunpack.c.l.b16 %v95
  %v399 = vunpack.c.l.b16 %v96
  %v400 = vunpack.c.l.b16 %v97
  %v401 = vunpack.c.l.b16 %v98
  %v402 = vunpack.c.l.b16 %v99
  %v403 = vunpack.c.l.b16 %v100
  %v404 = vunpack.c.l.b16 %v101
  %v405 = vunpack.c.l.b16 %v102
  %v406 = vunpack.c.l.b16 %v103
  %v407 = vunpack.c.l.b16 %v104
  %v408 = vunpack.c.l.b16 %v105
  %v409 = vunpack.c.l.b16 %v106
  %v410 = vunpack.c.l.b16 %v107
  %v411 = vunpack.c.l.b16 %v108
  %v412 = vunpack.c.l.b16 %v109
  %v413 = vunpack.c.l.b16 %v110
  %v414 = vunpack.c.l.b16 %v111
  %v415 = vunpack.c.l.b16 %v112
  %v416 = vunpack.c.l.b16 %v113
  %v417 = vunpack.c.l.b16 %v114
  %v418 = vunpack.c.l.b16 %v115
  %v419 = vunpack.c.l.b16 %v116
  %v420 = vunpack.c.l.b16 %v117
  %v421 = vunpack.c.l.b16 %v118
  %v422 = vunpack.c.l.b16 %v119
  %v423 = vunpack.c.l.b16 %v120
  %v424 = vunpack.c.l.b16 %v121
  %v425 = vunpack.c.l.b16 %v122
  %v426 = vunpack.c.l.b16 %v123
  %v427 = vunpack.c.l.b16 %v124
  %v428 = vunpack.c.l.b16 %v125
  %v429 = vunpack.c.l.b16 %v126
  %v430 = vunpack.c.l.b16 %v127
  %v431 = vunpack.c.l.b16 %v128
  %v432 = vunpack.c.l.b16 %v129
  %v433 = vunpack.c.l.b16 %v130
  %v434 = vunpack.c.l.b16 %v131
  %v435 = vunpack.c.l.b16 %v132
  %v436 = vunpack.c.l.b16 %v133
  %v437 = vunpack.c.l.b16 %v134
  %v438 = vunpack.c.l.b16 %v135
  %v439 = vunpack.c.l.b16 %v136
  %v440 = vunpack.c.l.b16 %v137
  %v441 = vunpack.c.l.b16 %v138
  %v442 = vunpack.c.l.b16 %v139
  %v443 = vunpack.c.l.b16 %v140
  %v444 = vunpack.c.l.b16 %v141
  %v445 = vunpack.c.l.b16 %v142
  %v446 = vunpack.c.l.b16 %v143
  %v447 = vunpack.c.l.b16 %v144
  %v448 = vunpack.c.l.b16 %v145
  %v449 = vunpack.c.l.b16 %v146
  %v450 = vunpack.c.l.b16 %v147
  %v451 = vunpack.c.l.b16 %v148
  %v452 = vunpack.c.l.b16 %v149
  %v453 = vunpack.c.l.b16 %v150
  %v454 = vpack.c.b16 %v327, %v326
  %v455 = vpack.c.b16 %v329, %v328
  %v456 = vpack.c.b16 %v331, %v330
  %v457 = vpack.c.b16 %v333, %v332
  %v458 = vpack.c.b16 %v335, %v334
  %v459 = vpack.c.b16 %v337, %v336
  %v460 = vpack.c.b16 %v339, %v338
  %v461 = vpack.c.b16 %v341, %v340
  %v462 = vpack.c.b16 %v343, %v342
  %v463 = vpack.c.b16 %v345, %v344
  %v464 = vpack.c.b16 %v347, %v346
  %v465 = vpack.c.b16 %v349, %v348
  %v466 = vpack.c.b16 %v351, %v350
  %v467 = vpack.c.b16 %v353, %v352
  %v468 = vpack.c.b16 %v355, %v354
  %v469 = vpack.c.b16 %v357, %v356
  %v470 = vpack.c.b16 %v359, %v358
  %v471 = vpack.c.b16 %v361, %v360
  %v472 = vpack.c.b16 %v363, %v362
  %v473 = vpack.c.b16 %v365, %v364
  %v474 = vpack.c.b16 %v367, %v366
  %v475 = vpack.c.b16 %v369, %v368
  %v476 = vpack.c.b16 %v371, %v370
  %v477 = vpack.c.b16 %v373, %v372
  %v478 = vpack.c.b16 %v375, %v374
  %v479 = vpack.c.b16 %v377, %v376
  %v480 = vpack.c.b16 %v379, %v378
  %v481 = vpack.c.b16 %v381, %v380
  %v482 = vpack.c.b16 %v383, %v382
  %v483 = vpack.c.b16 %v385, %v384
  %v484 = vpack.c.b16 %v387, %v386
  %v485 = vpack.c.b16 %v389, %v388
  %v486 = vpack.c.b16 %v391, %v390
  %v487 = vpack.c.b16 %v393, %v392
  %v488 = vpack.c.b16 %v395, %v394
  %v489 = vpack.c.b16 %v397, %v396
  %v490 = vpack.c.b16 %v399, %v398
  %v491 = vpack.c.b16 %v401, %v400
  %v492 = vpack.c.b16 %v403, %v402
  %v493 = vpack.c.b16 %v405, %v404
  %v494 = vpack.c.b16 %v407, %v406
  %v495 = vpack.c.b16 %v409, %v408
  %v496 = vpack.c.b16 %v411, %v410
  %v497 = vpack.c.b16 %v413, %v412
  %v498 = vpack.c.b16 %v415, %v414
  %v499 = vpack.c.b16 %v417, %v416
  %v500 = vpack.c.b16 %v419, %v418
  %v501 = vpack.c.b16 %v421, %v420
  %v502 = vpack.c.b16 %v423, %v422
  %v503 = vpack.c.b16 %v425, %v424
  %v504 = vpack.c.b16 %v427, %v426
  %v505 = vpack.c.b16 %v429, %v428
  %v506 = vpack.c.b16 %v431, %v430
  %v507 = vpack.c.b16 %v433, %v432
  %v508 = vpack.c.b16 %v435, %v434
  %v509 = vpack.c.b16 %v437, %v436
  %v510 = vpack.c.b16 %v439, %v438
  %v511 = vpack.c.b16 %v441, %v440
  %v512 = vpack.c.b16 %v443, %v442
  %v513 = vpack.c.b16 %v445, %v444
  %v514 = vpack.c.b16 %v447, %v446
  %v515 = vpack.c.b16 %v449, %v448
  %v516 = vpack.c.b16 %v451, %v450
  %v517 = vpack.c.b16 %v453, %v452
  %582 = vmatprep.subr.bf16.mxu0 0
  %583 = vmatpush1.bf16.msra.mxu0 %v461
  %584 = vmatprep.subr.bf16.mxu0 0
  %585 = vmatpush1.bf16.msra.mxu0 %v460
  %586 = vmatprep.subr.bf16.mxu0 0
  %587 = vmatpush1.bf16.msra.mxu0 %v459
  %588 = vmatprep.subr.bf16.mxu0 0
  %589 = vmatpush1.bf16.msra.mxu0 %v458
  %590 = vmatprep.subr.bf16.mxu0 0
  %591 = vmatpush1.bf16.msra.mxu0 %v457
  %592 = vmatprep.subr.bf16.mxu0 0
  %593 = vmatpush1.bf16.msra.mxu0 %v456
  %594 = vmatprep.subr.bf16.mxu0 0
  %595 = vmatpush1.bf16.msra.mxu0 %v455
  %596 = vmatprep.subr.bf16.mxu0 0
  %597 = vmatpush1.bf16.msra.mxu0 %v454
  %598 = vmatprep.subr.bf16.mxu0 0
  %599 = vmatpush2.bf16.msra.mxu0 %v469
  %600 = vmatprep.subr.bf16.mxu0 0
  %601 = vmatpush2.bf16.msra.mxu0 %v468
  %602 = vmatprep.subr.bf16.mxu0 0
  %603 = vmatpush2.bf16.msra.mxu0 %v467
  %604 = vmatprep.subr.bf16.mxu0 0
  %605 = vmatpush2.bf16.msra.mxu0 %v466
  %606 = vmatprep.subr.bf16.mxu0 0
  %607 = vmatpush2.bf16.msra.mxu0 %v465
  %608 = vmatprep.subr.bf16.mxu0 0
  %609 = vmatpush2.bf16.msra.mxu0 %v464
  %610 = vmatprep.subr.bf16.mxu0 0
  %611 = vmatpush2.bf16.msra.mxu0 %v463
  %612 = vmatprep.subr.bf16.mxu0 0
  %613 = vmatpush2.bf16.msra.mxu0 %v462
  %614 = vmatprep.mubr.bf16.mxu0 %v183
  %615 = vmatmul.mubr.bf16.gmra.mxu0 %v182
  %v616 = vpop.f32.mrf.mxu0
  %v617 = vadd.f32 %v156, %v616
  %v618 = vpop.f32.mrf.mxu0
  %v619 = vpop.f32.mrf.mxu0
  %v620 = vadd.f32 %v156, %v619
  %v621 = vpop.f32.mrf.mxu0
  %622 = vdwg.mxu0
  %623 = vmatprep.subr.bf16.mxu0 0
  %624 = vmatpush1.bf16.msra.mxu0 %v477
  %625 = vmatprep.subr.bf16.mxu0 0
  %626 = vmatpush1.bf16.msra.mxu0 %v476
  %627 = vmatprep.subr.bf16.mxu0 0
  %628 = vmatpush1.bf16.msra.mxu0 %v475
  %629 = vmatprep.subr.bf16.mxu0 0
  %630 = vmatpush1.bf16.msra.mxu0 %v474
  %631 = vmatprep.subr.bf16.mxu0 0
  %632 = vmatpush1.bf16.msra.mxu0 %v473
  %633 = vmatprep.subr.bf16.mxu0 0
  %634 = vmatpush1.bf16.msra.mxu0 %v472
  %635 = vmatprep.subr.bf16.mxu0 0
  %636 = vmatpush1.bf16.msra.mxu0 %v471
  %637 = vmatprep.subr.bf16.mxu0 0
  %638 = vmatpush1.bf16.msra.mxu0 %v470
  %639 = vmatprep.subr.bf16.mxu0 0
  %640 = vmatpush2.bf16.msra.mxu0 %v485
  %641 = vmatprep.subr.bf16.mxu0 0
  %642 = vmatpush2.bf16.msra.mxu0 %v484
  %643 = vmatprep.subr.bf16.mxu0 0
  %644 = vmatpush2.bf16.msra.mxu0 %v483
  %645 = vmatprep.subr.bf16.mxu0 0
  %646 = vmatpush2.bf16.msra.mxu0 %v482
  %647 = vmatprep.subr.bf16.mxu0 0
  %648 = vmatpush2.bf16.msra.mxu0 %v481
  %649 = vmatprep.subr.bf16.mxu0 0
  %650 = vmatpush2.bf16.msra.mxu0 %v480
  %651 = vmatprep.subr.bf16.mxu0 0
  %652 = vmatpush2.bf16.msra.mxu0 %v479
  %653 = vmatprep.subr.bf16.mxu0 0
  %654 = vmatpush2.bf16.msra.mxu0 %v478
  %655 = vmatprep.mubr.bf16.mxu0 %v185
  %656 = vmatmul.mubr.bf16.gmra.mxu0 %v184
  %v657 = vpop.f32.mrf.mxu0
  %v658 = vadd.f32 %v617, %v657
  %v659 = vpop.f32.mrf.mxu0
  %v660 = vpop.f32.mrf.mxu0
  %v661 = vadd.f32 %v620, %v660
  %v662 = vpop.f32.mrf.mxu0
  %663 = vdwg.mxu0
  %664 = vmatprep.subr.bf16.mxu0 0
  %665 = vmatpush1.bf16.msra.mxu0 %v493
  %666 = vmatprep.subr.bf16.mxu0 0
  %667 = vmatpush1.bf16.msra.mxu0 %v492
  %668 = vmatprep.subr.bf16.mxu0 0
  %669 = vmatpush1.bf16.msra.mxu0 %v491
  %670 = vmatprep.subr.bf16.mxu0 0
  %671 = vmatpush1.bf16.msra.mxu0 %v490
  %672 = vmatprep.subr.bf16.mxu0 0
  %673 = vmatpush1.bf16.msra.mxu0 %v489
  %674 = vmatprep.subr.bf16.mxu0 0
  %675 = vmatpush1.bf16.msra.mxu0 %v488
  %676 = vmatprep.subr.bf16.mxu0 0
  %677 = vmatpush1.bf16.msra.mxu0 %v487
  %678 = vmatprep.subr.bf16.mxu0 0
  %679 = vmatpush1.bf16.msra.mxu0 %v486
  %680 = vmatprep.subr.bf16.mxu0 0
  %681 = vmatpush2.bf16.msra.mxu0 %v501
  %682 = vmatprep.subr.bf16.mxu0 0
  %683 = vmatpush2.bf16.msra.mxu0 %v500
  %684 = vmatprep.subr.bf16.mxu0 0
  %685 = vmatpush2.bf16.msra.mxu0 %v499
  %686 = vmatprep.subr.bf16.mxu0 0
  %687 = vmatpush2.bf16.msra.mxu0 %v498
  %688 = vmatprep.subr.bf16.mxu0 0
  %689 = vmatpush2.bf16.msra.mxu0 %v497
  %690 = vmatprep.subr.bf16.mxu0 0
  %691 = vmatpush2.bf16.msra.mxu0 %v496
  %692 = vmatprep.subr.bf16.mxu0 0
  %693 = vmatpush2.bf16.msra.mxu0 %v495
  %694 = vmatprep.subr.bf16.mxu0 0
  %695 = vmatpush2.bf16.msra.mxu0 %v494
  %696 = vmatprep.mubr.bf16.mxu0 %v187
  %697 = vmatmul.mubr.bf16.gmra.mxu0 %v186
  %v698 = vpop.f32.mrf.mxu0
  %v699 = vadd.f32 %v658, %v698
  %v700 = vpop.f32.mrf.mxu0
  %v701 = vpop.f32.mrf.mxu0
  %v702 = vadd.f32 %v661, %v701
  %v703 = vpop.f32.mrf.mxu0
  %704 = vdwg.mxu0
  %705 = vmatprep.subr.bf16.mxu0 0
  %706 = vmatpush1.bf16.msra.mxu0 %v509
  %707 = vmatprep.subr.bf16.mxu0 0
  %708 = vmatpush1.bf16.msra.mxu0 %v508
  %709 = vmatprep.subr.bf16.mxu0 0
  %710 = vmatpush1.bf16.msra.mxu0 %v507
  %711 = vmatprep.subr.bf16.mxu0 0
  %712 = vmatpush1.bf16.msra.mxu0 %v506
  %713 = vmatprep.subr.bf16.mxu0 0
  %714 = vmatpush1.bf16.msra.mxu0 %v505
  %715 = vmatprep.subr.bf16.mxu0 0
  %716 = vmatpush1.bf16.msra.mxu0 %v504
  %717 = vmatprep.subr.bf16.mxu0 0
  %718 = vmatpush1.bf16.msra.mxu0 %v503
  %719 = vmatprep.subr.bf16.mxu0 0
  %720 = vmatpush1.bf16.msra.mxu0 %v502
  %721 = vmatprep.subr.bf16.mxu0 0
  %722 = vmatpush2.bf16.msra.mxu0 %v517
  %723 = vmatprep.subr.bf16.mxu0 0
  %724 = vmatpush2.bf16.msra.mxu0 %v516
  %725 = vmatprep.subr.bf16.mxu0 0
  %726 = vmatpush2.bf16.msra.mxu0 %v515
  %727 = vmatprep.subr.bf16.mxu0 0
  %728 = vmatpush2.bf16.msra.mxu0 %v514
  %729 = vmatprep.subr.bf16.mxu0 0
  %730 = vmatpush2.bf16.msra.mxu0 %v513
  %731 = vmatprep.subr.bf16.mxu0 0
  %732 = vmatpush2.bf16.msra.mxu0 %v512
  %733 = vmatprep.subr.bf16.mxu0 0
  %734 = vmatpush2.bf16.msra.mxu0 %v511
  %735 = vmatprep.subr.bf16.mxu0 0
  %736 = vmatpush2.bf16.msra.mxu0 %v510
  %737 = vmatprep.mubr.bf16.mxu0 %v189
  %738 = vmatmul.mubr.bf16.gmra.mxu0 %v188
  %v739 = vpop.f32.mrf.mxu0
  %v740 = vadd.f32 %v699, %v739
  %v741 = vpop.f32.mrf.mxu0
  %v742 = vpop.f32.mrf.mxu0
  %v743 = vadd.f32 %v702, %v742
  %v744 = vpop.f32.mrf.mxu0
  %745 = vdwg.mxu0
  %v746 = vmax.f32 %v740, 0.0
  %v747 = vmax.f32 %v743, 0.0
  %v748 = vpack.c.bf16 %v747, %v746
  %v750 = vunpack.c.l.b16 %v748
  %v751 = vunpack.c.h.b16 %v748
  %v752 = vpack.c.b16 %v750, %v750
  %v753 = vpack.c.b16 %v751, %v751
  %756 = vst [vmem:[%s3] sm:$0xf] %v752
  %757 = vst [vmem:[%s3 + $0x4] sm:$0xf] %v753
  // Predicated region
  $region14: #{beta_vae_forward.16} parent=0 // pred_check
    _
  $region15: #{beta_vae_forward.16} parent=0 // pred_check_branch
    %759 = sbr.rel (0) target = $region17
  $region16: #{beta_vae_forward.16} parent=0 // pred_region
    _
  $region17: #{beta_vae_forward.16} parent=0 // pred_fallthru
    _
  // Predicated region
  $region18: #{beta_vae_forward.16} parent=0 // pred_check
    _
  $region19: #{beta_vae_forward.16} parent=0 // pred_check_branch
    %761 = sbr.rel (0) target = $region21
  $region20: #{beta_vae_forward.16} parent=0 // pred_region
    _
  $region21: #{beta_vae_forward.16} parent=0 // pred_fallthru
    _

// kernel: tile.18
$region0: #{tile.18}
  #allocation0 [shape = 's32[1]{0}', space=sflag, size = 0x4, scoped, tag = 'scoped memory for tile.18']
  %s0 = inlined_call_operand.vmem [shape: f32[64], index: 0, kind: input, shape index: {}]
  %s1 = inlined_call_operand.vmem [shape: f32[4,64], index: 1, kind: output, shape index: {}]
  // Predicated region
  $region2: #{tile.18} parent=0 // pred_check
    _
  $region3: #{tile.18} parent=0 // pred_check_branch
    %3 = sbr.rel (0) target = $region5
  $region4: #{tile.18} parent=0 // pred_region
    _
  $region5: #{tile.18} parent=0 // pred_fallthru
    _
  %v4 = vld [vmem:[%s0] ss:$0 sm:$0xff]
  %5 = vst [vmem:[%s1] sm:$0xf] %v4

// kernel: tile.19
$region0: #{tile.19}
  %s0 = inlined_call_operand.vmem [shape: f32[4,64], index: 0, kind: input, shape index: {}]
  %s1 = inlined_call_operand.vmem [shape: f32[1,256], index: 1, kind: output, shape index: {}]
  $region1: #{tile.19} parent=0
    #allocation0 [shape = 'u8[8192]{0}', space=vmem, size = 0x2000, scoped, tag = 'scoped mem for output reshape']
    #allocation1 [shape = 'u8[4096]{0}', space=vmem, size = 0x1000, scoped, tag = 'scoped mem for input reshape']
    %s3 = sshll.u32 1, 4
    %s4 = ssub.s32 %s3, 1
    %v5 = vld [vmem:[%s0] sm:%s4]
    %6 = vst [vmem:[#allocation1] sm:%s4] %v5
    %s7 = smov 3
    %v8 = vld [vmem:[#allocation1] ss:$2 sm:%s7]
    %vm9 = vcmask 523264
    %10 = vst.msk [vmem:[#allocation0] ss:$8 sm:$0x3] %vm9, %v8
    %s11 = scalar_lea.vmem [#allocation1], 1
    %s12 = smov 3
    %v13 = vld [vmem:[%s11] ss:$2 sm:%s12]
    %14 = vrot.lane.b32.xlu0 %v13, 64
    %v15 = vpop.permute.xlu0 %14
    %vm16 = vcmask 1048064
    %17 = vst.msk [vmem:[#allocation0] ss:$8 sm:$0x3] %vm16, %v15
    %s19 = sshll.u32 1, 1
    %s20 = ssub.s32 %s19, 1
    %v22 = vld [vmem:[#allocation0] sm:%s20]
    %s23 = sshll.u32 1, 1
    %s24 = ssub.s32 %s23, 1
    %25 = vst [vmem:[%s1] sm:%s24] %v22
    %s26 = scalar_lea.vmem [#allocation0], 8
    %v27 = vld [vmem:[%s26] sm:%s20]
    %s28 = sshll.u32 1, 1
    %s29 = ssub.s32 %s28, 1
    %s30 = scalar_lea.vmem %s1, 1
    %31 = vst [vmem:[%s30] sm:%s29] %v27

// kernel: beta_vae_forward.19
$region0: #{beta_vae_forward.19}
  #allocation0 [shape = 'u32[]', space=smem, size = 0x4, offset = 0x4, fixed_abs, tag = 'smem constant byte address 0x4 - core index']
  #allocation1 [shape = 'u32[144,128]{1,0:T(1,128)}', space=vmem, size = 0x12000, scoped, tag = 'internal scratch']
  %s0 = inlined_call_operand.vmem [shape: bf16[32,512], index: 0, kind: input, shape index: {}]
  %s1 = inlined_call_operand.vmem [shape: bf16[512,256], index: 1, kind: input, shape index: {}]
  %s2 = inlined_call_operand.vmem [shape: f32[1,256], index: 2, kind: input, shape index: {}]
  %s3 = inlined_call_operand.vmem [shape: bf16[32,256], index: 3, kind: output, shape index: {}]
  %s4 = sld [smem:[#allocation0]]
  $region22: #{beta_vae_forward.19} parent=0
    _
  %s6 = ssub.s32 1, %s4
  %s7 = scalar_select 0, %s6, %s4
  // Predicated region
  $region2: #{beta_vae_forward.19} parent=0 // pred_check
    _
  $region3: #{beta_vae_forward.19} parent=0 // pred_check_branch
    %9 = sbr.rel (0) target = $region5
  $region4: #{beta_vae_forward.19} parent=0 // pred_region
    _
  $region5: #{beta_vae_forward.19} parent=0 // pred_fallthru
    _
  // Predicated region
  $region6: #{beta_vae_forward.19} parent=0 // pred_check
    _
  $region7: #{beta_vae_forward.19} parent=0 // pred_check_branch
    %11 = sbr.rel (0) target = $region9
  $region8: #{beta_vae_forward.19} parent=0 // pred_region
    _
  $region9: #{beta_vae_forward.19} parent=0 // pred_fallthru
    _
  // Predicated region
  $region10: #{beta_vae_forward.19} parent=0 // pred_check
    _
  $region11: #{beta_vae_forward.19} parent=0 // pred_check_branch
    %13 = sbr.rel (0) target = $region13
  $region12: #{beta_vae_forward.19} parent=0 // pred_region
    _
  $region13: #{beta_vae_forward.19} parent=0 // pred_fallthru
    _
  %v14 = vld [vmem:[%s0] sm:$0xff]
  %v15 = vld [vmem:[%s0 + $0x8] sm:$0xff]
  %v16 = vld [vmem:[%s0 + $0x10] sm:$0xff]
  %v17 = vld [vmem:[%s0 + $0x18] sm:$0xff]
  %v18 = vld [vmem:[%s0 + $0x20] sm:$0xff]
  %v19 = vld [vmem:[%s0 + $0x28] sm:$0xff]
  %v20 = vld [vmem:[%s0 + $0x30] sm:$0xff]
  %v21 = vld [vmem:[%s0 + $0x38] sm:$0xff]
  %v22 = vld [vmem:[%s1] sm:$0xff]
  %v23 = vld [vmem:[%s1 + $0x8] sm:$0xff]
  %v24 = vld [vmem:[%s1 + $0x10] sm:$0xff]
  %v25 = vld [vmem:[%s1 + $0x18] sm:$0xff]
  %v26 = vld [vmem:[%s1 + $0x20] sm:$0xff]
  %v27 = vld [vmem:[%s1 + $0x28] sm:$0xff]
  %v28 = vld [vmem:[%s1 + $0x30] sm:$0xff]
  %v29 = vld [vmem:[%s1 + $0x38] sm:$0xff]
  %v30 = vld [vmem:[%s1 + $0x40] sm:$0xff]
  %v31 = vld [vmem:[%s1 + $0x48] sm:$0xff]
  %v32 = vld [vmem:[%s1 + $0x50] sm:$0xff]
  %v33 = vld [vmem:[%s1 + $0x58] sm:$0xff]
  %v34 = vld [vmem:[%s1 + $0x60] sm:$0xff]
  %v35 = vld [vmem:[%s1 + $0x68] sm:$0xff]
  %v36 = vld [vmem:[%s1 + $0x70] sm:$0xff]
  %v37 = vld [vmem:[%s1 + $0x78] sm:$0xff]
  %v38 = vld [vmem:[%s1 + $0x80] sm:$0xff]
  %v39 = vld [vmem:[%s1 + $0x88] sm:$0xff]
  %v40 = vld [vmem:[%s1 + $0x90] sm:$0xff]
  %v41 = vld [vmem:[%s1 + $0x98] sm:$0xff]
  %v42 = vld [vmem:[%s1 + $0xa0] sm:$0xff]
  %v43 = vld [vmem:[%s1 + $0xa8] sm:$0xff]
  %v44 = vld [vmem:[%s1 + $0xb0] sm:$0xff]
  %v45 = vld [vmem:[%s1 + $0xb8] sm:$0xff]
  %v46 = vld [vmem:[%s1 + $0xc0] sm:$0xff]
  %v47 = vld [vmem:[%s1 + $0xc8] sm:$0xff]
  %v48 = vld [vmem:[%s1 + $0xd0] sm:$0xff]
  %v49 = vld [vmem:[%s1 + $0xd8] sm:$0xff]
  %v50 = vld [vmem:[%s1 + $0xe0] sm:$0xff]
  %v51 = vld [vmem:[%s1 + $0xe8] sm:$0xff]
  %v52 = vld [vmem:[%s1 + $0xf0] sm:$0xff]
  %v53 = vld [vmem:[%s1 + $0xf8] sm:$0xff]
  %v54 = vld [vmem:[%s1 + $0x100] sm:$0xff]
  %v55 = vld [vmem:[%s1 + $0x108] sm:$0xff]
  %v56 = vld [vmem:[%s1 + $0x110] sm:$0xff]
  %v57 = vld [vmem:[%s1 + $0x118] sm:$0xff]
  %v58 = vld [vmem:[%s1 + $0x120] sm:$0xff]
  %v59 = vld [vmem:[%s1 + $0x128] sm:$0xff]
  %v60 = vld [vmem:[%s1 + $0x130] sm:$0xff]
  %v61 = vld [vmem:[%s1 + $0x138] sm:$0xff]
  %v62 = vld [vmem:[%s1 + $0x140] sm:$0xff]
  %v63 = vld [vmem:[%s1 + $0x148] sm:$0xff]
  %v64 = vld [vmem:[%s1 + $0x150] sm:$0xff]
  %v65 = vld [vmem:[%s1 + $0x158] sm:$0xff]
  %v66 = vld [vmem:[%s1 + $0x160] sm:$0xff]
  %v67 = vld [vmem:[%s1 + $0x168] sm:$0xff]
  %v68 = vld [vmem:[%s1 + $0x170] sm:$0xff]
  %v69 = vld [vmem:[%s1 + $0x178] sm:$0xff]
  %v70 = vld [vmem:[%s1 + $0x180] sm:$0xff]
  %v71 = vld [vmem:[%s1 + $0x188] sm:$0xff]
  %v72 = vld [vmem:[%s1 + $0x190] sm:$0xff]
  %v73 = vld [vmem:[%s1 + $0x198] sm:$0xff]
  %v74 = vld [vmem:[%s1 + $0x1a0] sm:$0xff]
  %v75 = vld [vmem:[%s1 + $0x1a8] sm:$0xff]
  %v76 = vld [vmem:[%s1 + $0x1b0] sm:$0xff]
  %v77 = vld [vmem:[%s1 + $0x1b8] sm:$0xff]
  %v78 = vld [vmem:[%s1 + $0x1c0] sm:$0xff]
  %v79 = vld [vmem:[%s1 + $0x1c8] sm:$0xff]
  %v80 = vld [vmem:[%s1 + $0x1d0] sm:$0xff]
  %v81 = vld [vmem:[%s1 + $0x1d8] sm:$0xff]
  %v82 = vld [vmem:[%s1 + $0x1e0] sm:$0xff]
  %v83 = vld [vmem:[%s1 + $0x1e8] sm:$0xff]
  %v84 = vld [vmem:[%s1 + $0x1f0] sm:$0xff]
  %v85 = vld [vmem:[%s1 + $0x1f8] sm:$0xff]
  %v86 = vld [vmem:[%s2] sm:$0x3]
  %v88 = vlaneseq
  %v89 = vshrl.u32 %v88, 7
  %v90 = vsub.s32 0, %v89
  %v91 = vrot.slane %v86, %v90
  %v92 = vlaneseq
  %v93 = vshrl.u32 %v92, 7
  %v94 = vsub.s32 1, %v93
  %v95 = vrot.slane %v86, %v94
  %v106 = vunpack.c.l.b16 %v14
  %v107 = vunpack.c.h.b16 %v14
  %v108 = vunpack.c.l.b16 %v15
  %v109 = vunpack.c.h.b16 %v15
  %v110 = vunpack.c.l.b16 %v16
  %v111 = vunpack.c.h.b16 %v16
  %v112 = vunpack.c.l.b16 %v17
  %v113 = vunpack.c.h.b16 %v17
  %v114 = vunpack.c.l.b16 %v18
  %v115 = vunpack.c.h.b16 %v18
  %v116 = vunpack.c.l.b16 %v19
  %v117 = vunpack.c.h.b16 %v19
  %v118 = vunpack.c.l.b16 %v20
  %v119 = vunpack.c.h.b16 %v20
  %v120 = vunpack.c.l.b16 %v21
  %v121 = vunpack.c.h.b16 %v21
  %v122 = vpack.c.b16 %v110, %v106
  %v123 = vpack.c.b16 %v111, %v107
  %v124 = vpack.c.b16 %v112, %v108
  %v125 = vpack.c.b16 %v113, %v109
  %v126 = vpack.c.b16 %v118, %v114
  %v127 = vpack.c.b16 %v119, %v115
  %v128 = vpack.c.b16 %v120, %v116
  %v129 = vpack.c.b16 %v121, %v117
  %v202 = vunpack.c.l.b16 %v22
  %v203 = vunpack.c.h.b16 %v22
  %v204 = vunpack.c.l.b16 %v23
  %v205 = vunpack.c.h.b16 %v23
  %v206 = vunpack.c.l.b16 %v24
  %v207 = vunpack.c.h.b16 %v24
  %v208 = vunpack.c.l.b16 %v25
  %v209 = vunpack.c.h.b16 %v25
  %v210 = vunpack.c.l.b16 %v26
  %v211 = vunpack.c.h.b16 %v26
  %v212 = vunpack.c.l.b16 %v27
  %v213 = vunpack.c.h.b16 %v27
  %v214 = vunpack.c.l.b16 %v28
  %v215 = vunpack.c.h.b16 %v28
  %v216 = vunpack.c.l.b16 %v29
  %v217 = vunpack.c.h.b16 %v29
  %v218 = vunpack.c.l.b16 %v30
  %v219 = vunpack.c.h.b16 %v30
  %v220 = vunpack.c.l.b16 %v31
  %v221 = vunpack.c.h.b16 %v31
  %v222 = vunpack.c.l.b16 %v32
  %v223 = vunpack.c.h.b16 %v32
  %v224 = vunpack.c.l.b16 %v33
  %v225 = vunpack.c.h.b16 %v33
  %v226 = vunpack.c.l.b16 %v34
  %v227 = vunpack.c.h.b16 %v34
  %v228 = vunpack.c.l.b16 %v35
  %v229 = vunpack.c.h.b16 %v35
  %v230 = vunpack.c.l.b16 %v36
  %v231 = vunpack.c.h.b16 %v36
  %v232 = vunpack.c.l.b16 %v37
  %v233 = vunpack.c.h.b16 %v37
  %v234 = vunpack.c.l.b16 %v38
  %v235 = vunpack.c.h.b16 %v38
  %v236 = vunpack.c.l.b16 %v39
  %v237 = vunpack.c.h.b16 %v39
  %v238 = vunpack.c.l.b16 %v40
  %v239 = vunpack.c.h.b16 %v40
  %v240 = vunpack.c.l.b16 %v41
  %v241 = vunpack.c.h.b16 %v41
  %v242 = vunpack.c.l.b16 %v42
  %v243 = vunpack.c.h.b16 %v42
  %v244 = vunpack.c.l.b16 %v43
  %v245 = vunpack.c.h.b16 %v43
  %v246 = vunpack.c.l.b16 %v44
  %v247 = vunpack.c.h.b16 %v44
  %v248 = vunpack.c.l.b16 %v45
  %v249 = vunpack.c.h.b16 %v45
  %v250 = vunpack.c.l.b16 %v46
  %v251 = vunpack.c.h.b16 %v46
  %v252 = vunpack.c.l.b16 %v47
  %v253 = vunpack.c.h.b16 %v47
  %v254 = vunpack.c.l.b16 %v48
  %v255 = vunpack.c.h.b16 %v48
  %v256 = vunpack.c.l.b16 %v49
  %v257 = vunpack.c.h.b16 %v49
  %v258 = vunpack.c.l.b16 %v50
  %v259 = vunpack.c.h.b16 %v50
  %v260 = vunpack.c.l.b16 %v51
  %v261 = vunpack.c.h.b16 %v51
  %v262 = vunpack.c.l.b16 %v52
  %v263 = vunpack.c.h.b16 %v52
  %v264 = vunpack.c.l.b16 %v53
  %v265 = vunpack.c.h.b16 %v53
  %v266 = vunpack.c.l.b16 %v54
  %v267 = vunpack.c.h.b16 %v54
  %v268 = vunpack.c.l.b16 %v55
  %v269 = vunpack.c.h.b16 %v55
  %v270 = vunpack.c.l.b16 %v56
  %v271 = vunpack.c.h.b16 %v56
  %v272 = vunpack.c.l.b16 %v57
  %v273 = vunpack.c.h.b16 %v57
  %v274 = vunpack.c.l.b16 %v58
  %v275 = vunpack.c.h.b16 %v58
  %v276 = vunpack.c.l.b16 %v59
  %v277 = vunpack.c.h.b16 %v59
  %v278 = vunpack.c.l.b16 %v60
  %v279 = vunpack.c.h.b16 %v60
  %v280 = vunpack.c.l.b16 %v61
  %v281 = vunpack.c.h.b16 %v61
  %v282 = vunpack.c.l.b16 %v62
  %v283 = vunpack.c.h.b16 %v62
  %v284 = vunpack.c.l.b16 %v63
  %v285 = vunpack.c.h.b16 %v63
  %v286 = vunpack.c.l.b16 %v64
  %v287 = vunpack.c.h.b16 %v64
  %v288 = vunpack.c.l.b16 %v65
  %v289 = vunpack.c.h.b16 %v65
  %v290 = vunpack.c.l.b16 %v66
  %v291 = vunpack.c.h.b16 %v66
  %v292 = vunpack.c.l.b16 %v67
  %v293 = vunpack.c.h.b16 %v67
  %v294 = vunpack.c.l.b16 %v68
  %v295 = vunpack.c.h.b16 %v68
  %v296 = vunpack.c.l.b16 %v69
  %v297 = vunpack.c.h.b16 %v69
  %v298 = vunpack.c.l.b16 %v70
  %v299 = vunpack.c.h.b16 %v70
  %v300 = vunpack.c.l.b16 %v71
  %v301 = vunpack.c.h.b16 %v71
  %v302 = vunpack.c.l.b16 %v72
  %v303 = vunpack.c.h.b16 %v72
  %v304 = vunpack.c.l.b16 %v73
  %v305 = vunpack.c.h.b16 %v73
  %v306 = vunpack.c.l.b16 %v74
  %v307 = vunpack.c.h.b16 %v74
  %v308 = vunpack.c.l.b16 %v75
  %v309 = vunpack.c.h.b16 %v75
  %v310 = vunpack.c.l.b16 %v76
  %v311 = vunpack.c.h.b16 %v76
  %v312 = vunpack.c.l.b16 %v77
  %v313 = vunpack.c.h.b16 %v77
  %v314 = vunpack.c.l.b16 %v78
  %v315 = vunpack.c.h.b16 %v78
  %v316 = vunpack.c.l.b16 %v79
  %v317 = vunpack.c.h.b16 %v79
  %v318 = vunpack.c.l.b16 %v80
  %v319 = vunpack.c.h.b16 %v80
  %v320 = vunpack.c.l.b16 %v81
  %v321 = vunpack.c.h.b16 %v81
  %v322 = vunpack.c.l.b16 %v82
  %v323 = vunpack.c.h.b16 %v82
  %v324 = vunpack.c.l.b16 %v83
  %v325 = vunpack.c.h.b16 %v83
  %v326 = vunpack.c.l.b16 %v84
  %v327 = vunpack.c.h.b16 %v84
  %v328 = vunpack.c.l.b16 %v85
  %v329 = vunpack.c.h.b16 %v85
  %v330 = vpack.c.b16 %v204, %v202
  %v331 = vpack.c.b16 %v205, %v203
  %v332 = vpack.c.b16 %v208, %v206
  %v333 = vpack.c.b16 %v209, %v207
  %v334 = vpack.c.b16 %v212, %v210
  %v335 = vpack.c.b16 %v213, %v211
  %v336 = vpack.c.b16 %v216, %v214
  %v337 = vpack.c.b16 %v217, %v215
  %v338 = vpack.c.b16 %v220, %v218
  %v339 = vpack.c.b16 %v221, %v219
  %v340 = vpack.c.b16 %v224, %v222
  %v341 = vpack.c.b16 %v225, %v223
  %v342 = vpack.c.b16 %v228, %v226
  %v343 = vpack.c.b16 %v229, %v227
  %v344 = vpack.c.b16 %v232, %v230
  %v345 = vpack.c.b16 %v233, %v231
  %v346 = vpack.c.b16 %v236, %v234
  %v347 = vpack.c.b16 %v237, %v235
  %v348 = vpack.c.b16 %v240, %v238
  %v349 = vpack.c.b16 %v241, %v239
  %v350 = vpack.c.b16 %v244, %v242
  %v351 = vpack.c.b16 %v245, %v243
  %v352 = vpack.c.b16 %v248, %v246
  %v353 = vpack.c.b16 %v249, %v247
  %v354 = vpack.c.b16 %v252, %v250
  %v355 = vpack.c.b16 %v253, %v251
  %v356 = vpack.c.b16 %v256, %v254
  %v357 = vpack.c.b16 %v257, %v255
  %v358 = vpack.c.b16 %v260, %v258
  %v359 = vpack.c.b16 %v261, %v259
  %v360 = vpack.c.b16 %v264, %v262
  %v361 = vpack.c.b16 %v265, %v263
  %v362 = vpack.c.b16 %v268, %v266
  %v363 = vpack.c.b16 %v269, %v267
  %v364 = vpack.c.b16 %v272, %v270
  %v365 = vpack.c.b16 %v273, %v271
  %v366 = vpack.c.b16 %v276, %v274
  %v367 = vpack.c.b16 %v277, %v275
  %v368 = vpack.c.b16 %v280, %v278
  %v369 = vpack.c.b16 %v281, %v279
  %v370 = vpack.c.b16 %v284, %v282
  %v371 = vpack.c.b16 %v285, %v283
  %v372 = vpack.c.b16 %v288, %v286
  %v373 = vpack.c.b16 %v289, %v287
  %v374 = vpack.c.b16 %v292, %v290
  %v375 = vpack.c.b16 %v293, %v291
  %v376 = vpack.c.b16 %v296, %v294
  %v377 = vpack.c.b16 %v297, %v295
  %v378 = vpack.c.b16 %v300, %v298
  %v379 = vpack.c.b16 %v301, %v299
  %v380 = vpack.c.b16 %v304, %v302
  %v381 = vpack.c.b16 %v305, %v303
  %v382 = vpack.c.b16 %v308, %v306
  %v383 = vpack.c.b16 %v309, %v307
  %v384 = vpack.c.b16 %v312, %v310
  %v385 = vpack.c.b16 %v313, %v311
  %v386 = vpack.c.b16 %v316, %v314
  %v387 = vpack.c.b16 %v317, %v315
  %v388 = vpack.c.b16 %v320, %v318
  %v389 = vpack.c.b16 %v321, %v319
  %v390 = vpack.c.b16 %v324, %v322
  %v391 = vpack.c.b16 %v325, %v323
  %v392 = vpack.c.b16 %v328, %v326
  %v393 = vpack.c.b16 %v329, %v327
  %458 = vmatprep.subr.bf16.mxu0 %v345
  %459 = vmatpush1.bf16.msra.mxu0 %v344
  %460 = vmatprep.subr.bf16.mxu0 %v343
  %461 = vmatpush1.bf16.msra.mxu0 %v342
  %462 = vmatprep.subr.bf16.mxu0 %v341
  %463 = vmatpush1.bf16.msra.mxu0 %v340
  %464 = vmatprep.subr.bf16.mxu0 %v339
  %465 = vmatpush1.bf16.msra.mxu0 %v338
  %466 = vmatprep.subr.bf16.mxu0 %v337
  %467 = vmatpush1.bf16.msra.mxu0 %v336
  %468 = vmatprep.subr.bf16.mxu0 %v335
  %469 = vmatpush1.bf16.msra.mxu0 %v334
  %470 = vmatprep.subr.bf16.mxu0 %v333
  %471 = vmatpush1.bf16.msra.mxu0 %v332
  %472 = vmatprep.subr.bf16.mxu0 %v331
  %473 = vmatpush1.bf16.msra.mxu0 %v330
  %474 = vmatprep.subr.bf16.mxu0 %v361
  %475 = vmatpush2.bf16.msra.mxu0 %v360
  %476 = vmatprep.subr.bf16.mxu0 %v359
  %477 = vmatpush2.bf16.msra.mxu0 %v358
  %478 = vmatprep.subr.bf16.mxu0 %v357
  %479 = vmatpush2.bf16.msra.mxu0 %v356
  %480 = vmatprep.subr.bf16.mxu0 %v355
  %481 = vmatpush2.bf16.msra.mxu0 %v354
  %482 = vmatprep.subr.bf16.mxu0 %v353
  %483 = vmatpush2.bf16.msra.mxu0 %v352
  %484 = vmatprep.subr.bf16.mxu0 %v351
  %485 = vmatpush2.bf16.msra.mxu0 %v350
  %486 = vmatprep.subr.bf16.mxu0 %v349
  %487 = vmatpush2.bf16.msra.mxu0 %v348
  %488 = vmatprep.subr.bf16.mxu0 %v347
  %489 = vmatpush2.bf16.msra.mxu0 %v346
  %490 = vmatprep.mubr.bf16.mxu0 %v123
  %491 = vmatmul.mubr.bf16.gmra.mxu0 %v122
  %v492 = vpop.f32.mrf.mxu0
  %v493 = vadd.f32 %v91, %v492
  %v494 = vpop.f32.mrf.mxu0
  %v495 = vadd.f32 %v95, %v494
  %v496 = vpop.f32.mrf.mxu0
  %v497 = vadd.f32 %v91, %v496
  %v498 = vpop.f32.mrf.mxu0
  %v499 = vadd.f32 %v95, %v498
  %500 = vmatprep.mubr.bf16.mxu0 %v127
  %501 = vmatmul.mubr.bf16.gmra.mxu0 %v126
  %v502 = vpop.f32.mrf.mxu0
  %v503 = vadd.f32 %v91, %v502
  %v504 = vpop.f32.mrf.mxu0
  %v505 = vadd.f32 %v95, %v504
  %v506 = vpop.f32.mrf.mxu0
  %v507 = vadd.f32 %v91, %v506
  %v508 = vpop.f32.mrf.mxu0
  %v509 = vadd.f32 %v95, %v508
  %510 = vdwg.mxu0
  %511 = vmatprep.subr.bf16.mxu0 %v377
  %512 = vmatpush1.bf16.msra.mxu0 %v376
  %513 = vmatprep.subr.bf16.mxu0 %v375
  %514 = vmatpush1.bf16.msra.mxu0 %v374
  %515 = vmatprep.subr.bf16.mxu0 %v373
  %516 = vmatpush1.bf16.msra.mxu0 %v372
  %517 = vmatprep.subr.bf16.mxu0 %v371
  %518 = vmatpush1.bf16.msra.mxu0 %v370
  %519 = vmatprep.subr.bf16.mxu0 %v369
  %520 = vmatpush1.bf16.msra.mxu0 %v368
  %521 = vmatprep.subr.bf16.mxu0 %v367
  %522 = vmatpush1.bf16.msra.mxu0 %v366
  %523 = vmatprep.subr.bf16.mxu0 %v365
  %524 = vmatpush1.bf16.msra.mxu0 %v364
  %525 = vmatprep.subr.bf16.mxu0 %v363
  %526 = vmatpush1.bf16.msra.mxu0 %v362
  %527 = vmatprep.subr.bf16.mxu0 %v393
  %528 = vmatpush2.bf16.msra.mxu0 %v392
  %529 = vmatprep.subr.bf16.mxu0 %v391
  %530 = vmatpush2.bf16.msra.mxu0 %v390
  %531 = vmatprep.subr.bf16.mxu0 %v389
  %532 = vmatpush2.bf16.msra.mxu0 %v388
  %533 = vmatprep.subr.bf16.mxu0 %v387
  %534 = vmatpush2.bf16.msra.mxu0 %v386
  %535 = vmatprep.subr.bf16.mxu0 %v385
  %536 = vmatpush2.bf16.msra.mxu0 %v384
  %537 = vmatprep.subr.bf16.mxu0 %v383
  %538 = vmatpush2.bf16.msra.mxu0 %v382
  %539 = vmatprep.subr.bf16.mxu0 %v381
  %540 = vmatpush2.bf16.msra.mxu0 %v380
  %541 = vmatprep.subr.bf16.mxu0 %v379
  %542 = vmatpush2.bf16.msra.mxu0 %v378
  %543 = vmatprep.mubr.bf16.mxu0 %v125
  %544 = vmatmul.mubr.bf16.gmra.mxu0 %v124
  %v545 = vpop.f32.mrf.mxu0
  %v546 = vadd.f32 %v493, %v545
  %v547 = vpop.f32.mrf.mxu0
  %v548 = vadd.f32 %v495, %v547
  %v549 = vpop.f32.mrf.mxu0
  %v550 = vadd.f32 %v497, %v549
  %v551 = vpop.f32.mrf.mxu0
  %v552 = vadd.f32 %v499, %v551
  %553 = vmatprep.mubr.bf16.mxu0 %v129
  %554 = vmatmul.mubr.bf16.gmra.mxu0 %v128
  %v555 = vpop.f32.mrf.mxu0
  %v556 = vadd.f32 %v503, %v555
  %v557 = vpop.f32.mrf.mxu0
  %v558 = vadd.f32 %v505, %v557
  %v559 = vpop.f32.mrf.mxu0
  %v560 = vadd.f32 %v507, %v559
  %v561 = vpop.f32.mrf.mxu0
  %v562 = vadd.f32 %v509, %v561
  %563 = vdwg.mxu0
  %v564 = vmax.f32 %v546, 0.0
  %v565 = vmax.f32 %v548, 0.0
  %v566 = vmax.f32 %v550, 0.0
  %v567 = vmax.f32 %v552, 0.0
  %v568 = vmax.f32 %v556, 0.0
  %v569 = vmax.f32 %v558, 0.0
  %v570 = vmax.f32 %v560, 0.0
  %v571 = vmax.f32 %v562, 0.0
  %v572 = vpack.c.bf16 %v566, %v564
  %v573 = vpack.c.bf16 %v567, %v565
  %v574 = vpack.c.bf16 %v570, %v568
  %v575 = vpack.c.bf16 %v571, %v569
  %v580 = vunpack.c.l.b16 %v572
  %v581 = vunpack.c.l.b16 %v573
  %v582 = vunpack.c.h.b16 %v572
  %v583 = vunpack.c.h.b16 %v573
  %v584 = vunpack.c.l.b16 %v574
  %v585 = vunpack.c.l.b16 %v575
  %v586 = vunpack.c.h.b16 %v574
  %v587 = vunpack.c.h.b16 %v575
  %v588 = vpack.c.b16 %v581, %v580
  %v589 = vpack.c.b16 %v583, %v582
  %v590 = vpack.c.b16 %v585, %v584
  %v591 = vpack.c.b16 %v587, %v586
  %596 = vst [vmem:[%s3] sm:$0xff] %v588
  %597 = vst [vmem:[%s3 + $0x8] sm:$0xff] %v589
  %598 = vst [vmem:[%s3 + $0x10] sm:$0xff] %v590
  %599 = vst [vmem:[%s3 + $0x18] sm:$0xff] %v591
  // Predicated region
  $region14: #{beta_vae_forward.19} parent=0 // pred_check
    _
  $region15: #{beta_vae_forward.19} parent=0 // pred_check_branch
    %601 = sbr.rel (0) target = $region17
  $region16: #{beta_vae_forward.19} parent=0 // pred_region
    _
  $region17: #{beta_vae_forward.19} parent=0 // pred_fallthru
    _
  // Predicated region
  $region18: #{beta_vae_forward.19} parent=0 // pred_check
    _
  $region19: #{beta_vae_forward.19} parent=0 // pred_check_branch
    %603 = sbr.rel (0) target = $region21
  $region20: #{beta_vae_forward.19} parent=0 // pred_region
    _
  $region21: #{beta_vae_forward.19} parent=0 // pred_fallthru
    _

// kernel: beta_vae_forward.20
$region0: #{beta_vae_forward.20}
  #allocation0 [shape = 'u32[]', space=smem, size = 0x4, offset = 0x4, fixed_abs, tag = 'smem constant byte address 0x4 - core index']
  #allocation1 [shape = 'u32[144,128]{1,0:T(1,128)}', space=vmem, size = 0x12000, scoped, tag = 'internal scratch']
  %s0 = inlined_call_operand.vmem [shape: bf16[64,256], index: 0, kind: input, shape index: {}]
  %s1 = inlined_call_operand.vmem [shape: bf16[256,256], index: 1, kind: input, shape index: {}]
  %s2 = inlined_call_operand.vmem [shape: f32[1,256], index: 2, kind: input, shape index: {}]
  %s3 = inlined_call_operand.vmem [shape: bf16[64,256], index: 3, kind: output, shape index: {}]
  %s4 = sld [smem:[#allocation0]]
  $region22: #{beta_vae_forward.20} parent=0
    _
  %s6 = ssub.s32 1, %s4
  %s7 = scalar_select 0, %s6, %s4
  // Predicated region
  $region2: #{beta_vae_forward.20} parent=0 // pred_check
    _
  $region3: #{beta_vae_forward.20} parent=0 // pred_check_branch
    %9 = sbr.rel (0) target = $region5
  $region4: #{beta_vae_forward.20} parent=0 // pred_region
    _
  $region5: #{beta_vae_forward.20} parent=0 // pred_fallthru
    _
  // Predicated region
  $region6: #{beta_vae_forward.20} parent=0 // pred_check
    _
  $region7: #{beta_vae_forward.20} parent=0 // pred_check_branch
    %11 = sbr.rel (0) target = $region9
  $region8: #{beta_vae_forward.20} parent=0 // pred_region
    _
  $region9: #{beta_vae_forward.20} parent=0 // pred_fallthru
    _
  // Predicated region
  $region10: #{beta_vae_forward.20} parent=0 // pred_check
    _
  $region11: #{beta_vae_forward.20} parent=0 // pred_check_branch
    %13 = sbr.rel (0) target = $region13
  $region12: #{beta_vae_forward.20} parent=0 // pred_region
    _
  $region13: #{beta_vae_forward.20} parent=0 // pred_fallthru
    _
  %v14 = vld [vmem:[%s0] sm:$0xff]
  %v15 = vld [vmem:[%s0 + $0x8] sm:$0xff]
  %v16 = vld [vmem:[%s0 + $0x10] sm:$0xff]
  %v17 = vld [vmem:[%s0 + $0x18] sm:$0xff]
  %v18 = vld [vmem:[%s0 + $0x20] sm:$0xff]
  %v19 = vld [vmem:[%s0 + $0x28] sm:$0xff]
  %v20 = vld [vmem:[%s0 + $0x30] sm:$0xff]
  %v21 = vld [vmem:[%s0 + $0x38] sm:$0xff]
  %v22 = vld [vmem:[%s1] sm:$0xff]
  %v23 = vld [vmem:[%s1 + $0x8] sm:$0xff]
  %v24 = vld [vmem:[%s1 + $0x10] sm:$0xff]
  %v25 = vld [vmem:[%s1 + $0x18] sm:$0xff]
  %v26 = vld [vmem:[%s1 + $0x20] sm:$0xff]
  %v27 = vld [vmem:[%s1 + $0x28] sm:$0xff]
  %v28 = vld [vmem:[%s1 + $0x30] sm:$0xff]
  %v29 = vld [vmem:[%s1 + $0x38] sm:$0xff]
  %v30 = vld [vmem:[%s1 + $0x40] sm:$0xff]
  %v31 = vld [vmem:[%s1 + $0x48] sm:$0xff]
  %v32 = vld [vmem:[%s1 + $0x50] sm:$0xff]
  %v33 = vld [vmem:[%s1 + $0x58] sm:$0xff]
  %v34 = vld [vmem:[%s1 + $0x60] sm:$0xff]
  %v35 = vld [vmem:[%s1 + $0x68] sm:$0xff]
  %v36 = vld [vmem:[%s1 + $0x70] sm:$0xff]
  %v37 = vld [vmem:[%s1 + $0x78] sm:$0xff]
  %v38 = vld [vmem:[%s1 + $0x80] sm:$0xff]
  %v39 = vld [vmem:[%s1 + $0x88] sm:$0xff]
  %v40 = vld [vmem:[%s1 + $0x90] sm:$0xff]
  %v41 = vld [vmem:[%s1 + $0x98] sm:$0xff]
  %v42 = vld [vmem:[%s1 + $0xa0] sm:$0xff]
  %v43 = vld [vmem:[%s1 + $0xa8] sm:$0xff]
  %v44 = vld [vmem:[%s1 + $0xb0] sm:$0xff]
  %v45 = vld [vmem:[%s1 + $0xb8] sm:$0xff]
  %v46 = vld [vmem:[%s1 + $0xc0] sm:$0xff]
  %v47 = vld [vmem:[%s1 + $0xc8] sm:$0xff]
  %v48 = vld [vmem:[%s1 + $0xd0] sm:$0xff]
  %v49 = vld [vmem:[%s1 + $0xd8] sm:$0xff]
  %v50 = vld [vmem:[%s1 + $0xe0] sm:$0xff]
  %v51 = vld [vmem:[%s1 + $0xe8] sm:$0xff]
  %v52 = vld [vmem:[%s1 + $0xf0] sm:$0xff]
  %v53 = vld [vmem:[%s1 + $0xf8] sm:$0xff]
  %v54 = vld [vmem:[%s2] sm:$0x3]
  %v56 = vlaneseq
  %v57 = vshrl.u32 %v56, 7
  %v58 = vsub.s32 0, %v57
  %v59 = vrot.slane %v54, %v58
  %v60 = vlaneseq
  %v61 = vshrl.u32 %v60, 7
  %v62 = vsub.s32 1, %v61
  %v63 = vrot.slane %v54, %v62
  %v74 = vunpack.c.l.b16 %v14
  %v75 = vunpack.c.h.b16 %v14
  %v76 = vunpack.c.l.b16 %v15
  %v77 = vunpack.c.h.b16 %v15
  %v78 = vunpack.c.l.b16 %v16
  %v79 = vunpack.c.h.b16 %v16
  %v80 = vunpack.c.l.b16 %v17
  %v81 = vunpack.c.h.b16 %v17
  %v82 = vunpack.c.l.b16 %v18
  %v83 = vunpack.c.h.b16 %v18
  %v84 = vunpack.c.l.b16 %v19
  %v85 = vunpack.c.h.b16 %v19
  %v86 = vunpack.c.l.b16 %v20
  %v87 = vunpack.c.h.b16 %v20
  %v88 = vunpack.c.l.b16 %v21
  %v89 = vunpack.c.h.b16 %v21
  %v90 = vpack.c.b16 %v76, %v74
  %v91 = vpack.c.b16 %v77, %v75
  %v92 = vpack.c.b16 %v80, %v78
  %v93 = vpack.c.b16 %v81, %v79
  %v94 = vpack.c.b16 %v84, %v82
  %v95 = vpack.c.b16 %v85, %v83
  %v96 = vpack.c.b16 %v88, %v86
  %v97 = vpack.c.b16 %v89, %v87
  %v138 = vunpack.c.l.b16 %v22
  %v139 = vunpack.c.h.b16 %v22
  %v140 = vunpack.c.l.b16 %v23
  %v141 = vunpack.c.h.b16 %v23
  %v142 = vunpack.c.l.b16 %v24
  %v143 = vunpack.c.h.b16 %v24
  %v144 = vunpack.c.l.b16 %v25
  %v145 = vunpack.c.h.b16 %v25
  %v146 = vunpack.c.l.b16 %v26
  %v147 = vunpack.c.h.b16 %v26
  %v148 = vunpack.c.l.b16 %v27
  %v149 = vunpack.c.h.b16 %v27
  %v150 = vunpack.c.l.b16 %v28
  %v151 = vunpack.c.h.b16 %v28
  %v152 = vunpack.c.l.b16 %v29
  %v153 = vunpack.c.h.b16 %v29
  %v154 = vunpack.c.l.b16 %v30
  %v155 = vunpack.c.h.b16 %v30
  %v156 = vunpack.c.l.b16 %v31
  %v157 = vunpack.c.h.b16 %v31
  %v158 = vunpack.c.l.b16 %v32
  %v159 = vunpack.c.h.b16 %v32
  %v160 = vunpack.c.l.b16 %v33
  %v161 = vunpack.c.h.b16 %v33
  %v162 = vunpack.c.l.b16 %v34
  %v163 = vunpack.c.h.b16 %v34
  %v164 = vunpack.c.l.b16 %v35
  %v165 = vunpack.c.h.b16 %v35
  %v166 = vunpack.c.l.b16 %v36
  %v167 = vunpack.c.h.b16 %v36
  %v168 = vunpack.c.l.b16 %v37
  %v169 = vunpack.c.h.b16 %v37
  %v170 = vunpack.c.l.b16 %v38
  %v171 = vunpack.c.h.b16 %v38
  %v172 = vunpack.c.l.b16 %v39
  %v173 = vunpack.c.h.b16 %v39
  %v174 = vunpack.c.l.b16 %v40
  %v175 = vunpack.c.h.b16 %v40
  %v176 = vunpack.c.l.b16 %v41
  %v177 = vunpack.c.h.b16 %v41
  %v178 = vunpack.c.l.b16 %v42
  %v179 = vunpack.c.h.b16 %v42
  %v180 = vunpack.c.l.b16 %v43
  %v181 = vunpack.c.h.b16 %v43
  %v182 = vunpack.c.l.b16 %v44
  %v183 = vunpack.c.h.b16 %v44
  %v184 = vunpack.c.l.b16 %v45
  %v185 = vunpack.c.h.b16 %v45
  %v186 = vunpack.c.l.b16 %v46
  %v187 = vunpack.c.h.b16 %v46
  %v188 = vunpack.c.l.b16 %v47
  %v189 = vunpack.c.h.b16 %v47
  %v190 = vunpack.c.l.b16 %v48
  %v191 = vunpack.c.h.b16 %v48
  %v192 = vunpack.c.l.b16 %v49
  %v193 = vunpack.c.h.b16 %v49
  %v194 = vunpack.c.l.b16 %v50
  %v195 = vunpack.c.h.b16 %v50
  %v196 = vunpack.c.l.b16 %v51
  %v197 = vunpack.c.h.b16 %v51
  %v198 = vunpack.c.l.b16 %v52
  %v199 = vunpack.c.h.b16 %v52
  %v200 = vunpack.c.l.b16 %v53
  %v201 = vunpack.c.h.b16 %v53
  %v202 = vpack.c.b16 %v140, %v138
  %v203 = vpack.c.b16 %v141, %v139
  %v204 = vpack.c.b16 %v144, %v142
  %v205 = vpack.c.b16 %v145, %v143
  %v206 = vpack.c.b16 %v148, %v146
  %v207 = vpack.c.b16 %v149, %v147
  %v208 = vpack.c.b16 %v152, %v150
  %v209 = vpack.c.b16 %v153, %v151
  %v210 = vpack.c.b16 %v156, %v154
  %v211 = vpack.c.b16 %v157, %v155
  %v212 = vpack.c.b16 %v160, %v158
  %v213 = vpack.c.b16 %v161, %v159
  %v214 = vpack.c.b16 %v164, %v162
  %v215 = vpack.c.b16 %v165, %v163
  %v216 = vpack.c.b16 %v168, %v166
  %v217 = vpack.c.b16 %v169, %v167
  %v218 = vpack.c.b16 %v172, %v170
  %v219 = vpack.c.b16 %v173, %v171
  %v220 = vpack.c.b16 %v176, %v174
  %v221 = vpack.c.b16 %v177, %v175
  %v222 = vpack.c.b16 %v180, %v178
  %v223 = vpack.c.b16 %v181, %v179
  %v224 = vpack.c.b16 %v184, %v182
  %v225 = vpack.c.b16 %v185, %v183
  %v226 = vpack.c.b16 %v188, %v186
  %v227 = vpack.c.b16 %v189, %v187
  %v228 = vpack.c.b16 %v192, %v190
  %v229 = vpack.c.b16 %v193, %v191
  %v230 = vpack.c.b16 %v196, %v194
  %v231 = vpack.c.b16 %v197, %v195
  %v232 = vpack.c.b16 %v200, %v198
  %v233 = vpack.c.b16 %v201, %v199
  %266 = vmatprep.subr.bf16.mxu0 %v217
  %267 = vmatpush1.bf16.msra.mxu0 %v216
  %268 = vmatprep.subr.bf16.mxu0 %v215
  %269 = vmatpush1.bf16.msra.mxu0 %v214
  %270 = vmatprep.subr.bf16.mxu0 %v213
  %271 = vmatpush1.bf16.msra.mxu0 %v212
  %272 = vmatprep.subr.bf16.mxu0 %v211
  %273 = vmatpush1.bf16.msra.mxu0 %v210
  %274 = vmatprep.subr.bf16.mxu0 %v209
  %275 = vmatpush1.bf16.msra.mxu0 %v208
  %276 = vmatprep.subr.bf16.mxu0 %v207
  %277 = vmatpush1.bf16.msra.mxu0 %v206
  %278 = vmatprep.subr.bf16.mxu0 %v205
  %279 = vmatpush1.bf16.msra.mxu0 %v204
  %280 = vmatprep.subr.bf16.mxu0 %v203
  %281 = vmatpush1.bf16.msra.mxu0 %v202
  %282 = vmatprep.subr.bf16.mxu0 %v233
  %283 = vmatpush2.bf16.msra.mxu0 %v232
  %284 = vmatprep.subr.bf16.mxu0 %v231
  %285 = vmatpush2.bf16.msra.mxu0 %v230
  %286 = vmatprep.subr.bf16.mxu0 %v229
  %287 = vmatpush2.bf16.msra.mxu0 %v228
  %288 = vmatprep.subr.bf16.mxu0 %v227
  %289 = vmatpush2.bf16.msra.mxu0 %v226
  %290 = vmatprep.subr.bf16.mxu0 %v225
  %291 = vmatpush2.bf16.msra.mxu0 %v224
  %292 = vmatprep.subr.bf16.mxu0 %v223
  %293 = vmatpush2.bf16.msra.mxu0 %v222
  %294 = vmatprep.subr.bf16.mxu0 %v221
  %295 = vmatpush2.bf16.msra.mxu0 %v220
  %296 = vmatprep.subr.bf16.mxu0 %v219
  %297 = vmatpush2.bf16.msra.mxu0 %v218
  %298 = vmatprep.mubr.bf16.mxu0 %v91
  %299 = vmatmul.mubr.bf16.gmra.mxu0 %v90
  %v300 = vpop.f32.mrf.mxu0
  %v301 = vadd.f32 %v59, %v300
  %v302 = vpop.f32.mrf.mxu0
  %v303 = vadd.f32 %v63, %v302
  %v304 = vpop.f32.mrf.mxu0
  %v305 = vadd.f32 %v59, %v304
  %v306 = vpop.f32.mrf.mxu0
  %v307 = vadd.f32 %v63, %v306
  %308 = vmatprep.mubr.bf16.mxu0 %v93
  %309 = vmatmul.mubr.bf16.gmra.mxu0 %v92
  %v310 = vpop.f32.mrf.mxu0
  %v311 = vadd.f32 %v59, %v310
  %v312 = vpop.f32.mrf.mxu0
  %v313 = vadd.f32 %v63, %v312
  %v314 = vpop.f32.mrf.mxu0
  %v315 = vadd.f32 %v59, %v314
  %v316 = vpop.f32.mrf.mxu0
  %v317 = vadd.f32 %v63, %v316
  %318 = vmatprep.mubr.bf16.mxu0 %v95
  %319 = vmatmul.mubr.bf16.gmra.mxu0 %v94
  %v320 = vpop.f32.mrf.mxu0
  %v321 = vadd.f32 %v59, %v320
  %v322 = vpop.f32.mrf.mxu0
  %v323 = vadd.f32 %v63, %v322
  %v324 = vpop.f32.mrf.mxu0
  %v325 = vadd.f32 %v59, %v324
  %v326 = vpop.f32.mrf.mxu0
  %v327 = vadd.f32 %v63, %v326
  %328 = vmatprep.mubr.bf16.mxu0 %v97
  %329 = vmatmul.mubr.bf16.gmra.mxu0 %v96
  %v330 = vpop.f32.mrf.mxu0
  %v331 = vadd.f32 %v59, %v330
  %v332 = vpop.f32.mrf.mxu0
  %v333 = vadd.f32 %v63, %v332
  %v334 = vpop.f32.mrf.mxu0
  %v335 = vadd.f32 %v59, %v334
  %v336 = vpop.f32.mrf.mxu0
  %v337 = vadd.f32 %v63, %v336
  %338 = vdwg.mxu0
  %v339 = vmax.f32 %v301, 0.0
  %v340 = vmax.f32 %v303, 0.0
  %v341 = vmax.f32 %v305, 0.0
  %v342 = vmax.f32 %v307, 0.0
  %v343 = vmax.f32 %v311, 0.0
  %v344 = vmax.f32 %v313, 0.0
  %v345 = vmax.f32 %v315, 0.0
  %v346 = vmax.f32 %v317, 0.0
  %v347 = vmax.f32 %v321, 0.0
  %v348 = vmax.f32 %v323, 0.0
  %v349 = vmax.f32 %v325, 0.0
  %v350 = vmax.f32 %v327, 0.0
  %v351 = vmax.f32 %v331, 0.0
  %v352 = vmax.f32 %v333, 0.0
  %v353 = vmax.f32 %v335, 0.0
  %v354 = vmax.f32 %v337, 0.0
  %v355 = vpack.c.bf16 %v341, %v339
  %v356 = vpack.c.bf16 %v342, %v340
  %v357 = vpack.c.bf16 %v345, %v343
  %v358 = vpack.c.bf16 %v346, %v344
  %v359 = vpack.c.bf16 %v349, %v347
  %v360 = vpack.c.bf16 %v350, %v348
  %v361 = vpack.c.bf16 %v353, %v351
  %v362 = vpack.c.bf16 %v354, %v352
  %v371 = vunpack.c.l.b16 %v355
  %v372 = vunpack.c.l.b16 %v356
  %v373 = vunpack.c.h.b16 %v355
  %v374 = vunpack.c.h.b16 %v356
  %v375 = vunpack.c.l.b16 %v357
  %v376 = vunpack.c.l.b16 %v358
  %v377 = vunpack.c.h.b16 %v357
  %v378 = vunpack.c.h.b16 %v358
  %v379 = vunpack.c.l.b16 %v359
  %v380 = vunpack.c.l.b16 %v360
  %v381 = vunpack.c.h.b16 %v359
  %v382 = vunpack.c.h.b16 %v360
  %v383 = vunpack.c.l.b16 %v361
  %v384 = vunpack.c.l.b16 %v362
  %v385 = vunpack.c.h.b16 %v361
  %v386 = vunpack.c.h.b16 %v362
  %v387 = vpack.c.b16 %v372, %v371
  %v388 = vpack.c.b16 %v374, %v373
  %v389 = vpack.c.b16 %v376, %v375
  %v390 = vpack.c.b16 %v378, %v377
  %v391 = vpack.c.b16 %v380, %v379
  %v392 = vpack.c.b16 %v382, %v381
  %v393 = vpack.c.b16 %v384, %v383
  %v394 = vpack.c.b16 %v386, %v385
  %403 = vst [vmem:[%s3] sm:$0xff] %v387
  %404 = vst [vmem:[%s3 + $0x8] sm:$0xff] %v388
  %405 = vst [vmem:[%s3 + $0x10] sm:$0xff] %v389
  %406 = vst [vmem:[%s3 + $0x18] sm:$0xff] %v390
  %407 = vst [vmem:[%s3 + $0x20] sm:$0xff] %v391
  %408 = vst [vmem:[%s3 + $0x28] sm:$0xff] %v392
  %409 = vst [vmem:[%s3 + $0x30] sm:$0xff] %v393
  %410 = vst [vmem:[%s3 + $0x38] sm:$0xff] %v394
  // Predicated region
  $region14: #{beta_vae_forward.20} parent=0 // pred_check
    _
  $region15: #{beta_vae_forward.20} parent=0 // pred_check_branch
    %412 = sbr.rel (0) target = $region17
  $region16: #{beta_vae_forward.20} parent=0 // pred_region
    _
  $region17: #{beta_vae_forward.20} parent=0 // pred_fallthru
    _
  // Predicated region
  $region18: #{beta_vae_forward.20} parent=0 // pred_check
    _
  $region19: #{beta_vae_forward.20} parent=0 // pred_check_branch
    %414 = sbr.rel (0) target = $region21
  $region20: #{beta_vae_forward.20} parent=0 // pred_region
    _
  $region21: #{beta_vae_forward.20} parent=0 // pred_fallthru
    _

// kernel: tile.26
$region0: #{tile.26}
  #allocation0 [shape = 's32[1]{0}', space=sflag, size = 0x4, scoped, tag = 'scoped memory for tile.26']
  %s0 = inlined_call_operand.vmem [shape: f32[32], index: 0, kind: input, shape index: {}]
  %s1 = inlined_call_operand.vmem [shape: f32[4,32], index: 1, kind: output, shape index: {}]
  // Predicated region
  $region2: #{tile.26} parent=0 // pred_check
    _
  $region3: #{tile.26} parent=0 // pred_check_branch
    %3 = sbr.rel (0) target = $region5
  $region4: #{tile.26} parent=0 // pred_region
    _
  $region5: #{tile.26} parent=0 // pred_fallthru
    _
  %v4 = vld [vmem:[%s0] ss:$0 sm:$0xff]
  %5 = vst [vmem:[%s1] sm:$0xf] %v4

// kernel: tile.27
$region0: #{tile.27}
  %s0 = inlined_call_operand.vmem [shape: f32[4,32], index: 0, kind: input, shape index: {}]
  %s1 = inlined_call_operand.vmem [shape: f32[1,128], index: 1, kind: output, shape index: {}]
  $region1: #{tile.27} parent=0
    #allocation0 [shape = 'u8[4096]{0}', space=vmem, size = 0x1000, scoped, tag = 'scoped mem for output reshape']
    #allocation1 [shape = 'u8[4096]{0}', space=vmem, size = 0x1000, scoped, tag = 'scoped mem for input reshape']
    %s3 = sshll.u32 1, 4
    %s4 = ssub.s32 %s3, 1
    %v5 = vld [vmem:[%s0] sm:%s4]
    %6 = vst [vmem:[#allocation1] sm:%s4] %v5
    %v7 = vld [vmem:[#allocation1] sm:$0x1]
    %vm8 = vcmask 261120
    %9 = vst.msk [vmem:[#allocation0] sm:$0x1] %vm8, %v7
    %s10 = scalar_lea.vmem [#allocation1], 3
    %v11 = vld [vmem:[%s10] sm:$0x1]
    %12 = vrot.lane.b32.xlu0 %v11, 96
    %v13 = vpop.permute.xlu0 %12
    %vm14 = vcmask 1048320
    %15 = vst.msk [vmem:[#allocation0] sm:$0x1] %vm14, %v13
    %s16 = scalar_lea.vmem [#allocation1], 2
    %v17 = vld [vmem:[%s16] sm:$0x1]
    %18 = vrot.lane.b32.xlu0 %v17, 64
    %v19 = vpop.permute.xlu0 %18
    %vm20 = vcmask 785920
    %21 = vst.msk [vmem:[#allocation0] sm:$0x1] %vm20, %v19
    %s22 = scalar_lea.vmem [#allocation1], 1
    %v23 = vld [vmem:[%s22] sm:$0x1]
    %24 = vrot.lane.b32.xlu0 %v23, 32
    %v25 = vpop.permute.xlu0 %24
    %vm26 = vcmask 523520
    %27 = vst.msk [vmem:[#allocation0] sm:$0x1] %vm26, %v25
    %s29 = sshll.u32 1, 1
    %s30 = ssub.s32 %s29, 1
    %v32 = vld [vmem:[#allocation0] sm:%s30]
    %s33 = sshll.u32 1, 1
    %s34 = ssub.s32 %s33, 1
    %35 = vst [vmem:[%s1] sm:%s34] %v32

// kernel: beta_vae_forward.21
$region0: #{beta_vae_forward.21}
  #allocation0 [shape = 'u32[]', space=smem, size = 0x4, offset = 0x4, fixed_abs, tag = 'smem constant byte address 0x4 - core index']
  #allocation1 [shape = 'u32[144,128]{1,0:T(1,128)}', space=vmem, size = 0x12000, scoped, tag = 'internal scratch']
  %s0 = inlined_call_operand.vmem [shape: bf16[192,256], index: 0, kind: input, shape index: {}]
  %s1 = inlined_call_operand.vmem [shape: bf16[256,128], index: 1, kind: input, shape index: {}]
  %s2 = inlined_call_operand.vmem [shape: f32[1,128], index: 2, kind: input, shape index: {}]
  %s3 = inlined_call_operand.vmem [shape: bf16[192,128], index: 3, kind: output, shape index: {}]
  %s4 = sld [smem:[#allocation0]]
  $region45: #{beta_vae_forward.21} parent=0
    _
  %s6 = ssub.s32 1, %s4
  %s7 = scalar_select 0, %s6, %s4
  loop: start=0, step=1, limit=4
  $region2: #{beta_vae_forward.21} parent=0 // loop_pre_header
    _
  $region3: #{beta_vae_forward.21} parent=0 // loop_header
    %s9 = sphi 0, %s13
    %p10 = scmp.ge.s32.totalorder %s9, 4
    %s19 = sphi 0, %s21
    %s22 = sphi 0, %s19
    %s23 = sphi 0, %s22
    %s39 = sphi 0, %s23
    %s43 = sphi 0, %s43
    %s45 = sphi 0, %s43
    %s46 = sphi 0, %s45
    %s60 = sphi 0, %s46
    %s64 = sphi 0, %s64
    %s66 = sphi 0, %s64
    %s67 = sphi 0, %s66
    %s81 = sphi 0, %s67
    %s87 = sphi 0, %s89
    %s90 = sphi 0, %s87
    %s91 = sphi 0, %s90
    %s107 = sphi 0, %s91
  $region4: #{beta_vae_forward.21} parent=0 // loop_header_branch
    %12 = sbr.rel (%p10) target = $region8
  $region5: #{beta_vae_forward.21} parent=0 // loop_body
    %s14 = ssub.s32 %s9, 1
    %s15 = ssub.s32 %s9, 2
    %s16 = sadd.s32 %s9, 1
    %s17 = ssub.s32 %s9, %s16
    %p18 = scmp.eq.s32.totalorder %s17, 0
    %s20 = sadd.s32 %s19, 1
    %s21 = scalar_select %p18, %s19, %s20
    %p24 = pneg %p18
    %p25 = scmp.eq.s32.totalorder %s9, 1
    %p26 = por %p24, %p25
    %p27 = scmp.ne.s32.totalorder %s19, %s22
    %p28 = scmp.eq.s32.totalorder %s9, 0
    %p29 = por %p27, %p28
    %p30 = scmp.ne.s32.totalorder %s19, %s22
    %p31 = scmp.eq.s32.totalorder %s14, 1
    %p32 = por %p30, %p31
    %p33 = scmp.ne.s32.totalorder %s22, %s23
    %p34 = scmp.eq.s32.totalorder %s14, 0
    %p35 = por %p33, %p34
    %p36 = scmp.ne.s32.totalorder %s22, %s23
    %p37 = scmp.eq.s32.totalorder %s15, 1
    %p38 = por %p36, %p37
    %p40 = scmp.ne.s32.totalorder %s23, %s39
    %p41 = scmp.eq.s32.totalorder %s15, 0
    %p42 = por %p40, %p41
    %s44 = sadd.s32 %s43, 1
    %p47 = scmp.eq.s32.totalorder %s9, 1
    %p48 = scmp.ne.s32.totalorder %s43, %s45
    %p49 = scmp.eq.s32.totalorder %s9, 0
    %p50 = por %p48, %p49
    %p51 = scmp.ne.s32.totalorder %s43, %s45
    %p52 = scmp.eq.s32.totalorder %s14, 1
    %p53 = por %p51, %p52
    %p54 = scmp.ne.s32.totalorder %s45, %s46
    %p55 = scmp.eq.s32.totalorder %s14, 0
    %p56 = por %p54, %p55
    %p57 = scmp.ne.s32.totalorder %s45, %s46
    %p58 = scmp.eq.s32.totalorder %s15, 1
    %p59 = por %p57, %p58
    %p61 = scmp.ne.s32.totalorder %s46, %s60
    %p62 = scmp.eq.s32.totalorder %s15, 0
    %p63 = por %p61, %p62
    %s65 = sadd.s32 %s64, 1
    %p68 = scmp.eq.s32.totalorder %s9, 1
    %p69 = scmp.ne.s32.totalorder %s64, %s66
    %p70 = scmp.eq.s32.totalorder %s9, 0
    %p71 = por %p69, %p70
    %p72 = scmp.ne.s32.totalorder %s64, %s66
    %p73 = scmp.eq.s32.totalorder %s14, 1
    %p74 = por %p72, %p73
    %p75 = scmp.ne.s32.totalorder %s66, %s67
    %p76 = scmp.eq.s32.totalorder %s14, 0
    %p77 = por %p75, %p76
    %p78 = scmp.ne.s32.totalorder %s66, %s67
    %p79 = scmp.eq.s32.totalorder %s15, 1
    %p80 = por %p78, %p79
    %p82 = scmp.ne.s32.totalorder %s67, %s81
    %p83 = scmp.eq.s32.totalorder %s15, 0
    %p84 = por %p82, %p83
    %s85 = ssub.s32 %s9, %s16
    %p86 = scmp.eq.s32.totalorder %s85, 0
    %s88 = sadd.s32 %s87, 1
    %s89 = scalar_select %p86, %s87, %s88
    %p92 = pneg %p86
    %p93 = scmp.eq.s32.totalorder %s9, 1
    %p94 = por %p92, %p93
    %p95 = scmp.ne.s32.totalorder %s87, %s90
    %p96 = scmp.eq.s32.totalorder %s9, 0
    %p97 = por %p95, %p96
    %p98 = scmp.ne.s32.totalorder %s87, %s90
    %p99 = scmp.eq.s32.totalorder %s14, 1
    %p100 = por %p98, %p99
    %p101 = scmp.ne.s32.totalorder %s90, %s91
    %p102 = scmp.eq.s32.totalorder %s14, 0
    %p103 = por %p101, %p102
    %p104 = scmp.ne.s32.totalorder %s90, %s91
    %p105 = scmp.eq.s32.totalorder %s15, 1
    %p106 = por %p104, %p105
    %p108 = scmp.ne.s32.totalorder %s91, %s107
    %p109 = scmp.eq.s32.totalorder %s15, 0
    %p110 = por %p108, %p109
    %p111 = scmp.le.s32.totalorder 1, %s9
    %p112 = scmp.lt.s32.totalorder %s9, 3
    %p113 = pnand %p111, %p112
    %p114 = pneg %p113
    // Predicated region
    $region9: #{beta_vae_forward.21} parent=5 // pred_check
      _
    $region10: #{beta_vae_forward.21} parent=5 // pred_check_branch
      %116 = sbr.rel (%p113) target = $region12
    $region11: #{beta_vae_forward.21} parent=5 // pred_region
      %s117 = ssub.s32 %s9, 1
      // Predicated region
      $region13: #{beta_vae_forward.21} parent=11 // pred_check
        %p118 = pneg %p56
      $region14: #{beta_vae_forward.21} parent=11 // pred_check_branch
        %120 = sbr.rel (%p118) target = $region16
      $region15: #{beta_vae_forward.21} parent=11 // pred_region
        _
      $region16: #{beta_vae_forward.21} parent=11 // pred_fallthru
        _
      // Predicated region
      $region17: #{beta_vae_forward.21} parent=11 // pred_check
        %p121 = pneg %p77
      $region18: #{beta_vae_forward.21} parent=11 // pred_check_branch
        %123 = sbr.rel (%p121) target = $region20
      $region19: #{beta_vae_forward.21} parent=11 // pred_region
        _
      $region20: #{beta_vae_forward.21} parent=11 // pred_fallthru
        _
    $region12: #{beta_vae_forward.21} parent=5 // pred_fallthru
      _
    %p124 = scmp.lt.s32.totalorder %s9, 2
    // Predicated region
    $region21: #{beta_vae_forward.21} parent=5 // pred_check
      %p125 = pneg %p124
    $region22: #{beta_vae_forward.21} parent=5 // pred_check_branch
      %127 = sbr.rel (%p125) target = $region24
    $region23: #{beta_vae_forward.21} parent=5 // pred_region
      // Predicated region
      $region25: #{beta_vae_forward.21} parent=23 // pred_check
        %p128 = pneg %p29
      $region26: #{beta_vae_forward.21} parent=23 // pred_check_branch
        %130 = sbr.rel (%p128) target = $region28
      $region27: #{beta_vae_forward.21} parent=23 // pred_region
        %s131 = smul.u32 12, %s9
        %p132 = scmp.lt.s32.totalorder %s131, 23
        %s133 = scalar_select %p132, %s131, 23
        %s134 = smul.addr %s133, 2
        %s135 = smul.addr %s134, 4
        %s136 = scalar_lea.vmem %s0, %s135
        %s137 = smul.u32 12, %s9
      $region28: #{beta_vae_forward.21} parent=23 // pred_fallthru
        _
    $region24: #{beta_vae_forward.21} parent=5 // pred_fallthru
      _
    %p138 = scmp.le.s32.totalorder 1, %s9
    %p139 = scmp.lt.s32.totalorder %s9, 3
    %p140 = pnand %p138, %p139
    %p141 = pneg %p140
    // Predicated region
    $region29: #{beta_vae_forward.21} parent=5 // pred_check
      _
    $region30: #{beta_vae_forward.21} parent=5 // pred_check_branch
      %143 = sbr.rel (%p140) target = $region32
    $region31: #{beta_vae_forward.21} parent=5 // pred_region
      %s144 = ssub.s32 %s9, 1
      %s145 = smul.u32 12, %s14
      %p146 = scmp.lt.s32.totalorder %s145, 23
      %s147 = scalar_select %p146, %s145, 23
      %s148 = smul.addr %s147, 2
      %s149 = smul.addr %s148, 4
      %s150 = scalar_lea.vmem %s0, %s149
      %p151 = pneg %p35
      %p152 = pneg %p32
      %p153 = pneg %p56
      %p154 = pneg %p53
      %p155 = pneg %p77
      %p156 = pneg %p74
      %p157 = pneg %p103
      %p158 = pneg %p100
      %s159 = smul.u32 12, %s14
      %p160 = scmp.lt.s32.totalorder %s159, 23
      %s161 = scalar_select %p160, %s159, 23
      %s162 = smul.addr %s161, 4
      %s163 = scalar_lea.vmem %s3, %s162
      %s164 = smul.u32 12, %s14
      %p165 = scmp.lt.s32.totalorder %s164, 23
      %s166 = scalar_select %p165, %s164, 23
      %s167 = smul.addr %s166, 2
      %s168 = smul.addr %s167, 4
      %s169 = scalar_lea.vmem %s0, %s168
      %s170 = smul.u32 12, %s14
      %s171 = smul.u32 12, %s14
      %p172 = scmp.lt.s32.totalorder %s171, 23
      %s173 = scalar_select %p172, %s171, 23
      %s174 = smul.addr %s173, 4
      %s175 = scalar_lea.vmem %s3, %s174
      %s176 = smul.u32 12, %s14
      %v178 = vld [vmem:[%s169] sm:$0xff]
      %v179 = vld [vmem:[%s169 + $0x8] sm:$0xff]
      %v180 = vld [vmem:[%s169 + $0x10] sm:$0xff]
      %v181 = vld [vmem:[%s169 + $0x18] sm:$0xff]
      %v182 = vld [vmem:[%s169 + $0x20] sm:$0xff]
      %v183 = vld [vmem:[%s169 + $0x28] sm:$0xff]
      %v184 = vld [vmem:[%s169 + $0x30] sm:$0xff]
      %v185 = vld [vmem:[%s169 + $0x38] sm:$0xff]
      %v186 = vld [vmem:[%s169 + $0x40] sm:$0xff]
      %v187 = vld [vmem:[%s169 + $0x48] sm:$0xff]
      %v188 = vld [vmem:[%s169 + $0x50] sm:$0xff]
      %v189 = vld [vmem:[%s169 + $0x58] sm:$0xff]
      %v190 = vld [vmem:[%s1] sm:$0xf]
      %v191 = vld [vmem:[%s1 + $0x4] sm:$0xf]
      %v192 = vld [vmem:[%s1 + $0x8] sm:$0xf]
      %v193 = vld [vmem:[%s1 + $0xc] sm:$0xf]
      %v194 = vld [vmem:[%s1 + $0x10] sm:$0xf]
      %v195 = vld [vmem:[%s1 + $0x14] sm:$0xf]
      %v196 = vld [vmem:[%s1 + $0x18] sm:$0xf]
      %v197 = vld [vmem:[%s1 + $0x1c] sm:$0xf]
      %v198 = vld [vmem:[%s1 + $0x20] sm:$0xf]
      %v199 = vld [vmem:[%s1 + $0x24] sm:$0xf]
      %v200 = vld [vmem:[%s1 + $0x28] sm:$0xf]
      %v201 = vld [vmem:[%s1 + $0x2c] sm:$0xf]
      %v202 = vld [vmem:[%s1 + $0x30] sm:$0xf]
      %v203 = vld [vmem:[%s1 + $0x34] sm:$0xf]
      %v204 = vld [vmem:[%s1 + $0x38] sm:$0xf]
      %v205 = vld [vmem:[%s1 + $0x3c] sm:$0xf]
      %v206 = vld [vmem:[%s1 + $0x40] sm:$0xf]
      %v207 = vld [vmem:[%s1 + $0x44] sm:$0xf]
      %v208 = vld [vmem:[%s1 + $0x48] sm:$0xf]
      %v209 = vld [vmem:[%s1 + $0x4c] sm:$0xf]
      %v210 = vld [vmem:[%s1 + $0x50] sm:$0xf]
      %v211 = vld [vmem:[%s1 + $0x54] sm:$0xf]
      %v212 = vld [vmem:[%s1 + $0x58] sm:$0xf]
      %v213 = vld [vmem:[%s1 + $0x5c] sm:$0xf]
      %v214 = vld [vmem:[%s1 + $0x60] sm:$0xf]
      %v215 = vld [vmem:[%s1 + $0x64] sm:$0xf]
      %v216 = vld [vmem:[%s1 + $0x68] sm:$0xf]
      %v217 = vld [vmem:[%s1 + $0x6c] sm:$0xf]
      %v218 = vld [vmem:[%s1 + $0x70] sm:$0xf]
      %v219 = vld [vmem:[%s1 + $0x74] sm:$0xf]
      %v220 = vld [vmem:[%s1 + $0x78] sm:$0xf]
      %v221 = vld [vmem:[%s1 + $0x7c] sm:$0xf]
      %v222 = vld [vmem:[%s2] sm:$0x1]
      %v224 = vlaneseq
      %v225 = vshrl.u32 %v224, 7
      %v226 = vsub.s32 0, %v225
      %v227 = vrot.slane %v222, %v226
      %v241 = vunpack.c.l.b16 %v178
      %v242 = vunpack.c.h.b16 %v178
      %v243 = vunpack.c.l.b16 %v179
      %v244 = vunpack.c.h.b16 %v179
      %v245 = vunpack.c.l.b16 %v180
      %v246 = vunpack.c.h.b16 %v180
      %v247 = vunpack.c.l.b16 %v181
      %v248 = vunpack.c.h.b16 %v181
      %v249 = vunpack.c.l.b16 %v182
      %v250 = vunpack.c.h.b16 %v182
      %v251 = vunpack.c.l.b16 %v183
      %v252 = vunpack.c.h.b16 %v183
      %v253 = vunpack.c.l.b16 %v184
      %v254 = vunpack.c.h.b16 %v184
      %v255 = vunpack.c.l.b16 %v185
      %v256 = vunpack.c.h.b16 %v185
      %v257 = vunpack.c.l.b16 %v186
      %v258 = vunpack.c.h.b16 %v186
      %v259 = vunpack.c.l.b16 %v187
      %v260 = vunpack.c.h.b16 %v187
      %v261 = vunpack.c.l.b16 %v188
      %v262 = vunpack.c.h.b16 %v188
      %v263 = vunpack.c.l.b16 %v189
      %v264 = vunpack.c.h.b16 %v189
      %v265 = vpack.c.b16 %v243, %v241
      %v266 = vpack.c.b16 %v244, %v242
      %v267 = vpack.c.b16 %v247, %v245
      %v268 = vpack.c.b16 %v248, %v246
      %v269 = vpack.c.b16 %v251, %v249
      %v270 = vpack.c.b16 %v252, %v250
      %v271 = vpack.c.b16 %v255, %v253
      %v272 = vpack.c.b16 %v256, %v254
      %v273 = vpack.c.b16 %v259, %v257
      %v274 = vpack.c.b16 %v260, %v258
      %v275 = vpack.c.b16 %v263, %v261
      %v276 = vpack.c.b16 %v264, %v262
      %v321 = vunpack.c.l.b16 %v190
      %v322 = vunpack.c.l.b16 %v191
      %v323 = vunpack.c.l.b16 %v192
      %v324 = vunpack.c.l.b16 %v193
      %v325 = vunpack.c.l.b16 %v194
      %v326 = vunpack.c.l.b16 %v195
      %v327 = vunpack.c.l.b16 %v196
      %v328 = vunpack.c.l.b16 %v197
      %v329 = vunpack.c.l.b16 %v198
      %v330 = vunpack.c.l.b16 %v199
      %v331 = vunpack.c.l.b16 %v200
      %v332 = vunpack.c.l.b16 %v201
      %v333 = vunpack.c.l.b16 %v202
      %v334 = vunpack.c.l.b16 %v203
      %v335 = vunpack.c.l.b16 %v204
      %v336 = vunpack.c.l.b16 %v205
      %v337 = vunpack.c.l.b16 %v206
      %v338 = vunpack.c.l.b16 %v207
      %v339 = vunpack.c.l.b16 %v208
      %v340 = vunpack.c.l.b16 %v209
      %v341 = vunpack.c.l.b16 %v210
      %v342 = vunpack.c.l.b16 %v211
      %v343 = vunpack.c.l.b16 %v212
      %v344 = vunpack.c.l.b16 %v213
      %v345 = vunpack.c.l.b16 %v214
      %v346 = vunpack.c.l.b16 %v215
      %v347 = vunpack.c.l.b16 %v216
      %v348 = vunpack.c.l.b16 %v217
      %v349 = vunpack.c.l.b16 %v218
      %v350 = vunpack.c.l.b16 %v219
      %v351 = vunpack.c.l.b16 %v220
      %v352 = vunpack.c.l.b16 %v221
      %v353 = vpack.c.b16 %v322, %v321
      %v354 = vpack.c.b16 %v324, %v323
      %v355 = vpack.c.b16 %v326, %v325
      %v356 = vpack.c.b16 %v328, %v327
      %v357 = vpack.c.b16 %v330, %v329
      %v358 = vpack.c.b16 %v332, %v331
      %v359 = vpack.c.b16 %v334, %v333
      %v360 = vpack.c.b16 %v336, %v335
      %v361 = vpack.c.b16 %v338, %v337
      %v362 = vpack.c.b16 %v340, %v339
      %v363 = vpack.c.b16 %v342, %v341
      %v364 = vpack.c.b16 %v344, %v343
      %v365 = vpack.c.b16 %v346, %v345
      %v366 = vpack.c.b16 %v348, %v347
      %v367 = vpack.c.b16 %v350, %v349
      %v368 = vpack.c.b16 %v352, %v351
      %385 = vmatprep.subr.bf16.mxu0 0
      %386 = vmatpush1.bf16.msra.mxu0 %v360
      %387 = vmatprep.subr.bf16.mxu0 0
      %388 = vmatpush1.bf16.msra.mxu0 %v359
      %389 = vmatprep.subr.bf16.mxu0 0
      %390 = vmatpush1.bf16.msra.mxu0 %v358
      %391 = vmatprep.subr.bf16.mxu0 0
      %392 = vmatpush1.bf16.msra.mxu0 %v357
      %393 = vmatprep.subr.bf16.mxu0 0
      %394 = vmatpush1.bf16.msra.mxu0 %v356
      %395 = vmatprep.subr.bf16.mxu0 0
      %396 = vmatpush1.bf16.msra.mxu0 %v355
      %397 = vmatprep.subr.bf16.mxu0 0
      %398 = vmatpush1.bf16.msra.mxu0 %v354
      %399 = vmatprep.subr.bf16.mxu0 0
      %400 = vmatpush1.bf16.msra.mxu0 %v353
      %401 = vmatprep.subr.bf16.mxu0 0
      %402 = vmatpush2.bf16.msra.mxu0 %v368
      %403 = vmatprep.subr.bf16.mxu0 0
      %404 = vmatpush2.bf16.msra.mxu0 %v367
      %405 = vmatprep.subr.bf16.mxu0 0
      %406 = vmatpush2.bf16.msra.mxu0 %v366
      %407 = vmatprep.subr.bf16.mxu0 0
      %408 = vmatpush2.bf16.msra.mxu0 %v365
      %409 = vmatprep.subr.bf16.mxu0 0
      %410 = vmatpush2.bf16.msra.mxu0 %v364
      %411 = vmatprep.subr.bf16.mxu0 0
      %412 = vmatpush2.bf16.msra.mxu0 %v363
      %413 = vmatprep.subr.bf16.mxu0 0
      %414 = vmatpush2.bf16.msra.mxu0 %v362
      %415 = vmatprep.subr.bf16.mxu0 0
      %416 = vmatpush2.bf16.msra.mxu0 %v361
      %417 = vmatprep.mubr.bf16.mxu0 %v266
      %418 = vmatmul.mubr.bf16.gmra.mxu0 %v265
      %v419 = vpop.f32.mrf.mxu0
      %v420 = vadd.f32 %v227, %v419
      %v421 = vpop.f32.mrf.mxu0
      %v422 = vpop.f32.mrf.mxu0
      %v423 = vadd.f32 %v227, %v422
      %v424 = vpop.f32.mrf.mxu0
      %425 = vmatprep.mubr.bf16.mxu0 %v268
      %426 = vmatmul.mubr.bf16.gmra.mxu0 %v267
      %v427 = vpop.f32.mrf.mxu0
      %v428 = vadd.f32 %v227, %v427
      %v429 = vpop.f32.mrf.mxu0
      %v430 = vpop.f32.mrf.mxu0
      %v431 = vadd.f32 %v227, %v430
      %v432 = vpop.f32.mrf.mxu0
      %433 = vmatprep.mubr.bf16.mxu0 %v270
      %434 = vmatmul.mubr.bf16.gmra.mxu0 %v269
      %v435 = vpop.f32.mrf.mxu0
      %v436 = vadd.f32 %v227, %v435
      %v437 = vpop.f32.mrf.mxu0
      %v438 = vpop.f32.mrf.mxu0
      %v439 = vadd.f32 %v227, %v438
      %v440 = vpop.f32.mrf.mxu0
      %441 = vmatprep.mubr.bf16.mxu0 %v272
      %442 = vmatmul.mubr.bf16.gmra.mxu0 %v271
      %v443 = vpop.f32.mrf.mxu0
      %v444 = vadd.f32 %v227, %v443
      %v445 = vpop.f32.mrf.mxu0
      %v446 = vpop.f32.mrf.mxu0
      %v447 = vadd.f32 %v227, %v446
      %v448 = vpop.f32.mrf.mxu0
      %449 = vmatprep.mubr.bf16.mxu0 %v274
      %450 = vmatmul.mubr.bf16.gmra.mxu0 %v273
      %v451 = vpop.f32.mrf.mxu0
      %v452 = vadd.f32 %v227, %v451
      %v453 = vpop.f32.mrf.mxu0
      %v454 = vpop.f32.mrf.mxu0
      %v455 = vadd.f32 %v227, %v454
      %v456 = vpop.f32.mrf.mxu0
      %457 = vmatprep.mubr.bf16.mxu0 %v276
      %458 = vmatmul.mubr.bf16.gmra.mxu0 %v275
      %v459 = vpop.f32.mrf.mxu0
      %v460 = vadd.f32 %v227, %v459
      %v461 = vpop.f32.mrf.mxu0
      %v462 = vpop.f32.mrf.mxu0
      %v463 = vadd.f32 %v227, %v462
      %v464 = vpop.f32.mrf.mxu0
      %465 = vdwg.mxu0
      %v466 = vmax.f32 %v420, 0.0
      %v467 = vmax.f32 %v423, 0.0
      %v468 = vmax.f32 %v428, 0.0
      %v469 = vmax.f32 %v431, 0.0
      %v470 = vmax.f32 %v436, 0.0
      %v471 = vmax.f32 %v439, 0.0
      %v472 = vmax.f32 %v444, 0.0
      %v473 = vmax.f32 %v447, 0.0
      %v474 = vmax.f32 %v452, 0.0
      %v475 = vmax.f32 %v455, 0.0
      %v476 = vmax.f32 %v460, 0.0
      %v477 = vmax.f32 %v463, 0.0
      %v478 = vpack.c.bf16 %v467, %v466
      %v479 = vpack.c.bf16 %v469, %v468
      %v480 = vpack.c.bf16 %v471, %v470
      %v481 = vpack.c.bf16 %v473, %v472
      %v482 = vpack.c.bf16 %v475, %v474
      %v483 = vpack.c.bf16 %v477, %v476
      %v490 = vunpack.c.l.b16 %v478
      %v491 = vunpack.c.h.b16 %v478
      %v492 = vunpack.c.l.b16 %v479
      %v493 = vunpack.c.h.b16 %v479
      %v494 = vunpack.c.l.b16 %v480
      %v495 = vunpack.c.h.b16 %v480
      %v496 = vunpack.c.l.b16 %v481
      %v497 = vunpack.c.h.b16 %v481
      %v498 = vunpack.c.l.b16 %v482
      %v499 = vunpack.c.h.b16 %v482
      %v500 = vunpack.c.l.b16 %v483
      %v501 = vunpack.c.h.b16 %v483
      %v502 = vpack.c.b16 %v490, %v490
      %v503 = vpack.c.b16 %v491, %v491
      %v504 = vpack.c.b16 %v492, %v492
      %v505 = vpack.c.b16 %v493, %v493
      %v506 = vpack.c.b16 %v494, %v494
      %v507 = vpack.c.b16 %v495, %v495
      %v508 = vpack.c.b16 %v496, %v496
      %v509 = vpack.c.b16 %v497, %v497
      %v510 = vpack.c.b16 %v498, %v498
      %v511 = vpack.c.b16 %v499, %v499
      %v512 = vpack.c.b16 %v500, %v500
      %v513 = vpack.c.b16 %v501, %v501
      %526 = vst [vmem:[%s175] sm:$0xf] %v502
      %527 = vst [vmem:[%s175 + $0x4] sm:$0xf] %v503
      %528 = vst [vmem:[%s175 + $0x8] sm:$0xf] %v504
      %529 = vst [vmem:[%s175 + $0xc] sm:$0xf] %v505
      %530 = vst [vmem:[%s175 + $0x10] sm:$0xf] %v506
      %531 = vst [vmem:[%s175 + $0x14] sm:$0xf] %v507
      %532 = vst [vmem:[%s175 + $0x18] sm:$0xf] %v508
      %533 = vst [vmem:[%s175 + $0x1c] sm:$0xf] %v509
      %534 = vst [vmem:[%s175 + $0x20] sm:$0xf] %v510
      %535 = vst [vmem:[%s175 + $0x24] sm:$0xf] %v511
      %536 = vst [vmem:[%s175 + $0x28] sm:$0xf] %v512
      %537 = vst [vmem:[%s175 + $0x2c] sm:$0xf] %v513
      %s538 = smul.u32 12, %s14
      %p539 = scmp.lt.s32.totalorder %s538, 23
      %s540 = scalar_select %p539, %s538, 23
      %s541 = smul.addr %s540, 4
      %s542 = scalar_lea.vmem %s3, %s541
      // Predicated region
      $region33: #{beta_vae_forward.21} parent=31 // pred_check
        %p543 = pneg %p100
      $region34: #{beta_vae_forward.21} parent=31 // pred_check_branch
        %545 = sbr.rel (%p543) target = $region36
      $region35: #{beta_vae_forward.21} parent=31 // pred_region
        %s546 = smul.u32 12, %s14
      $region36: #{beta_vae_forward.21} parent=31 // pred_fallthru
        _
    $region32: #{beta_vae_forward.21} parent=5 // pred_fallthru
      _
    %p547 = scmp.le.s32.totalorder 2, %s9
    // Predicated region
    $region37: #{beta_vae_forward.21} parent=5 // pred_check
      %p548 = pneg %p547
    $region38: #{beta_vae_forward.21} parent=5 // pred_check_branch
      %550 = sbr.rel (%p548) target = $region40
    $region39: #{beta_vae_forward.21} parent=5 // pred_region
      %s551 = ssub.s32 %s9, 2
      // Predicated region
      $region41: #{beta_vae_forward.21} parent=39 // pred_check
        %p552 = pneg %p106
      $region42: #{beta_vae_forward.21} parent=39 // pred_check_branch
        %554 = sbr.rel (%p552) target = $region44
      $region43: #{beta_vae_forward.21} parent=39 // pred_region
        %s555 = smul.u32 12, %s15
        %p556 = scmp.lt.s32.totalorder %s555, 23
        %s557 = scalar_select %p556, %s555, 23
        %s558 = smul.addr %s557, 4
        %s559 = scalar_lea.vmem %s3, %s558
      $region44: #{beta_vae_forward.21} parent=39 // pred_fallthru
        _
    $region40: #{beta_vae_forward.21} parent=5 // pred_fallthru
      _
  $region6: #{beta_vae_forward.21} parent=0 // loop_footer
    %s13 = sadd.s32 1, %s9
  $region7: #{beta_vae_forward.21} parent=0 // loop_footer_branch
    %8 = sbr.rel target = $region3
  $region8: #{beta_vae_forward.21} parent=0 // loop_exit
    _

// kernel: beta_vae_forward.22
$region0: #{beta_vae_forward.22}
  #allocation0 [shape = 'u32[]', space=smem, size = 0x4, offset = 0x4, fixed_abs, tag = 'smem constant byte address 0x4 - core index']
  #allocation1 [shape = 'u32[144,128]{1,0:T(1,128)}', space=vmem, size = 0x12000, scoped, tag = 'internal scratch']
  %s0 = inlined_call_operand.vmem [shape: bf16[608,128], index: 0, kind: input, shape index: {}]
  %s1 = inlined_call_operand.vmem [shape: bf16[128,128], index: 1, kind: input, shape index: {}]
  %s2 = inlined_call_operand.vmem [shape: f32[1,128], index: 2, kind: input, shape index: {}]
  %s3 = inlined_call_operand.vmem [shape: bf16[608,128], index: 3, kind: output, shape index: {}]
  %s4 = sld [smem:[#allocation0]]
  $region45: #{beta_vae_forward.22} parent=0
    _
  %s6 = ssub.s32 1, %s4
  %s7 = scalar_select 0, %s6, %s4
  loop: start=0, step=1, limit=4
  $region2: #{beta_vae_forward.22} parent=0 // loop_pre_header
    _
  $region3: #{beta_vae_forward.22} parent=0 // loop_header
    %s9 = sphi 0, %s13
    %p10 = scmp.ge.s32.totalorder %s9, 4
    %s19 = sphi 0, %s21
    %s22 = sphi 0, %s19
    %s23 = sphi 0, %s22
    %s39 = sphi 0, %s23
    %s43 = sphi 0, %s43
    %s45 = sphi 0, %s43
    %s46 = sphi 0, %s45
    %s60 = sphi 0, %s46
    %s64 = sphi 0, %s64
    %s66 = sphi 0, %s64
    %s67 = sphi 0, %s66
    %s81 = sphi 0, %s67
    %s87 = sphi 0, %s89
    %s90 = sphi 0, %s87
    %s91 = sphi 0, %s90
    %s107 = sphi 0, %s91
  $region4: #{beta_vae_forward.22} parent=0 // loop_header_branch
    %12 = sbr.rel (%p10) target = $region8
  $region5: #{beta_vae_forward.22} parent=0 // loop_body
    %s14 = ssub.s32 %s9, 1
    %s15 = ssub.s32 %s9, 2
    %s16 = sadd.s32 %s9, 1
    %s17 = ssub.s32 %s9, %s16
    %p18 = scmp.eq.s32.totalorder %s17, 0
    %s20 = sadd.s32 %s19, 1
    %s21 = scalar_select %p18, %s19, %s20
    %p24 = pneg %p18
    %p25 = scmp.eq.s32.totalorder %s9, 1
    %p26 = por %p24, %p25
    %p27 = scmp.ne.s32.totalorder %s19, %s22
    %p28 = scmp.eq.s32.totalorder %s9, 0
    %p29 = por %p27, %p28
    %p30 = scmp.ne.s32.totalorder %s19, %s22
    %p31 = scmp.eq.s32.totalorder %s14, 1
    %p32 = por %p30, %p31
    %p33 = scmp.ne.s32.totalorder %s22, %s23
    %p34 = scmp.eq.s32.totalorder %s14, 0
    %p35 = por %p33, %p34
    %p36 = scmp.ne.s32.totalorder %s22, %s23
    %p37 = scmp.eq.s32.totalorder %s15, 1
    %p38 = por %p36, %p37
    %p40 = scmp.ne.s32.totalorder %s23, %s39
    %p41 = scmp.eq.s32.totalorder %s15, 0
    %p42 = por %p40, %p41
    %s44 = sadd.s32 %s43, 1
    %p47 = scmp.eq.s32.totalorder %s9, 1
    %p48 = scmp.ne.s32.totalorder %s43, %s45
    %p49 = scmp.eq.s32.totalorder %s9, 0
    %p50 = por %p48, %p49
    %p51 = scmp.ne.s32.totalorder %s43, %s45
    %p52 = scmp.eq.s32.totalorder %s14, 1
    %p53 = por %p51, %p52
    %p54 = scmp.ne.s32.totalorder %s45, %s46
    %p55 = scmp.eq.s32.totalorder %s14, 0
    %p56 = por %p54, %p55
    %p57 = scmp.ne.s32.totalorder %s45, %s46
    %p58 = scmp.eq.s32.totalorder %s15, 1
    %p59 = por %p57, %p58
    %p61 = scmp.ne.s32.totalorder %s46, %s60
    %p62 = scmp.eq.s32.totalorder %s15, 0
    %p63 = por %p61, %p62
    %s65 = sadd.s32 %s64, 1
    %p68 = scmp.eq.s32.totalorder %s9, 1
    %p69 = scmp.ne.s32.totalorder %s64, %s66
    %p70 = scmp.eq.s32.totalorder %s9, 0
    %p71 = por %p69, %p70
    %p72 = scmp.ne.s32.totalorder %s64, %s66
    %p73 = scmp.eq.s32.totalorder %s14, 1
    %p74 = por %p72, %p73
    %p75 = scmp.ne.s32.totalorder %s66, %s67
    %p76 = scmp.eq.s32.totalorder %s14, 0
    %p77 = por %p75, %p76
    %p78 = scmp.ne.s32.totalorder %s66, %s67
    %p79 = scmp.eq.s32.totalorder %s15, 1
    %p80 = por %p78, %p79
    %p82 = scmp.ne.s32.totalorder %s67, %s81
    %p83 = scmp.eq.s32.totalorder %s15, 0
    %p84 = por %p82, %p83
    %s85 = ssub.s32 %s9, %s16
    %p86 = scmp.eq.s32.totalorder %s85, 0
    %s88 = sadd.s32 %s87, 1
    %s89 = scalar_select %p86, %s87, %s88
    %p92 = pneg %p86
    %p93 = scmp.eq.s32.totalorder %s9, 1
    %p94 = por %p92, %p93
    %p95 = scmp.ne.s32.totalorder %s87, %s90
    %p96 = scmp.eq.s32.totalorder %s9, 0
    %p97 = por %p95, %p96
    %p98 = scmp.ne.s32.totalorder %s87, %s90
    %p99 = scmp.eq.s32.totalorder %s14, 1
    %p100 = por %p98, %p99
    %p101 = scmp.ne.s32.totalorder %s90, %s91
    %p102 = scmp.eq.s32.totalorder %s14, 0
    %p103 = por %p101, %p102
    %p104 = scmp.ne.s32.totalorder %s90, %s91
    %p105 = scmp.eq.s32.totalorder %s15, 1
    %p106 = por %p104, %p105
    %p108 = scmp.ne.s32.totalorder %s91, %s107
    %p109 = scmp.eq.s32.totalorder %s15, 0
    %p110 = por %p108, %p109
    %p111 = scmp.le.s32.totalorder 1, %s9
    %p112 = scmp.lt.s32.totalorder %s9, 3
    %p113 = pnand %p111, %p112
    %p114 = pneg %p113
    // Predicated region
    $region9: #{beta_vae_forward.22} parent=5 // pred_check
      _
    $region10: #{beta_vae_forward.22} parent=5 // pred_check_branch
      %116 = sbr.rel (%p113) target = $region12
    $region11: #{beta_vae_forward.22} parent=5 // pred_region
      %s117 = ssub.s32 %s9, 1
      // Predicated region
      $region13: #{beta_vae_forward.22} parent=11 // pred_check
        %p118 = pneg %p56
      $region14: #{beta_vae_forward.22} parent=11 // pred_check_branch
        %120 = sbr.rel (%p118) target = $region16
      $region15: #{beta_vae_forward.22} parent=11 // pred_region
        _
      $region16: #{beta_vae_forward.22} parent=11 // pred_fallthru
        _
      // Predicated region
      $region17: #{beta_vae_forward.22} parent=11 // pred_check
        %p121 = pneg %p77
      $region18: #{beta_vae_forward.22} parent=11 // pred_check_branch
        %123 = sbr.rel (%p121) target = $region20
      $region19: #{beta_vae_forward.22} parent=11 // pred_region
        _
      $region20: #{beta_vae_forward.22} parent=11 // pred_fallthru
        _
    $region12: #{beta_vae_forward.22} parent=5 // pred_fallthru
      _
    %p124 = scmp.lt.s32.totalorder %s9, 2
    // Predicated region
    $region21: #{beta_vae_forward.22} parent=5 // pred_check
      %p125 = pneg %p124
    $region22: #{beta_vae_forward.22} parent=5 // pred_check_branch
      %127 = sbr.rel (%p125) target = $region24
    $region23: #{beta_vae_forward.22} parent=5 // pred_region
      // Predicated region
      $region25: #{beta_vae_forward.22} parent=23 // pred_check
        %p128 = pneg %p29
      $region26: #{beta_vae_forward.22} parent=23 // pred_check_branch
        %130 = sbr.rel (%p128) target = $region28
      $region27: #{beta_vae_forward.22} parent=23 // pred_region
        %s131 = smul.u32 38, %s9
        %p132 = scmp.lt.s32.totalorder %s131, 75
        %s133 = scalar_select %p132, %s131, 75
        %s134 = smul.addr %s133, 4
        %s135 = scalar_lea.vmem %s0, %s134
        %s136 = smul.u32 38, %s9
      $region28: #{beta_vae_forward.22} parent=23 // pred_fallthru
        _
    $region24: #{beta_vae_forward.22} parent=5 // pred_fallthru
      _
    %p137 = scmp.le.s32.totalorder 1, %s9
    %p138 = scmp.lt.s32.totalorder %s9, 3
    %p139 = pnand %p137, %p138
    %p140 = pneg %p139
    // Predicated region
    $region29: #{beta_vae_forward.22} parent=5 // pred_check
      _
    $region30: #{beta_vae_forward.22} parent=5 // pred_check_branch
      %142 = sbr.rel (%p139) target = $region32
    $region31: #{beta_vae_forward.22} parent=5 // pred_region
      %s143 = ssub.s32 %s9, 1
      %s144 = smul.u32 38, %s14
      %p145 = scmp.lt.s32.totalorder %s144, 75
      %s146 = scalar_select %p145, %s144, 75
      %s147 = smul.addr %s146, 4
      %s148 = scalar_lea.vmem %s0, %s147
      %p149 = pneg %p35
      %p150 = pneg %p32
      %p151 = pneg %p56
      %p152 = pneg %p53
      %p153 = pneg %p77
      %p154 = pneg %p74
      %p155 = pneg %p103
      %p156 = pneg %p100
      %s157 = smul.u32 38, %s14
      %p158 = scmp.lt.s32.totalorder %s157, 75
      %s159 = scalar_select %p158, %s157, 75
      %s160 = smul.addr %s159, 4
      %s161 = scalar_lea.vmem %s3, %s160
      %s162 = smul.u32 38, %s14
      %p163 = scmp.lt.s32.totalorder %s162, 75
      %s164 = scalar_select %p163, %s162, 75
      %s165 = smul.addr %s164, 4
      %s166 = scalar_lea.vmem %s0, %s165
      %s167 = smul.u32 38, %s14
      %s168 = smul.u32 38, %s14
      %p169 = scmp.lt.s32.totalorder %s168, 75
      %s170 = scalar_select %p169, %s168, 75
      %s171 = smul.addr %s170, 4
      %s172 = scalar_lea.vmem %s3, %s171
      %s173 = smul.u32 38, %s14
      %v175 = vld [vmem:[%s166] sm:$0xf]
      %v176 = vld [vmem:[%s166 + $0x4] sm:$0xf]
      %v177 = vld [vmem:[%s166 + $0x8] sm:$0xf]
      %v178 = vld [vmem:[%s166 + $0xc] sm:$0xf]
      %v179 = vld [vmem:[%s166 + $0x10] sm:$0xf]
      %v180 = vld [vmem:[%s166 + $0x14] sm:$0xf]
      %v181 = vld [vmem:[%s166 + $0x18] sm:$0xf]
      %v182 = vld [vmem:[%s166 + $0x1c] sm:$0xf]
      %v183 = vld [vmem:[%s166 + $0x20] sm:$0xf]
      %v184 = vld [vmem:[%s166 + $0x24] sm:$0xf]
      %v185 = vld [vmem:[%s166 + $0x28] sm:$0xf]
      %v186 = vld [vmem:[%s166 + $0x2c] sm:$0xf]
      %v187 = vld [vmem:[%s166 + $0x30] sm:$0xf]
      %v188 = vld [vmem:[%s166 + $0x34] sm:$0xf]
      %v189 = vld [vmem:[%s166 + $0x38] sm:$0xf]
      %v190 = vld [vmem:[%s166 + $0x3c] sm:$0xf]
      %v191 = vld [vmem:[%s166 + $0x40] sm:$0xf]
      %v192 = vld [vmem:[%s166 + $0x44] sm:$0xf]
      %v193 = vld [vmem:[%s166 + $0x48] sm:$0xf]
      %v194 = vld [vmem:[%s166 + $0x4c] sm:$0xf]
      %v195 = vld [vmem:[%s166 + $0x50] sm:$0xf]
      %v196 = vld [vmem:[%s166 + $0x54] sm:$0xf]
      %v197 = vld [vmem:[%s166 + $0x58] sm:$0xf]
      %v198 = vld [vmem:[%s166 + $0x5c] sm:$0xf]
      %v199 = vld [vmem:[%s166 + $0x60] sm:$0xf]
      %v200 = vld [vmem:[%s166 + $0x64] sm:$0xf]
      %v201 = vld [vmem:[%s166 + $0x68] sm:$0xf]
      %v202 = vld [vmem:[%s166 + $0x6c] sm:$0xf]
      %v203 = vld [vmem:[%s166 + $0x70] sm:$0xf]
      %v204 = vld [vmem:[%s166 + $0x74] sm:$0xf]
      %v205 = vld [vmem:[%s166 + $0x78] sm:$0xf]
      %v206 = vld [vmem:[%s166 + $0x7c] sm:$0xf]
      %v207 = vld [vmem:[%s166 + $0x80] sm:$0xf]
      %v208 = vld [vmem:[%s166 + $0x84] sm:$0xf]
      %v209 = vld [vmem:[%s166 + $0x88] sm:$0xf]
      %v210 = vld [vmem:[%s166 + $0x8c] sm:$0xf]
      %v211 = vld [vmem:[%s166 + $0x90] sm:$0xf]
      %v212 = vld [vmem:[%s166 + $0x94] sm:$0xf]
      %v213 = vld [vmem:[%s1] sm:$0xf]
      %v214 = vld [vmem:[%s1 + $0x4] sm:$0xf]
      %v215 = vld [vmem:[%s1 + $0x8] sm:$0xf]
      %v216 = vld [vmem:[%s1 + $0xc] sm:$0xf]
      %v217 = vld [vmem:[%s1 + $0x10] sm:$0xf]
      %v218 = vld [vmem:[%s1 + $0x14] sm:$0xf]
      %v219 = vld [vmem:[%s1 + $0x18] sm:$0xf]
      %v220 = vld [vmem:[%s1 + $0x1c] sm:$0xf]
      %v221 = vld [vmem:[%s1 + $0x20] sm:$0xf]
      %v222 = vld [vmem:[%s1 + $0x24] sm:$0xf]
      %v223 = vld [vmem:[%s1 + $0x28] sm:$0xf]
      %v224 = vld [vmem:[%s1 + $0x2c] sm:$0xf]
      %v225 = vld [vmem:[%s1 + $0x30] sm:$0xf]
      %v226 = vld [vmem:[%s1 + $0x34] sm:$0xf]
      %v227 = vld [vmem:[%s1 + $0x38] sm:$0xf]
      %v228 = vld [vmem:[%s1 + $0x3c] sm:$0xf]
      %v229 = vld [vmem:[%s2] sm:$0x1]
      %v231 = vlaneseq
      %v232 = vshrl.u32 %v231, 7
      %v233 = vsub.s32 0, %v232
      %v234 = vrot.slane %v229, %v233
      %v274 = vunpack.c.l.b16 %v175
      %v275 = vunpack.c.l.b16 %v176
      %v276 = vunpack.c.l.b16 %v177
      %v277 = vunpack.c.l.b16 %v178
      %v278 = vunpack.c.l.b16 %v179
      %v279 = vunpack.c.l.b16 %v180
      %v280 = vunpack.c.l.b16 %v181
      %v281 = vunpack.c.l.b16 %v182
      %v282 = vunpack.c.l.b16 %v183
      %v283 = vunpack.c.l.b16 %v184
      %v284 = vunpack.c.l.b16 %v185
      %v285 = vunpack.c.l.b16 %v186
      %v286 = vunpack.c.l.b16 %v187
      %v287 = vunpack.c.l.b16 %v188
      %v288 = vunpack.c.l.b16 %v189
      %v289 = vunpack.c.l.b16 %v190
      %v290 = vunpack.c.l.b16 %v191
      %v291 = vunpack.c.l.b16 %v192
      %v292 = vunpack.c.l.b16 %v193
      %v293 = vunpack.c.l.b16 %v194
      %v294 = vunpack.c.l.b16 %v195
      %v295 = vunpack.c.l.b16 %v196
      %v296 = vunpack.c.l.b16 %v197
      %v297 = vunpack.c.l.b16 %v198
      %v298 = vunpack.c.l.b16 %v199
      %v299 = vunpack.c.l.b16 %v200
      %v300 = vunpack.c.l.b16 %v201
      %v301 = vunpack.c.l.b16 %v202
      %v302 = vunpack.c.l.b16 %v203
      %v303 = vunpack.c.l.b16 %v204
      %v304 = vunpack.c.l.b16 %v205
      %v305 = vunpack.c.l.b16 %v206
      %v306 = vunpack.c.l.b16 %v207
      %v307 = vunpack.c.l.b16 %v208
      %v308 = vunpack.c.l.b16 %v209
      %v309 = vunpack.c.l.b16 %v210
      %v310 = vunpack.c.l.b16 %v211
      %v311 = vunpack.c.l.b16 %v212
      %v312 = vpack.c.b16 %v275, %v274
      %v313 = vpack.c.b16 %v277, %v276
      %v314 = vpack.c.b16 %v279, %v278
      %v315 = vpack.c.b16 %v281, %v280
      %v316 = vpack.c.b16 %v283, %v282
      %v317 = vpack.c.b16 %v285, %v284
      %v318 = vpack.c.b16 %v287, %v286
      %v319 = vpack.c.b16 %v289, %v288
      %v320 = vpack.c.b16 %v291, %v290
      %v321 = vpack.c.b16 %v293, %v292
      %v322 = vpack.c.b16 %v295, %v294
      %v323 = vpack.c.b16 %v297, %v296
      %v324 = vpack.c.b16 %v299, %v298
      %v325 = vpack.c.b16 %v301, %v300
      %v326 = vpack.c.b16 %v303, %v302
      %v327 = vpack.c.b16 %v305, %v304
      %v328 = vpack.c.b16 %v307, %v306
      %v329 = vpack.c.b16 %v309, %v308
      %v330 = vpack.c.b16 %v311, %v310
      %v366 = vunpack.c.l.b16 %v213
      %v367 = vunpack.c.l.b16 %v214
      %v368 = vunpack.c.l.b16 %v215
      %v369 = vunpack.c.l.b16 %v216
      %v370 = vunpack.c.l.b16 %v217
      %v371 = vunpack.c.l.b16 %v218
      %v372 = vunpack.c.l.b16 %v219
      %v373 = vunpack.c.l.b16 %v220
      %v374 = vunpack.c.l.b16 %v221
      %v375 = vunpack.c.l.b16 %v222
      %v376 = vunpack.c.l.b16 %v223
      %v377 = vunpack.c.l.b16 %v224
      %v378 = vunpack.c.l.b16 %v225
      %v379 = vunpack.c.l.b16 %v226
      %v380 = vunpack.c.l.b16 %v227
      %v381 = vunpack.c.l.b16 %v228
      %v382 = vpack.c.b16 %v367, %v366
      %v383 = vpack.c.b16 %v369, %v368
      %v384 = vpack.c.b16 %v371, %v370
      %v385 = vpack.c.b16 %v373, %v372
      %v386 = vpack.c.b16 %v375, %v374
      %v387 = vpack.c.b16 %v377, %v376
      %v388 = vpack.c.b16 %v379, %v378
      %v389 = vpack.c.b16 %v381, %v380
      %398 = vmatprep.subr.bf16.mxu0 0
      %399 = vmatpush1.bf16.msra.mxu0 %v389
      %400 = vmatprep.subr.bf16.mxu0 0
      %401 = vmatpush1.bf16.msra.mxu0 %v388
      %402 = vmatprep.subr.bf16.mxu0 0
      %403 = vmatpush1.bf16.msra.mxu0 %v387
      %404 = vmatprep.subr.bf16.mxu0 0
      %405 = vmatpush1.bf16.msra.mxu0 %v386
      %406 = vmatprep.subr.bf16.mxu0 0
      %407 = vmatpush1.bf16.msra.mxu0 %v385
      %408 = vmatprep.subr.bf16.mxu0 0
      %409 = vmatpush1.bf16.msra.mxu0 %v384
      %410 = vmatprep.subr.bf16.mxu0 0
      %411 = vmatpush1.bf16.msra.mxu0 %v383
      %412 = vmatprep.subr.bf16.mxu0 0
      %413 = vmatpush1.bf16.msra.mxu0 %v382
      %414 = vmatprep.subr.bf16.mxu0 0
      %415 = vmatpush2.bf16.msra.mxu0 0
      %416 = vmatprep.subr.bf16.mxu0 0
      %417 = vmatpush2.bf16.msra.mxu0 0
      %418 = vmatprep.subr.bf16.mxu0 0
      %419 = vmatpush2.bf16.msra.mxu0 0
      %420 = vmatprep.subr.bf16.mxu0 0
      %421 = vmatpush2.bf16.msra.mxu0 0
      %422 = vmatprep.subr.bf16.mxu0 0
      %423 = vmatpush2.bf16.msra.mxu0 0
      %424 = vmatprep.subr.bf16.mxu0 0
      %425 = vmatpush2.bf16.msra.mxu0 0
      %426 = vmatprep.subr.bf16.mxu0 0
      %427 = vmatpush2.bf16.msra.mxu0 0
      %428 = vmatprep.subr.bf16.mxu0 0
      %429 = vmatpush2.bf16.msra.mxu0 0
      %430 = vmatprep.mubr.bf16.mxu0 0
      %431 = vmatmul.mubr.bf16.gmra.mxu0 %v312
      %v432 = vpop.f32.mrf.mxu0
      %v433 = vadd.f32 %v234, %v432
      %v434 = vpop.f32.mrf.mxu0
      %v435 = vpop.f32.mrf.mxu0
      %v436 = vadd.f32 %v234, %v435
      %v437 = vpop.f32.mrf.mxu0
      %438 = vmatprep.mubr.bf16.mxu0 0
      %439 = vmatmul.mubr.bf16.gmra.mxu0 %v313
      %v440 = vpop.f32.mrf.mxu0
      %v441 = vadd.f32 %v234, %v440
      %v442 = vpop.f32.mrf.mxu0
      %v443 = vpop.f32.mrf.mxu0
      %v444 = vadd.f32 %v234, %v443
      %v445 = vpop.f32.mrf.mxu0
      %446 = vmatprep.mubr.bf16.mxu0 0
      %447 = vmatmul.mubr.bf16.gmra.mxu0 %v314
      %v448 = vpop.f32.mrf.mxu0
      %v449 = vadd.f32 %v234, %v448
      %v450 = vpop.f32.mrf.mxu0
      %v451 = vpop.f32.mrf.mxu0
      %v452 = vadd.f32 %v234, %v451
      %v453 = vpop.f32.mrf.mxu0
      %454 = vmatprep.mubr.bf16.mxu0 0
      %455 = vmatmul.mubr.bf16.gmra.mxu0 %v315
      %v456 = vpop.f32.mrf.mxu0
      %v457 = vadd.f32 %v234, %v456
      %v458 = vpop.f32.mrf.mxu0
      %v459 = vpop.f32.mrf.mxu0
      %v460 = vadd.f32 %v234, %v459
      %v461 = vpop.f32.mrf.mxu0
      %462 = vmatprep.mubr.bf16.mxu0 0
      %463 = vmatmul.mubr.bf16.gmra.mxu0 %v316
      %v464 = vpop.f32.mrf.mxu0
      %v465 = vadd.f32 %v234, %v464
      %v466 = vpop.f32.mrf.mxu0
      %v467 = vpop.f32.mrf.mxu0
      %v468 = vadd.f32 %v234, %v467
      %v469 = vpop.f32.mrf.mxu0
      %470 = vmatprep.mubr.bf16.mxu0 0
      %471 = vmatmul.mubr.bf16.gmra.mxu0 %v317
      %v472 = vpop.f32.mrf.mxu0
      %v473 = vadd.f32 %v234, %v472
      %v474 = vpop.f32.mrf.mxu0
      %v475 = vpop.f32.mrf.mxu0
      %v476 = vadd.f32 %v234, %v475
      %v477 = vpop.f32.mrf.mxu0
      %478 = vmatprep.mubr.bf16.mxu0 0
      %479 = vmatmul.mubr.bf16.gmra.mxu0 %v318
      %v480 = vpop.f32.mrf.mxu0
      %v481 = vadd.f32 %v234, %v480
      %v482 = vpop.f32.mrf.mxu0
      %v483 = vpop.f32.mrf.mxu0
      %v484 = vadd.f32 %v234, %v483
      %v485 = vpop.f32.mrf.mxu0
      %486 = vmatprep.mubr.bf16.mxu0 0
      %487 = vmatmul.mubr.bf16.gmra.mxu0 %v319
      %v488 = vpop.f32.mrf.mxu0
      %v489 = vadd.f32 %v234, %v488
      %v490 = vpop.f32.mrf.mxu0
      %v491 = vpop.f32.mrf.mxu0
      %v492 = vadd.f32 %v234, %v491
      %v493 = vpop.f32.mrf.mxu0
      %494 = vmatprep.mubr.bf16.mxu0 0
      %495 = vmatmul.mubr.bf16.gmra.mxu0 %v320
      %v496 = vpop.f32.mrf.mxu0
      %v497 = vadd.f32 %v234, %v496
      %v498 = vpop.f32.mrf.mxu0
      %v499 = vpop.f32.mrf.mxu0
      %v500 = vadd.f32 %v234, %v499
      %v501 = vpop.f32.mrf.mxu0
      %502 = vmatprep.mubr.bf16.mxu0 0
      %503 = vmatmul.mubr.bf16.gmra.mxu0 %v321
      %v504 = vpop.f32.mrf.mxu0
      %v505 = vadd.f32 %v234, %v504
      %v506 = vpop.f32.mrf.mxu0
      %v507 = vpop.f32.mrf.mxu0
      %v508 = vadd.f32 %v234, %v507
      %v509 = vpop.f32.mrf.mxu0
      %510 = vmatprep.mubr.bf16.mxu0 0
      %511 = vmatmul.mubr.bf16.gmra.mxu0 %v322
      %v512 = vpop.f32.mrf.mxu0
      %v513 = vadd.f32 %v234, %v512
      %v514 = vpop.f32.mrf.mxu0
      %v515 = vpop.f32.mrf.mxu0
      %v516 = vadd.f32 %v234, %v515
      %v517 = vpop.f32.mrf.mxu0
      %518 = vmatprep.mubr.bf16.mxu0 0
      %519 = vmatmul.mubr.bf16.gmra.mxu0 %v323
      %v520 = vpop.f32.mrf.mxu0
      %v521 = vadd.f32 %v234, %v520
      %v522 = vpop.f32.mrf.mxu0
      %v523 = vpop.f32.mrf.mxu0
      %v524 = vadd.f32 %v234, %v523
      %v525 = vpop.f32.mrf.mxu0
      %526 = vmatprep.mubr.bf16.mxu0 0
      %527 = vmatmul.mubr.bf16.gmra.mxu0 %v324
      %v528 = vpop.f32.mrf.mxu0
      %v529 = vadd.f32 %v234, %v528
      %v530 = vpop.f32.mrf.mxu0
      %v531 = vpop.f32.mrf.mxu0
      %v532 = vadd.f32 %v234, %v531
      %v533 = vpop.f32.mrf.mxu0
      %534 = vmatprep.mubr.bf16.mxu0 0
      %535 = vmatmul.mubr.bf16.gmra.mxu0 %v325
      %v536 = vpop.f32.mrf.mxu0
      %v537 = vadd.f32 %v234, %v536
      %v538 = vpop.f32.mrf.mxu0
      %v539 = vpop.f32.mrf.mxu0
      %v540 = vadd.f32 %v234, %v539
      %v541 = vpop.f32.mrf.mxu0
      %542 = vmatprep.mubr.bf16.mxu0 0
      %543 = vmatmul.mubr.bf16.gmra.mxu0 %v326
      %v544 = vpop.f32.mrf.mxu0
      %v545 = vadd.f32 %v234, %v544
      %v546 = vpop.f32.mrf.mxu0
      %v547 = vpop.f32.mrf.mxu0
      %v548 = vadd.f32 %v234, %v547
      %v549 = vpop.f32.mrf.mxu0
      %550 = vmatprep.mubr.bf16.mxu0 0
      %551 = vmatmul.mubr.bf16.gmra.mxu0 %v327
      %v552 = vpop.f32.mrf.mxu0
      %v553 = vadd.f32 %v234, %v552
      %v554 = vpop.f32.mrf.mxu0
      %v555 = vpop.f32.mrf.mxu0
      %v556 = vadd.f32 %v234, %v555
      %v557 = vpop.f32.mrf.mxu0
      %558 = vmatprep.mubr.bf16.mxu0 0
      %559 = vmatmul.mubr.bf16.gmra.mxu0 %v328
      %v560 = vpop.f32.mrf.mxu0
      %v561 = vadd.f32 %v234, %v560
      %v562 = vpop.f32.mrf.mxu0
      %v563 = vpop.f32.mrf.mxu0
      %v564 = vadd.f32 %v234, %v563
      %v565 = vpop.f32.mrf.mxu0
      %566 = vmatprep.mubr.bf16.mxu0 0
      %567 = vmatmul.mubr.bf16.gmra.mxu0 %v329
      %v568 = vpop.f32.mrf.mxu0
      %v569 = vadd.f32 %v234, %v568
      %v570 = vpop.f32.mrf.mxu0
      %v571 = vpop.f32.mrf.mxu0
      %v572 = vadd.f32 %v234, %v571
      %v573 = vpop.f32.mrf.mxu0
      %574 = vmatprep.mubr.bf16.mxu0 0
      %575 = vmatmul.mubr.bf16.gmra.mxu0 %v330
      %v576 = vpop.f32.mrf.mxu0
      %v577 = vadd.f32 %v234, %v576
      %v578 = vpop.f32.mrf.mxu0
      %v579 = vpop.f32.mrf.mxu0
      %v580 = vadd.f32 %v234, %v579
      %v581 = vpop.f32.mrf.mxu0
      %582 = vdwg.mxu0
      %v583 = vmax.f32 %v433, 0.0
      %v584 = vmax.f32 %v436, 0.0
      %v585 = vmax.f32 %v441, 0.0
      %v586 = vmax.f32 %v444, 0.0
      %v587 = vmax.f32 %v449, 0.0
      %v588 = vmax.f32 %v452, 0.0
      %v589 = vmax.f32 %v457, 0.0
      %v590 = vmax.f32 %v460, 0.0
      %v591 = vmax.f32 %v465, 0.0
      %v592 = vmax.f32 %v468, 0.0
      %v593 = vmax.f32 %v473, 0.0
      %v594 = vmax.f32 %v476, 0.0
      %v595 = vmax.f32 %v481, 0.0
      %v596 = vmax.f32 %v484, 0.0
      %v597 = vmax.f32 %v489, 0.0
      %v598 = vmax.f32 %v492, 0.0
      %v599 = vmax.f32 %v497, 0.0
      %v600 = vmax.f32 %v500, 0.0
      %v601 = vmax.f32 %v505, 0.0
      %v602 = vmax.f32 %v508, 0.0
      %v603 = vmax.f32 %v513, 0.0
      %v604 = vmax.f32 %v516, 0.0
      %v605 = vmax.f32 %v521, 0.0
      %v606 = vmax.f32 %v524, 0.0
      %v607 = vmax.f32 %v529, 0.0
      %v608 = vmax.f32 %v532, 0.0
      %v609 = vmax.f32 %v537, 0.0
      %v610 = vmax.f32 %v540, 0.0
      %v611 = vmax.f32 %v545, 0.0
      %v612 = vmax.f32 %v548, 0.0
      %v613 = vmax.f32 %v553, 0.0
      %v614 = vmax.f32 %v556, 0.0
      %v615 = vmax.f32 %v561, 0.0
      %v616 = vmax.f32 %v564, 0.0
      %v617 = vmax.f32 %v569, 0.0
      %v618 = vmax.f32 %v572, 0.0
      %v619 = vmax.f32 %v577, 0.0
      %v620 = vmax.f32 %v580, 0.0
      %v621 = vpack.c.bf16 %v584, %v583
      %v622 = vpack.c.bf16 %v586, %v585
      %v623 = vpack.c.bf16 %v588, %v587
      %v624 = vpack.c.bf16 %v590, %v589
      %v625 = vpack.c.bf16 %v592, %v591
      %v626 = vpack.c.bf16 %v594, %v593
      %v627 = vpack.c.bf16 %v596, %v595
      %v628 = vpack.c.bf16 %v598, %v597
      %v629 = vpack.c.bf16 %v600, %v599
      %v630 = vpack.c.bf16 %v602, %v601
      %v631 = vpack.c.bf16 %v604, %v603
      %v632 = vpack.c.bf16 %v606, %v605
      %v633 = vpack.c.bf16 %v608, %v607
      %v634 = vpack.c.bf16 %v610, %v609
      %v635 = vpack.c.bf16 %v612, %v611
      %v636 = vpack.c.bf16 %v614, %v613
      %v637 = vpack.c.bf16 %v616, %v615
      %v638 = vpack.c.bf16 %v618, %v617
      %v639 = vpack.c.bf16 %v620, %v619
      %v659 = vunpack.c.l.b16 %v621
      %v660 = vunpack.c.h.b16 %v621
      %v661 = vunpack.c.l.b16 %v622
      %v662 = vunpack.c.h.b16 %v622
      %v663 = vunpack.c.l.b16 %v623
      %v664 = vunpack.c.h.b16 %v623
      %v665 = vunpack.c.l.b16 %v624
      %v666 = vunpack.c.h.b16 %v624
      %v667 = vunpack.c.l.b16 %v625
      %v668 = vunpack.c.h.b16 %v625
      %v669 = vunpack.c.l.b16 %v626
      %v670 = vunpack.c.h.b16 %v626
      %v671 = vunpack.c.l.b16 %v627
      %v672 = vunpack.c.h.b16 %v627
      %v673 = vunpack.c.l.b16 %v628
      %v674 = vunpack.c.h.b16 %v628
      %v675 = vunpack.c.l.b16 %v629
      %v676 = vunpack.c.h.b16 %v629
      %v677 = vunpack.c.l.b16 %v630
      %v678 = vunpack.c.h.b16 %v630
      %v679 = vunpack.c.l.b16 %v631
      %v680 = vunpack.c.h.b16 %v631
      %v681 = vunpack.c.l.b16 %v632
      %v682 = vunpack.c.h.b16 %v632
      %v683 = vunpack.c.l.b16 %v633
      %v684 = vunpack.c.h.b16 %v633
      %v685 = vunpack.c.l.b16 %v634
      %v686 = vunpack.c.h.b16 %v634
      %v687 = vunpack.c.l.b16 %v635
      %v688 = vunpack.c.h.b16 %v635
      %v689 = vunpack.c.l.b16 %v636
      %v690 = vunpack.c.h.b16 %v636
      %v691 = vunpack.c.l.b16 %v637
      %v692 = vunpack.c.h.b16 %v637
      %v693 = vunpack.c.l.b16 %v638
      %v694 = vunpack.c.h.b16 %v638
      %v695 = vunpack.c.l.b16 %v639
      %v696 = vunpack.c.h.b16 %v639
      %v697 = vpack.c.b16 %v659, %v659
      %v698 = vpack.c.b16 %v660, %v660
      %v699 = vpack.c.b16 %v661, %v661
      %v700 = vpack.c.b16 %v662, %v662
      %v701 = vpack.c.b16 %v663, %v663
      %v702 = vpack.c.b16 %v664, %v664
      %v703 = vpack.c.b16 %v665, %v665
      %v704 = vpack.c.b16 %v666, %v666
      %v705 = vpack.c.b16 %v667, %v667
      %v706 = vpack.c.b16 %v668, %v668
      %v707 = vpack.c.b16 %v669, %v669
      %v708 = vpack.c.b16 %v670, %v670
      %v709 = vpack.c.b16 %v671, %v671
      %v710 = vpack.c.b16 %v672, %v672
      %v711 = vpack.c.b16 %v673, %v673
      %v712 = vpack.c.b16 %v674, %v674
      %v713 = vpack.c.b16 %v675, %v675
      %v714 = vpack.c.b16 %v676, %v676
      %v715 = vpack.c.b16 %v677, %v677
      %v716 = vpack.c.b16 %v678, %v678
      %v717 = vpack.c.b16 %v679, %v679
      %v718 = vpack.c.b16 %v680, %v680
      %v719 = vpack.c.b16 %v681, %v681
      %v720 = vpack.c.b16 %v682, %v682
      %v721 = vpack.c.b16 %v683, %v683
      %v722 = vpack.c.b16 %v684, %v684
      %v723 = vpack.c.b16 %v685, %v685
      %v724 = vpack.c.b16 %v686, %v686
      %v725 = vpack.c.b16 %v687, %v687
      %v726 = vpack.c.b16 %v688, %v688
      %v727 = vpack.c.b16 %v689, %v689
      %v728 = vpack.c.b16 %v690, %v690
      %v729 = vpack.c.b16 %v691, %v691
      %v730 = vpack.c.b16 %v692, %v692
      %v731 = vpack.c.b16 %v693, %v693
      %v732 = vpack.c.b16 %v694, %v694
      %v733 = vpack.c.b16 %v695, %v695
      %v734 = vpack.c.b16 %v696, %v696
      %773 = vst [vmem:[%s172] sm:$0xf] %v697
      %774 = vst [vmem:[%s172 + $0x4] sm:$0xf] %v698
      %775 = vst [vmem:[%s172 + $0x8] sm:$0xf] %v699
      %776 = vst [vmem:[%s172 + $0xc] sm:$0xf] %v700
      %777 = vst [vmem:[%s172 + $0x10] sm:$0xf] %v701
      %778 = vst [vmem:[%s172 + $0x14] sm:$0xf] %v702
      %779 = vst [vmem:[%s172 + $0x18] sm:$0xf] %v703
      %780 = vst [vmem:[%s172 + $0x1c] sm:$0xf] %v704
      %781 = vst [vmem:[%s172 + $0x20] sm:$0xf] %v705
      %782 = vst [vmem:[%s172 + $0x24] sm:$0xf] %v706
      %783 = vst [vmem:[%s172 + $0x28] sm:$0xf] %v707
      %784 = vst [vmem:[%s172 + $0x2c] sm:$0xf] %v708
      %785 = vst [vmem:[%s172 + $0x30] sm:$0xf] %v709
      %786 = vst [vmem:[%s172 + $0x34] sm:$0xf] %v710
      %787 = vst [vmem:[%s172 + $0x38] sm:$0xf] %v711
      %788 = vst [vmem:[%s172 + $0x3c] sm:$0xf] %v712
      %789 = vst [vmem:[%s172 + $0x40] sm:$0xf] %v713
      %790 = vst [vmem:[%s172 + $0x44] sm:$0xf] %v714
      %791 = vst [vmem:[%s172 + $0x48] sm:$0xf] %v715
      %792 = vst [vmem:[%s172 + $0x4c] sm:$0xf] %v716
      %793 = vst [vmem:[%s172 + $0x50] sm:$0xf] %v717
      %794 = vst [vmem:[%s172 + $0x54] sm:$0xf] %v718
      %795 = vst [vmem:[%s172 + $0x58] sm:$0xf] %v719
      %796 = vst [vmem:[%s172 + $0x5c] sm:$0xf] %v720
      %797 = vst [vmem:[%s172 + $0x60] sm:$0xf] %v721
      %798 = vst [vmem:[%s172 + $0x64] sm:$0xf] %v722
      %799 = vst [vmem:[%s172 + $0x68] sm:$0xf] %v723
      %800 = vst [vmem:[%s172 + $0x6c] sm:$0xf] %v724
      %801 = vst [vmem:[%s172 + $0x70] sm:$0xf] %v725
      %802 = vst [vmem:[%s172 + $0x74] sm:$0xf] %v726
      %803 = vst [vmem:[%s172 + $0x78] sm:$0xf] %v727
      %804 = vst [vmem:[%s172 + $0x7c] sm:$0xf] %v728
      %805 = vst [vmem:[%s172 + $0x80] sm:$0xf] %v729
      %806 = vst [vmem:[%s172 + $0x84] sm:$0xf] %v730
      %807 = vst [vmem:[%s172 + $0x88] sm:$0xf] %v731
      %808 = vst [vmem:[%s172 + $0x8c] sm:$0xf] %v732
      %809 = vst [vmem:[%s172 + $0x90] sm:$0xf] %v733
      %810 = vst [vmem:[%s172 + $0x94] sm:$0xf] %v734
      %s811 = smul.u32 38, %s14
      %p812 = scmp.lt.s32.totalorder %s811, 75
      %s813 = scalar_select %p812, %s811, 75
      %s814 = smul.addr %s813, 4
      %s815 = scalar_lea.vmem %s3, %s814
      // Predicated region
      $region33: #{beta_vae_forward.22} parent=31 // pred_check
        %p816 = pneg %p100
      $region34: #{beta_vae_forward.22} parent=31 // pred_check_branch
        %818 = sbr.rel (%p816) target = $region36
      $region35: #{beta_vae_forward.22} parent=31 // pred_region
        %s819 = smul.u32 38, %s14
      $region36: #{beta_vae_forward.22} parent=31 // pred_fallthru
        _
    $region32: #{beta_vae_forward.22} parent=5 // pred_fallthru
      _
    %p820 = scmp.le.s32.totalorder 2, %s9
    // Predicated region
    $region37: #{beta_vae_forward.22} parent=5 // pred_check
      %p821 = pneg %p820
    $region38: #{beta_vae_forward.22} parent=5 // pred_check_branch
      %823 = sbr.rel (%p821) target = $region40
    $region39: #{beta_vae_forward.22} parent=5 // pred_region
      %s824 = ssub.s32 %s9, 2
      // Predicated region
      $region41: #{beta_vae_forward.22} parent=39 // pred_check
        %p825 = pneg %p106
      $region42: #{beta_vae_forward.22} parent=39 // pred_check_branch
        %827 = sbr.rel (%p825) target = $region44
      $region43: #{beta_vae_forward.22} parent=39 // pred_region
        %s828 = smul.u32 38, %s15
        %p829 = scmp.lt.s32.totalorder %s828, 75
        %s830 = scalar_select %p829, %s828, 75
        %s831 = smul.addr %s830, 4
        %s832 = scalar_lea.vmem %s3, %s831
      $region44: #{beta_vae_forward.22} parent=39 // pred_fallthru
        _
    $region40: #{beta_vae_forward.22} parent=5 // pred_fallthru
      _
  $region6: #{beta_vae_forward.22} parent=0 // loop_footer
    %s13 = sadd.s32 1, %s9
  $region7: #{beta_vae_forward.22} parent=0 // loop_footer_branch
    %8 = sbr.rel target = $region3
  $region8: #{beta_vae_forward.22} parent=0 // loop_exit
    _

// kernel: beta_vae_forward.23
$region0: #{beta_vae_forward.23}
  #allocation0 [shape = 'u32[]', space=smem, size = 0x4, offset = 0x4, fixed_abs, tag = 'smem constant byte address 0x4 - core index']
  #allocation1 [shape = 'u32[144,128]{1,0:T(1,128)}', space=vmem, size = 0x12000, scoped, tag = 'internal scratch']
  %s0 = inlined_call_operand.vmem [shape: bf16[2208,128], index: 0, kind: input, shape index: {}]
  %s1 = inlined_call_operand.vmem [shape: bf16[128,4], index: 1, kind: input, shape index: {}]
  %s2 = inlined_call_operand.vmem [shape: f32[1,4], index: 2, kind: input, shape index: {}]
  %s3 = inlined_call_operand.vmem [shape: f32[2208,4], index: 3, kind: output, shape index: {}]
  %s4 = sld [smem:[#allocation0]]
  $region45: #{beta_vae_forward.23} parent=0
    _
  %s6 = ssub.s32 1, %s4
  %s7 = scalar_select 0, %s6, %s4
  loop: start=0, step=1, limit=5
  $region2: #{beta_vae_forward.23} parent=0 // loop_pre_header
    _
  $region3: #{beta_vae_forward.23} parent=0 // loop_header
    %s9 = sphi 0, %s13
    %p10 = scmp.ge.s32.totalorder %s9, 5
    %s19 = sphi 0, %s21
    %s22 = sphi 0, %s19
    %s23 = sphi 0, %s22
    %s39 = sphi 0, %s23
    %s43 = sphi 0, %s43
    %s45 = sphi 0, %s43
    %s46 = sphi 0, %s45
    %s60 = sphi 0, %s46
    %s64 = sphi 0, %s64
    %s66 = sphi 0, %s64
    %s67 = sphi 0, %s66
    %s81 = sphi 0, %s67
    %s87 = sphi 0, %s89
    %s90 = sphi 0, %s87
    %s91 = sphi 0, %s90
    %s107 = sphi 0, %s91
  $region4: #{beta_vae_forward.23} parent=0 // loop_header_branch
    %12 = sbr.rel (%p10) target = $region8
  $region5: #{beta_vae_forward.23} parent=0 // loop_body
    %s14 = ssub.s32 %s9, 1
    %s15 = ssub.s32 %s9, 2
    %s16 = sadd.s32 %s9, 1
    %s17 = ssub.s32 %s9, %s16
    %p18 = scmp.eq.s32.totalorder %s17, 0
    %s20 = sadd.s32 %s19, 1
    %s21 = scalar_select %p18, %s19, %s20
    %p24 = pneg %p18
    %p25 = scmp.eq.s32.totalorder %s9, 2
    %p26 = por %p24, %p25
    %p27 = scmp.ne.s32.totalorder %s19, %s22
    %p28 = scmp.eq.s32.totalorder %s9, 0
    %p29 = por %p27, %p28
    %p30 = scmp.ne.s32.totalorder %s19, %s22
    %p31 = scmp.eq.s32.totalorder %s14, 2
    %p32 = por %p30, %p31
    %p33 = scmp.ne.s32.totalorder %s22, %s23
    %p34 = scmp.eq.s32.totalorder %s14, 0
    %p35 = por %p33, %p34
    %p36 = scmp.ne.s32.totalorder %s22, %s23
    %p37 = scmp.eq.s32.totalorder %s15, 2
    %p38 = por %p36, %p37
    %p40 = scmp.ne.s32.totalorder %s23, %s39
    %p41 = scmp.eq.s32.totalorder %s15, 0
    %p42 = por %p40, %p41
    %s44 = sadd.s32 %s43, 1
    %p47 = scmp.eq.s32.totalorder %s9, 2
    %p48 = scmp.ne.s32.totalorder %s43, %s45
    %p49 = scmp.eq.s32.totalorder %s9, 0
    %p50 = por %p48, %p49
    %p51 = scmp.ne.s32.totalorder %s43, %s45
    %p52 = scmp.eq.s32.totalorder %s14, 2
    %p53 = por %p51, %p52
    %p54 = scmp.ne.s32.totalorder %s45, %s46
    %p55 = scmp.eq.s32.totalorder %s14, 0
    %p56 = por %p54, %p55
    %p57 = scmp.ne.s32.totalorder %s45, %s46
    %p58 = scmp.eq.s32.totalorder %s15, 2
    %p59 = por %p57, %p58
    %p61 = scmp.ne.s32.totalorder %s46, %s60
    %p62 = scmp.eq.s32.totalorder %s15, 0
    %p63 = por %p61, %p62
    %s65 = sadd.s32 %s64, 1
    %p68 = scmp.eq.s32.totalorder %s9, 2
    %p69 = scmp.ne.s32.totalorder %s64, %s66
    %p70 = scmp.eq.s32.totalorder %s9, 0
    %p71 = por %p69, %p70
    %p72 = scmp.ne.s32.totalorder %s64, %s66
    %p73 = scmp.eq.s32.totalorder %s14, 2
    %p74 = por %p72, %p73
    %p75 = scmp.ne.s32.totalorder %s66, %s67
    %p76 = scmp.eq.s32.totalorder %s14, 0
    %p77 = por %p75, %p76
    %p78 = scmp.ne.s32.totalorder %s66, %s67
    %p79 = scmp.eq.s32.totalorder %s15, 2
    %p80 = por %p78, %p79
    %p82 = scmp.ne.s32.totalorder %s67, %s81
    %p83 = scmp.eq.s32.totalorder %s15, 0
    %p84 = por %p82, %p83
    %s85 = ssub.s32 %s9, %s16
    %p86 = scmp.eq.s32.totalorder %s85, 0
    %s88 = sadd.s32 %s87, 1
    %s89 = scalar_select %p86, %s87, %s88
    %p92 = pneg %p86
    %p93 = scmp.eq.s32.totalorder %s9, 2
    %p94 = por %p92, %p93
    %p95 = scmp.ne.s32.totalorder %s87, %s90
    %p96 = scmp.eq.s32.totalorder %s9, 0
    %p97 = por %p95, %p96
    %p98 = scmp.ne.s32.totalorder %s87, %s90
    %p99 = scmp.eq.s32.totalorder %s14, 2
    %p100 = por %p98, %p99
    %p101 = scmp.ne.s32.totalorder %s90, %s91
    %p102 = scmp.eq.s32.totalorder %s14, 0
    %p103 = por %p101, %p102
    %p104 = scmp.ne.s32.totalorder %s90, %s91
    %p105 = scmp.eq.s32.totalorder %s15, 2
    %p106 = por %p104, %p105
    %p108 = scmp.ne.s32.totalorder %s91, %s107
    %p109 = scmp.eq.s32.totalorder %s15, 0
    %p110 = por %p108, %p109
    %p111 = scmp.le.s32.totalorder 1, %s9
    %p112 = scmp.lt.s32.totalorder %s9, 4
    %p113 = pnand %p111, %p112
    %p114 = pneg %p113
    // Predicated region
    $region9: #{beta_vae_forward.23} parent=5 // pred_check
      _
    $region10: #{beta_vae_forward.23} parent=5 // pred_check_branch
      %116 = sbr.rel (%p113) target = $region12
    $region11: #{beta_vae_forward.23} parent=5 // pred_region
      %s117 = ssub.s32 %s9, 1
      // Predicated region
      $region13: #{beta_vae_forward.23} parent=11 // pred_check
        %p118 = pneg %p56
      $region14: #{beta_vae_forward.23} parent=11 // pred_check_branch
        %120 = sbr.rel (%p118) target = $region16
      $region15: #{beta_vae_forward.23} parent=11 // pred_region
        _
      $region16: #{beta_vae_forward.23} parent=11 // pred_fallthru
        _
      // Predicated region
      $region17: #{beta_vae_forward.23} parent=11 // pred_check
        %p121 = pneg %p77
      $region18: #{beta_vae_forward.23} parent=11 // pred_check_branch
        %123 = sbr.rel (%p121) target = $region20
      $region19: #{beta_vae_forward.23} parent=11 // pred_region
        _
      $region20: #{beta_vae_forward.23} parent=11 // pred_fallthru
        _
    $region12: #{beta_vae_forward.23} parent=5 // pred_fallthru
      _
    %p124 = scmp.lt.s32.totalorder %s9, 3
    // Predicated region
    $region21: #{beta_vae_forward.23} parent=5 // pred_check
      %p125 = pneg %p124
    $region22: #{beta_vae_forward.23} parent=5 // pred_check_branch
      %127 = sbr.rel (%p125) target = $region24
    $region23: #{beta_vae_forward.23} parent=5 // pred_region
      // Predicated region
      $region25: #{beta_vae_forward.23} parent=23 // pred_check
        %p128 = pneg %p29
      $region26: #{beta_vae_forward.23} parent=23 // pred_check_branch
        %130 = sbr.rel (%p128) target = $region28
      $region27: #{beta_vae_forward.23} parent=23 // pred_region
        %s131 = smul.u32 92, %s9
        %p132 = scmp.lt.s32.totalorder %s131, 275
        %s133 = scalar_select %p132, %s131, 275
        %s134 = smul.addr %s133, 4
        %s135 = scalar_lea.vmem %s0, %s134
        %s136 = smul.u32 92, %s9
      $region28: #{beta_vae_forward.23} parent=23 // pred_fallthru
        _
    $region24: #{beta_vae_forward.23} parent=5 // pred_fallthru
      _
    %p137 = scmp.le.s32.totalorder 1, %s9
    %p138 = scmp.lt.s32.totalorder %s9, 4
    %p139 = pnand %p137, %p138
    %p140 = pneg %p139
    // Predicated region
    $region29: #{beta_vae_forward.23} parent=5 // pred_check
      _
    $region30: #{beta_vae_forward.23} parent=5 // pred_check_branch
      %142 = sbr.rel (%p139) target = $region32
    $region31: #{beta_vae_forward.23} parent=5 // pred_region
      %s143 = ssub.s32 %s9, 1
      %s144 = smul.u32 92, %s14
      %p145 = scmp.lt.s32.totalorder %s144, 275
      %s146 = scalar_select %p145, %s144, 275
      %s147 = smul.addr %s146, 4
      %s148 = scalar_lea.vmem %s0, %s147
      %p149 = pneg %p35
      %p150 = pneg %p32
      %p151 = pneg %p56
      %p152 = pneg %p53
      %p153 = pneg %p77
      %p154 = pneg %p74
      %p155 = pneg %p103
      %p156 = pneg %p100
      %s157 = smul.u32 92, %s14
      %p158 = scmp.lt.s32.totalorder %s157, 275
      %s159 = scalar_select %p158, %s157, 275
      %s160 = smul.addr %s159, 8
      %s161 = scalar_lea.vmem %s3, %s160
      %s162 = smul.u32 92, %s14
      %p163 = scmp.lt.s32.totalorder %s162, 275
      %s164 = scalar_select %p163, %s162, 275
      %s165 = smul.addr %s164, 4
      %s166 = scalar_lea.vmem %s0, %s165
      %s167 = smul.u32 92, %s14
      %s168 = smul.u32 92, %s14
      %p169 = scmp.lt.s32.totalorder %s168, 275
      %s170 = scalar_select %p169, %s168, 275
      %s171 = smul.addr %s170, 8
      %s172 = scalar_lea.vmem %s3, %s171
      %s173 = smul.u32 92, %s14
      %v175 = vld [vmem:[%s166] sm:$0xf]
      %v176 = vld [vmem:[%s166 + $0x4] sm:$0xf]
      %v177 = vld [vmem:[%s166 + $0x8] sm:$0xf]
      %v178 = vld [vmem:[%s166 + $0xc] sm:$0xf]
      %v179 = vld [vmem:[%s166 + $0x10] sm:$0xf]
      %v180 = vld [vmem:[%s166 + $0x14] sm:$0xf]
      %v181 = vld [vmem:[%s166 + $0x18] sm:$0xf]
      %v182 = vld [vmem:[%s166 + $0x1c] sm:$0xf]
      %v183 = vld [vmem:[%s166 + $0x20] sm:$0xf]
      %v184 = vld [vmem:[%s166 + $0x24] sm:$0xf]
      %v185 = vld [vmem:[%s166 + $0x28] sm:$0xf]
      %v186 = vld [vmem:[%s166 + $0x2c] sm:$0xf]
      %v187 = vld [vmem:[%s166 + $0x30] sm:$0xf]
      %v188 = vld [vmem:[%s166 + $0x34] sm:$0xf]
      %v189 = vld [vmem:[%s166 + $0x38] sm:$0xf]
      %v190 = vld [vmem:[%s166 + $0x3c] sm:$0xf]
      %v191 = vld [vmem:[%s166 + $0x40] sm:$0xf]
      %v192 = vld [vmem:[%s166 + $0x44] sm:$0xf]
      %v193 = vld [vmem:[%s166 + $0x48] sm:$0xf]
      %v194 = vld [vmem:[%s166 + $0x4c] sm:$0xf]
      %v195 = vld [vmem:[%s166 + $0x50] sm:$0xf]
      %v196 = vld [vmem:[%s166 + $0x54] sm:$0xf]
      %v197 = vld [vmem:[%s166 + $0x58] sm:$0xf]
      %v198 = vld [vmem:[%s166 + $0x5c] sm:$0xf]
      %v199 = vld [vmem:[%s166 + $0x60] sm:$0xf]
      %v200 = vld [vmem:[%s166 + $0x64] sm:$0xf]
      %v201 = vld [vmem:[%s166 + $0x68] sm:$0xf]
      %v202 = vld [vmem:[%s166 + $0x6c] sm:$0xf]
      %v203 = vld [vmem:[%s166 + $0x70] sm:$0xf]
      %v204 = vld [vmem:[%s166 + $0x74] sm:$0xf]
      %v205 = vld [vmem:[%s166 + $0x78] sm:$0xf]
      %v206 = vld [vmem:[%s166 + $0x7c] sm:$0xf]
      %v207 = vld [vmem:[%s166 + $0x80] sm:$0xf]
      %v208 = vld [vmem:[%s166 + $0x84] sm:$0xf]
      %v209 = vld [vmem:[%s166 + $0x88] sm:$0xf]
      %v210 = vld [vmem:[%s166 + $0x8c] sm:$0xf]
      %v211 = vld [vmem:[%s166 + $0x90] sm:$0xf]
      %v212 = vld [vmem:[%s166 + $0x94] sm:$0xf]
      %v213 = vld [vmem:[%s166 + $0x98] sm:$0xf]
      %v214 = vld [vmem:[%s166 + $0x9c] sm:$0xf]
      %v215 = vld [vmem:[%s166 + $0xa0] sm:$0xf]
      %v216 = vld [vmem:[%s166 + $0xa4] sm:$0xf]
      %v217 = vld [vmem:[%s166 + $0xa8] sm:$0xf]
      %v218 = vld [vmem:[%s166 + $0xac] sm:$0xf]
      %v219 = vld [vmem:[%s166 + $0xb0] sm:$0xf]
      %v220 = vld [vmem:[%s166 + $0xb4] sm:$0xf]
      %v221 = vld [vmem:[%s166 + $0xb8] sm:$0xf]
      %v222 = vld [vmem:[%s166 + $0xbc] sm:$0xf]
      %v223 = vld [vmem:[%s166 + $0xc0] sm:$0xf]
      %v224 = vld [vmem:[%s166 + $0xc4] sm:$0xf]
      %v225 = vld [vmem:[%s166 + $0xc8] sm:$0xf]
      %v226 = vld [vmem:[%s166 + $0xcc] sm:$0xf]
      %v227 = vld [vmem:[%s166 + $0xd0] sm:$0xf]
      %v228 = vld [vmem:[%s166 + $0xd4] sm:$0xf]
      %v229 = vld [vmem:[%s166 + $0xd8] sm:$0xf]
      %v230 = vld [vmem:[%s166 + $0xdc] sm:$0xf]
      %v231 = vld [vmem:[%s166 + $0xe0] sm:$0xf]
      %v232 = vld [vmem:[%s166 + $0xe4] sm:$0xf]
      %v233 = vld [vmem:[%s166 + $0xe8] sm:$0xf]
      %v234 = vld [vmem:[%s166 + $0xec] sm:$0xf]
      %v235 = vld [vmem:[%s166 + $0xf0] sm:$0xf]
      %v236 = vld [vmem:[%s166 + $0xf4] sm:$0xf]
      %v237 = vld [vmem:[%s166 + $0xf8] sm:$0xf]
      %v238 = vld [vmem:[%s166 + $0xfc] sm:$0xf]
      %v239 = vld [vmem:[%s166 + $0x100] sm:$0xf]
      %v240 = vld [vmem:[%s166 + $0x104] sm:$0xf]
      %v241 = vld [vmem:[%s166 + $0x108] sm:$0xf]
      %v242 = vld [vmem:[%s166 + $0x10c] sm:$0xf]
      %v243 = vld [vmem:[%s166 + $0x110] sm:$0xf]
      %v244 = vld [vmem:[%s166 + $0x114] sm:$0xf]
      %v245 = vld [vmem:[%s166 + $0x118] sm:$0xf]
      %v246 = vld [vmem:[%s166 + $0x11c] sm:$0xf]
      %v247 = vld [vmem:[%s166 + $0x120] sm:$0xf]
      %v248 = vld [vmem:[%s166 + $0x124] sm:$0xf]
      %v249 = vld [vmem:[%s166 + $0x128] sm:$0xf]
      %v250 = vld [vmem:[%s166 + $0x12c] sm:$0xf]
      %v251 = vld [vmem:[%s166 + $0x130] sm:$0xf]
      %v252 = vld [vmem:[%s166 + $0x134] sm:$0xf]
      %v253 = vld [vmem:[%s166 + $0x138] sm:$0xf]
      %v254 = vld [vmem:[%s166 + $0x13c] sm:$0xf]
      %v255 = vld [vmem:[%s166 + $0x140] sm:$0xf]
      %v256 = vld [vmem:[%s166 + $0x144] sm:$0xf]
      %v257 = vld [vmem:[%s166 + $0x148] sm:$0xf]
      %v258 = vld [vmem:[%s166 + $0x14c] sm:$0xf]
      %v259 = vld [vmem:[%s166 + $0x150] sm:$0xf]
      %v260 = vld [vmem:[%s166 + $0x154] sm:$0xf]
      %v261 = vld [vmem:[%s166 + $0x158] sm:$0xf]
      %v262 = vld [vmem:[%s166 + $0x15c] sm:$0xf]
      %v263 = vld [vmem:[%s166 + $0x160] sm:$0xf]
      %v264 = vld [vmem:[%s166 + $0x164] sm:$0xf]
      %v265 = vld [vmem:[%s166 + $0x168] sm:$0xf]
      %v266 = vld [vmem:[%s166 + $0x16c] sm:$0xf]
      %v267 = vld [vmem:[%s1] sm:$0xf]
      %v268 = vld [vmem:[%s1 + $0x4] sm:$0xf]
      %v269 = vld [vmem:[%s1 + $0x8] sm:$0xf]
      %v270 = vld [vmem:[%s1 + $0xc] sm:$0xf]
      %v271 = vld [vmem:[%s1 + $0x10] sm:$0xf]
      %v272 = vld [vmem:[%s1 + $0x14] sm:$0xf]
      %v273 = vld [vmem:[%s1 + $0x18] sm:$0xf]
      %v274 = vld [vmem:[%s1 + $0x1c] sm:$0xf]
      %v275 = vld [vmem:[%s1 + $0x20] sm:$0xf]
      %v276 = vld [vmem:[%s1 + $0x24] sm:$0xf]
      %v277 = vld [vmem:[%s1 + $0x28] sm:$0xf]
      %v278 = vld [vmem:[%s1 + $0x2c] sm:$0xf]
      %v279 = vld [vmem:[%s1 + $0x30] sm:$0xf]
      %v280 = vld [vmem:[%s1 + $0x34] sm:$0xf]
      %v281 = vld [vmem:[%s1 + $0x38] sm:$0xf]
      %v282 = vld [vmem:[%s1 + $0x3c] sm:$0xf]
      %v283 = vld [vmem:[%s2] sm:$0x1]
      %v285 = vlaneseq
      %v286 = vshrl.u32 %v285, 7
      %v287 = vsub.s32 0, %v286
      %v288 = vrot.slane %v283, %v287
      %v382 = vunpack.c.l.b16 %v175
      %v383 = vunpack.c.l.b16 %v176
      %v384 = vunpack.c.l.b16 %v177
      %v385 = vunpack.c.l.b16 %v178
      %v386 = vunpack.c.l.b16 %v179
      %v387 = vunpack.c.l.b16 %v180
      %v388 = vunpack.c.l.b16 %v181
      %v389 = vunpack.c.l.b16 %v182
      %v390 = vunpack.c.l.b16 %v183
      %v391 = vunpack.c.l.b16 %v184
      %v392 = vunpack.c.l.b16 %v185
      %v393 = vunpack.c.l.b16 %v186
      %v394 = vunpack.c.l.b16 %v187
      %v395 = vunpack.c.l.b16 %v188
      %v396 = vunpack.c.l.b16 %v189
      %v397 = vunpack.c.l.b16 %v190
      %v398 = vunpack.c.l.b16 %v191
      %v399 = vunpack.c.l.b16 %v192
      %v400 = vunpack.c.l.b16 %v193
      %v401 = vunpack.c.l.b16 %v194
      %v402 = vunpack.c.l.b16 %v195
      %v403 = vunpack.c.l.b16 %v196
      %v404 = vunpack.c.l.b16 %v197
      %v405 = vunpack.c.l.b16 %v198
      %v406 = vunpack.c.l.b16 %v199
      %v407 = vunpack.c.l.b16 %v200
      %v408 = vunpack.c.l.b16 %v201
      %v409 = vunpack.c.l.b16 %v202
      %v410 = vunpack.c.l.b16 %v203
      %v411 = vunpack.c.l.b16 %v204
      %v412 = vunpack.c.l.b16 %v205
      %v413 = vunpack.c.l.b16 %v206
      %v414 = vunpack.c.l.b16 %v207
      %v415 = vunpack.c.l.b16 %v208
      %v416 = vunpack.c.l.b16 %v209
      %v417 = vunpack.c.l.b16 %v210
      %v418 = vunpack.c.l.b16 %v211
      %v419 = vunpack.c.l.b16 %v212
      %v420 = vunpack.c.l.b16 %v213
      %v421 = vunpack.c.l.b16 %v214
      %v422 = vunpack.c.l.b16 %v215
      %v423 = vunpack.c.l.b16 %v216
      %v424 = vunpack.c.l.b16 %v217
      %v425 = vunpack.c.l.b16 %v218
      %v426 = vunpack.c.l.b16 %v219
      %v427 = vunpack.c.l.b16 %v220
      %v428 = vunpack.c.l.b16 %v221
      %v429 = vunpack.c.l.b16 %v222
      %v430 = vunpack.c.l.b16 %v223
      %v431 = vunpack.c.l.b16 %v224
      %v432 = vunpack.c.l.b16 %v225
      %v433 = vunpack.c.l.b16 %v226
      %v434 = vunpack.c.l.b16 %v227
      %v435 = vunpack.c.l.b16 %v228
      %v436 = vunpack.c.l.b16 %v229
      %v437 = vunpack.c.l.b16 %v230
      %v438 = vunpack.c.l.b16 %v231
      %v439 = vunpack.c.l.b16 %v232
      %v440 = vunpack.c.l.b16 %v233
      %v441 = vunpack.c.l.b16 %v234
      %v442 = vunpack.c.l.b16 %v235
      %v443 = vunpack.c.l.b16 %v236
      %v444 = vunpack.c.l.b16 %v237
      %v445 = vunpack.c.l.b16 %v238
      %v446 = vunpack.c.l.b16 %v239
      %v447 = vunpack.c.l.b16 %v240
      %v448 = vunpack.c.l.b16 %v241
      %v449 = vunpack.c.l.b16 %v242
      %v450 = vunpack.c.l.b16 %v243
      %v451 = vunpack.c.l.b16 %v244
      %v452 = vunpack.c.l.b16 %v245
      %v453 = vunpack.c.l.b16 %v246
      %v454 = vunpack.c.l.b16 %v247
      %v455 = vunpack.c.l.b16 %v248
      %v456 = vunpack.c.l.b16 %v249
      %v457 = vunpack.c.l.b16 %v250
      %v458 = vunpack.c.l.b16 %v251
      %v459 = vunpack.c.l.b16 %v252
      %v460 = vunpack.c.l.b16 %v253
      %v461 = vunpack.c.l.b16 %v254
      %v462 = vunpack.c.l.b16 %v255
      %v463 = vunpack.c.l.b16 %v256
      %v464 = vunpack.c.l.b16 %v257
      %v465 = vunpack.c.l.b16 %v258
      %v466 = vunpack.c.l.b16 %v259
      %v467 = vunpack.c.l.b16 %v260
      %v468 = vunpack.c.l.b16 %v261
      %v469 = vunpack.c.l.b16 %v262
      %v470 = vunpack.c.l.b16 %v263
      %v471 = vunpack.c.l.b16 %v264
      %v472 = vunpack.c.l.b16 %v265
      %v473 = vunpack.c.l.b16 %v266
      %v474 = vpack.c.b16 %v383, %v382
      %v475 = vpack.c.b16 %v385, %v384
      %v476 = vpack.c.b16 %v387, %v386
      %v477 = vpack.c.b16 %v389, %v388
      %v478 = vpack.c.b16 %v391, %v390
      %v479 = vpack.c.b16 %v393, %v392
      %v480 = vpack.c.b16 %v395, %v394
      %v481 = vpack.c.b16 %v397, %v396
      %v482 = vpack.c.b16 %v399, %v398
      %v483 = vpack.c.b16 %v401, %v400
      %v484 = vpack.c.b16 %v403, %v402
      %v485 = vpack.c.b16 %v405, %v404
      %v486 = vpack.c.b16 %v407, %v406
      %v487 = vpack.c.b16 %v409, %v408
      %v488 = vpack.c.b16 %v411, %v410
      %v489 = vpack.c.b16 %v413, %v412
      %v490 = vpack.c.b16 %v415, %v414
      %v491 = vpack.c.b16 %v417, %v416
      %v492 = vpack.c.b16 %v419, %v418
      %v493 = vpack.c.b16 %v421, %v420
      %v494 = vpack.c.b16 %v423, %v422
      %v495 = vpack.c.b16 %v425, %v424
      %v496 = vpack.c.b16 %v427, %v426
      %v497 = vpack.c.b16 %v429, %v428
      %v498 = vpack.c.b16 %v431, %v430
      %v499 = vpack.c.b16 %v433, %v432
      %v500 = vpack.c.b16 %v435, %v434
      %v501 = vpack.c.b16 %v437, %v436
      %v502 = vpack.c.b16 %v439, %v438
      %v503 = vpack.c.b16 %v441, %v440
      %v504 = vpack.c.b16 %v443, %v442
      %v505 = vpack.c.b16 %v445, %v444
      %v506 = vpack.c.b16 %v447, %v446
      %v507 = vpack.c.b16 %v449, %v448
      %v508 = vpack.c.b16 %v451, %v450
      %v509 = vpack.c.b16 %v453, %v452
      %v510 = vpack.c.b16 %v455, %v454
      %v511 = vpack.c.b16 %v457, %v456
      %v512 = vpack.c.b16 %v459, %v458
      %v513 = vpack.c.b16 %v461, %v460
      %v514 = vpack.c.b16 %v463, %v462
      %v515 = vpack.c.b16 %v465, %v464
      %v516 = vpack.c.b16 %v467, %v466
      %v517 = vpack.c.b16 %v469, %v468
      %v518 = vpack.c.b16 %v471, %v470
      %v519 = vpack.c.b16 %v473, %v472
      %v582 = vunpack.c.l.b16 %v267
      %v583 = vunpack.c.l.b16 %v268
      %v584 = vunpack.c.l.b16 %v269
      %v585 = vunpack.c.l.b16 %v270
      %v586 = vunpack.c.l.b16 %v271
      %v587 = vunpack.c.l.b16 %v272
      %v588 = vunpack.c.l.b16 %v273
      %v589 = vunpack.c.l.b16 %v274
      %v590 = vunpack.c.l.b16 %v275
      %v591 = vunpack.c.l.b16 %v276
      %v592 = vunpack.c.l.b16 %v277
      %v593 = vunpack.c.l.b16 %v278
      %v594 = vunpack.c.l.b16 %v279
      %v595 = vunpack.c.l.b16 %v280
      %v596 = vunpack.c.l.b16 %v281
      %v597 = vunpack.c.l.b16 %v282
      %v598 = vpack.c.b16 %v583, %v582
      %v599 = vpack.c.b16 %v585, %v584
      %v600 = vpack.c.b16 %v587, %v586
      %v601 = vpack.c.b16 %v589, %v588
      %v602 = vpack.c.b16 %v591, %v590
      %v603 = vpack.c.b16 %v593, %v592
      %v604 = vpack.c.b16 %v595, %v594
      %v605 = vpack.c.b16 %v597, %v596
      %614 = vmatprep.subr.bf16.mxu0 0
      %615 = vmatpush1.bf16.msra.mxu0 %v605
      %616 = vmatprep.subr.bf16.mxu0 0
      %617 = vmatpush1.bf16.msra.mxu0 %v604
      %618 = vmatprep.subr.bf16.mxu0 0
      %619 = vmatpush1.bf16.msra.mxu0 %v603
      %620 = vmatprep.subr.bf16.mxu0 0
      %621 = vmatpush1.bf16.msra.mxu0 %v602
      %622 = vmatprep.subr.bf16.mxu0 0
      %623 = vmatpush1.bf16.msra.mxu0 %v601
      %624 = vmatprep.subr.bf16.mxu0 0
      %625 = vmatpush1.bf16.msra.mxu0 %v600
      %626 = vmatprep.subr.bf16.mxu0 0
      %627 = vmatpush1.bf16.msra.mxu0 %v599
      %628 = vmatprep.subr.bf16.mxu0 0
      %629 = vmatpush1.bf16.msra.mxu0 %v598
      %630 = vmatprep.subr.bf16.mxu0 0
      %631 = vmatpush2.bf16.msra.mxu0 0
      %632 = vmatprep.subr.bf16.mxu0 0
      %633 = vmatpush2.bf16.msra.mxu0 0
      %634 = vmatprep.subr.bf16.mxu0 0
      %635 = vmatpush2.bf16.msra.mxu0 0
      %636 = vmatprep.subr.bf16.mxu0 0
      %637 = vmatpush2.bf16.msra.mxu0 0
      %638 = vmatprep.subr.bf16.mxu0 0
      %639 = vmatpush2.bf16.msra.mxu0 0
      %640 = vmatprep.subr.bf16.mxu0 0
      %641 = vmatpush2.bf16.msra.mxu0 0
      %642 = vmatprep.subr.bf16.mxu0 0
      %643 = vmatpush2.bf16.msra.mxu0 0
      %644 = vmatprep.subr.bf16.mxu0 0
      %645 = vmatpush2.bf16.msra.mxu0 0
      %646 = vmatprep.mubr.bf16.mxu0 0
      %647 = vmatmul.mubr.bf16.gmra.mxu0 %v474
      %v648 = vpop.f32.mrf.mxu0
      %v649 = vadd.f32 %v288, %v648
      %v650 = vpop.f32.mrf.mxu0
      %v651 = vpop.f32.mrf.mxu0
      %v652 = vadd.f32 %v288, %v651
      %v653 = vpop.f32.mrf.mxu0
      %654 = vmatprep.mubr.bf16.mxu0 0
      %655 = vmatmul.mubr.bf16.gmra.mxu0 %v475
      %v656 = vpop.f32.mrf.mxu0
      %v657 = vadd.f32 %v288, %v656
      %v658 = vpop.f32.mrf.mxu0
      %v659 = vpop.f32.mrf.mxu0
      %v660 = vadd.f32 %v288, %v659
      %v661 = vpop.f32.mrf.mxu0
      %662 = vmatprep.mubr.bf16.mxu0 0
      %663 = vmatmul.mubr.bf16.gmra.mxu0 %v476
      %v664 = vpop.f32.mrf.mxu0
      %v665 = vadd.f32 %v288, %v664
      %v666 = vpop.f32.mrf.mxu0
      %v667 = vpop.f32.mrf.mxu0
      %v668 = vadd.f32 %v288, %v667
      %v669 = vpop.f32.mrf.mxu0
      %670 = vmatprep.mubr.bf16.mxu0 0
      %671 = vmatmul.mubr.bf16.gmra.mxu0 %v477
      %v672 = vpop.f32.mrf.mxu0
      %v673 = vadd.f32 %v288, %v672
      %v674 = vpop.f32.mrf.mxu0
      %v675 = vpop.f32.mrf.mxu0
      %v676 = vadd.f32 %v288, %v675
      %v677 = vpop.f32.mrf.mxu0
      %678 = vmatprep.mubr.bf16.mxu0 0
      %679 = vmatmul.mubr.bf16.gmra.mxu0 %v478
      %v680 = vpop.f32.mrf.mxu0
      %v681 = vadd.f32 %v288, %v680
      %v682 = vpop.f32.mrf.mxu0
      %v683 = vpop.f32.mrf.mxu0
      %v684 = vadd.f32 %v288, %v683
      %v685 = vpop.f32.mrf.mxu0
      %686 = vmatprep.mubr.bf16.mxu0 0
      %687 = vmatmul.mubr.bf16.gmra.mxu0 %v479
      %v688 = vpop.f32.mrf.mxu0
      %v689 = vadd.f32 %v288, %v688
      %v690 = vpop.f32.mrf.mxu0
      %v691 = vpop.f32.mrf.mxu0
      %v692 = vadd.f32 %v288, %v691
      %v693 = vpop.f32.mrf.mxu0
      %694 = vmatprep.mubr.bf16.mxu0 0
      %695 = vmatmul.mubr.bf16.gmra.mxu0 %v480
      %v696 = vpop.f32.mrf.mxu0
      %v697 = vadd.f32 %v288, %v696
      %v698 = vpop.f32.mrf.mxu0
      %v699 = vpop.f32.mrf.mxu0
      %v700 = vadd.f32 %v288, %v699
      %v701 = vpop.f32.mrf.mxu0
      %702 = vmatprep.mubr.bf16.mxu0 0
      %703 = vmatmul.mubr.bf16.gmra.mxu0 %v481
      %v704 = vpop.f32.mrf.mxu0
      %v705 = vadd.f32 %v288, %v704
      %v706 = vpop.f32.mrf.mxu0
      %v707 = vpop.f32.mrf.mxu0
      %v708 = vadd.f32 %v288, %v707
      %v709 = vpop.f32.mrf.mxu0
      %710 = vmatprep.mubr.bf16.mxu0 0
      %711 = vmatmul.mubr.bf16.gmra.mxu0 %v482
      %v712 = vpop.f32.mrf.mxu0
      %v713 = vadd.f32 %v288, %v712
      %v714 = vpop.f32.mrf.mxu0
      %v715 = vpop.f32.mrf.mxu0
      %v716 = vadd.f32 %v288, %v715
      %v717 = vpop.f32.mrf.mxu0
      %718 = vmatprep.mubr.bf16.mxu0 0
      %719 = vmatmul.mubr.bf16.gmra.mxu0 %v483
      %v720 = vpop.f32.mrf.mxu0
      %v721 = vadd.f32 %v288, %v720
      %v722 = vpop.f32.mrf.mxu0
      %v723 = vpop.f32.mrf.mxu0
      %v724 = vadd.f32 %v288, %v723
      %v725 = vpop.f32.mrf.mxu0
      %726 = vmatprep.mubr.bf16.mxu0 0
      %727 = vmatmul.mubr.bf16.gmra.mxu0 %v484
      %v728 = vpop.f32.mrf.mxu0
      %v729 = vadd.f32 %v288, %v728
      %v730 = vpop.f32.mrf.mxu0
      %v731 = vpop.f32.mrf.mxu0
      %v732 = vadd.f32 %v288, %v731
      %v733 = vpop.f32.mrf.mxu0
      %734 = vmatprep.mubr.bf16.mxu0 0
      %735 = vmatmul.mubr.bf16.gmra.mxu0 %v485
      %v736 = vpop.f32.mrf.mxu0
      %v737 = vadd.f32 %v288, %v736
      %v738 = vpop.f32.mrf.mxu0
      %v739 = vpop.f32.mrf.mxu0
      %v740 = vadd.f32 %v288, %v739
      %v741 = vpop.f32.mrf.mxu0
      %742 = vmatprep.mubr.bf16.mxu0 0
      %743 = vmatmul.mubr.bf16.gmra.mxu0 %v486
      %v744 = vpop.f32.mrf.mxu0
      %v745 = vadd.f32 %v288, %v744
      %v746 = vpop.f32.mrf.mxu0
      %v747 = vpop.f32.mrf.mxu0
      %v748 = vadd.f32 %v288, %v747
      %v749 = vpop.f32.mrf.mxu0
      %750 = vmatprep.mubr.bf16.mxu0 0
      %751 = vmatmul.mubr.bf16.gmra.mxu0 %v487
      %v752 = vpop.f32.mrf.mxu0
      %v753 = vadd.f32 %v288, %v752
      %v754 = vpop.f32.mrf.mxu0
      %v755 = vpop.f32.mrf.mxu0
      %v756 = vadd.f32 %v288, %v755
      %v757 = vpop.f32.mrf.mxu0
      %758 = vmatprep.mubr.bf16.mxu0 0
      %759 = vmatmul.mubr.bf16.gmra.mxu0 %v488
      %v760 = vpop.f32.mrf.mxu0
      %v761 = vadd.f32 %v288, %v760
      %v762 = vpop.f32.mrf.mxu0
      %v763 = vpop.f32.mrf.mxu0
      %v764 = vadd.f32 %v288, %v763
      %v765 = vpop.f32.mrf.mxu0
      %766 = vmatprep.mubr.bf16.mxu0 0
      %767 = vmatmul.mubr.bf16.gmra.mxu0 %v489
      %v768 = vpop.f32.mrf.mxu0
      %v769 = vadd.f32 %v288, %v768
      %v770 = vpop.f32.mrf.mxu0
      %v771 = vpop.f32.mrf.mxu0
      %v772 = vadd.f32 %v288, %v771
      %v773 = vpop.f32.mrf.mxu0
      %774 = vmatprep.mubr.bf16.mxu0 0
      %775 = vmatmul.mubr.bf16.gmra.mxu0 %v490
      %v776 = vpop.f32.mrf.mxu0
      %v777 = vadd.f32 %v288, %v776
      %v778 = vpop.f32.mrf.mxu0
      %v779 = vpop.f32.mrf.mxu0
      %v780 = vadd.f32 %v288, %v779
      %v781 = vpop.f32.mrf.mxu0
      %782 = vmatprep.mubr.bf16.mxu0 0
      %783 = vmatmul.mubr.bf16.gmra.mxu0 %v491
      %v784 = vpop.f32.mrf.mxu0
      %v785 = vadd.f32 %v288, %v784
      %v786 = vpop.f32.mrf.mxu0
      %v787 = vpop.f32.mrf.mxu0
      %v788 = vadd.f32 %v288, %v787
      %v789 = vpop.f32.mrf.mxu0
      %790 = vmatprep.mubr.bf16.mxu0 0
      %791 = vmatmul.mubr.bf16.gmra.mxu0 %v492
      %v792 = vpop.f32.mrf.mxu0
      %v793 = vadd.f32 %v288, %v792
      %v794 = vpop.f32.mrf.mxu0
      %v795 = vpop.f32.mrf.mxu0
      %v796 = vadd.f32 %v288, %v795
      %v797 = vpop.f32.mrf.mxu0
      %798 = vmatprep.mubr.bf16.mxu0 0
      %799 = vmatmul.mubr.bf16.gmra.mxu0 %v493
      %v800 = vpop.f32.mrf.mxu0
      %v801 = vadd.f32 %v288, %v800
      %v802 = vpop.f32.mrf.mxu0
      %v803 = vpop.f32.mrf.mxu0
      %v804 = vadd.f32 %v288, %v803
      %v805 = vpop.f32.mrf.mxu0
      %806 = vmatprep.mubr.bf16.mxu0 0
      %807 = vmatmul.mubr.bf16.gmra.mxu0 %v494
      %v808 = vpop.f32.mrf.mxu0
      %v809 = vadd.f32 %v288, %v808
      %v810 = vpop.f32.mrf.mxu0
      %v811 = vpop.f32.mrf.mxu0
      %v812 = vadd.f32 %v288, %v811
      %v813 = vpop.f32.mrf.mxu0
      %814 = vmatprep.mubr.bf16.mxu0 0
      %815 = vmatmul.mubr.bf16.gmra.mxu0 %v495
      %v816 = vpop.f32.mrf.mxu0
      %v817 = vadd.f32 %v288, %v816
      %v818 = vpop.f32.mrf.mxu0
      %v819 = vpop.f32.mrf.mxu0
      %v820 = vadd.f32 %v288, %v819
      %v821 = vpop.f32.mrf.mxu0
      %822 = vmatprep.mubr.bf16.mxu0 0
      %823 = vmatmul.mubr.bf16.gmra.mxu0 %v496
      %v824 = vpop.f32.mrf.mxu0
      %v825 = vadd.f32 %v288, %v824
      %v826 = vpop.f32.mrf.mxu0
      %v827 = vpop.f32.mrf.mxu0
      %v828 = vadd.f32 %v288, %v827
      %v829 = vpop.f32.mrf.mxu0
      %830 = vmatprep.mubr.bf16.mxu0 0
      %831 = vmatmul.mubr.bf16.gmra.mxu0 %v497
      %v832 = vpop.f32.mrf.mxu0
      %v833 = vadd.f32 %v288, %v832
      %v834 = vpop.f32.mrf.mxu0
      %v835 = vpop.f32.mrf.mxu0
      %v836 = vadd.f32 %v288, %v835
      %v837 = vpop.f32.mrf.mxu0
      %838 = vmatprep.mubr.bf16.mxu0 0
      %839 = vmatmul.mubr.bf16.gmra.mxu0 %v498
      %v840 = vpop.f32.mrf.mxu0
      %v841 = vadd.f32 %v288, %v840
      %v842 = vpop.f32.mrf.mxu0
      %v843 = vpop.f32.mrf.mxu0
      %v844 = vadd.f32 %v288, %v843
      %v845 = vpop.f32.mrf.mxu0
      %846 = vmatprep.mubr.bf16.mxu0 0
      %847 = vmatmul.mubr.bf16.gmra.mxu0 %v499
      %v848 = vpop.f32.mrf.mxu0
      %v849 = vadd.f32 %v288, %v848
      %v850 = vpop.f32.mrf.mxu0
      %v851 = vpop.f32.mrf.mxu0
      %v852 = vadd.f32 %v288, %v851
      %v853 = vpop.f32.mrf.mxu0
      %854 = vmatprep.mubr.bf16.mxu0 0
      %855 = vmatmul.mubr.bf16.gmra.mxu0 %v500
      %v856 = vpop.f32.mrf.mxu0
      %v857 = vadd.f32 %v288, %v856
      %v858 = vpop.f32.mrf.mxu0
      %v859 = vpop.f32.mrf.mxu0
      %v860 = vadd.f32 %v288, %v859
      %v861 = vpop.f32.mrf.mxu0
      %862 = vmatprep.mubr.bf16.mxu0 0
      %863 = vmatmul.mubr.bf16.gmra.mxu0 %v501
      %v864 = vpop.f32.mrf.mxu0
      %v865 = vadd.f32 %v288, %v864
      %v866 = vpop.f32.mrf.mxu0
      %v867 = vpop.f32.mrf.mxu0
      %v868 = vadd.f32 %v288, %v867
      %v869 = vpop.f32.mrf.mxu0
      %870 = vmatprep.mubr.bf16.mxu0 0
      %871 = vmatmul.mubr.bf16.gmra.mxu0 %v502
      %v872 = vpop.f32.mrf.mxu0
      %v873 = vadd.f32 %v288, %v872
      %v874 = vpop.f32.mrf.mxu0
      %v875 = vpop.f32.mrf.mxu0
      %v876 = vadd.f32 %v288, %v875
      %v877 = vpop.f32.mrf.mxu0
      %878 = vmatprep.mubr.bf16.mxu0 0
      %879 = vmatmul.mubr.bf16.gmra.mxu0 %v503
      %v880 = vpop.f32.mrf.mxu0
      %v881 = vadd.f32 %v288, %v880
      %v882 = vpop.f32.mrf.mxu0
      %v883 = vpop.f32.mrf.mxu0
      %v884 = vadd.f32 %v288, %v883
      %v885 = vpop.f32.mrf.mxu0
      %886 = vmatprep.mubr.bf16.mxu0 0
      %887 = vmatmul.mubr.bf16.gmra.mxu0 %v504
      %v888 = vpop.f32.mrf.mxu0
      %v889 = vadd.f32 %v288, %v888
      %v890 = vpop.f32.mrf.mxu0
      %v891 = vpop.f32.mrf.mxu0
      %v892 = vadd.f32 %v288, %v891
      %v893 = vpop.f32.mrf.mxu0
      %894 = vmatprep.mubr.bf16.mxu0 0
      %895 = vmatmul.mubr.bf16.gmra.mxu0 %v505
      %v896 = vpop.f32.mrf.mxu0
      %v897 = vadd.f32 %v288, %v896
      %v898 = vpop.f32.mrf.mxu0
      %v899 = vpop.f32.mrf.mxu0
      %v900 = vadd.f32 %v288, %v899
      %v901 = vpop.f32.mrf.mxu0
      %902 = vmatprep.mubr.bf16.mxu0 0
      %903 = vmatmul.mubr.bf16.gmra.mxu0 %v506
      %v904 = vpop.f32.mrf.mxu0
      %v905 = vadd.f32 %v288, %v904
      %v906 = vpop.f32.mrf.mxu0
      %v907 = vpop.f32.mrf.mxu0
      %v908 = vadd.f32 %v288, %v907
      %v909 = vpop.f32.mrf.mxu0
      %910 = vmatprep.mubr.bf16.mxu0 0
      %911 = vmatmul.mubr.bf16.gmra.mxu0 %v507
      %v912 = vpop.f32.mrf.mxu0
      %v913 = vadd.f32 %v288, %v912
      %v914 = vpop.f32.mrf.mxu0
      %v915 = vpop.f32.mrf.mxu0
      %v916 = vadd.f32 %v288, %v915
      %v917 = vpop.f32.mrf.mxu0
      %918 = vmatprep.mubr.bf16.mxu0 0
      %919 = vmatmul.mubr.bf16.gmra.mxu0 %v508
      %v920 = vpop.f32.mrf.mxu0
      %v921 = vadd.f32 %v288, %v920
      %v922 = vpop.f32.mrf.mxu0
      %v923 = vpop.f32.mrf.mxu0
      %v924 = vadd.f32 %v288, %v923
      %v925 = vpop.f32.mrf.mxu0
      %926 = vmatprep.mubr.bf16.mxu0 0
      %927 = vmatmul.mubr.bf16.gmra.mxu0 %v509
      %v928 = vpop.f32.mrf.mxu0
      %v929 = vadd.f32 %v288, %v928
      %v930 = vpop.f32.mrf.mxu0
      %v931 = vpop.f32.mrf.mxu0
      %v932 = vadd.f32 %v288, %v931
      %v933 = vpop.f32.mrf.mxu0
      %934 = vmatprep.mubr.bf16.mxu0 0
      %935 = vmatmul.mubr.bf16.gmra.mxu0 %v510
      %v936 = vpop.f32.mrf.mxu0
      %v937 = vadd.f32 %v288, %v936
      %v938 = vpop.f32.mrf.mxu0
      %v939 = vpop.f32.mrf.mxu0
      %v940 = vadd.f32 %v288, %v939
      %v941 = vpop.f32.mrf.mxu0
      %942 = vmatprep.mubr.bf16.mxu0 0
      %943 = vmatmul.mubr.bf16.gmra.mxu0 %v511
      %v944 = vpop.f32.mrf.mxu0
      %v945 = vadd.f32 %v288, %v944
      %v946 = vpop.f32.mrf.mxu0
      %v947 = vpop.f32.mrf.mxu0
      %v948 = vadd.f32 %v288, %v947
      %v949 = vpop.f32.mrf.mxu0
      %950 = vmatprep.mubr.bf16.mxu0 0
      %951 = vmatmul.mubr.bf16.gmra.mxu0 %v512
      %v952 = vpop.f32.mrf.mxu0
      %v953 = vadd.f32 %v288, %v952
      %v954 = vpop.f32.mrf.mxu0
      %v955 = vpop.f32.mrf.mxu0
      %v956 = vadd.f32 %v288, %v955
      %v957 = vpop.f32.mrf.mxu0
      %958 = vmatprep.mubr.bf16.mxu0 0
      %959 = vmatmul.mubr.bf16.gmra.mxu0 %v513
      %v960 = vpop.f32.mrf.mxu0
      %v961 = vadd.f32 %v288, %v960
      %v962 = vpop.f32.mrf.mxu0
      %v963 = vpop.f32.mrf.mxu0
      %v964 = vadd.f32 %v288, %v963
      %v965 = vpop.f32.mrf.mxu0
      %966 = vmatprep.mubr.bf16.mxu0 0
      %967 = vmatmul.mubr.bf16.gmra.mxu0 %v514
      %v968 = vpop.f32.mrf.mxu0
      %v969 = vadd.f32 %v288, %v968
      %v970 = vpop.f32.mrf.mxu0
      %v971 = vpop.f32.mrf.mxu0
      %v972 = vadd.f32 %v288, %v971
      %v973 = vpop.f32.mrf.mxu0
      %974 = vmatprep.mubr.bf16.mxu0 0
      %975 = vmatmul.mubr.bf16.gmra.mxu0 %v515
      %v976 = vpop.f32.mrf.mxu0
      %v977 = vadd.f32 %v288, %v976
      %v978 = vpop.f32.mrf.mxu0
      %v979 = vpop.f32.mrf.mxu0
      %v980 = vadd.f32 %v288, %v979
      %v981 = vpop.f32.mrf.mxu0
      %982 = vmatprep.mubr.bf16.mxu0 0
      %983 = vmatmul.mubr.bf16.gmra.mxu0 %v516
      %v984 = vpop.f32.mrf.mxu0
      %v985 = vadd.f32 %v288, %v984
      %v986 = vpop.f32.mrf.mxu0
      %v987 = vpop.f32.mrf.mxu0
      %v988 = vadd.f32 %v288, %v987
      %v989 = vpop.f32.mrf.mxu0
      %990 = vmatprep.mubr.bf16.mxu0 0
      %991 = vmatmul.mubr.bf16.gmra.mxu0 %v517
      %v992 = vpop.f32.mrf.mxu0
      %v993 = vadd.f32 %v288, %v992
      %v994 = vpop.f32.mrf.mxu0
      %v995 = vpop.f32.mrf.mxu0
      %v996 = vadd.f32 %v288, %v995
      %v997 = vpop.f32.mrf.mxu0
      %998 = vmatprep.mubr.bf16.mxu0 0
      %999 = vmatmul.mubr.bf16.gmra.mxu0 %v518
      %v1000 = vpop.f32.mrf.mxu0
      %v1001 = vadd.f32 %v288, %v1000
      %v1002 = vpop.f32.mrf.mxu0
      %v1003 = vpop.f32.mrf.mxu0
      %v1004 = vadd.f32 %v288, %v1003
      %v1005 = vpop.f32.mrf.mxu0
      %1006 = vmatprep.mubr.bf16.mxu0 0
      %1007 = vmatmul.mubr.bf16.gmra.mxu0 %v519
      %v1008 = vpop.f32.mrf.mxu0
      %v1009 = vadd.f32 %v288, %v1008
      %v1010 = vpop.f32.mrf.mxu0
      %v1011 = vpop.f32.mrf.mxu0
      %v1012 = vadd.f32 %v288, %v1011
      %v1013 = vpop.f32.mrf.mxu0
      %1014 = vdwg.mxu0
      %v1015 = vxor.u32 %v649, 2147483648
      %v1016 = vxor.u32 %v652, 2147483648
      %v1017 = vxor.u32 %v657, 2147483648
      %v1018 = vxor.u32 %v660, 2147483648
      %v1019 = vxor.u32 %v665, 2147483648
      %v1020 = vxor.u32 %v668, 2147483648
      %v1021 = vxor.u32 %v673, 2147483648
      %v1022 = vxor.u32 %v676, 2147483648
      %v1023 = vxor.u32 %v681, 2147483648
      %v1024 = vxor.u32 %v684, 2147483648
      %v1025 = vxor.u32 %v689, 2147483648
      %v1026 = vxor.u32 %v692, 2147483648
      %v1027 = vxor.u32 %v697, 2147483648
      %v1028 = vxor.u32 %v700, 2147483648
      %v1029 = vxor.u32 %v705, 2147483648
      %v1030 = vxor.u32 %v708, 2147483648
      %v1031 = vxor.u32 %v713, 2147483648
      %v1032 = vxor.u32 %v716, 2147483648
      %v1033 = vxor.u32 %v721, 2147483648
      %v1034 = vxor.u32 %v724, 2147483648
      %v1035 = vxor.u32 %v729, 2147483648
      %v1036 = vxor.u32 %v732, 2147483648
      %v1037 = vxor.u32 %v737, 2147483648
      %v1038 = vxor.u32 %v740, 2147483648
      %v1039 = vxor.u32 %v745, 2147483648
      %v1040 = vxor.u32 %v748, 2147483648
      %v1041 = vxor.u32 %v753, 2147483648
      %v1042 = vxor.u32 %v756, 2147483648
      %v1043 = vxor.u32 %v761, 2147483648
      %v1044 = vxor.u32 %v764, 2147483648
      %v1045 = vxor.u32 %v769, 2147483648
      %v1046 = vxor.u32 %v772, 2147483648
      %v1047 = vxor.u32 %v777, 2147483648
      %v1048 = vxor.u32 %v780, 2147483648
      %v1049 = vxor.u32 %v785, 2147483648
      %v1050 = vxor.u32 %v788, 2147483648
      %v1051 = vxor.u32 %v793, 2147483648
      %v1052 = vxor.u32 %v796, 2147483648
      %v1053 = vxor.u32 %v801, 2147483648
      %v1054 = vxor.u32 %v804, 2147483648
      %v1055 = vxor.u32 %v809, 2147483648
      %v1056 = vxor.u32 %v812, 2147483648
      %v1057 = vxor.u32 %v817, 2147483648
      %v1058 = vxor.u32 %v820, 2147483648
      %v1059 = vxor.u32 %v825, 2147483648
      %v1060 = vxor.u32 %v828, 2147483648
      %v1061 = vxor.u32 %v833, 2147483648
      %v1062 = vxor.u32 %v836, 2147483648
      %v1063 = vxor.u32 %v841, 2147483648
      %v1064 = vxor.u32 %v844, 2147483648
      %v1065 = vxor.u32 %v849, 2147483648
      %v1066 = vxor.u32 %v852, 2147483648
      %v1067 = vxor.u32 %v857, 2147483648
      %v1068 = vxor.u32 %v860, 2147483648
      %v1069 = vxor.u32 %v865, 2147483648
      %v1070 = vxor.u32 %v868, 2147483648
      %v1071 = vxor.u32 %v873, 2147483648
      %v1072 = vxor.u32 %v876, 2147483648
      %v1073 = vxor.u32 %v881, 2147483648
      %v1074 = vxor.u32 %v884, 2147483648
      %v1075 = vxor.u32 %v889, 2147483648
      %v1076 = vxor.u32 %v892, 2147483648
      %v1077 = vxor.u32 %v897, 2147483648
      %v1078 = vxor.u32 %v900, 2147483648
      %v1079 = vxor.u32 %v905, 2147483648
      %v1080 = vxor.u32 %v908, 2147483648
      %v1081 = vxor.u32 %v913, 2147483648
      %v1082 = vxor.u32 %v916, 2147483648
      %v1083 = vxor.u32 %v921, 2147483648
      %v1084 = vxor.u32 %v924, 2147483648
      %v1085 = vxor.u32 %v929, 2147483648
      %v1086 = vxor.u32 %v932, 2147483648
      %v1087 = vxor.u32 %v937, 2147483648
      %v1088 = vxor.u32 %v940, 2147483648
      %v1089 = vxor.u32 %v945, 2147483648
      %v1090 = vxor.u32 %v948, 2147483648
      %v1091 = vxor.u32 %v953, 2147483648
      %v1092 = vxor.u32 %v956, 2147483648
      %v1093 = vxor.u32 %v961, 2147483648
      %v1094 = vxor.u32 %v964, 2147483648
      %v1095 = vxor.u32 %v969, 2147483648
      %v1096 = vxor.u32 %v972, 2147483648
      %v1097 = vxor.u32 %v977, 2147483648
      %v1098 = vxor.u32 %v980, 2147483648
      %v1099 = vxor.u32 %v985, 2147483648
      %v1100 = vxor.u32 %v988, 2147483648
      %v1101 = vxor.u32 %v993, 2147483648
      %v1102 = vxor.u32 %v996, 2147483648
      %v1103 = vxor.u32 %v1001, 2147483648
      %v1104 = vxor.u32 %v1004, 2147483648
      %v1105 = vxor.u32 %v1009, 2147483648
      %v1106 = vxor.u32 %v1012, 2147483648
      %v1107 = vmul.f32 %v1015, 1.442695
      %v1108 = vpow.pop %v1107
      %v1109 = vmul.f32 %v1016, 1.442695
      %v1110 = vpow.pop %v1109
      %v1111 = vmul.f32 %v1017, 1.442695
      %v1112 = vpow.pop %v1111
      %v1113 = vmul.f32 %v1018, 1.442695
      %v1114 = vpow.pop %v1113
      %v1115 = vmul.f32 %v1019, 1.442695
      %v1116 = vpow.pop %v1115
      %v1117 = vmul.f32 %v1020, 1.442695
      %v1118 = vpow.pop %v1117
      %v1119 = vmul.f32 %v1021, 1.442695
      %v1120 = vpow.pop %v1119
      %v1121 = vmul.f32 %v1022, 1.442695
      %v1122 = vpow.pop %v1121
      %v1123 = vmul.f32 %v1023, 1.442695
      %v1124 = vpow.pop %v1123
      %v1125 = vmul.f32 %v1024, 1.442695
      %v1126 = vpow.pop %v1125
      %v1127 = vmul.f32 %v1025, 1.442695
      %v1128 = vpow.pop %v1127
      %v1129 = vmul.f32 %v1026, 1.442695
      %v1130 = vpow.pop %v1129
      %v1131 = vmul.f32 %v1027, 1.442695
      %v1132 = vpow.pop %v1131
      %v1133 = vmul.f32 %v1028, 1.442695
      %v1134 = vpow.pop %v1133
      %v1135 = vmul.f32 %v1029, 1.442695
      %v1136 = vpow.pop %v1135
      %v1137 = vmul.f32 %v1030, 1.442695
      %v1138 = vpow.pop %v1137
      %v1139 = vmul.f32 %v1031, 1.442695
      %v1140 = vpow.pop %v1139
      %v1141 = vmul.f32 %v1032, 1.442695
      %v1142 = vpow.pop %v1141
      %v1143 = vmul.f32 %v1033, 1.442695
      %v1144 = vpow.pop %v1143
      %v1145 = vmul.f32 %v1034, 1.442695
      %v1146 = vpow.pop %v1145
      %v1147 = vmul.f32 %v1035, 1.442695
      %v1148 = vpow.pop %v1147
      %v1149 = vmul.f32 %v1036, 1.442695
      %v1150 = vpow.pop %v1149
      %v1151 = vmul.f32 %v1037, 1.442695
      %v1152 = vpow.pop %v1151
      %v1153 = vmul.f32 %v1038, 1.442695
      %v1154 = vpow.pop %v1153
      %v1155 = vmul.f32 %v1039, 1.442695
      %v1156 = vpow.pop %v1155
      %v1157 = vmul.f32 %v1040, 1.442695
      %v1158 = vpow.pop %v1157
      %v1159 = vmul.f32 %v1041, 1.442695
      %v1160 = vpow.pop %v1159
      %v1161 = vmul.f32 %v1042, 1.442695
      %v1162 = vpow.pop %v1161
      %v1163 = vmul.f32 %v1043, 1.442695
      %v1164 = vpow.pop %v1163
      %v1165 = vmul.f32 %v1044, 1.442695
      %v1166 = vpow.pop %v1165
      %v1167 = vmul.f32 %v1045, 1.442695
      %v1168 = vpow.pop %v1167
      %v1169 = vmul.f32 %v1046, 1.442695
      %v1170 = vpow.pop %v1169
      %v1171 = vmul.f32 %v1047, 1.442695
      %v1172 = vpow.pop %v1171
      %v1173 = vmul.f32 %v1048, 1.442695
      %v1174 = vpow.pop %v1173
      %v1175 = vmul.f32 %v1049, 1.442695
      %v1176 = vpow.pop %v1175
      %v1177 = vmul.f32 %v1050, 1.442695
      %v1178 = vpow.pop %v1177
      %v1179 = vmul.f32 %v1051, 1.442695
      %v1180 = vpow.pop %v1179
      %v1181 = vmul.f32 %v1052, 1.442695
      %v1182 = vpow.pop %v1181
      %v1183 = vmul.f32 %v1053, 1.442695
      %v1184 = vpow.pop %v1183
      %v1185 = vmul.f32 %v1054, 1.442695
      %v1186 = vpow.pop %v1185
      %v1187 = vmul.f32 %v1055, 1.442695
      %v1188 = vpow.pop %v1187
      %v1189 = vmul.f32 %v1056, 1.442695
      %v1190 = vpow.pop %v1189
      %v1191 = vmul.f32 %v1057, 1.442695
      %v1192 = vpow.pop %v1191
      %v1193 = vmul.f32 %v1058, 1.442695
      %v1194 = vpow.pop %v1193
      %v1195 = vmul.f32 %v1059, 1.442695
      %v1196 = vpow.pop %v1195
      %v1197 = vmul.f32 %v1060, 1.442695
      %v1198 = vpow.pop %v1197
      %v1199 = vmul.f32 %v1061, 1.442695
      %v1200 = vpow.pop %v1199
      %v1201 = vmul.f32 %v1062, 1.442695
      %v1202 = vpow.pop %v1201
      %v1203 = vmul.f32 %v1063, 1.442695
      %v1204 = vpow.pop %v1203
      %v1205 = vmul.f32 %v1064, 1.442695
      %v1206 = vpow.pop %v1205
      %v1207 = vmul.f32 %v1065, 1.442695
      %v1208 = vpow.pop %v1207
      %v1209 = vmul.f32 %v1066, 1.442695
      %v1210 = vpow.pop %v1209
      %v1211 = vmul.f32 %v1067, 1.442695
      %v1212 = vpow.pop %v1211
      %v1213 = vmul.f32 %v1068, 1.442695
      %v1214 = vpow.pop %v1213
      %v1215 = vmul.f32 %v1069, 1.442695
      %v1216 = vpow.pop %v1215
      %v1217 = vmul.f32 %v1070, 1.442695
      %v1218 = vpow.pop %v1217
      %v1219 = vmul.f32 %v1071, 1.442695
      %v1220 = vpow.pop %v1219
      %v1221 = vmul.f32 %v1072, 1.442695
      %v1222 = vpow.pop %v1221
      %v1223 = vmul.f32 %v1073, 1.442695
      %v1224 = vpow.pop %v1223
      %v1225 = vmul.f32 %v1074, 1.442695
      %v1226 = vpow.pop %v1225
      %v1227 = vmul.f32 %v1075, 1.442695
      %v1228 = vpow.pop %v1227
      %v1229 = vmul.f32 %v1076, 1.442695
      %v1230 = vpow.pop %v1229
      %v1231 = vmul.f32 %v1077, 1.442695
      %v1232 = vpow.pop %v1231
      %v1233 = vmul.f32 %v1078, 1.442695
      %v1234 = vpow.pop %v1233
      %v1235 = vmul.f32 %v1079, 1.442695
      %v1236 = vpow.pop %v1235
      %v1237 = vmul.f32 %v1080, 1.442695
      %v1238 = vpow.pop %v1237
      %v1239 = vmul.f32 %v1081, 1.442695
      %v1240 = vpow.pop %v1239
      %v1241 = vmul.f32 %v1082, 1.442695
      %v1242 = vpow.pop %v1241
      %v1243 = vmul.f32 %v1083, 1.442695
      %v1244 = vpow.pop %v1243
      %v1245 = vmul.f32 %v1084, 1.442695
      %v1246 = vpow.pop %v1245
      %v1247 = vmul.f32 %v1085, 1.442695
      %v1248 = vpow.pop %v1247
      %v1249 = vmul.f32 %v1086, 1.442695
      %v1250 = vpow.pop %v1249
      %v1251 = vmul.f32 %v1087, 1.442695
      %v1252 = vpow.pop %v1251
      %v1253 = vmul.f32 %v1088, 1.442695
      %v1254 = vpow.pop %v1253
      %v1255 = vmul.f32 %v1089, 1.442695
      %v1256 = vpow.pop %v1255
      %v1257 = vmul.f32 %v1090, 1.442695
      %v1258 = vpow.pop %v1257
      %v1259 = vmul.f32 %v1091, 1.442695
      %v1260 = vpow.pop %v1259
      %v1261 = vmul.f32 %v1092, 1.442695
      %v1262 = vpow.pop %v1261
      %v1263 = vmul.f32 %v1093, 1.442695
      %v1264 = vpow.pop %v1263
      %v1265 = vmul.f32 %v1094, 1.442695
      %v1266 = vpow.pop %v1265
      %v1267 = vmul.f32 %v1095, 1.442695
      %v1268 = vpow.pop %v1267
      %v1269 = vmul.f32 %v1096, 1.442695
      %v1270 = vpow.pop %v1269
      %v1271 = vmul.f32 %v1097, 1.442695
      %v1272 = vpow.pop %v1271
      %v1273 = vmul.f32 %v1098, 1.442695
      %v1274 = vpow.pop %v1273
      %v1275 = vmul.f32 %v1099, 1.442695
      %v1276 = vpow.pop %v1275
      %v1277 = vmul.f32 %v1100, 1.442695
      %v1278 = vpow.pop %v1277
      %v1279 = vmul.f32 %v1101, 1.442695
      %v1280 = vpow.pop %v1279
      %v1281 = vmul.f32 %v1102, 1.442695
      %v1282 = vpow.pop %v1281
      %v1283 = vmul.f32 %v1103, 1.442695
      %v1284 = vpow.pop %v1283
      %v1285 = vmul.f32 %v1104, 1.442695
      %v1286 = vpow.pop %v1285
      %v1287 = vmul.f32 %v1105, 1.442695
      %v1288 = vpow.pop %v1287
      %v1289 = vmul.f32 %v1106, 1.442695
      %v1290 = vpow.pop %v1289
      %v1291 = vadd.f32 %v1108, 1.0
      %v1292 = vadd.f32 %v1110, 1.0
      %v1293 = vadd.f32 %v1112, 1.0
      %v1294 = vadd.f32 %v1114, 1.0
      %v1295 = vadd.f32 %v1116, 1.0
      %v1296 = vadd.f32 %v1118, 1.0
      %v1297 = vadd.f32 %v1120, 1.0
      %v1298 = vadd.f32 %v1122, 1.0
      %v1299 = vadd.f32 %v1124, 1.0
      %v1300 = vadd.f32 %v1126, 1.0
      %v1301 = vadd.f32 %v1128, 1.0
      %v1302 = vadd.f32 %v1130, 1.0
      %v1303 = vadd.f32 %v1132, 1.0
      %v1304 = vadd.f32 %v1134, 1.0
      %v1305 = vadd.f32 %v1136, 1.0
      %v1306 = vadd.f32 %v1138, 1.0
      %v1307 = vadd.f32 %v1140, 1.0
      %v1308 = vadd.f32 %v1142, 1.0
      %v1309 = vadd.f32 %v1144, 1.0
      %v1310 = vadd.f32 %v1146, 1.0
      %v1311 = vadd.f32 %v1148, 1.0
      %v1312 = vadd.f32 %v1150, 1.0
      %v1313 = vadd.f32 %v1152, 1.0
      %v1314 = vadd.f32 %v1154, 1.0
      %v1315 = vadd.f32 %v1156, 1.0
      %v1316 = vadd.f32 %v1158, 1.0
      %v1317 = vadd.f32 %v1160, 1.0
      %v1318 = vadd.f32 %v1162, 1.0
      %v1319 = vadd.f32 %v1164, 1.0
      %v1320 = vadd.f32 %v1166, 1.0
      %v1321 = vadd.f32 %v1168, 1.0
      %v1322 = vadd.f32 %v1170, 1.0
      %v1323 = vadd.f32 %v1172, 1.0
      %v1324 = vadd.f32 %v1174, 1.0
      %v1325 = vadd.f32 %v1176, 1.0
      %v1326 = vadd.f32 %v1178, 1.0
      %v1327 = vadd.f32 %v1180, 1.0
      %v1328 = vadd.f32 %v1182, 1.0
      %v1329 = vadd.f32 %v1184, 1.0
      %v1330 = vadd.f32 %v1186, 1.0
      %v1331 = vadd.f32 %v1188, 1.0
      %v1332 = vadd.f32 %v1190, 1.0
      %v1333 = vadd.f32 %v1192, 1.0
      %v1334 = vadd.f32 %v1194, 1.0
      %v1335 = vadd.f32 %v1196, 1.0
      %v1336 = vadd.f32 %v1198, 1.0
      %v1337 = vadd.f32 %v1200, 1.0
      %v1338 = vadd.f32 %v1202, 1.0
      %v1339 = vadd.f32 %v1204, 1.0
      %v1340 = vadd.f32 %v1206, 1.0
      %v1341 = vadd.f32 %v1208, 1.0
      %v1342 = vadd.f32 %v1210, 1.0
      %v1343 = vadd.f32 %v1212, 1.0
      %v1344 = vadd.f32 %v1214, 1.0
      %v1345 = vadd.f32 %v1216, 1.0
      %v1346 = vadd.f32 %v1218, 1.0
      %v1347 = vadd.f32 %v1220, 1.0
      %v1348 = vadd.f32 %v1222, 1.0
      %v1349 = vadd.f32 %v1224, 1.0
      %v1350 = vadd.f32 %v1226, 1.0
      %v1351 = vadd.f32 %v1228, 1.0
      %v1352 = vadd.f32 %v1230, 1.0
      %v1353 = vadd.f32 %v1232, 1.0
      %v1354 = vadd.f32 %v1234, 1.0
      %v1355 = vadd.f32 %v1236, 1.0
      %v1356 = vadd.f32 %v1238, 1.0
      %v1357 = vadd.f32 %v1240, 1.0
      %v1358 = vadd.f32 %v1242, 1.0
      %v1359 = vadd.f32 %v1244, 1.0
      %v1360 = vadd.f32 %v1246, 1.0
      %v1361 = vadd.f32 %v1248, 1.0
      %v1362 = vadd.f32 %v1250, 1.0
      %v1363 = vadd.f32 %v1252, 1.0
      %v1364 = vadd.f32 %v1254, 1.0
      %v1365 = vadd.f32 %v1256, 1.0
      %v1366 = vadd.f32 %v1258, 1.0
      %v1367 = vadd.f32 %v1260, 1.0
      %v1368 = vadd.f32 %v1262, 1.0
      %v1369 = vadd.f32 %v1264, 1.0
      %v1370 = vadd.f32 %v1266, 1.0
      %v1371 = vadd.f32 %v1268, 1.0
      %v1372 = vadd.f32 %v1270, 1.0
      %v1373 = vadd.f32 %v1272, 1.0
      %v1374 = vadd.f32 %v1274, 1.0
      %v1375 = vadd.f32 %v1276, 1.0
      %v1376 = vadd.f32 %v1278, 1.0
      %v1377 = vadd.f32 %v1280, 1.0
      %v1378 = vadd.f32 %v1282, 1.0
      %v1379 = vadd.f32 %v1284, 1.0
      %v1380 = vadd.f32 %v1286, 1.0
      %v1381 = vadd.f32 %v1288, 1.0
      %v1382 = vadd.f32 %v1290, 1.0
      %v1383 = vrcp.pop %v1291
      %v1384 = vmul.f32 1.0, %v1383
      %v1385 = vrcp.pop %v1292
      %v1386 = vmul.f32 1.0, %v1385
      %v1387 = vrcp.pop %v1293
      %v1388 = vmul.f32 1.0, %v1387
      %v1389 = vrcp.pop %v1294
      %v1390 = vmul.f32 1.0, %v1389
      %v1391 = vrcp.pop %v1295
      %v1392 = vmul.f32 1.0, %v1391
      %v1393 = vrcp.pop %v1296
      %v1394 = vmul.f32 1.0, %v1393
      %v1395 = vrcp.pop %v1297
      %v1396 = vmul.f32 1.0, %v1395
      %v1397 = vrcp.pop %v1298
      %v1398 = vmul.f32 1.0, %v1397
      %v1399 = vrcp.pop %v1299
      %v1400 = vmul.f32 1.0, %v1399
      %v1401 = vrcp.pop %v1300
      %v1402 = vmul.f32 1.0, %v1401
      %v1403 = vrcp.pop %v1301
      %v1404 = vmul.f32 1.0, %v1403
      %v1405 = vrcp.pop %v1302
      %v1406 = vmul.f32 1.0, %v1405
      %v1407 = vrcp.pop %v1303
      %v1408 = vmul.f32 1.0, %v1407
      %v1409 = vrcp.pop %v1304
      %v1410 = vmul.f32 1.0, %v1409
      %v1411 = vrcp.pop %v1305
      %v1412 = vmul.f32 1.0, %v1411
      %v1413 = vrcp.pop %v1306
      %v1414 = vmul.f32 1.0, %v1413
      %v1415 = vrcp.pop %v1307
      %v1416 = vmul.f32 1.0, %v1415
      %v1417 = vrcp.pop %v1308
      %v1418 = vmul.f32 1.0, %v1417
      %v1419 = vrcp.pop %v1309
      %v1420 = vmul.f32 1.0, %v1419
      %v1421 = vrcp.pop %v1310
      %v1422 = vmul.f32 1.0, %v1421
      %v1423 = vrcp.pop %v1311
      %v1424 = vmul.f32 1.0, %v1423
      %v1425 = vrcp.pop %v1312
      %v1426 = vmul.f32 1.0, %v1425
      %v1427 = vrcp.pop %v1313
      %v1428 = vmul.f32 1.0, %v1427
      %v1429 = vrcp.pop %v1314
      %v1430 = vmul.f32 1.0, %v1429
      %v1431 = vrcp.pop %v1315
      %v1432 = vmul.f32 1.0, %v1431
      %v1433 = vrcp.pop %v1316
      %v1434 = vmul.f32 1.0, %v1433
      %v1435 = vrcp.pop %v1317
      %v1436 = vmul.f32 1.0, %v1435
      %v1437 = vrcp.pop %v1318
      %v1438 = vmul.f32 1.0, %v1437
      %v1439 = vrcp.pop %v1319
      %v1440 = vmul.f32 1.0, %v1439
      %v1441 = vrcp.pop %v1320
      %v1442 = vmul.f32 1.0, %v1441
      %v1443 = vrcp.pop %v1321
      %v1444 = vmul.f32 1.0, %v1443
      %v1445 = vrcp.pop %v1322
      %v1446 = vmul.f32 1.0, %v1445
      %v1447 = vrcp.pop %v1323
      %v1448 = vmul.f32 1.0, %v1447
      %v1449 = vrcp.pop %v1324
      %v1450 = vmul.f32 1.0, %v1449
      %v1451 = vrcp.pop %v1325
      %v1452 = vmul.f32 1.0, %v1451
      %v1453 = vrcp.pop %v1326
      %v1454 = vmul.f32 1.0, %v1453
      %v1455 = vrcp.pop %v1327
      %v1456 = vmul.f32 1.0, %v1455
      %v1457 = vrcp.pop %v1328
      %v1458 = vmul.f32 1.0, %v1457
      %v1459 = vrcp.pop %v1329
      %v1460 = vmul.f32 1.0, %v1459
      %v1461 = vrcp.pop %v1330
      %v1462 = vmul.f32 1.0, %v1461
      %v1463 = vrcp.pop %v1331
      %v1464 = vmul.f32 1.0, %v1463
      %v1465 = vrcp.pop %v1332
      %v1466 = vmul.f32 1.0, %v1465
      %v1467 = vrcp.pop %v1333
      %v1468 = vmul.f32 1.0, %v1467
      %v1469 = vrcp.pop %v1334
      %v1470 = vmul.f32 1.0, %v1469
      %v1471 = vrcp.pop %v1335
      %v1472 = vmul.f32 1.0, %v1471
      %v1473 = vrcp.pop %v1336
      %v1474 = vmul.f32 1.0, %v1473
      %v1475 = vrcp.pop %v1337
      %v1476 = vmul.f32 1.0, %v1475
      %v1477 = vrcp.pop %v1338
      %v1478 = vmul.f32 1.0, %v1477
      %v1479 = vrcp.pop %v1339
      %v1480 = vmul.f32 1.0, %v1479
      %v1481 = vrcp.pop %v1340
      %v1482 = vmul.f32 1.0, %v1481
      %v1483 = vrcp.pop %v1341
      %v1484 = vmul.f32 1.0, %v1483
      %v1485 = vrcp.pop %v1342
      %v1486 = vmul.f32 1.0, %v1485
      %v1487 = vrcp.pop %v1343
      %v1488 = vmul.f32 1.0, %v1487
      %v1489 = vrcp.pop %v1344
      %v1490 = vmul.f32 1.0, %v1489
      %v1491 = vrcp.pop %v1345
      %v1492 = vmul.f32 1.0, %v1491
      %v1493 = vrcp.pop %v1346
      %v1494 = vmul.f32 1.0, %v1493
      %v1495 = vrcp.pop %v1347
      %v1496 = vmul.f32 1.0, %v1495
      %v1497 = vrcp.pop %v1348
      %v1498 = vmul.f32 1.0, %v1497
      %v1499 = vrcp.pop %v1349
      %v1500 = vmul.f32 1.0, %v1499
      %v1501 = vrcp.pop %v1350
      %v1502 = vmul.f32 1.0, %v1501
      %v1503 = vrcp.pop %v1351
      %v1504 = vmul.f32 1.0, %v1503
      %v1505 = vrcp.pop %v1352
      %v1506 = vmul.f32 1.0, %v1505
      %v1507 = vrcp.pop %v1353
      %v1508 = vmul.f32 1.0, %v1507
      %v1509 = vrcp.pop %v1354
      %v1510 = vmul.f32 1.0, %v1509
      %v1511 = vrcp.pop %v1355
      %v1512 = vmul.f32 1.0, %v1511
      %v1513 = vrcp.pop %v1356
      %v1514 = vmul.f32 1.0, %v1513
      %v1515 = vrcp.pop %v1357
      %v1516 = vmul.f32 1.0, %v1515
      %v1517 = vrcp.pop %v1358
      %v1518 = vmul.f32 1.0, %v1517
      %v1519 = vrcp.pop %v1359
      %v1520 = vmul.f32 1.0, %v1519
      %v1521 = vrcp.pop %v1360
      %v1522 = vmul.f32 1.0, %v1521
      %v1523 = vrcp.pop %v1361
      %v1524 = vmul.f32 1.0, %v1523
      %v1525 = vrcp.pop %v1362
      %v1526 = vmul.f32 1.0, %v1525
      %v1527 = vrcp.pop %v1363
      %v1528 = vmul.f32 1.0, %v1527
      %v1529 = vrcp.pop %v1364
      %v1530 = vmul.f32 1.0, %v1529
      %v1531 = vrcp.pop %v1365
      %v1532 = vmul.f32 1.0, %v1531
      %v1533 = vrcp.pop %v1366
      %v1534 = vmul.f32 1.0, %v1533
      %v1535 = vrcp.pop %v1367
      %v1536 = vmul.f32 1.0, %v1535
      %v1537 = vrcp.pop %v1368
      %v1538 = vmul.f32 1.0, %v1537
      %v1539 = vrcp.pop %v1369
      %v1540 = vmul.f32 1.0, %v1539
      %v1541 = vrcp.pop %v1370
      %v1542 = vmul.f32 1.0, %v1541
      %v1543 = vrcp.pop %v1371
      %v1544 = vmul.f32 1.0, %v1543
      %v1545 = vrcp.pop %v1372
      %v1546 = vmul.f32 1.0, %v1545
      %v1547 = vrcp.pop %v1373
      %v1548 = vmul.f32 1.0, %v1547
      %v1549 = vrcp.pop %v1374
      %v1550 = vmul.f32 1.0, %v1549
      %v1551 = vrcp.pop %v1375
      %v1552 = vmul.f32 1.0, %v1551
      %v1553 = vrcp.pop %v1376
      %v1554 = vmul.f32 1.0, %v1553
      %v1555 = vrcp.pop %v1377
      %v1556 = vmul.f32 1.0, %v1555
      %v1557 = vrcp.pop %v1378
      %v1558 = vmul.f32 1.0, %v1557
      %v1559 = vrcp.pop %v1379
      %v1560 = vmul.f32 1.0, %v1559
      %v1561 = vrcp.pop %v1380
      %v1562 = vmul.f32 1.0, %v1561
      %v1563 = vrcp.pop %v1381
      %v1564 = vmul.f32 1.0, %v1563
      %v1565 = vrcp.pop %v1382
      %v1566 = vmul.f32 1.0, %v1565
      %vm1567 = vcmask 31744
      %1568 = vst.msk [vmem:[%s172] sm:$0xff] %vm1567, %v1384
      %1569 = vst.msk [vmem:[%s172 + $0x8] sm:$0xff] %vm1567, %v1386
      %1570 = vst.msk [vmem:[%s172 + $0x10] sm:$0xff] %vm1567, %v1388
      %1571 = vst.msk [vmem:[%s172 + $0x18] sm:$0xff] %vm1567, %v1390
      %1572 = vst.msk [vmem:[%s172 + $0x20] sm:$0xff] %vm1567, %v1392
      %1573 = vst.msk [vmem:[%s172 + $0x28] sm:$0xff] %vm1567, %v1394
      %1574 = vst.msk [vmem:[%s172 + $0x30] sm:$0xff] %vm1567, %v1396
      %1575 = vst.msk [vmem:[%s172 + $0x38] sm:$0xff] %vm1567, %v1398
      %1576 = vst.msk [vmem:[%s172 + $0x40] sm:$0xff] %vm1567, %v1400
      %1577 = vst.msk [vmem:[%s172 + $0x48] sm:$0xff] %vm1567, %v1402
      %1578 = vst.msk [vmem:[%s172 + $0x50] sm:$0xff] %vm1567, %v1404
      %1579 = vst.msk [vmem:[%s172 + $0x58] sm:$0xff] %vm1567, %v1406
      %1580 = vst.msk [vmem:[%s172 + $0x60] sm:$0xff] %vm1567, %v1408
      %1581 = vst.msk [vmem:[%s172 + $0x68] sm:$0xff] %vm1567, %v1410
      %1582 = vst.msk [vmem:[%s172 + $0x70] sm:$0xff] %vm1567, %v1412
      %1583 = vst.msk [vmem:[%s172 + $0x78] sm:$0xff] %vm1567, %v1414
      %1584 = vst.msk [vmem:[%s172 + $0x80] sm:$0xff] %vm1567, %v1416
      %1585 = vst.msk [vmem:[%s172 + $0x88] sm:$0xff] %vm1567, %v1418
      %1586 = vst.msk [vmem:[%s172 + $0x90] sm:$0xff] %vm1567, %v1420
      %1587 = vst.msk [vmem:[%s172 + $0x98] sm:$0xff] %vm1567, %v1422
      %1588 = vst.msk [vmem:[%s172 + $0xa0] sm:$0xff] %vm1567, %v1424
      %1589 = vst.msk [vmem:[%s172 + $0xa8] sm:$0xff] %vm1567, %v1426
      %1590 = vst.msk [vmem:[%s172 + $0xb0] sm:$0xff] %vm1567, %v1428
      %1591 = vst.msk [vmem:[%s172 + $0xb8] sm:$0xff] %vm1567, %v1430
      %1592 = vst.msk [vmem:[%s172 + $0xc0] sm:$0xff] %vm1567, %v1432
      %1593 = vst.msk [vmem:[%s172 + $0xc8] sm:$0xff] %vm1567, %v1434
      %1594 = vst.msk [vmem:[%s172 + $0xd0] sm:$0xff] %vm1567, %v1436
      %1595 = vst.msk [vmem:[%s172 + $0xd8] sm:$0xff] %vm1567, %v1438
      %1596 = vst.msk [vmem:[%s172 + $0xe0] sm:$0xff] %vm1567, %v1440
      %1597 = vst.msk [vmem:[%s172 + $0xe8] sm:$0xff] %vm1567, %v1442
      %1598 = vst.msk [vmem:[%s172 + $0xf0] sm:$0xff] %vm1567, %v1444
      %1599 = vst.msk [vmem:[%s172 + $0xf8] sm:$0xff] %vm1567, %v1446
      %1600 = vst.msk [vmem:[%s172 + $0x100] sm:$0xff] %vm1567, %v1448
      %1601 = vst.msk [vmem:[%s172 + $0x108] sm:$0xff] %vm1567, %v1450
      %1602 = vst.msk [vmem:[%s172 + $0x110] sm:$0xff] %vm1567, %v1452
      %1603 = vst.msk [vmem:[%s172 + $0x118] sm:$0xff] %vm1567, %v1454
      %1604 = vst.msk [vmem:[%s172 + $0x120] sm:$0xff] %vm1567, %v1456
      %1605 = vst.msk [vmem:[%s172 + $0x128] sm:$0xff] %vm1567, %v1458
      %1606 = vst.msk [vmem:[%s172 + $0x130] sm:$0xff] %vm1567, %v1460
      %1607 = vst.msk [vmem:[%s172 + $0x138] sm:$0xff] %vm1567, %v1462
      %1608 = vst.msk [vmem:[%s172 + $0x140] sm:$0xff] %vm1567, %v1464
      %1609 = vst.msk [vmem:[%s172 + $0x148] sm:$0xff] %vm1567, %v1466
      %1610 = vst.msk [vmem:[%s172 + $0x150] sm:$0xff] %vm1567, %v1468
      %1611 = vst.msk [vmem:[%s172 + $0x158] sm:$0xff] %vm1567, %v1470
      %1612 = vst.msk [vmem:[%s172 + $0x160] sm:$0xff] %vm1567, %v1472
      %1613 = vst.msk [vmem:[%s172 + $0x168] sm:$0xff] %vm1567, %v1474
      %1614 = vst.msk [vmem:[%s172 + $0x170] sm:$0xff] %vm1567, %v1476
      %1615 = vst.msk [vmem:[%s172 + $0x178] sm:$0xff] %vm1567, %v1478
      %1616 = vst.msk [vmem:[%s172 + $0x180] sm:$0xff] %vm1567, %v1480
      %1617 = vst.msk [vmem:[%s172 + $0x188] sm:$0xff] %vm1567, %v1482
      %1618 = vst.msk [vmem:[%s172 + $0x190] sm:$0xff] %vm1567, %v1484
      %1619 = vst.msk [vmem:[%s172 + $0x198] sm:$0xff] %vm1567, %v1486
      %1620 = vst.msk [vmem:[%s172 + $0x1a0] sm:$0xff] %vm1567, %v1488
      %1621 = vst.msk [vmem:[%s172 + $0x1a8] sm:$0xff] %vm1567, %v1490
      %1622 = vst.msk [vmem:[%s172 + $0x1b0] sm:$0xff] %vm1567, %v1492
      %1623 = vst.msk [vmem:[%s172 + $0x1b8] sm:$0xff] %vm1567, %v1494
      %1624 = vst.msk [vmem:[%s172 + $0x1c0] sm:$0xff] %vm1567, %v1496
      %1625 = vst.msk [vmem:[%s172 + $0x1c8] sm:$0xff] %vm1567, %v1498
      %1626 = vst.msk [vmem:[%s172 + $0x1d0] sm:$0xff] %vm1567, %v1500
      %1627 = vst.msk [vmem:[%s172 + $0x1d8] sm:$0xff] %vm1567, %v1502
      %1628 = vst.msk [vmem:[%s172 + $0x1e0] sm:$0xff] %vm1567, %v1504
      %1629 = vst.msk [vmem:[%s172 + $0x1e8] sm:$0xff] %vm1567, %v1506
      %1630 = vst.msk [vmem:[%s172 + $0x1f0] sm:$0xff] %vm1567, %v1508
      %1631 = vst.msk [vmem:[%s172 + $0x1f8] sm:$0xff] %vm1567, %v1510
      %1632 = vst.msk [vmem:[%s172 + $0x200] sm:$0xff] %vm1567, %v1512
      %1633 = vst.msk [vmem:[%s172 + $0x208] sm:$0xff] %vm1567, %v1514
      %1634 = vst.msk [vmem:[%s172 + $0x210] sm:$0xff] %vm1567, %v1516
      %1635 = vst.msk [vmem:[%s172 + $0x218] sm:$0xff] %vm1567, %v1518
      %1636 = vst.msk [vmem:[%s172 + $0x220] sm:$0xff] %vm1567, %v1520
      %1637 = vst.msk [vmem:[%s172 + $0x228] sm:$0xff] %vm1567, %v1522
      %1638 = vst.msk [vmem:[%s172 + $0x230] sm:$0xff] %vm1567, %v1524
      %1639 = vst.msk [vmem:[%s172 + $0x238] sm:$0xff] %vm1567, %v1526
      %1640 = vst.msk [vmem:[%s172 + $0x240] sm:$0xff] %vm1567, %v1528
      %1641 = vst.msk [vmem:[%s172 + $0x248] sm:$0xff] %vm1567, %v1530
      %1642 = vst.msk [vmem:[%s172 + $0x250] sm:$0xff] %vm1567, %v1532
      %1643 = vst.msk [vmem:[%s172 + $0x258] sm:$0xff] %vm1567, %v1534
      %1644 = vst.msk [vmem:[%s172 + $0x260] sm:$0xff] %vm1567, %v1536
      %1645 = vst.msk [vmem:[%s172 + $0x268] sm:$0xff] %vm1567, %v1538
      %1646 = vst.msk [vmem:[%s172 + $0x270] sm:$0xff] %vm1567, %v1540
      %1647 = vst.msk [vmem:[%s172 + $0x278] sm:$0xff] %vm1567, %v1542
      %1648 = vst.msk [vmem:[%s172 + $0x280] sm:$0xff] %vm1567, %v1544
      %1649 = vst.msk [vmem:[%s172 + $0x288] sm:$0xff] %vm1567, %v1546
      %1650 = vst.msk [vmem:[%s172 + $0x290] sm:$0xff] %vm1567, %v1548
      %1651 = vst.msk [vmem:[%s172 + $0x298] sm:$0xff] %vm1567, %v1550
      %1652 = vst.msk [vmem:[%s172 + $0x2a0] sm:$0xff] %vm1567, %v1552
      %1653 = vst.msk [vmem:[%s172 + $0x2a8] sm:$0xff] %vm1567, %v1554
      %1654 = vst.msk [vmem:[%s172 + $0x2b0] sm:$0xff] %vm1567, %v1556
      %1655 = vst.msk [vmem:[%s172 + $0x2b8] sm:$0xff] %vm1567, %v1558
      %1656 = vst.msk [vmem:[%s172 + $0x2c0] sm:$0xff] %vm1567, %v1560
      %1657 = vst.msk [vmem:[%s172 + $0x2c8] sm:$0xff] %vm1567, %v1562
      %1658 = vst.msk [vmem:[%s172 + $0x2d0] sm:$0xff] %vm1567, %v1564
      %1659 = vst.msk [vmem:[%s172 + $0x2d8] sm:$0xff] %vm1567, %v1566
      %s1660 = smul.u32 92, %s14
      %p1661 = scmp.lt.s32.totalorder %s1660, 275
      %s1662 = scalar_select %p1661, %s1660, 275
      %s1663 = smul.addr %s1662, 8
      %s1664 = scalar_lea.vmem %s3, %s1663
      // Predicated region
      $region33: #{beta_vae_forward.23} parent=31 // pred_check
        %p1665 = pneg %p100
      $region34: #{beta_vae_forward.23} parent=31 // pred_check_branch
        %1667 = sbr.rel (%p1665) target = $region36
      $region35: #{beta_vae_forward.23} parent=31 // pred_region
        %s1668 = smul.u32 92, %s14
      $region36: #{beta_vae_forward.23} parent=31 // pred_fallthru
        _
    $region32: #{beta_vae_forward.23} parent=5 // pred_fallthru
      _
    %p1669 = scmp.le.s32.totalorder 2, %s9
    // Predicated region
    $region37: #{beta_vae_forward.23} parent=5 // pred_check
      %p1670 = pneg %p1669
    $region38: #{beta_vae_forward.23} parent=5 // pred_check_branch
      %1672 = sbr.rel (%p1670) target = $region40
    $region39: #{beta_vae_forward.23} parent=5 // pred_region
      %s1673 = ssub.s32 %s9, 2
      // Predicated region
      $region41: #{beta_vae_forward.23} parent=39 // pred_check
        %p1674 = pneg %p106
      $region42: #{beta_vae_forward.23} parent=39 // pred_check_branch
        %1676 = sbr.rel (%p1674) target = $region44
      $region43: #{beta_vae_forward.23} parent=39 // pred_region
        %s1677 = smul.u32 92, %s15
        %p1678 = scmp.lt.s32.totalorder %s1677, 275
        %s1679 = scalar_select %p1678, %s1677, 275
        %s1680 = smul.addr %s1679, 8
        %s1681 = scalar_lea.vmem %s3, %s1680
      $region44: #{beta_vae_forward.23} parent=39 // pred_fallthru
        _
    $region40: #{beta_vae_forward.23} parent=5 // pred_fallthru
      _
  $region6: #{beta_vae_forward.23} parent=0 // loop_footer
    %s13 = sadd.s32 1, %s9
  $region7: #{beta_vae_forward.23} parent=0 // loop_footer_branch
    %8 = sbr.rel target = $region3
  $region8: #{beta_vae_forward.23} parent=0 // loop_exit
    _

</llo_original>
